<compile_context>
chip_gen: v5e
topology: v5e:2x2
jax: 0.10.0
libtpu: 0.0.40
codegen_flags: <defaults>
</compile_context>

<pallas_src>
import numpy as np
import jax
import jax.numpy as jnp
from jax.experimental import pallas as pl
from jax.experimental.pallas import tpu as pltpu

HIDDEN = 300          # reference hidden size
HP = 384              # padded hidden (3 x 128 lanes)
ATT_DIM = 200         # reference attention dim
AP = 256              # padded attention dim (2 x 128 lanes)
N_STATIONS = 12
STATION_IN = 8
TARGET_IN = 5
KS1 = STATION_IN + 1  # per-station slot width (features + bias column)


# ----------------------------------------------------------------------------
# shared math: PyTorch LSTMCell single step with zero (h, c) state, from fused gates
#   gates columns: [0:HP] -> i, [HP:2HP] -> g, [2HP:3HP] -> o   (f gate irrelevant: c0 = 0)
#   h = o * tanh(i * g)
# ----------------------------------------------------------------------------
def _lstm_h_from_gates(gates):
    i = jax.nn.sigmoid(gates[:, 0:HP])
    g = jnp.tanh(gates[:, HP:2 * HP])
    o = jax.nn.sigmoid(gates[:, 2 * HP:3 * HP])
    return o * jnp.tanh(i * g)


# ----------------------------------------------------------------------------
# The fused Pallas kernel: one grid step handles TH timesteps for the whole batch.
# Row ordering of every "station" activation is (station, t_local, b), flattened.
# ----------------------------------------------------------------------------
def gclstm_fused_kernel(xs_ref, xt_ref, wex_ref, perm_ref,
                        ws_ref, wt_ref,
                        a1t_ref, a1h_ref, ba1_ref, a2a_ref,
                        f2h_ref, f2t_ref, bf2_ref, wout_ref, bout_ref,
                        pred_ref):
    S, TB, KS = xs_ref.shape                       # (12, TH*B, 108)

    # --- 12 station LSTM cells for all TH*B rows: ONE matmul (block-scattered inputs) ---
    xs = xs_ref[...].reshape(S * TB, KS)           # (S*TB, 108)
    gates_s = jnp.dot(xs, ws_ref[...], preferred_element_type=jnp.float32)   # (S*TB, 3*HP)
    h_s = _lstm_h_from_gates(gates_s)              # (S*TB, HP), padded lanes exactly 0

    # --- target LSTM cell for all TH*B rows ---
    gates_t = jnp.dot(xt_ref[...], wt_ref[...], preferred_element_type=jnp.float32)
    h_t = _lstm_h_from_gates(gates_t)              # (TB, HP)

    # --- attention: relu([h_t, h_s] @ A1 + b1) then relu(. @ A2[:200] + wij@A2[200:] + b2) ---
    ht_a1 = jnp.dot(h_t, a1t_ref[...], preferred_element_type=jnp.float32) + ba1_ref[...]
    hs_a1 = jnp.dot(h_s, a1h_ref[...], preferred_element_type=jnp.float32)  # (S*TB, AP)
    att = jax.nn.relu(hs_a1.reshape(S, TB, AP) + ht_a1[None, :, :])          # (S, TB, AP)

    lg = jnp.dot(att.reshape(S * TB, AP), a2a_ref[...],
                 preferred_element_type=jnp.float32)                        # (S*TB, 1)
    lg = jax.nn.relu(lg + wex_ref[...].reshape(S * TB, 1))

    # --- softmax over the 12 stations (per timestep, per batch element) ---
    lg3 = lg.reshape(S, TB, 1)
    m = jnp.max(lg3, axis=0, keepdims=True)
    e = jnp.exp(lg3 - m)
    sm = e / jnp.sum(e, axis=0, keepdims=True)                              # (S, TB, 1)

    # --- reference quirk: (12,B) softmax row-major re-bucketed to (B,12); realized as a
    #     fixed permutation matmul so the weight lands back in (station, t, b) row order ---
    wneed = jnp.dot(perm_ref[...], sm.reshape(S * TB, 1),
                    preferred_element_type=jnp.float32)                     # (S*TB, 1)

    # --- weighted fusion of the 12 station hiddens ---
    fusion = jnp.sum((h_s * wneed).reshape(S, TB, HP), axis=0)              # (TB, HP)

    # --- fuse2 + Wout ---
    fuse = (jnp.dot(fusion, f2h_ref[...], preferred_element_type=jnp.float32)
            + jnp.dot(h_t, f2t_ref[...], preferred_element_type=jnp.float32)
            + bf2_ref[...])                                                 # (TB, AP)
    pred_ref[...] = (jnp.dot(fuse, wout_ref[...], preferred_element_type=jnp.float32)
                     + bout_ref[...])                                       # (TB, 1)


# ----------------------------------------------------------------------------
# pallas_call wrapper
# ----------------------------------------------------------------------------
def _gclstm_pallas(p, xs_blk, xt_aug, wex_col, perm, G, TH, B):
    S = N_STATIONS
    TB = TH * B
    KS = S * KS1
    c2 = lambda g: (0, 0)

    in_specs = [
        pl.BlockSpec((S, TB, KS), lambda g: (0, g, 0)),       # block-scattered station inputs
        pl.BlockSpec((TB, TARGET_IN + 1), lambda g: (g, 0)),  # augmented target inputs
        pl.BlockSpec((S, TB, 1), lambda g: (0, g, 0)),        # wij@A2[200:202] + biasa2
        pl.BlockSpec((S * TB, S * TB), c2),                   # quirk permutation matrix
        pl.BlockSpec((KS, 3 * HP), c2),                       # fused station gate weights+bias
        pl.BlockSpec((TARGET_IN + 1, 3 * HP), c2),            # fused target gate weights+bias
        pl.BlockSpec((HP, AP), c2),                           # Attention1[:300] (padded)
        pl.BlockSpec((HP, AP), c2),                           # Attention1[300:600] (padded)
        pl.BlockSpec((1, AP), c2),                            # biasa1 (padded)
        pl.BlockSpec((AP, 1), c2),                            # Attention2[:200] (padded)
        pl.BlockSpec((HP, AP), c2),                           # fuse2[:300] (padded)
        pl.BlockSpec((HP, AP), c2),                           # fuse2[300:600] (padded)
        pl.BlockSpec((1, AP), c2),                            # biasf2 (padded)
        pl.BlockSpec((AP, 1), c2),                            # Wout (padded)
        pl.BlockSpec((1, 1), c2),                             # biasout
    ]
    out_specs = pl.BlockSpec((TB, 1), lambda g: (g, 0))
    out_shape = jax.ShapeDtypeStruct((G * TB, 1), jnp.float32)

    return pl.pallas_call(
        gclstm_fused_kernel,
        grid=(G,),
        in_specs=in_specs,
        out_specs=out_specs,
        out_shape=out_shape,
        compiler_params=pltpu.CompilerParams(dimension_semantics=("parallel",)),
    )(xs_blk, xt_aug, wex_col, perm,
      p['W_S'], p['W_T'], p['A1_t'], p['A1_h'], p['biasa1'], p['A2_a'],
      p['f2h'], p['f2t'], p['biasf2'], p['Wout'], p['biasout'])


# ----------------------------------------------------------------------------
# host-side helpers
# ----------------------------------------------------------------------------
def _build_quirk_perm(S, TH, B):
    """Permutation P so that (P @ sm_col)[(j,t,b)] = sm[(b*S+j)//B, t, (b*S+j)%B],
    i.e. torch's softmax(12,B).reshape(B,1,12) row-major re-bucketing, in (s,t,b) row order."""
    N = S * TH * B
    P = np.zeros((N, N), np.float32)
    for j in range(S):
        for b in range(B):
            sp, bp = divmod(b * S + j, B)
            for t in range(TH):
                P[j * TH * B + t * B + b, sp * TH * B + t * B + bp] = 1.0
    return jnp.asarray(P)


# ----------------------------------------------------------------------------
# Parameters (uniform(-0.1, 0.1) as in reset_parameters), rebuilt into the fused /
# zero-padded kernel layout.  weight_hh never affects the output (h0=c0=0) and is
# therefore folded away; bias_ih + bias_hh are summed.
# ----------------------------------------------------------------------------
def init_params(key):
    keys = iter(jax.random.split(key, 40))

    def u(shape):
        return jax.random.uniform(next(keys), shape, jnp.float32, minval=-0.1, maxval=0.1)

    H = HIDDEN
    wih_s = u((N_STATIONS, 4 * H, STATION_IN))
    bih_s = u((N_STATIONS, 4 * H))
    bhh_s = u((N_STATIONS, 4 * H))
    wih_t = u((4 * H, TARGET_IN))
    bih_t = u((4 * H,))
    bhh_t = u((4 * H,))
    A1 = u((600, 200))
    ba1 = u((200,))
    A2 = u((202, 1))
    ba2 = u((1,))
    f2 = u((600, 200))
    bf2 = u((200,))
    Wout = u((200, 1))
    bout = u((1,))
    sigma = u((1,))     # only used by the dead weight_aa branch (omitted)
    sigmas = u((1,))
    # wp, bp, ff, bff, a, b, fuse1, biasf exist in __init__ but are unused in forward.

    def pad2(x, r, c):
        return jnp.zeros((r, c), jnp.float32).at[:x.shape[0], :x.shape[1]].set(x)

    # fused per-station gate weights: rows [k*9 : k*9+8] = [Wi_k | Wg_k | Wo_k] (PyTorch gate
    # order chunks i, f, g, o of weight_ih), row k*9+8 = summed biases.  Columns are padded
    # per gate block to HP so every gate slice is 128-lane aligned.
    W_S = jnp.zeros((N_STATIONS * KS1, 3 * HP), jnp.float32)
    for k in range(N_STATIONS):
        Wi = wih_s[k, 0:H, :].T
        Wg = wih_s[k, 2 * H:3 * H, :].T
        Wo = wih_s[k, 3 * H:4 * H, :].T
        bi = bih_s[k, 0:H] + bhh_s[k, 0:H]
        bg = bih_s[k, 2 * H:3 * H] + bhh_s[k, 2 * H:3 * H]
        bo = bih_s[k, 3 * H:4 * H] + bhh_s[k, 3 * H:4 * H]
        r0 = k * KS1
        W_S = W_S.at[r0:r0 + STATION_IN, 0:H].set(Wi)
        W_S = W_S.at[r0:r0 + STATION_IN, HP:HP + H].set(Wg)
        W_S = W_S.at[r0:r0 + STATION_IN, 2 * HP:2 * HP + H].set(Wo)
        W_S = W_S.at[r0 + STATION_IN, 0:H].set(bi)
        W_S = W_S.at[r0 + STATION_IN, HP:HP + H].set(bg)
        W_S = W_S.at[r0 + STATION_IN, 2 * HP:2 * HP + H].set(bo)

    W_T = jnp.zeros((TARGET_IN + 1, 3 * HP), jnp.float32)
    W_T = W_T.at[0:TARGET_IN, 0:H].set(wih_t[0:H, :].T)
    W_T = W_T.at[0:TARGET_IN, HP:HP + H].set(wih_t[2 * H:3 * H, :].T)
    W_T = W_T.at[0:TARGET_IN, 2 * HP:2 * HP + H].set(wih_t[3 * H:4 * H, :].T)
    W_T = W_T.at[TARGET_IN, 0:H].set(bih_t[0:H] + bhh_t[0:H])
    W_T = W_T.at[TARGET_IN, HP:HP + H].set(bih_t[2 * H:3 * H] + bhh_t[2 * H:3 * H])
    W_T = W_T.at[TARGET_IN, 2 * HP:2 * HP + H].set(bih_t[3 * H:4 * H] + bhh_t[3 * H:4 * H])

    return dict(
        W_S=W_S, W_T=W_T,
        A1_t=pad2(A1[0:H, :], HP, AP),
        A1_h=pad2(A1[H:2 * H, :], HP, AP),
        biasa1=pad2(ba1[None, :], 1, AP),
        A2_a=pad2(A2[0:ATT_DIM, :], AP, 1),
        A2_w=A2[ATT_DIM:ATT_DIM + 2, 0],
        biasa2=ba2,
        f2h=pad2(f2[0:H, :], HP, AP),
        f2t=pad2(f2[H:2 * H, :], HP, AP),
        biasf2=pad2(bf2[None, :], 1, AP),
        Wout=pad2(Wout, AP, 1),
        biasout=bout[None, :],
        sigma=sigma, sigmas=sigmas,
    )


# ----------------------------------------------------------------------------
# Forward pass (mirrors GCLSTM.forward / input_transform / EncoderLSTM)
# ----------------------------------------------------------------------------
def gclstm_forward(params, local_inputs, labels, extras, DisM, AngleM):
    del DisM, AngleM  # only used by the dead weight_aa branch (no effect on outputs)
    dt = jnp.float32
    li = jnp.transpose(local_inputs, (1, 0, 2, 3)).astype(dt)   # (T, B, n_rows, 12)
    lb = jnp.transpose(labels, (1, 0, 2, 3)).astype(dt)         # (T, B, 1, 1)
    ex = jnp.transpose(extras, (1, 0, 2, 3)).astype(dt)         # (T, B, extra_rows, 1)
    T, B = li.shape[0], li.shape[1]
    S = N_STATIONS

    # 2-way time split so a v7x megacore gets both TensorCores; fall back to 1 otherwise.
    G = 2 if (T % 2 == 0 and ((T // 2) * B) % 8 == 0) else 1
    TH = T // G

    # station inputs, block-scattered with a bias-1 column per station slot:
    #   xs_blk[s, t*B+b, q*9+i] = x_{s}(t,b,i) if q == s (i<8), 1.0 if q == s, i == 8, else 0
    xs_s = jnp.transpose(li[:, :, 0:STATION_IN, :], (3, 0, 1, 2))            # (S, T, B, 8)
    xs_a = jnp.concatenate([xs_s, jnp.ones((S, T, B, 1), dt)], axis=-1)      # (S, T, B, 9)
    eye = jnp.eye(S, dtype=dt)
    xs_blk = jnp.einsum('stbi,sq->stbqi', xs_a, eye).reshape(S, T * B, S * KS1)

    # target inputs with bias-1 column
    xt = ex[:, :, 0:TARGET_IN, 0]                                            # (T, B, 5)
    xt_aug = jnp.concatenate([xt, jnp.ones((T, B, 1), dt)], -1).reshape(T * B, TARGET_IN + 1)

    # wij @ Attention2[200:202] + biasa2, laid out in (station, t, b) row order
    a2w = params['A2_w']
    wex = li[:, :, 7, :] * a2w[0] + li[:, :, 6, :] * a2w[1] + params['biasa2'][0]  # (T, B, S)
    wex_col = jnp.transpose(wex, (2, 0, 1)).reshape(S, T * B, 1)

    perm = _build_quirk_perm(S, TH, B)                                       # constant

    preds_flat = _gclstm_pallas(params, xs_blk, xt_aug, wex_col, perm, G, TH, B)
    preds = preds_flat.reshape(T, B, 1)          # == torch predictlist stacked
    labels_out = lb.reshape(T, B, 1)             # == split(view(-1,1), B) stacked
    return preds, labels_out


# ----------------------------------------------------------------------------
# pure-JAX reference (same math, naive per-timestep/per-station loops) for validation
# ----------------------------------------------------------------------------
def _reference_forward(p, local_inputs, extras):
    li = jnp.transpose(local_inputs, (1, 0, 2, 3)).astype(jnp.float32)
    ex = jnp.transpose(extras, (1, 0, 2, 3)).astype(jnp.float32)
    T, B = li.shape[0], li.shape[1]
    preds = []
    for t in range(T):
        hs = []
        for k in range(N_STATIONS):
            x = li[t, :, 0:STATION_IN, k]
            xa = jnp.concatenate([x, jnp.ones((B, 1), jnp.float32)], -1)
            hs.append(_lstm_h_from_gates(xa @ p['W_S'][k * KS1:(k + 1) * KS1, :]))
        xta = jnp.concatenate([ex[t, :, 0:TARGET_IN, 0], jnp.ones((B, 1), jnp.float32)], -1)
        ht = _lstm_h_from_gates(xta @ p['W_T'])
        logits = []
        for k in range(N_STATIONS):
            a = jax.nn.relu(ht @ p['A1_t'] + hs[k] @ p['A1_h'] + p['biasa1'])
            wij = li[t, :, 7, k] * p['A2_w'][0] + li[t, :, 6, k] * p['A2_w'][1]
            lg = jax.nn.relu(a @ p['A2_a'] + wij[:, None] + p['biasa2'][0])
            logits.append(lg[:, 0])
        L = jnp.stack(logits, 0)                                  # (S, B)
        sm = jax.nn.softmax(L, axis=0)
        w_used = sm.reshape(-1).reshape(B, N_STATIONS)            # reference reshape quirk
        H = jnp.stack(hs, 0)                                      # (S, B, HP)
        fusion = jnp.einsum('sbh,bs->bh', H, w_used)
        fuse = fusion @ p['f2h'] + ht @ p['f2t'] + p['biasf2']
        preds.append(fuse @ p['Wout'] + p['biasout'])
    return jnp.stack(preds, 0)                                    # (T, B, 1)


# ----------------------------------------------------------------------------
if __name__ == "__main__":
    key = jax.random.PRNGKey(0)
    B, T, N_ROWS, EXTRA_ROWS = 4, 8, 12, 9   # n_rows-8 == extra_rows-5 (pearson slices)

    kp, kx, kl, ke, kd, ka = jax.random.split(key, 6)
    params = init_params(kp)

    local_inputs = jax.random.normal(kx, (B, T, N_ROWS, N_STATIONS), jnp.float32)
    labels = jax.random.normal(kl, (B, T, 1, 1), jnp.float32)
    extras = jax.random.normal(ke, (B, T, EXTRA_ROWS, 1), jnp.float32)
    DisM = np.asarray(jax.random.uniform(kd, (N_STATIONS,), jnp.float32, 0.5, 2.0))
    AngleM = np.asarray(jax.random.uniform(ka, (N_STATIONS, 1), jnp.float32, 0.0, 3.14))

    fwd = jax.jit(gclstm_forward)
    preds, labels_out = fwd(params, local_inputs, labels, extras, DisM, AngleM)
    preds = jax.block_until_ready(preds)
    labels_out = jax.block_until_ready(labels_out)
    assert preds.shape == (T, B, 1) and labels_out.shape == (T, B, 1)

    ref = _reference_forward(params, local_inputs, extras)
    err = float(jnp.max(jnp.abs(preds - ref)))
    assert err < 2e-2, f"kernel/reference mismatch: max abs err = {err}"
    print("KERNEL_OK")
</pallas_src>

<mosaic_0001>
module attributes {stable_mosaic.version = 11 : i64} {
  func.func @gclstm_fused_kernel(%arg0: i32, %arg1: memref<12x16x108xf32, #tpu.memory_space<vmem>>, %arg2: memref<16x6xf32, #tpu.memory_space<vmem>>, %arg3: memref<12x16x1xf32, #tpu.memory_space<vmem>>, %arg4: memref<192x192xf32, #tpu.memory_space<vmem>>, %arg5: memref<108x1152xf32, #tpu.memory_space<vmem>>, %arg6: memref<6x1152xf32, #tpu.memory_space<vmem>>, %arg7: memref<384x256xf32, #tpu.memory_space<vmem>>, %arg8: memref<384x256xf32, #tpu.memory_space<vmem>>, %arg9: memref<1x256xf32, #tpu.memory_space<vmem>>, %arg10: memref<256x1xf32, #tpu.memory_space<vmem>>, %arg11: memref<384x256xf32, #tpu.memory_space<vmem>>, %arg12: memref<384x256xf32, #tpu.memory_space<vmem>>, %arg13: memref<1x256xf32, #tpu.memory_space<vmem>>, %arg14: memref<256x1xf32, #tpu.memory_space<vmem>>, %arg15: memref<1x1xf32, #tpu.memory_space<vmem>>, %arg16: memref<16x1xf32, #tpu.memory_space<vmem>>) attributes {dimension_semantics = [#tpu.dimension_semantics<parallel>], iteration_bounds = array<i64: 2>, scalar_prefetch = 0 : i64, scratch_operands = 0 : i64, tpu.core_type = #tpu.core_type<tc>, window_params = [{transform_indices = @transform_0, window_bounds = array<i64: 12, 16, 108>}, {transform_indices = @transform_1, window_bounds = array<i64: 16, 6>}, {transform_indices = @transform_2, window_bounds = array<i64: 12, 16, 1>}, {pipeline_mode = #tpu.pipeline_mode<synchronous>, transform_indices = @transform_3, window_bounds = array<i64: 192, 192>}, {pipeline_mode = #tpu.pipeline_mode<synchronous>, transform_indices = @transform_4, window_bounds = array<i64: 108, 1152>}, {pipeline_mode = #tpu.pipeline_mode<synchronous>, transform_indices = @transform_5, window_bounds = array<i64: 6, 1152>}, {pipeline_mode = #tpu.pipeline_mode<synchronous>, transform_indices = @transform_6, window_bounds = array<i64: 384, 256>}, {pipeline_mode = #tpu.pipeline_mode<synchronous>, transform_indices = @transform_7, window_bounds = array<i64: 384, 256>}, {pipeline_mode = #tpu.pipeline_mode<synchronous>, transform_indices = @transform_8, window_bounds = array<i64: 1, 256>}, {pipeline_mode = #tpu.pipeline_mode<synchronous>, transform_indices = @transform_9, window_bounds = array<i64: 256, 1>}, {pipeline_mode = #tpu.pipeline_mode<synchronous>, transform_indices = @transform_10, window_bounds = array<i64: 384, 256>}, {pipeline_mode = #tpu.pipeline_mode<synchronous>, transform_indices = @transform_11, window_bounds = array<i64: 384, 256>}, {pipeline_mode = #tpu.pipeline_mode<synchronous>, transform_indices = @transform_12, window_bounds = array<i64: 1, 256>}, {pipeline_mode = #tpu.pipeline_mode<synchronous>, transform_indices = @transform_13, window_bounds = array<i64: 256, 1>}, {pipeline_mode = #tpu.pipeline_mode<synchronous>, transform_indices = @transform_14, window_bounds = array<i64: 1, 1>}, {transform_indices = @transform_15, window_bounds = array<i64: 16, 1>}]} {
    %c0 = arith.constant 0 : index
    %c0_0 = arith.constant 0 : index
    %c0_1 = arith.constant 0 : index
    %0 = vector.load %arg1[%c0, %c0_0, %c0_1] : memref<12x16x108xf32, #tpu.memory_space<vmem>>, vector<12x16x108xf32>
    %1 = vector.shape_cast %0 : vector<12x16x108xf32> to vector<192x108xf32>
    %c0_2 = arith.constant 0 : index
    %c0_3 = arith.constant 0 : index
    %2 = vector.load %arg5[%c0_2, %c0_3] : memref<108x1152xf32, #tpu.memory_space<vmem>>, vector<108x1152xf32>
    %cst = arith.constant dense<0.000000e+00> : vector<192x1152xf32>
    %3 = tpu.matmul %1, %2, %cst {dimension_numbers = #tpu.dot_dimension_numbers<[1], [0], [0], [1], [0, 0, 1, 1], [], []>} : vector<192x108xf32>, vector<108x1152xf32>, vector<192x1152xf32> -> vector<192x1152xf32>
    %4 = vector.extract_strided_slice %3 {offsets = [0, 0], sizes = [192, 384], strides = [1, 1]} : vector<192x1152xf32> to vector<192x384xf32>
    %5 = arith.negf %4 : vector<192x384xf32>
    %6 = math.exp %5 : vector<192x384xf32>
    %cst_4 = arith.constant 1.000000e+00 : f32
    %7 = vector.broadcast %cst_4 : f32 to vector<192x384xf32>
    %8 = arith.addf %7, %6 : vector<192x384xf32>
    %9 = arith.divf %7, %8 : vector<192x384xf32>
    %10 = vector.extract_strided_slice %3 {offsets = [0, 384], sizes = [192, 384], strides = [1, 1]} : vector<192x1152xf32> to vector<192x384xf32>
    %11 = math.tanh %10 : vector<192x384xf32>
    %12 = vector.extract_strided_slice %3 {offsets = [0, 768], sizes = [192, 384], strides = [1, 1]} : vector<192x1152xf32> to vector<192x384xf32>
    %13 = arith.negf %12 : vector<192x384xf32>
    %14 = math.exp %13 : vector<192x384xf32>
    %cst_5 = arith.constant 1.000000e+00 : f32
    %15 = vector.broadcast %cst_5 : f32 to vector<192x384xf32>
    %16 = arith.addf %15, %14 : vector<192x384xf32>
    %17 = arith.divf %15, %16 : vector<192x384xf32>
    %18 = arith.mulf %9, %11 : vector<192x384xf32>
    %19 = math.tanh %18 : vector<192x384xf32>
    %20 = arith.mulf %17, %19 : vector<192x384xf32>
    %c0_6 = arith.constant 0 : index
    %c0_7 = arith.constant 0 : index
    %21 = vector.load %arg2[%c0_6, %c0_7] : memref<16x6xf32, #tpu.memory_space<vmem>>, vector<16x6xf32>
    %c0_8 = arith.constant 0 : index
    %c0_9 = arith.constant 0 : index
    %22 = vector.load %arg6[%c0_8, %c0_9] : memref<6x1152xf32, #tpu.memory_space<vmem>>, vector<6x1152xf32>
    %cst_10 = arith.constant dense<0.000000e+00> : vector<16x1152xf32>
    %23 = tpu.matmul %21, %22, %cst_10 {dimension_numbers = #tpu.dot_dimension_numbers<[1], [0], [0], [1], [0, 0, 1, 1], [], []>} : vector<16x6xf32>, vector<6x1152xf32>, vector<16x1152xf32> -> vector<16x1152xf32>
    %24 = vector.extract_strided_slice %23 {offsets = [0, 0], sizes = [16, 384], strides = [1, 1]} : vector<16x1152xf32> to vector<16x384xf32>
    %25 = arith.negf %24 : vector<16x384xf32>
    %26 = math.exp %25 : vector<16x384xf32>
    %cst_11 = arith.constant 1.000000e+00 : f32
    %27 = vector.broadcast %cst_11 : f32 to vector<16x384xf32>
    %28 = arith.addf %27, %26 : vector<16x384xf32>
    %29 = arith.divf %27, %28 : vector<16x384xf32>
    %30 = vector.extract_strided_slice %23 {offsets = [0, 384], sizes = [16, 384], strides = [1, 1]} : vector<16x1152xf32> to vector<16x384xf32>
    %31 = math.tanh %30 : vector<16x384xf32>
    %32 = vector.extract_strided_slice %23 {offsets = [0, 768], sizes = [16, 384], strides = [1, 1]} : vector<16x1152xf32> to vector<16x384xf32>
    %33 = arith.negf %32 : vector<16x384xf32>
    %34 = math.exp %33 : vector<16x384xf32>
    %cst_12 = arith.constant 1.000000e+00 : f32
    %35 = vector.broadcast %cst_12 : f32 to vector<16x384xf32>
    %36 = arith.addf %35, %34 : vector<16x384xf32>
    %37 = arith.divf %35, %36 : vector<16x384xf32>
    %38 = arith.mulf %29, %31 : vector<16x384xf32>
    %39 = math.tanh %38 : vector<16x384xf32>
    %40 = arith.mulf %37, %39 : vector<16x384xf32>
    %c0_13 = arith.constant 0 : index
    %c0_14 = arith.constant 0 : index
    %41 = vector.load %arg7[%c0_13, %c0_14] : memref<384x256xf32, #tpu.memory_space<vmem>>, vector<384x256xf32>
    %cst_15 = arith.constant dense<0.000000e+00> : vector<16x256xf32>
    %42 = tpu.matmul %40, %41, %cst_15 {dimension_numbers = #tpu.dot_dimension_numbers<[1], [0], [0], [1], [0, 0, 1, 1], [], []>} : vector<16x384xf32>, vector<384x256xf32>, vector<16x256xf32> -> vector<16x256xf32>
    %c0_16 = arith.constant 0 : index
    %c0_17 = arith.constant 0 : index
    %43 = vector.load %arg9[%c0_16, %c0_17] : memref<1x256xf32, #tpu.memory_space<vmem>>, vector<1x256xf32>
    %44 = vector.broadcast %43 : vector<1x256xf32> to vector<16x256xf32>
    %45 = arith.addf %42, %44 : vector<16x256xf32>
    %c0_18 = arith.constant 0 : index
    %c0_19 = arith.constant 0 : index
    %46 = vector.load %arg8[%c0_18, %c0_19] : memref<384x256xf32, #tpu.memory_space<vmem>>, vector<384x256xf32>
    %cst_20 = arith.constant dense<0.000000e+00> : vector<192x256xf32>
    %47 = tpu.matmul %20, %46, %cst_20 {dimension_numbers = #tpu.dot_dimension_numbers<[1], [0], [0], [1], [0, 0, 1, 1], [], []>} : vector<192x384xf32>, vector<384x256xf32>, vector<192x256xf32> -> vector<192x256xf32>
    %48 = vector.shape_cast %47 : vector<192x256xf32> to vector<12x16x256xf32>
    %49 = vector.shape_cast %45 : vector<16x256xf32> to vector<1x16x256xf32>
    %50 = vector.broadcast %49 : vector<1x16x256xf32> to vector<12x16x256xf32>
    %51 = arith.addf %48, %50 : vector<12x16x256xf32>
    %cst_21 = arith.constant 0.000000e+00 : f32
    %52 = vector.broadcast %cst_21 : f32 to vector<12x16x256xf32>
    %53 = arith.maximumf %51, %52 : vector<12x16x256xf32>
    %54 = vector.shape_cast %53 : vector<12x16x256xf32> to vector<192x256xf32>
    %c0_22 = arith.constant 0 : index
    %c0_23 = arith.constant 0 : index
    %55 = vector.load %arg10[%c0_22, %c0_23] : memref<256x1xf32, #tpu.memory_space<vmem>>, vector<256x1xf32>
    %cst_24 = arith.constant dense<0.000000e+00> : vector<192x1xf32>
    %56 = tpu.matmul %54, %55, %cst_24 {dimension_numbers = #tpu.dot_dimension_numbers<[1], [0], [0], [1], [0, 0, 1, 1], [], []>} : vector<192x256xf32>, vector<256x1xf32>, vector<192x1xf32> -> vector<192x1xf32>
    %c0_25 = arith.constant 0 : index
    %c0_26 = arith.constant 0 : index
    %c0_27 = arith.constant 0 : index
    %57 = vector.load %arg3[%c0_25, %c0_26, %c0_27] : memref<12x16x1xf32, #tpu.memory_space<vmem>>, vector<12x16x1xf32>
    %58 = vector.shape_cast %57 : vector<12x16x1xf32> to vector<192x1xf32>
    %59 = arith.addf %56, %58 : vector<192x1xf32>
    %cst_28 = arith.constant 0.000000e+00 : f32
    %60 = vector.broadcast %cst_28 : f32 to vector<192x1xf32>
    %61 = arith.maximumf %59, %60 : vector<192x1xf32>
    %62 = vector.shape_cast %61 : vector<192x1xf32> to vector<12x16x1xf32>
    %cst_29 = arith.constant dense<0xFF800000> : vector<16x1xf32>
    %63 = vector.multi_reduction <maximumf>, %62, %cst_29 [0] : vector<12x16x1xf32> to vector<16x1xf32>
    %64 = vector.shape_cast %63 : vector<16x1xf32> to vector<1x16x1xf32>
    %65 = vector.broadcast %64 : vector<1x16x1xf32> to vector<12x16x1xf32>
    %66 = arith.subf %62, %65 : vector<12x16x1xf32>
    %67 = math.exp %66 : vector<12x16x1xf32>
    %cst_30 = arith.constant dense<0.000000e+00> : vector<16x1xf32>
    %68 = vector.multi_reduction <add>, %67, %cst_30 [0] : vector<12x16x1xf32> to vector<16x1xf32>
    %69 = vector.shape_cast %68 : vector<16x1xf32> to vector<1x16x1xf32>
    %70 = vector.broadcast %69 : vector<1x16x1xf32> to vector<12x16x1xf32>
    %71 = arith.divf %67, %70 : vector<12x16x1xf32>
    %c0_31 = arith.constant 0 : index
    %c0_32 = arith.constant 0 : index
    %72 = vector.load %arg4[%c0_31, %c0_32] : memref<192x192xf32, #tpu.memory_space<vmem>>, vector<192x192xf32>
    %73 = vector.shape_cast %71 : vector<12x16x1xf32> to vector<192x1xf32>
    %cst_33 = arith.constant dense<0.000000e+00> : vector<192x1xf32>
    %74 = tpu.matmul %72, %73, %cst_33 {dimension_numbers = #tpu.dot_dimension_numbers<[1], [0], [0], [1], [0, 0, 1, 1], [], []>} : vector<192x192xf32>, vector<192x1xf32>, vector<192x1xf32> -> vector<192x1xf32>
    %75 = vector.broadcast %74 : vector<192x1xf32> to vector<192x384xf32>
    %76 = arith.mulf %20, %75 : vector<192x384xf32>
    %77 = vector.shape_cast %76 : vector<192x384xf32> to vector<12x16x384xf32>
    %cst_34 = arith.constant dense<0.000000e+00> : vector<16x384xf32>
    %78 = vector.multi_reduction <add>, %77, %cst_34 [0] : vector<12x16x384xf32> to vector<16x384xf32>
    %c0_35 = arith.constant 0 : index
    %c0_36 = arith.constant 0 : index
    %79 = vector.load %arg11[%c0_35, %c0_36] : memref<384x256xf32, #tpu.memory_space<vmem>>, vector<384x256xf32>
    %cst_37 = arith.constant dense<0.000000e+00> : vector<16x256xf32>
    %80 = tpu.matmul %78, %79, %cst_37 {dimension_numbers = #tpu.dot_dimension_numbers<[1], [0], [0], [1], [0, 0, 1, 1], [], []>} : vector<16x384xf32>, vector<384x256xf32>, vector<16x256xf32> -> vector<16x256xf32>
    %c0_38 = arith.constant 0 : index
    %c0_39 = arith.constant 0 : index
    %81 = vector.load %arg12[%c0_38, %c0_39] : memref<384x256xf32, #tpu.memory_space<vmem>>, vector<384x256xf32>
    %cst_40 = arith.constant dense<0.000000e+00> : vector<16x256xf32>
    %82 = tpu.matmul %40, %81, %cst_40 {dimension_numbers = #tpu.dot_dimension_numbers<[1], [0], [0], [1], [0, 0, 1, 1], [], []>} : vector<16x384xf32>, vector<384x256xf32>, vector<16x256xf32> -> vector<16x256xf32>
    %83 = arith.addf %80, %82 : vector<16x256xf32>
    %c0_41 = arith.constant 0 : index
    %c0_42 = arith.constant 0 : index
    %84 = vector.load %arg13[%c0_41, %c0_42] : memref<1x256xf32, #tpu.memory_space<vmem>>, vector<1x256xf32>
    %85 = vector.broadcast %84 : vector<1x256xf32> to vector<16x256xf32>
    %86 = arith.addf %83, %85 : vector<16x256xf32>
    %c0_43 = arith.constant 0 : index
    %c0_44 = arith.constant 0 : index
    %87 = vector.load %arg14[%c0_43, %c0_44] : memref<256x1xf32, #tpu.memory_space<vmem>>, vector<256x1xf32>
    %cst_45 = arith.constant dense<0.000000e+00> : vector<16x1xf32>
    %88 = tpu.matmul %86, %87, %cst_45 {dimension_numbers = #tpu.dot_dimension_numbers<[1], [0], [0], [1], [0, 0, 1, 1], [], []>} : vector<16x256xf32>, vector<256x1xf32>, vector<16x1xf32> -> vector<16x1xf32>
    %c0_46 = arith.constant 0 : index
    %c0_47 = arith.constant 0 : index
    %89 = vector.load %arg15[%c0_46, %c0_47] : memref<1x1xf32, #tpu.memory_space<vmem>>, vector<1x1xf32>
    %90 = vector.broadcast %89 : vector<1x1xf32> to vector<16x1xf32>
    %91 = arith.addf %88, %90 : vector<16x1xf32>
    %c0_48 = arith.constant 0 : index
    %c0_49 = arith.constant 0 : index
    %92 = vector.load %arg16[%c0_48, %c0_49] : memref<16x1xf32, #tpu.memory_space<vmem>>, vector<16x1xf32>
    tpu.vector_store %arg16[%c0_48, %c0_49], %91 {strides = array<i32>} : memref<16x1xf32, #tpu.memory_space<vmem>>, vector<16x1xf32>,
    return
  }
  func.func @transform_0(%arg0: i32) -> (i32, i32, i32) {
    %c0_i32 = arith.constant 0 : i32
    %c0_i32_0 = arith.constant 0 : i32
    %c0_i32_1 = arith.constant 0 : i32
    return %c0_i32, %arg0, %c0_i32_0 : i32, i32, i32
  }
  func.func @transform_1(%arg0: i32) -> (i32, i32) {
    %c0_i32 = arith.constant 0 : i32
    %c0_i32_0 = arith.constant 0 : i32
    return %arg0, %c0_i32 : i32, i32
  }
  func.func @transform_2(%arg0: i32) -> (i32, i32, i32) {
    %c0_i32 = arith.constant 0 : i32
    %c0_i32_0 = arith.constant 0 : i32
    %c0_i32_1 = arith.constant 0 : i32
    return %c0_i32, %arg0, %c0_i32_0 : i32, i32, i32
  }
  func.func @transform_3(%arg0: i32) -> (i32, i32) {
    %c0_i32 = arith.constant 0 : i32
    %c0_i32_0 = arith.constant 0 : i32
    %c0_i32_1 = arith.constant 0 : i32
    return %c0_i32, %c0_i32_0 : i32, i32
  }
  func.func @transform_4(%arg0: i32) -> (i32, i32) {
    %c0_i32 = arith.constant 0 : i32
    %c0_i32_0 = arith.constant 0 : i32
    %c0_i32_1 = arith.constant 0 : i32
    return %c0_i32, %c0_i32_0 : i32, i32
  }
  func.func @transform_5(%arg0: i32) -> (i32, i32) {
    %c0_i32 = arith.constant 0 : i32
    %c0_i32_0 = arith.constant 0 : i32
    %c0_i32_1 = arith.constant 0 : i32
    return %c0_i32, %c0_i32_0 : i32, i32
  }
  func.func @transform_6(%arg0: i32) -> (i32, i32) {
    %c0_i32 = arith.constant 0 : i32
    %c0_i32_0 = arith.constant 0 : i32
    %c0_i32_1 = arith.constant 0 : i32
    return %c0_i32, %c0_i32_0 : i32, i32
  }
  func.func @transform_7(%arg0: i32) -> (i32, i32) {
    %c0_i32 = arith.constant 0 : i32
    %c0_i32_0 = arith.constant 0 : i32
    %c0_i32_1 = arith.constant 0 : i32
    return %c0_i32, %c0_i32_0 : i32, i32
  }
  func.func @transform_8(%arg0: i32) -> (i32, i32) {
    %c0_i32 = arith.constant 0 : i32
    %c0_i32_0 = arith.constant 0 : i32
    %c0_i32_1 = arith.constant 0 : i32
    return %c0_i32, %c0_i32_0 : i32, i32
  }
  func.func @transform_9(%arg0: i32) -> (i32, i32) {
    %c0_i32 = arith.constant 0 : i32
    %c0_i32_0 = arith.constant 0 : i32
    %c0_i32_1 = arith.constant 0 : i32
    return %c0_i32, %c0_i32_0 : i32, i32
  }
  func.func @transform_10(%arg0: i32) -> (i32, i32) {
    %c0_i32 = arith.constant 0 : i32
    %c0_i32_0 = arith.constant 0 : i32
    %c0_i32_1 = arith.constant 0 : i32
    return %c0_i32, %c0_i32_0 : i32, i32
  }
  func.func @transform_11(%arg0: i32) -> (i32, i32) {
    %c0_i32 = arith.constant 0 : i32
    %c0_i32_0 = arith.constant 0 : i32
    %c0_i32_1 = arith.constant 0 : i32
    return %c0_i32, %c0_i32_0 : i32, i32
  }
  func.func @transform_12(%arg0: i32) -> (i32, i32) {
    %c0_i32 = arith.constant 0 : i32
    %c0_i32_0 = arith.constant 0 : i32
    %c0_i32_1 = arith.constant 0 : i32
    return %c0_i32, %c0_i32_0 : i32, i32
  }
  func.func @transform_13(%arg0: i32) -> (i32, i32) {
    %c0_i32 = arith.constant 0 : i32
    %c0_i32_0 = arith.constant 0 : i32
    %c0_i32_1 = arith.constant 0 : i32
    return %c0_i32, %c0_i32_0 : i32, i32
  }
  func.func @transform_14(%arg0: i32) -> (i32, i32) {
    %c0_i32 = arith.constant 0 : i32
    %c0_i32_0 = arith.constant 0 : i32
    %c0_i32_1 = arith.constant 0 : i32
    return %c0_i32, %c0_i32_0 : i32, i32
  }
  func.func @transform_15(%arg0: i32) -> (i32, i32) {
    %c0_i32 = arith.constant 0 : i32
    %c0_i32_0 = arith.constant 0 : i32
    return %arg0, %c0_i32 : i32, i32
  }
}

</mosaic_0001>

<llo_original>
// kernel: gclstm_forward.1
$region0: #{gclstm_forward.1}
  #allocation0 [shape = 'u32[]', space=smem, size = 0x4, offset = 0x4, fixed_abs, tag = 'smem constant byte address 0x4 - core index']
  #allocation1 [shape = 'u32[72,128]{1,0:T(1,128)}', space=vmem, size = 0x9000, scoped, tag = 'internal scratch']
  #allocation2 [shape = 'f32[1,1]{1,0:T(1,128)S(1)}', space=vmem, size = 0x200, scoped, tag = 'scoped memory for gclstm_forward.1']
  %s0 = inlined_call_operand.vmem [shape: f32[12,32,108], index: 0, kind: input, shape index: {}]
  %s1 = inlined_call_operand.vmem [shape: f32[32,6], index: 1, kind: input, shape index: {}]
  %s2 = inlined_call_operand.vmem [shape: f32[12,32,1], index: 2, kind: input, shape index: {}]
  %s3 = inlined_call_operand.vmem [shape: f32[192,192], index: 3, kind: input, shape index: {}]
  %s4 = inlined_call_operand.vmem [shape: f32[108,1152], index: 4, kind: input, shape index: {}]
  %s5 = inlined_call_operand.vmem [shape: f32[6,1152], index: 5, kind: input, shape index: {}]
  %s6 = inlined_call_operand.vmem [shape: f32[384,256], index: 6, kind: input, shape index: {}]
  %s7 = inlined_call_operand.vmem [shape: f32[384,256], index: 7, kind: input, shape index: {}]
  %s8 = inlined_call_operand.vmem [shape: f32[1,256], index: 8, kind: input, shape index: {}]
  %s9 = inlined_call_operand.vmem [shape: f32[256,1], index: 9, kind: input, shape index: {}]
  %s10 = inlined_call_operand.vmem [shape: f32[384,256], index: 10, kind: input, shape index: {}]
  %s11 = inlined_call_operand.vmem [shape: f32[384,256], index: 11, kind: input, shape index: {}]
  %s12 = inlined_call_operand.vmem [shape: f32[1,256], index: 12, kind: input, shape index: {}]
  %s13 = inlined_call_operand.vmem [shape: f32[256,1], index: 13, kind: input, shape index: {}]
  %s14 = inlined_call_operand.<no memory space> [shape: f32[1,1], index: 14, kind: input, shape index: {}]
  %s15 = inlined_call_operand.vmem [shape: f32[32,1], index: 15, kind: output, shape index: {}]
  %s16 = sld [smem:[#allocation0]]
  $region169: #{gclstm_forward.1} parent=0
    _
  %s18 = ssub.s32 1, %s16
  %s19 = scalar_select 0, %s18, %s16
  %v20 = vstv %s14
  %21 = vst [vmem:[#allocation2] sm:$0x1] %v20
  $region1: #{gclstm_forward.1} parent=0
    #allocation3 [shape = 'u8[196608]{0}', space=vmem, size = 0x30000, scoped, tag = 'input window, operand 0']
    #allocation4 [shape = 'u8[196608]{0}', space=vmem, size = 0x30000, scoped, tag = 'input window, operand 2']
    loop: start=0, step=1, limit=4
    $region2: #{gclstm_forward.1} parent=1 // loop_pre_header
      _
    $region3: #{gclstm_forward.1} parent=1 // loop_header
      %s23 = sphi 0, %s27
      %p24 = scmp.ge.s32.totalorder %s23, 4
      %s33 = sphi 0, %s35
      %s36 = sphi 0, %s33
      %s37 = sphi 0, %s36
      %s53 = sphi 0, %s37
      %s59 = sphi 0, %s61
      %s62 = sphi 0, %s59
      %s63 = sphi 0, %s62
      %s79 = sphi 0, %s63
      %s85 = sphi 0, %s87
      %s88 = sphi 0, %s85
      %s89 = sphi 0, %s88
      %s105 = sphi 0, %s89
      %s109 = sphi 0, %s109
      %s111 = sphi 0, %s109
      %s112 = sphi 0, %s111
      %s126 = sphi 0, %s112
      %s130 = sphi 0, %s130
      %s132 = sphi 0, %s130
      %s133 = sphi 0, %s132
      %s147 = sphi 0, %s133
      %s151 = sphi 0, %s151
      %s153 = sphi 0, %s151
      %s154 = sphi 0, %s153
      %s168 = sphi 0, %s154
      %s172 = sphi 0, %s172
      %s174 = sphi 0, %s172
      %s175 = sphi 0, %s174
      %s189 = sphi 0, %s175
      %s193 = sphi 0, %s193
      %s195 = sphi 0, %s193
      %s196 = sphi 0, %s195
      %s210 = sphi 0, %s196
      %s214 = sphi 0, %s214
      %s216 = sphi 0, %s214
      %s217 = sphi 0, %s216
      %s231 = sphi 0, %s217
      %s235 = sphi 0, %s235
      %s237 = sphi 0, %s235
      %s238 = sphi 0, %s237
      %s252 = sphi 0, %s238
      %s256 = sphi 0, %s256
      %s258 = sphi 0, %s256
      %s259 = sphi 0, %s258
      %s273 = sphi 0, %s259
      %s277 = sphi 0, %s277
      %s279 = sphi 0, %s277
      %s280 = sphi 0, %s279
      %s294 = sphi 0, %s280
      %s298 = sphi 0, %s298
      %s300 = sphi 0, %s298
      %s301 = sphi 0, %s300
      %s315 = sphi 0, %s301
      %s319 = sphi 0, %s319
      %s321 = sphi 0, %s319
      %s322 = sphi 0, %s321
      %s336 = sphi 0, %s322
      %s340 = sphi 0, %s340
      %s342 = sphi 0, %s340
      %s343 = sphi 0, %s342
      %s357 = sphi 0, %s343
      %s363 = sphi 0, %s365
      %s366 = sphi 0, %s363
      %s367 = sphi 0, %s366
      %s383 = sphi 0, %s367
    $region4: #{gclstm_forward.1} parent=1 // loop_header_branch
      %26 = sbr.rel (%p24) target = $region8
    $region5: #{gclstm_forward.1} parent=1 // loop_body
      %s28 = ssub.s32 %s23, 1
      %s29 = ssub.s32 %s23, 2
      %s30 = sadd.s32 %s23, 1
      %s31 = ssub.s32 %s23, %s30
      %p32 = scmp.eq.s32.totalorder %s31, 0
      %s34 = sadd.s32 %s33, 1
      %s35 = scalar_select %p32, %s33, %s34
      %p38 = pneg %p32
      %p39 = scmp.eq.s32.totalorder %s23, 1
      %p40 = por %p38, %p39
      %p41 = scmp.ne.s32.totalorder %s33, %s36
      %p42 = scmp.eq.s32.totalorder %s23, 0
      %p43 = por %p41, %p42
      %p44 = scmp.ne.s32.totalorder %s33, %s36
      %p45 = scmp.eq.s32.totalorder %s28, 1
      %p46 = por %p44, %p45
      %p47 = scmp.ne.s32.totalorder %s36, %s37
      %p48 = scmp.eq.s32.totalorder %s28, 0
      %p49 = por %p47, %p48
      %p50 = scmp.ne.s32.totalorder %s36, %s37
      %p51 = scmp.eq.s32.totalorder %s29, 1
      %p52 = por %p50, %p51
      %p54 = scmp.ne.s32.totalorder %s37, %s53
      %p55 = scmp.eq.s32.totalorder %s29, 0
      %p56 = por %p54, %p55
      %s57 = ssub.s32 %s23, %s30
      %p58 = scmp.eq.s32.totalorder %s57, 0
      %s60 = sadd.s32 %s59, 1
      %s61 = scalar_select %p58, %s59, %s60
      %p64 = pneg %p58
      %p65 = scmp.eq.s32.totalorder %s23, 1
      %p66 = por %p64, %p65
      %p67 = scmp.ne.s32.totalorder %s59, %s62
      %p68 = scmp.eq.s32.totalorder %s23, 0
      %p69 = por %p67, %p68
      %p70 = scmp.ne.s32.totalorder %s59, %s62
      %p71 = scmp.eq.s32.totalorder %s28, 1
      %p72 = por %p70, %p71
      %p73 = scmp.ne.s32.totalorder %s62, %s63
      %p74 = scmp.eq.s32.totalorder %s28, 0
      %p75 = por %p73, %p74
      %p76 = scmp.ne.s32.totalorder %s62, %s63
      %p77 = scmp.eq.s32.totalorder %s29, 1
      %p78 = por %p76, %p77
      %p80 = scmp.ne.s32.totalorder %s63, %s79
      %p81 = scmp.eq.s32.totalorder %s29, 0
      %p82 = por %p80, %p81
      %s83 = ssub.s32 %s23, %s30
      %p84 = scmp.eq.s32.totalorder %s83, 0
      %s86 = sadd.s32 %s85, 1
      %s87 = scalar_select %p84, %s85, %s86
      %p90 = pneg %p84
      %p91 = scmp.eq.s32.totalorder %s23, 1
      %p92 = por %p90, %p91
      %p93 = scmp.ne.s32.totalorder %s85, %s88
      %p94 = scmp.eq.s32.totalorder %s23, 0
      %p95 = por %p93, %p94
      %p96 = scmp.ne.s32.totalorder %s85, %s88
      %p97 = scmp.eq.s32.totalorder %s28, 1
      %p98 = por %p96, %p97
      %p99 = scmp.ne.s32.totalorder %s88, %s89
      %p100 = scmp.eq.s32.totalorder %s28, 0
      %p101 = por %p99, %p100
      %p102 = scmp.ne.s32.totalorder %s88, %s89
      %p103 = scmp.eq.s32.totalorder %s29, 1
      %p104 = por %p102, %p103
      %p106 = scmp.ne.s32.totalorder %s89, %s105
      %p107 = scmp.eq.s32.totalorder %s29, 0
      %p108 = por %p106, %p107
      %s110 = sadd.s32 %s109, 1
      %p113 = scmp.eq.s32.totalorder %s23, 1
      %p114 = scmp.ne.s32.totalorder %s109, %s111
      %p115 = scmp.eq.s32.totalorder %s23, 0
      %p116 = por %p114, %p115
      %p117 = scmp.ne.s32.totalorder %s109, %s111
      %p118 = scmp.eq.s32.totalorder %s28, 1
      %p119 = por %p117, %p118
      %p120 = scmp.ne.s32.totalorder %s111, %s112
      %p121 = scmp.eq.s32.totalorder %s28, 0
      %p122 = por %p120, %p121
      %p123 = scmp.ne.s32.totalorder %s111, %s112
      %p124 = scmp.eq.s32.totalorder %s29, 1
      %p125 = por %p123, %p124
      %p127 = scmp.ne.s32.totalorder %s112, %s126
      %p128 = scmp.eq.s32.totalorder %s29, 0
      %p129 = por %p127, %p128
      %s131 = sadd.s32 %s130, 1
      %p134 = scmp.eq.s32.totalorder %s23, 1
      %p135 = scmp.ne.s32.totalorder %s130, %s132
      %p136 = scmp.eq.s32.totalorder %s23, 0
      %p137 = por %p135, %p136
      %p138 = scmp.ne.s32.totalorder %s130, %s132
      %p139 = scmp.eq.s32.totalorder %s28, 1
      %p140 = por %p138, %p139
      %p141 = scmp.ne.s32.totalorder %s132, %s133
      %p142 = scmp.eq.s32.totalorder %s28, 0
      %p143 = por %p141, %p142
      %p144 = scmp.ne.s32.totalorder %s132, %s133
      %p145 = scmp.eq.s32.totalorder %s29, 1
      %p146 = por %p144, %p145
      %p148 = scmp.ne.s32.totalorder %s133, %s147
      %p149 = scmp.eq.s32.totalorder %s29, 0
      %p150 = por %p148, %p149
      %s152 = sadd.s32 %s151, 1
      %p155 = scmp.eq.s32.totalorder %s23, 1
      %p156 = scmp.ne.s32.totalorder %s151, %s153
      %p157 = scmp.eq.s32.totalorder %s23, 0
      %p158 = por %p156, %p157
      %p159 = scmp.ne.s32.totalorder %s151, %s153
      %p160 = scmp.eq.s32.totalorder %s28, 1
      %p161 = por %p159, %p160
      %p162 = scmp.ne.s32.totalorder %s153, %s154
      %p163 = scmp.eq.s32.totalorder %s28, 0
      %p164 = por %p162, %p163
      %p165 = scmp.ne.s32.totalorder %s153, %s154
      %p166 = scmp.eq.s32.totalorder %s29, 1
      %p167 = por %p165, %p166
      %p169 = scmp.ne.s32.totalorder %s154, %s168
      %p170 = scmp.eq.s32.totalorder %s29, 0
      %p171 = por %p169, %p170
      %s173 = sadd.s32 %s172, 1
      %p176 = scmp.eq.s32.totalorder %s23, 1
      %p177 = scmp.ne.s32.totalorder %s172, %s174
      %p178 = scmp.eq.s32.totalorder %s23, 0
      %p179 = por %p177, %p178
      %p180 = scmp.ne.s32.totalorder %s172, %s174
      %p181 = scmp.eq.s32.totalorder %s28, 1
      %p182 = por %p180, %p181
      %p183 = scmp.ne.s32.totalorder %s174, %s175
      %p184 = scmp.eq.s32.totalorder %s28, 0
      %p185 = por %p183, %p184
      %p186 = scmp.ne.s32.totalorder %s174, %s175
      %p187 = scmp.eq.s32.totalorder %s29, 1
      %p188 = por %p186, %p187
      %p190 = scmp.ne.s32.totalorder %s175, %s189
      %p191 = scmp.eq.s32.totalorder %s29, 0
      %p192 = por %p190, %p191
      %s194 = sadd.s32 %s193, 1
      %p197 = scmp.eq.s32.totalorder %s23, 1
      %p198 = scmp.ne.s32.totalorder %s193, %s195
      %p199 = scmp.eq.s32.totalorder %s23, 0
      %p200 = por %p198, %p199
      %p201 = scmp.ne.s32.totalorder %s193, %s195
      %p202 = scmp.eq.s32.totalorder %s28, 1
      %p203 = por %p201, %p202
      %p204 = scmp.ne.s32.totalorder %s195, %s196
      %p205 = scmp.eq.s32.totalorder %s28, 0
      %p206 = por %p204, %p205
      %p207 = scmp.ne.s32.totalorder %s195, %s196
      %p208 = scmp.eq.s32.totalorder %s29, 1
      %p209 = por %p207, %p208
      %p211 = scmp.ne.s32.totalorder %s196, %s210
      %p212 = scmp.eq.s32.totalorder %s29, 0
      %p213 = por %p211, %p212
      %s215 = sadd.s32 %s214, 1
      %p218 = scmp.eq.s32.totalorder %s23, 1
      %p219 = scmp.ne.s32.totalorder %s214, %s216
      %p220 = scmp.eq.s32.totalorder %s23, 0
      %p221 = por %p219, %p220
      %p222 = scmp.ne.s32.totalorder %s214, %s216
      %p223 = scmp.eq.s32.totalorder %s28, 1
      %p224 = por %p222, %p223
      %p225 = scmp.ne.s32.totalorder %s216, %s217
      %p226 = scmp.eq.s32.totalorder %s28, 0
      %p227 = por %p225, %p226
      %p228 = scmp.ne.s32.totalorder %s216, %s217
      %p229 = scmp.eq.s32.totalorder %s29, 1
      %p230 = por %p228, %p229
      %p232 = scmp.ne.s32.totalorder %s217, %s231
      %p233 = scmp.eq.s32.totalorder %s29, 0
      %p234 = por %p232, %p233
      %s236 = sadd.s32 %s235, 1
      %p239 = scmp.eq.s32.totalorder %s23, 1
      %p240 = scmp.ne.s32.totalorder %s235, %s237
      %p241 = scmp.eq.s32.totalorder %s23, 0
      %p242 = por %p240, %p241
      %p243 = scmp.ne.s32.totalorder %s235, %s237
      %p244 = scmp.eq.s32.totalorder %s28, 1
      %p245 = por %p243, %p244
      %p246 = scmp.ne.s32.totalorder %s237, %s238
      %p247 = scmp.eq.s32.totalorder %s28, 0
      %p248 = por %p246, %p247
      %p249 = scmp.ne.s32.totalorder %s237, %s238
      %p250 = scmp.eq.s32.totalorder %s29, 1
      %p251 = por %p249, %p250
      %p253 = scmp.ne.s32.totalorder %s238, %s252
      %p254 = scmp.eq.s32.totalorder %s29, 0
      %p255 = por %p253, %p254
      %s257 = sadd.s32 %s256, 1
      %p260 = scmp.eq.s32.totalorder %s23, 1
      %p261 = scmp.ne.s32.totalorder %s256, %s258
      %p262 = scmp.eq.s32.totalorder %s23, 0
      %p263 = por %p261, %p262
      %p264 = scmp.ne.s32.totalorder %s256, %s258
      %p265 = scmp.eq.s32.totalorder %s28, 1
      %p266 = por %p264, %p265
      %p267 = scmp.ne.s32.totalorder %s258, %s259
      %p268 = scmp.eq.s32.totalorder %s28, 0
      %p269 = por %p267, %p268
      %p270 = scmp.ne.s32.totalorder %s258, %s259
      %p271 = scmp.eq.s32.totalorder %s29, 1
      %p272 = por %p270, %p271
      %p274 = scmp.ne.s32.totalorder %s259, %s273
      %p275 = scmp.eq.s32.totalorder %s29, 0
      %p276 = por %p274, %p275
      %s278 = sadd.s32 %s277, 1
      %p281 = scmp.eq.s32.totalorder %s23, 1
      %p282 = scmp.ne.s32.totalorder %s277, %s279
      %p283 = scmp.eq.s32.totalorder %s23, 0
      %p284 = por %p282, %p283
      %p285 = scmp.ne.s32.totalorder %s277, %s279
      %p286 = scmp.eq.s32.totalorder %s28, 1
      %p287 = por %p285, %p286
      %p288 = scmp.ne.s32.totalorder %s279, %s280
      %p289 = scmp.eq.s32.totalorder %s28, 0
      %p290 = por %p288, %p289
      %p291 = scmp.ne.s32.totalorder %s279, %s280
      %p292 = scmp.eq.s32.totalorder %s29, 1
      %p293 = por %p291, %p292
      %p295 = scmp.ne.s32.totalorder %s280, %s294
      %p296 = scmp.eq.s32.totalorder %s29, 0
      %p297 = por %p295, %p296
      %s299 = sadd.s32 %s298, 1
      %p302 = scmp.eq.s32.totalorder %s23, 1
      %p303 = scmp.ne.s32.totalorder %s298, %s300
      %p304 = scmp.eq.s32.totalorder %s23, 0
      %p305 = por %p303, %p304
      %p306 = scmp.ne.s32.totalorder %s298, %s300
      %p307 = scmp.eq.s32.totalorder %s28, 1
      %p308 = por %p306, %p307
      %p309 = scmp.ne.s32.totalorder %s300, %s301
      %p310 = scmp.eq.s32.totalorder %s28, 0
      %p311 = por %p309, %p310
      %p312 = scmp.ne.s32.totalorder %s300, %s301
      %p313 = scmp.eq.s32.totalorder %s29, 1
      %p314 = por %p312, %p313
      %p316 = scmp.ne.s32.totalorder %s301, %s315
      %p317 = scmp.eq.s32.totalorder %s29, 0
      %p318 = por %p316, %p317
      %s320 = sadd.s32 %s319, 1
      %p323 = scmp.eq.s32.totalorder %s23, 1
      %p324 = scmp.ne.s32.totalorder %s319, %s321
      %p325 = scmp.eq.s32.totalorder %s23, 0
      %p326 = por %p324, %p325
      %p327 = scmp.ne.s32.totalorder %s319, %s321
      %p328 = scmp.eq.s32.totalorder %s28, 1
      %p329 = por %p327, %p328
      %p330 = scmp.ne.s32.totalorder %s321, %s322
      %p331 = scmp.eq.s32.totalorder %s28, 0
      %p332 = por %p330, %p331
      %p333 = scmp.ne.s32.totalorder %s321, %s322
      %p334 = scmp.eq.s32.totalorder %s29, 1
      %p335 = por %p333, %p334
      %p337 = scmp.ne.s32.totalorder %s322, %s336
      %p338 = scmp.eq.s32.totalorder %s29, 0
      %p339 = por %p337, %p338
      %s341 = sadd.s32 %s340, 1
      %p344 = scmp.eq.s32.totalorder %s23, 1
      %p345 = scmp.ne.s32.totalorder %s340, %s342
      %p346 = scmp.eq.s32.totalorder %s23, 0
      %p347 = por %p345, %p346
      %p348 = scmp.ne.s32.totalorder %s340, %s342
      %p349 = scmp.eq.s32.totalorder %s28, 1
      %p350 = por %p348, %p349
      %p351 = scmp.ne.s32.totalorder %s342, %s343
      %p352 = scmp.eq.s32.totalorder %s28, 0
      %p353 = por %p351, %p352
      %p354 = scmp.ne.s32.totalorder %s342, %s343
      %p355 = scmp.eq.s32.totalorder %s29, 1
      %p356 = por %p354, %p355
      %p358 = scmp.ne.s32.totalorder %s343, %s357
      %p359 = scmp.eq.s32.totalorder %s29, 0
      %p360 = por %p358, %p359
      %s361 = ssub.s32 %s23, %s30
      %p362 = scmp.eq.s32.totalorder %s361, 0
      %s364 = sadd.s32 %s363, 1
      %s365 = scalar_select %p362, %s363, %s364
      %p368 = pneg %p362
      %p369 = scmp.eq.s32.totalorder %s23, 1
      %p370 = por %p368, %p369
      %p371 = scmp.ne.s32.totalorder %s363, %s366
      %p372 = scmp.eq.s32.totalorder %s23, 0
      %p373 = por %p371, %p372
      %p374 = scmp.ne.s32.totalorder %s363, %s366
      %p375 = scmp.eq.s32.totalorder %s28, 1
      %p376 = por %p374, %p375
      %p377 = scmp.ne.s32.totalorder %s366, %s367
      %p378 = scmp.eq.s32.totalorder %s28, 0
      %p379 = por %p377, %p378
      %p380 = scmp.ne.s32.totalorder %s366, %s367
      %p381 = scmp.eq.s32.totalorder %s29, 1
      %p382 = por %p380, %p381
      %p384 = scmp.ne.s32.totalorder %s367, %s383
      %p385 = scmp.eq.s32.totalorder %s29, 0
      %p386 = por %p384, %p385
      %p387 = scmp.le.s32.totalorder 1, %s23
      %p388 = scmp.lt.s32.totalorder %s23, 3
      %p389 = pnand %p387, %p388
      %p390 = pneg %p389
      // Predicated region
      $region9: #{gclstm_forward.1} parent=5 // pred_check
        _
      $region10: #{gclstm_forward.1} parent=5 // pred_check_branch
        %392 = sbr.rel (%p389) target = $region12
      $region11: #{gclstm_forward.1} parent=5 // pred_region
        %s393 = ssub.s32 %s23, 1
        // Predicated region
        $region13: #{gclstm_forward.1} parent=11 // pred_check
          %p394 = pneg %p122
        $region14: #{gclstm_forward.1} parent=11 // pred_check_branch
          %396 = sbr.rel (%p394) target = $region16
        $region15: #{gclstm_forward.1} parent=11 // pred_region
          _
        $region16: #{gclstm_forward.1} parent=11 // pred_fallthru
          _
        // Predicated region
        $region17: #{gclstm_forward.1} parent=11 // pred_check
          %p397 = pneg %p143
        $region18: #{gclstm_forward.1} parent=11 // pred_check_branch
          %399 = sbr.rel (%p397) target = $region20
        $region19: #{gclstm_forward.1} parent=11 // pred_region
          _
        $region20: #{gclstm_forward.1} parent=11 // pred_fallthru
          _
        // Predicated region
        $region21: #{gclstm_forward.1} parent=11 // pred_check
          %p400 = pneg %p164
        $region22: #{gclstm_forward.1} parent=11 // pred_check_branch
          %402 = sbr.rel (%p400) target = $region24
        $region23: #{gclstm_forward.1} parent=11 // pred_region
          _
        $region24: #{gclstm_forward.1} parent=11 // pred_fallthru
          _
        // Predicated region
        $region25: #{gclstm_forward.1} parent=11 // pred_check
          %p403 = pneg %p185
        $region26: #{gclstm_forward.1} parent=11 // pred_check_branch
          %405 = sbr.rel (%p403) target = $region28
        $region27: #{gclstm_forward.1} parent=11 // pred_region
          _
        $region28: #{gclstm_forward.1} parent=11 // pred_fallthru
          _
        // Predicated region
        $region29: #{gclstm_forward.1} parent=11 // pred_check
          %p406 = pneg %p206
        $region30: #{gclstm_forward.1} parent=11 // pred_check_branch
          %408 = sbr.rel (%p406) target = $region32
        $region31: #{gclstm_forward.1} parent=11 // pred_region
          _
        $region32: #{gclstm_forward.1} parent=11 // pred_fallthru
          _
        // Predicated region
        $region33: #{gclstm_forward.1} parent=11 // pred_check
          %p409 = pneg %p227
        $region34: #{gclstm_forward.1} parent=11 // pred_check_branch
          %411 = sbr.rel (%p409) target = $region36
        $region35: #{gclstm_forward.1} parent=11 // pred_region
          _
        $region36: #{gclstm_forward.1} parent=11 // pred_fallthru
          _
        // Predicated region
        $region37: #{gclstm_forward.1} parent=11 // pred_check
          %p412 = pneg %p248
        $region38: #{gclstm_forward.1} parent=11 // pred_check_branch
          %414 = sbr.rel (%p412) target = $region40
        $region39: #{gclstm_forward.1} parent=11 // pred_region
          _
        $region40: #{gclstm_forward.1} parent=11 // pred_fallthru
          _
        // Predicated region
        $region41: #{gclstm_forward.1} parent=11 // pred_check
          %p415 = pneg %p269
        $region42: #{gclstm_forward.1} parent=11 // pred_check_branch
          %417 = sbr.rel (%p415) target = $region44
        $region43: #{gclstm_forward.1} parent=11 // pred_region
          _
        $region44: #{gclstm_forward.1} parent=11 // pred_fallthru
          _
        // Predicated region
        $region45: #{gclstm_forward.1} parent=11 // pred_check
          %p418 = pneg %p290
        $region46: #{gclstm_forward.1} parent=11 // pred_check_branch
          %420 = sbr.rel (%p418) target = $region48
        $region47: #{gclstm_forward.1} parent=11 // pred_region
          _
        $region48: #{gclstm_forward.1} parent=11 // pred_fallthru
          _
        // Predicated region
        $region49: #{gclstm_forward.1} parent=11 // pred_check
          %p421 = pneg %p311
        $region50: #{gclstm_forward.1} parent=11 // pred_check_branch
          %423 = sbr.rel (%p421) target = $region52
        $region51: #{gclstm_forward.1} parent=11 // pred_region
          _
        $region52: #{gclstm_forward.1} parent=11 // pred_fallthru
          _
        // Predicated region
        $region53: #{gclstm_forward.1} parent=11 // pred_check
          %p424 = pneg %p332
        $region54: #{gclstm_forward.1} parent=11 // pred_check_branch
          %426 = sbr.rel (%p424) target = $region56
        $region55: #{gclstm_forward.1} parent=11 // pred_region
          _
        $region56: #{gclstm_forward.1} parent=11 // pred_fallthru
          _
        // Predicated region
        $region57: #{gclstm_forward.1} parent=11 // pred_check
          %p427 = pneg %p353
        $region58: #{gclstm_forward.1} parent=11 // pred_check_branch
          %429 = sbr.rel (%p427) target = $region60
        $region59: #{gclstm_forward.1} parent=11 // pred_region
          _
        $region60: #{gclstm_forward.1} parent=11 // pred_fallthru
          _
      $region12: #{gclstm_forward.1} parent=5 // pred_fallthru
        _
      %p430 = scmp.lt.s32.totalorder %s23, 2
      // Predicated region
      $region61: #{gclstm_forward.1} parent=5 // pred_check
        %p431 = pneg %p430
      $region62: #{gclstm_forward.1} parent=5 // pred_check_branch
        %433 = sbr.rel (%p431) target = $region64
      $region63: #{gclstm_forward.1} parent=5 // pred_region
        // Predicated region
        $region65: #{gclstm_forward.1} parent=63 // pred_check
          %p434 = pneg %p43
        $region66: #{gclstm_forward.1} parent=63 // pred_check_branch
          %436 = sbr.rel (%p434) target = $region68
        $region67: #{gclstm_forward.1} parent=63 // pred_region
          %s437 = sand.u32 %s33, 1
          %s438 = sand.u32 %s33, 1
          %s439 = smul.addr %s438, 192
          %s440 = scalar_lea.vmem [#allocation3], %s439
          %s441 = smul.u32 2, %s23
          %s442 = smul.addr %s441, 8
          %s443 = scalar_lea.vmem %s0, %s442
          // Predicated region
          $region69: #{gclstm_forward.1} parent=67 // pred_check
            _
          $region70: #{gclstm_forward.1} parent=67 // pred_check_branch
            %445 = sbr.rel (0) target = $region72
          $region71: #{gclstm_forward.1} parent=67 // pred_region
            // Predicated region
            $region73: #{gclstm_forward.1} parent=71 // pred_check
              _
            $region74: #{gclstm_forward.1} parent=71 // pred_check_branch
              %447 = sbr.rel (0) target = $region76
            $region75: #{gclstm_forward.1} parent=71 // pred_region
              // Predicated region
              $region88: #{gclstm_forward.1} parent=75 // pred_check
                _
              $region89: #{gclstm_forward.1} parent=75 // pred_check_branch
                %509 = sbr.rel (0) target = $region91
              $region90: #{gclstm_forward.1} parent=75 // pred_region
                loop: start=0, step=1, limit=1
                $region92: #{gclstm_forward.1} parent=90 // loop_pre_header
                  _
                $region93: #{gclstm_forward.1} parent=90 // loop_header
                  %s511 = sphi 0, %s515
                  %p512 = scmp.ge.s32.totalorder %s511, 1
                  %s516 = sphi %s443, %s443
                  %s517 = sphi %s440, %s440
                $region94: #{gclstm_forward.1} parent=90 // loop_header_branch
                  %514 = sbr.rel (%p512) target = $region98
                $region95: #{gclstm_forward.1} parent=90 // loop_body
                  %v518 = vld [vmem:[%s516] sm:$0xff]
                  %519 = vst [vmem:[%s517] sm:$0xff] %v518
                  %v520 = vld [vmem:[%s516 + $0x8] sm:$0xff]
                  %521 = vst [vmem:[%s517 + $0x8] sm:$0xff] %v520
                  %v522 = vld [vmem:[%s516 + $0x20] sm:$0xff]
                  %523 = vst [vmem:[%s517 + $0x10] sm:$0xff] %v522
                  %v524 = vld [vmem:[%s516 + $0x28] sm:$0xff]
                  %525 = vst [vmem:[%s517 + $0x18] sm:$0xff] %v524
                  %v526 = vld [vmem:[%s516 + $0x40] sm:$0xff]
                  %527 = vst [vmem:[%s517 + $0x20] sm:$0xff] %v526
                  %v528 = vld [vmem:[%s516 + $0x48] sm:$0xff]
                  %529 = vst [vmem:[%s517 + $0x28] sm:$0xff] %v528
                  %v530 = vld [vmem:[%s516 + $0x60] sm:$0xff]
                  %531 = vst [vmem:[%s517 + $0x30] sm:$0xff] %v530
                  %v532 = vld [vmem:[%s516 + $0x68] sm:$0xff]
                  %533 = vst [vmem:[%s517 + $0x38] sm:$0xff] %v532
                  %v534 = vld [vmem:[%s516 + $0x80] sm:$0xff]
                  %535 = vst [vmem:[%s517 + $0x40] sm:$0xff] %v534
                  %v536 = vld [vmem:[%s516 + $0x88] sm:$0xff]
                  %537 = vst [vmem:[%s517 + $0x48] sm:$0xff] %v536
                  %v538 = vld [vmem:[%s516 + $0xa0] sm:$0xff]
                  %539 = vst [vmem:[%s517 + $0x50] sm:$0xff] %v538
                  %v540 = vld [vmem:[%s516 + $0xa8] sm:$0xff]
                  %541 = vst [vmem:[%s517 + $0x58] sm:$0xff] %v540
                  %v542 = vld [vmem:[%s516 + $0xc0] sm:$0xff]
                  %543 = vst [vmem:[%s517 + $0x60] sm:$0xff] %v542
                  %v544 = vld [vmem:[%s516 + $0xc8] sm:$0xff]
                  %545 = vst [vmem:[%s517 + $0x68] sm:$0xff] %v544
                  %v546 = vld [vmem:[%s516 + $0xe0] sm:$0xff]
                  %547 = vst [vmem:[%s517 + $0x70] sm:$0xff] %v546
                  %v548 = vld [vmem:[%s516 + $0xe8] sm:$0xff]
                  %549 = vst [vmem:[%s517 + $0x78] sm:$0xff] %v548
                  %v550 = vld [vmem:[%s516 + $0x100] sm:$0xff]
                  %551 = vst [vmem:[%s517 + $0x80] sm:$0xff] %v550
                  %v552 = vld [vmem:[%s516 + $0x108] sm:$0xff]
                  %553 = vst [vmem:[%s517 + $0x88] sm:$0xff] %v552
                  %v554 = vld [vmem:[%s516 + $0x120] sm:$0xff]
                  %555 = vst [vmem:[%s517 + $0x90] sm:$0xff] %v554
                  %v556 = vld [vmem:[%s516 + $0x128] sm:$0xff]
                  %557 = vst [vmem:[%s517 + $0x98] sm:$0xff] %v556
                  %v558 = vld [vmem:[%s516 + $0x140] sm:$0xff]
                  %559 = vst [vmem:[%s517 + $0xa0] sm:$0xff] %v558
                  %v560 = vld [vmem:[%s516 + $0x148] sm:$0xff]
                  %561 = vst [vmem:[%s517 + $0xa8] sm:$0xff] %v560
                  %v562 = vld [vmem:[%s516 + $0x160] sm:$0xff]
                  %563 = vst [vmem:[%s517 + $0xb0] sm:$0xff] %v562
                  %v564 = vld [vmem:[%s516 + $0x168] sm:$0xff]
                  %565 = vst [vmem:[%s517 + $0xb8] sm:$0xff] %v564
                $region96: #{gclstm_forward.1} parent=90 // loop_footer
                  %s515 = sadd.s32 1, %s511
                $region97: #{gclstm_forward.1} parent=90 // loop_footer_branch
                  %510 = sbr.rel target = $region93
                $region98: #{gclstm_forward.1} parent=90 // loop_exit
                  _
              $region91: #{gclstm_forward.1} parent=75 // pred_fallthru
                _
              // Predicated region
              $region99: #{gclstm_forward.1} parent=75 // pred_check
                _
              $region100: #{gclstm_forward.1} parent=75 // pred_check_branch
                %567 = sbr.rel target = $region102
              $region101: #{gclstm_forward.1} parent=75 // pred_region
                _
              $region102: #{gclstm_forward.1} parent=75 // pred_fallthru
                _
            $region76: #{gclstm_forward.1} parent=71 // pred_fallthru
              _
            // Predicated region
            $region77: #{gclstm_forward.1} parent=71 // pred_check
              _
            $region78: #{gclstm_forward.1} parent=71 // pred_check_branch
              %449 = sbr.rel target = $region80
            $region79: #{gclstm_forward.1} parent=71 // pred_region
              %s451 = ssub.s32 256, 1
              loop: start=0, step=1, limit=1
              $region81: #{gclstm_forward.1} parent=79 // loop_pre_header
                _
              $region82: #{gclstm_forward.1} parent=79 // loop_header
                %s453 = sphi 0, %s457
                %p454 = scmp.ge.s32.totalorder %s453, 1
                %s458 = sphi %s443, %s443
                %s459 = sphi %s440, %s440
              $region83: #{gclstm_forward.1} parent=79 // loop_header_branch
                %456 = sbr.rel (%p454) target = $region87
              $region84: #{gclstm_forward.1} parent=79 // loop_body
                %v460 = vld [vmem:[%s458] sm:%s451]
                %461 = vst [vmem:[%s459] sm:%s451] %v460
                %v462 = vld [vmem:[%s458 + $0x8] sm:%s451]
                %463 = vst [vmem:[%s459 + $0x8] sm:%s451] %v462
                %v464 = vld [vmem:[%s458 + $0x20] sm:%s451]
                %465 = vst [vmem:[%s459 + $0x10] sm:%s451] %v464
                %v466 = vld [vmem:[%s458 + $0x28] sm:%s451]
                %467 = vst [vmem:[%s459 + $0x18] sm:%s451] %v466
                %v468 = vld [vmem:[%s458 + $0x40] sm:%s451]
                %469 = vst [vmem:[%s459 + $0x20] sm:%s451] %v468
                %v470 = vld [vmem:[%s458 + $0x48] sm:%s451]
                %471 = vst [vmem:[%s459 + $0x28] sm:%s451] %v470
                %v472 = vld [vmem:[%s458 + $0x60] sm:%s451]
                %473 = vst [vmem:[%s459 + $0x30] sm:%s451] %v472
                %v474 = vld [vmem:[%s458 + $0x68] sm:%s451]
                %475 = vst [vmem:[%s459 + $0x38] sm:%s451] %v474
                %v476 = vld [vmem:[%s458 + $0x80] sm:%s451]
                %477 = vst [vmem:[%s459 + $0x40] sm:%s451] %v476
                %v478 = vld [vmem:[%s458 + $0x88] sm:%s451]
                %479 = vst [vmem:[%s459 + $0x48] sm:%s451] %v478
                %v480 = vld [vmem:[%s458 + $0xa0] sm:%s451]
                %481 = vst [vmem:[%s459 + $0x50] sm:%s451] %v480
                %v482 = vld [vmem:[%s458 + $0xa8] sm:%s451]
                %483 = vst [vmem:[%s459 + $0x58] sm:%s451] %v482
                %v484 = vld [vmem:[%s458 + $0xc0] sm:%s451]
                %485 = vst [vmem:[%s459 + $0x60] sm:%s451] %v484
                %v486 = vld [vmem:[%s458 + $0xc8] sm:%s451]
                %487 = vst [vmem:[%s459 + $0x68] sm:%s451] %v486
                %v488 = vld [vmem:[%s458 + $0xe0] sm:%s451]
                %489 = vst [vmem:[%s459 + $0x70] sm:%s451] %v488
                %v490 = vld [vmem:[%s458 + $0xe8] sm:%s451]
                %491 = vst [vmem:[%s459 + $0x78] sm:%s451] %v490
                %v492 = vld [vmem:[%s458 + $0x100] sm:%s451]
                %493 = vst [vmem:[%s459 + $0x80] sm:%s451] %v492
                %v494 = vld [vmem:[%s458 + $0x108] sm:%s451]
                %495 = vst [vmem:[%s459 + $0x88] sm:%s451] %v494
                %v496 = vld [vmem:[%s458 + $0x120] sm:%s451]
                %497 = vst [vmem:[%s459 + $0x90] sm:%s451] %v496
                %v498 = vld [vmem:[%s458 + $0x128] sm:%s451]
                %499 = vst [vmem:[%s459 + $0x98] sm:%s451] %v498
                %v500 = vld [vmem:[%s458 + $0x140] sm:%s451]
                %501 = vst [vmem:[%s459 + $0xa0] sm:%s451] %v500
                %v502 = vld [vmem:[%s458 + $0x148] sm:%s451]
                %503 = vst [vmem:[%s459 + $0xa8] sm:%s451] %v502
                %v504 = vld [vmem:[%s458 + $0x160] sm:%s451]
                %505 = vst [vmem:[%s459 + $0xb0] sm:%s451] %v504
                %v506 = vld [vmem:[%s458 + $0x168] sm:%s451]
                %507 = vst [vmem:[%s459 + $0xb8] sm:%s451] %v506
              $region85: #{gclstm_forward.1} parent=79 // loop_footer
                %s457 = sadd.s32 1, %s453
              $region86: #{gclstm_forward.1} parent=79 // loop_footer_branch
                %452 = sbr.rel target = $region82
              $region87: #{gclstm_forward.1} parent=79 // loop_exit
                _
            $region80: #{gclstm_forward.1} parent=71 // pred_fallthru
              _
          $region72: #{gclstm_forward.1} parent=67 // pred_fallthru
            _
          %568 = vnop
        $region68: #{gclstm_forward.1} parent=63 // pred_fallthru
          _
        // Predicated region
        $region103: #{gclstm_forward.1} parent=63 // pred_check
          %p569 = pneg %p69
        $region104: #{gclstm_forward.1} parent=63 // pred_check_branch
          %571 = sbr.rel (%p569) target = $region106
        $region105: #{gclstm_forward.1} parent=63 // pred_region
          %s572 = smul.u32 2, %s23
          %p573 = scmp.lt.s32.totalorder %s572, 3
          %s574 = scalar_select %p573, %s572, 3
          %s575 = smul.addr %s574, 8
          %s576 = scalar_lea.vmem %s1, %s575
          %s577 = smul.u32 2, %s23
        $region106: #{gclstm_forward.1} parent=63 // pred_fallthru
          _
        // Predicated region
        $region107: #{gclstm_forward.1} parent=63 // pred_check
          %p578 = pneg %p95
        $region108: #{gclstm_forward.1} parent=63 // pred_check_branch
          %580 = sbr.rel (%p578) target = $region110
        $region109: #{gclstm_forward.1} parent=63 // pred_region
          %s581 = sand.u32 %s85, 1
          %s582 = sand.u32 %s85, 1
          %s583 = smul.addr %s582, 192
          %s584 = scalar_lea.vmem [#allocation4], %s583
          %s585 = smul.u32 2, %s23
          %s586 = smul.addr %s585, 8
          %s587 = scalar_lea.vmem %s2, %s586
          // Predicated region
          $region111: #{gclstm_forward.1} parent=109 // pred_check
            _
          $region112: #{gclstm_forward.1} parent=109 // pred_check_branch
            %589 = sbr.rel (0) target = $region114
          $region113: #{gclstm_forward.1} parent=109 // pred_region
            // Predicated region
            $region115: #{gclstm_forward.1} parent=113 // pred_check
              _
            $region116: #{gclstm_forward.1} parent=113 // pred_check_branch
              %591 = sbr.rel (0) target = $region118
            $region117: #{gclstm_forward.1} parent=113 // pred_region
              // Predicated region
              $region130: #{gclstm_forward.1} parent=117 // pred_check
                _
              $region131: #{gclstm_forward.1} parent=117 // pred_check_branch
                %653 = sbr.rel (0) target = $region133
              $region132: #{gclstm_forward.1} parent=117 // pred_region
                loop: start=0, step=1, limit=1
                $region134: #{gclstm_forward.1} parent=132 // loop_pre_header
                  _
                $region135: #{gclstm_forward.1} parent=132 // loop_header
                  %s655 = sphi 0, %s659
                  %p656 = scmp.ge.s32.totalorder %s655, 1
                  %s660 = sphi %s587, %s587
                  %s661 = sphi %s584, %s584
                $region136: #{gclstm_forward.1} parent=132 // loop_header_branch
                  %658 = sbr.rel (%p656) target = $region140
                $region137: #{gclstm_forward.1} parent=132 // loop_body
                  %v662 = vld [vmem:[%s660] sm:$0xff]
                  %663 = vst [vmem:[%s661] sm:$0xff] %v662
                  %v664 = vld [vmem:[%s660 + $0x8] sm:$0xff]
                  %665 = vst [vmem:[%s661 + $0x8] sm:$0xff] %v664
                  %v666 = vld [vmem:[%s660 + $0x20] sm:$0xff]
                  %667 = vst [vmem:[%s661 + $0x10] sm:$0xff] %v666
                  %v668 = vld [vmem:[%s660 + $0x28] sm:$0xff]
                  %669 = vst [vmem:[%s661 + $0x18] sm:$0xff] %v668
                  %v670 = vld [vmem:[%s660 + $0x40] sm:$0xff]
                  %671 = vst [vmem:[%s661 + $0x20] sm:$0xff] %v670
                  %v672 = vld [vmem:[%s660 + $0x48] sm:$0xff]
                  %673 = vst [vmem:[%s661 + $0x28] sm:$0xff] %v672
                  %v674 = vld [vmem:[%s660 + $0x60] sm:$0xff]
                  %675 = vst [vmem:[%s661 + $0x30] sm:$0xff] %v674
                  %v676 = vld [vmem:[%s660 + $0x68] sm:$0xff]
                  %677 = vst [vmem:[%s661 + $0x38] sm:$0xff] %v676
                  %v678 = vld [vmem:[%s660 + $0x80] sm:$0xff]
                  %679 = vst [vmem:[%s661 + $0x40] sm:$0xff] %v678
                  %v680 = vld [vmem:[%s660 + $0x88] sm:$0xff]
                  %681 = vst [vmem:[%s661 + $0x48] sm:$0xff] %v680
                  %v682 = vld [vmem:[%s660 + $0xa0] sm:$0xff]
                  %683 = vst [vmem:[%s661 + $0x50] sm:$0xff] %v682
                  %v684 = vld [vmem:[%s660 + $0xa8] sm:$0xff]
                  %685 = vst [vmem:[%s661 + $0x58] sm:$0xff] %v684
                  %v686 = vld [vmem:[%s660 + $0xc0] sm:$0xff]
                  %687 = vst [vmem:[%s661 + $0x60] sm:$0xff] %v686
                  %v688 = vld [vmem:[%s660 + $0xc8] sm:$0xff]
                  %689 = vst [vmem:[%s661 + $0x68] sm:$0xff] %v688
                  %v690 = vld [vmem:[%s660 + $0xe0] sm:$0xff]
                  %691 = vst [vmem:[%s661 + $0x70] sm:$0xff] %v690
                  %v692 = vld [vmem:[%s660 + $0xe8] sm:$0xff]
                  %693 = vst [vmem:[%s661 + $0x78] sm:$0xff] %v692
                  %v694 = vld [vmem:[%s660 + $0x100] sm:$0xff]
                  %695 = vst [vmem:[%s661 + $0x80] sm:$0xff] %v694
                  %v696 = vld [vmem:[%s660 + $0x108] sm:$0xff]
                  %697 = vst [vmem:[%s661 + $0x88] sm:$0xff] %v696
                  %v698 = vld [vmem:[%s660 + $0x120] sm:$0xff]
                  %699 = vst [vmem:[%s661 + $0x90] sm:$0xff] %v698
                  %v700 = vld [vmem:[%s660 + $0x128] sm:$0xff]
                  %701 = vst [vmem:[%s661 + $0x98] sm:$0xff] %v700
                  %v702 = vld [vmem:[%s660 + $0x140] sm:$0xff]
                  %703 = vst [vmem:[%s661 + $0xa0] sm:$0xff] %v702
                  %v704 = vld [vmem:[%s660 + $0x148] sm:$0xff]
                  %705 = vst [vmem:[%s661 + $0xa8] sm:$0xff] %v704
                  %v706 = vld [vmem:[%s660 + $0x160] sm:$0xff]
                  %707 = vst [vmem:[%s661 + $0xb0] sm:$0xff] %v706
                  %v708 = vld [vmem:[%s660 + $0x168] sm:$0xff]
                  %709 = vst [vmem:[%s661 + $0xb8] sm:$0xff] %v708
                $region138: #{gclstm_forward.1} parent=132 // loop_footer
                  %s659 = sadd.s32 1, %s655
                $region139: #{gclstm_forward.1} parent=132 // loop_footer_branch
                  %654 = sbr.rel target = $region135
                $region140: #{gclstm_forward.1} parent=132 // loop_exit
                  _
              $region133: #{gclstm_forward.1} parent=117 // pred_fallthru
                _
              // Predicated region
              $region141: #{gclstm_forward.1} parent=117 // pred_check
                _
              $region142: #{gclstm_forward.1} parent=117 // pred_check_branch
                %711 = sbr.rel target = $region144
              $region143: #{gclstm_forward.1} parent=117 // pred_region
                _
              $region144: #{gclstm_forward.1} parent=117 // pred_fallthru
                _
            $region118: #{gclstm_forward.1} parent=113 // pred_fallthru
              _
            // Predicated region
            $region119: #{gclstm_forward.1} parent=113 // pred_check
              _
            $region120: #{gclstm_forward.1} parent=113 // pred_check_branch
              %593 = sbr.rel target = $region122
            $region121: #{gclstm_forward.1} parent=113 // pred_region
              %s595 = ssub.s32 256, 1
              loop: start=0, step=1, limit=1
              $region123: #{gclstm_forward.1} parent=121 // loop_pre_header
                _
              $region124: #{gclstm_forward.1} parent=121 // loop_header
                %s597 = sphi 0, %s601
                %p598 = scmp.ge.s32.totalorder %s597, 1
                %s602 = sphi %s587, %s587
                %s603 = sphi %s584, %s584
              $region125: #{gclstm_forward.1} parent=121 // loop_header_branch
                %600 = sbr.rel (%p598) target = $region129
              $region126: #{gclstm_forward.1} parent=121 // loop_body
                %v604 = vld [vmem:[%s602] sm:%s595]
                %605 = vst [vmem:[%s603] sm:%s595] %v604
                %v606 = vld [vmem:[%s602 + $0x8] sm:%s595]
                %607 = vst [vmem:[%s603 + $0x8] sm:%s595] %v606
                %v608 = vld [vmem:[%s602 + $0x20] sm:%s595]
                %609 = vst [vmem:[%s603 + $0x10] sm:%s595] %v608
                %v610 = vld [vmem:[%s602 + $0x28] sm:%s595]
                %611 = vst [vmem:[%s603 + $0x18] sm:%s595] %v610
                %v612 = vld [vmem:[%s602 + $0x40] sm:%s595]
                %613 = vst [vmem:[%s603 + $0x20] sm:%s595] %v612
                %v614 = vld [vmem:[%s602 + $0x48] sm:%s595]
                %615 = vst [vmem:[%s603 + $0x28] sm:%s595] %v614
                %v616 = vld [vmem:[%s602 + $0x60] sm:%s595]
                %617 = vst [vmem:[%s603 + $0x30] sm:%s595] %v616
                %v618 = vld [vmem:[%s602 + $0x68] sm:%s595]
                %619 = vst [vmem:[%s603 + $0x38] sm:%s595] %v618
                %v620 = vld [vmem:[%s602 + $0x80] sm:%s595]
                %621 = vst [vmem:[%s603 + $0x40] sm:%s595] %v620
                %v622 = vld [vmem:[%s602 + $0x88] sm:%s595]
                %623 = vst [vmem:[%s603 + $0x48] sm:%s595] %v622
                %v624 = vld [vmem:[%s602 + $0xa0] sm:%s595]
                %625 = vst [vmem:[%s603 + $0x50] sm:%s595] %v624
                %v626 = vld [vmem:[%s602 + $0xa8] sm:%s595]
                %627 = vst [vmem:[%s603 + $0x58] sm:%s595] %v626
                %v628 = vld [vmem:[%s602 + $0xc0] sm:%s595]
                %629 = vst [vmem:[%s603 + $0x60] sm:%s595] %v628
                %v630 = vld [vmem:[%s602 + $0xc8] sm:%s595]
                %631 = vst [vmem:[%s603 + $0x68] sm:%s595] %v630
                %v632 = vld [vmem:[%s602 + $0xe0] sm:%s595]
                %633 = vst [vmem:[%s603 + $0x70] sm:%s595] %v632
                %v634 = vld [vmem:[%s602 + $0xe8] sm:%s595]
                %635 = vst [vmem:[%s603 + $0x78] sm:%s595] %v634
                %v636 = vld [vmem:[%s602 + $0x100] sm:%s595]
                %637 = vst [vmem:[%s603 + $0x80] sm:%s595] %v636
                %v638 = vld [vmem:[%s602 + $0x108] sm:%s595]
                %639 = vst [vmem:[%s603 + $0x88] sm:%s595] %v638
                %v640 = vld [vmem:[%s602 + $0x120] sm:%s595]
                %641 = vst [vmem:[%s603 + $0x90] sm:%s595] %v640
                %v642 = vld [vmem:[%s602 + $0x128] sm:%s595]
                %643 = vst [vmem:[%s603 + $0x98] sm:%s595] %v642
                %v644 = vld [vmem:[%s602 + $0x140] sm:%s595]
                %645 = vst [vmem:[%s603 + $0xa0] sm:%s595] %v644
                %v646 = vld [vmem:[%s602 + $0x148] sm:%s595]
                %647 = vst [vmem:[%s603 + $0xa8] sm:%s595] %v646
                %v648 = vld [vmem:[%s602 + $0x160] sm:%s595]
                %649 = vst [vmem:[%s603 + $0xb0] sm:%s595] %v648
                %v650 = vld [vmem:[%s602 + $0x168] sm:%s595]
                %651 = vst [vmem:[%s603 + $0xb8] sm:%s595] %v650
              $region127: #{gclstm_forward.1} parent=121 // loop_footer
                %s601 = sadd.s32 1, %s597
              $region128: #{gclstm_forward.1} parent=121 // loop_footer_branch
                %596 = sbr.rel target = $region124
              $region129: #{gclstm_forward.1} parent=121 // loop_exit
                _
            $region122: #{gclstm_forward.1} parent=113 // pred_fallthru
              _
          $region114: #{gclstm_forward.1} parent=109 // pred_fallthru
            _
          %712 = vnop
        $region110: #{gclstm_forward.1} parent=63 // pred_fallthru
          _
      $region64: #{gclstm_forward.1} parent=5 // pred_fallthru
        _
      %p713 = scmp.le.s32.totalorder 1, %s23
      %p714 = scmp.lt.s32.totalorder %s23, 3
      %p715 = pnand %p713, %p714
      %p716 = pneg %p715
      // Predicated region
      $region145: #{gclstm_forward.1} parent=5 // pred_check
        _
      $region146: #{gclstm_forward.1} parent=5 // pred_check_branch
        %718 = sbr.rel (%p715) target = $region148
      $region147: #{gclstm_forward.1} parent=5 // pred_region
        %s719 = ssub.s32 %s23, 1
        %s720 = sand.u32 %s36, 1
        %s721 = sand.u32 %s36, 1
        %s722 = smul.addr %s721, 192
        %s723 = scalar_lea.vmem [#allocation3], %s722
        // Predicated region
        $region149: #{gclstm_forward.1} parent=147 // pred_check
          %p724 = pneg %p49
        $region150: #{gclstm_forward.1} parent=147 // pred_check_branch
          %726 = sbr.rel (%p724) target = $region152
        $region151: #{gclstm_forward.1} parent=147 // pred_region
          _
        $region152: #{gclstm_forward.1} parent=147 // pred_fallthru
          _
        %s727 = sand.u32 %s88, 1
        %s728 = sand.u32 %s88, 1
        %s729 = smul.addr %s728, 192
        %s730 = scalar_lea.vmem [#allocation4], %s729
        // Predicated region
        $region153: #{gclstm_forward.1} parent=147 // pred_check
          %p731 = pneg %p101
        $region154: #{gclstm_forward.1} parent=147 // pred_check_branch
          %733 = sbr.rel (%p731) target = $region156
        $region155: #{gclstm_forward.1} parent=147 // pred_region
          _
        $region156: #{gclstm_forward.1} parent=147 // pred_fallthru
          _
        %s734 = sand.u32 %s36, 1
        %s735 = sand.u32 %s36, 1
        %s736 = smul.addr %s735, 192
        %s737 = scalar_lea.vmem [#allocation3], %s736
        %p738 = pneg %p49
        %p739 = pneg %p46
        %s740 = smul.u32 2, %s28
        %p741 = scmp.lt.s32.totalorder %s740, 3
        %s742 = scalar_select %p741, %s740, 3
        %s743 = smul.addr %s742, 8
        %s744 = scalar_lea.vmem %s1, %s743
        %p745 = pneg %p75
        %p746 = pneg %p72
        %s747 = sand.u32 %s88, 1
        %s748 = sand.u32 %s88, 1
        %s749 = smul.addr %s748, 192
        %s750 = scalar_lea.vmem [#allocation4], %s749
        %p751 = pneg %p101
        %p752 = pneg %p98
        %p753 = pneg %p122
        %p754 = pneg %p119
        %p755 = pneg %p143
        %p756 = pneg %p140
        %p757 = pneg %p164
        %p758 = pneg %p161
        %p759 = pneg %p185
        %p760 = pneg %p182
        %p761 = pneg %p206
        %p762 = pneg %p203
        %p763 = pneg %p227
        %p764 = pneg %p224
        %p765 = pneg %p248
        %p766 = pneg %p245
        %p767 = pneg %p269
        %p768 = pneg %p266
        %p769 = pneg %p290
        %p770 = pneg %p287
        %p771 = pneg %p311
        %p772 = pneg %p308
        %p773 = pneg %p332
        %p774 = pneg %p329
        %p775 = pneg %p353
        %p776 = pneg %p350
        %p777 = pneg %p379
        %p778 = pneg %p376
        %s779 = smul.u32 2, %s28
        %p780 = scmp.lt.s32.totalorder %s779, 3
        %s781 = scalar_select %p780, %s779, 3
        %s782 = smul.addr %s781, 8
        %s783 = scalar_lea.vmem %s15, %s782
        %s784 = smul.u32 2, %s28
        %s785 = smul.u32 2, %s28
        %p786 = scmp.lt.s32.totalorder %s785, 3
        %s787 = scalar_select %p786, %s785, 3
        %s788 = smul.addr %s787, 8
        %s789 = scalar_lea.vmem %s1, %s788
        %s790 = smul.u32 2, %s28
        %s791 = smul.u32 2, %s28
        %s792 = smul.u32 2, %s28
        %p793 = scmp.lt.s32.totalorder %s792, 3
        %s794 = scalar_select %p793, %s792, 3
        %s795 = smul.addr %s794, 8
        %s796 = scalar_lea.vmem %s15, %s795
        %s797 = smul.u32 2, %s28
        %v798 = vld [vmem:[%s723] sm:$0xff]
        %v799 = vld [vmem:[%s723 + $0x8] sm:$0xff]
        %v800 = vld [vmem:[%s723 + $0x10] sm:$0xff]
        %v801 = vld [vmem:[%s723 + $0x18] sm:$0xff]
        %v802 = vld [vmem:[%s723 + $0x20] sm:$0xff]
        %v803 = vld [vmem:[%s723 + $0x28] sm:$0xff]
        %v804 = vld [vmem:[%s723 + $0x30] sm:$0xff]
        %v805 = vld [vmem:[%s723 + $0x38] sm:$0xff]
        %v806 = vld [vmem:[%s723 + $0x40] sm:$0xff]
        %v807 = vld [vmem:[%s723 + $0x48] sm:$0xff]
        %v808 = vld [vmem:[%s723 + $0x50] sm:$0xff]
        %v809 = vld [vmem:[%s723 + $0x58] sm:$0xff]
        %v810 = vld [vmem:[%s723 + $0x60] sm:$0xff]
        %v811 = vld [vmem:[%s723 + $0x68] sm:$0xff]
        %v812 = vld [vmem:[%s723 + $0x70] sm:$0xff]
        %v813 = vld [vmem:[%s723 + $0x78] sm:$0xff]
        %v814 = vld [vmem:[%s723 + $0x80] sm:$0xff]
        %v815 = vld [vmem:[%s723 + $0x88] sm:$0xff]
        %v816 = vld [vmem:[%s723 + $0x90] sm:$0xff]
        %v817 = vld [vmem:[%s723 + $0x98] sm:$0xff]
        %v818 = vld [vmem:[%s723 + $0xa0] sm:$0xff]
        %v819 = vld [vmem:[%s723 + $0xa8] sm:$0xff]
        %v820 = vld [vmem:[%s723 + $0xb0] sm:$0xff]
        %v821 = vld [vmem:[%s723 + $0xb8] sm:$0xff]
        %v822 = vld [vmem:[%s4] sm:$0xff]
        %v823 = vld [vmem:[%s4 + $0x8] sm:$0xff]
        %v824 = vld [vmem:[%s4 + $0x10] sm:$0xff]
        %v825 = vld [vmem:[%s4 + $0x18] sm:$0xff]
        %v826 = vld [vmem:[%s4 + $0x20] sm:$0xff]
        %v827 = vld [vmem:[%s4 + $0x28] sm:$0xff]
        %v828 = vld [vmem:[%s4 + $0x30] sm:$0xff]
        %v829 = vld [vmem:[%s4 + $0x38] sm:$0xff]
        %v830 = vld [vmem:[%s4 + $0x40] sm:$0xff]
        %v831 = vld [vmem:[%s4 + $0x48] sm:$0xff]
        %v832 = vld [vmem:[%s4 + $0x50] sm:$0xff]
        %v833 = vld [vmem:[%s4 + $0x58] sm:$0xff]
        %v834 = vld [vmem:[%s4 + $0x60] sm:$0xff]
        %v835 = vld [vmem:[%s4 + $0x68] sm:$0xff]
        %v836 = vld [vmem:[%s4 + $0x70] sm:$0xff]
        %v837 = vld [vmem:[%s4 + $0x78] sm:$0xff]
        %v838 = vld [vmem:[%s4 + $0x80] sm:$0xff]
        %v839 = vld [vmem:[%s4 + $0x88] sm:$0xff]
        %v840 = vld [vmem:[%s4 + $0x90] sm:$0xff]
        %v841 = vld [vmem:[%s4 + $0x98] sm:$0xff]
        %v842 = vld [vmem:[%s4 + $0xa0] sm:$0xff]
        %v843 = vld [vmem:[%s4 + $0xa8] sm:$0xff]
        %v844 = vld [vmem:[%s4 + $0xb0] sm:$0xff]
        %v845 = vld [vmem:[%s4 + $0xb8] sm:$0xff]
        %v846 = vld [vmem:[%s4 + $0xc0] sm:$0xff]
        %v847 = vld [vmem:[%s4 + $0xc8] sm:$0xff]
        %v848 = vld [vmem:[%s4 + $0xd0] sm:$0xff]
        %v849 = vld [vmem:[%s4 + $0xd8] sm:$0xff]
        %v850 = vld [vmem:[%s4 + $0xe0] sm:$0xff]
        %v851 = vld [vmem:[%s4 + $0xe8] sm:$0xff]
        %v852 = vld [vmem:[%s4 + $0xf0] sm:$0xff]
        %v853 = vld [vmem:[%s4 + $0xf8] sm:$0xff]
        %v854 = vld [vmem:[%s4 + $0x100] sm:$0xff]
        %v855 = vld [vmem:[%s4 + $0x108] sm:$0xff]
        %v856 = vld [vmem:[%s4 + $0x110] sm:$0xff]
        %v857 = vld [vmem:[%s4 + $0x118] sm:$0xff]
        %v858 = vld [vmem:[%s4 + $0x120] sm:$0xff]
        %v859 = vld [vmem:[%s4 + $0x128] sm:$0xff]
        %v860 = vld [vmem:[%s4 + $0x130] sm:$0xff]
        %v861 = vld [vmem:[%s4 + $0x138] sm:$0xff]
        %v862 = vld [vmem:[%s4 + $0x140] sm:$0xff]
        %v863 = vld [vmem:[%s4 + $0x148] sm:$0xff]
        %v864 = vld [vmem:[%s4 + $0x150] sm:$0xff]
        %v865 = vld [vmem:[%s4 + $0x158] sm:$0xff]
        %v866 = vld [vmem:[%s4 + $0x160] sm:$0xff]
        %v867 = vld [vmem:[%s4 + $0x168] sm:$0xff]
        %v868 = vld [vmem:[%s4 + $0x170] sm:$0xff]
        %v869 = vld [vmem:[%s4 + $0x178] sm:$0xff]
        %v870 = vld [vmem:[%s4 + $0x180] sm:$0xff]
        %v871 = vld [vmem:[%s4 + $0x188] sm:$0xff]
        %v872 = vld [vmem:[%s4 + $0x190] sm:$0xff]
        %v873 = vld [vmem:[%s4 + $0x198] sm:$0xff]
        %v874 = vld [vmem:[%s4 + $0x1a0] sm:$0xff]
        %v875 = vld [vmem:[%s4 + $0x1a8] sm:$0xff]
        %v876 = vld [vmem:[%s4 + $0x1b0] sm:$0xff]
        %v877 = vld [vmem:[%s4 + $0x1b8] sm:$0xff]
        %v878 = vld [vmem:[%s4 + $0x1c0] sm:$0xff]
        %v879 = vld [vmem:[%s4 + $0x1c8] sm:$0xff]
        %v880 = vld [vmem:[%s4 + $0x1d0] sm:$0xff]
        %v881 = vld [vmem:[%s4 + $0x1d8] sm:$0xff]
        %v882 = vld [vmem:[%s4 + $0x1e0] sm:$0xff]
        %v883 = vld [vmem:[%s4 + $0x1e8] sm:$0xff]
        %v884 = vld [vmem:[%s4 + $0x1f0] sm:$0xff]
        %v885 = vld [vmem:[%s4 + $0x1f8] sm:$0xff]
        %v886 = vld [vmem:[%s4 + $0x200] sm:$0xff]
        %v887 = vld [vmem:[%s4 + $0x208] sm:$0xff]
        %v888 = vld [vmem:[%s4 + $0x210] sm:$0xff]
        %v889 = vld [vmem:[%s4 + $0x218] sm:$0xff]
        %v890 = vld [vmem:[%s4 + $0x220] sm:$0xff]
        %v891 = vld [vmem:[%s4 + $0x228] sm:$0xff]
        %v892 = vld [vmem:[%s4 + $0x230] sm:$0xff]
        %v893 = vld [vmem:[%s4 + $0x238] sm:$0xff]
        %v894 = vld [vmem:[%s4 + $0x240] sm:$0xff]
        %v895 = vld [vmem:[%s4 + $0x248] sm:$0xff]
        %v896 = vld [vmem:[%s4 + $0x250] sm:$0xff]
        %v897 = vld [vmem:[%s4 + $0x258] sm:$0xff]
        %v898 = vld [vmem:[%s4 + $0x260] sm:$0xff]
        %v899 = vld [vmem:[%s4 + $0x268] sm:$0xff]
        %v900 = vld [vmem:[%s4 + $0x270] sm:$0xff]
        %v901 = vld [vmem:[%s4 + $0x278] sm:$0xff]
        %v902 = vld [vmem:[%s4 + $0x280] sm:$0xff]
        %v903 = vld [vmem:[%s4 + $0x288] sm:$0xff]
        %v904 = vld [vmem:[%s4 + $0x290] sm:$0xff]
        %v905 = vld [vmem:[%s4 + $0x298] sm:$0xff]
        %v906 = vld [vmem:[%s4 + $0x2a0] sm:$0xff]
        %v907 = vld [vmem:[%s4 + $0x2a8] sm:$0xff]
        %v908 = vld [vmem:[%s4 + $0x2b0] sm:$0xff]
        %v909 = vld [vmem:[%s4 + $0x2b8] sm:$0xff]
        %v910 = vld [vmem:[%s4 + $0x2c0] sm:$0xff]
        %v911 = vld [vmem:[%s4 + $0x2c8] sm:$0xff]
        %v912 = vld [vmem:[%s4 + $0x2d0] sm:$0xff]
        %v913 = vld [vmem:[%s4 + $0x2d8] sm:$0xff]
        %v914 = vld [vmem:[%s4 + $0x2e0] sm:$0xff]
        %v915 = vld [vmem:[%s4 + $0x2e8] sm:$0xff]
        %v916 = vld [vmem:[%s4 + $0x2f0] sm:$0xff]
        %v917 = vld [vmem:[%s4 + $0x2f8] sm:$0xff]
        %v918 = vld [vmem:[%s4 + $0x300] sm:$0xff]
        %v919 = vld [vmem:[%s4 + $0x308] sm:$0xff]
        %v920 = vld [vmem:[%s4 + $0x310] sm:$0xff]
        %v921 = vld [vmem:[%s4 + $0x318] sm:$0xff]
        %v922 = vld [vmem:[%s4 + $0x320] sm:$0xff]
        %v923 = vld [vmem:[%s4 + $0x328] sm:$0xff]
        %v924 = vld [vmem:[%s4 + $0x330] sm:$0xff]
        %v925 = vld [vmem:[%s4 + $0x338] sm:$0xff]
        %v926 = vld [vmem:[%s4 + $0x340] sm:$0xff]
        %v927 = vld [vmem:[%s4 + $0x348] sm:$0xff]
        %v928 = vld [vmem:[%s4 + $0x350] sm:$0xff]
        %v929 = vld [vmem:[%s4 + $0x358] sm:$0xff]
        %v930 = vld [vmem:[%s4 + $0x360] sm:$0xff]
        %v931 = vld [vmem:[%s4 + $0x368] sm:$0xff]
        %v932 = vld [vmem:[%s4 + $0x370] sm:$0xff]
        %v933 = vld [vmem:[%s4 + $0x378] sm:$0xff]
        %v934 = vld [vmem:[%s4 + $0x380] sm:$0xff]
        %v935 = vld [vmem:[%s4 + $0x388] sm:$0xff]
        %v936 = vld [vmem:[%s4 + $0x390] sm:$0xff]
        %v937 = vld [vmem:[%s4 + $0x398] sm:$0xff]
        %v938 = vld [vmem:[%s4 + $0x3a0] sm:$0xff]
        %v939 = vld [vmem:[%s4 + $0x3a8] sm:$0xf]
        %v940 = vld [vmem:[%s4 + $0x3b0] sm:$0xf]
        %v941 = vld [vmem:[%s4 + $0x3b8] sm:$0xf]
        %v942 = vld [vmem:[%s4 + $0x3c0] sm:$0xf]
        %v943 = vld [vmem:[%s4 + $0x3c8] sm:$0xf]
        %v944 = vld [vmem:[%s4 + $0x3d0] sm:$0xf]
        %v945 = vld [vmem:[%s4 + $0x3d8] sm:$0xf]
        %v946 = vld [vmem:[%s4 + $0x3e0] sm:$0xf]
        %v947 = vld [vmem:[%s4 + $0x3e8] sm:$0xf]
        %vm948 = vcmask 883712
        %v950 = vsel %vm948, %v798, 0
        %v953 = vsel %vm948, %v799, 0
        %v956 = vsel %vm948, %v800, 0
        %v959 = vsel %vm948, %v801, 0
        %v962 = vsel %vm948, %v802, 0
        %v965 = vsel %vm948, %v803, 0
        %v968 = vsel %vm948, %v804, 0
        %v971 = vsel %vm948, %v805, 0
        %v974 = vsel %vm948, %v806, 0
        %v977 = vsel %vm948, %v807, 0
        %v980 = vsel %vm948, %v808, 0
        %v983 = vsel %vm948, %v809, 0
        %v986 = vsel %vm948, %v810, 0
        %v989 = vsel %vm948, %v811, 0
        %v992 = vsel %vm948, %v812, 0
        %v995 = vsel %vm948, %v813, 0
        %v998 = vsel %vm948, %v814, 0
        %v1001 = vsel %vm948, %v815, 0
        %v1004 = vsel %vm948, %v816, 0
        %v1007 = vsel %vm948, %v817, 0
        %v1010 = vsel %vm948, %v818, 0
        %v1013 = vsel %vm948, %v819, 0
        %v1016 = vsel %vm948, %v820, 0
        %v1019 = vsel %vm948, %v821, 0
        %vm1021 = vcmask 1043456
        %v1023 = vsel %vm1021, %v939, 0
        %v1026 = vsel %vm1021, %v940, 0
        %v1029 = vsel %vm1021, %v941, 0
        %v1032 = vsel %vm1021, %v942, 0
        %v1035 = vsel %vm1021, %v943, 0
        %v1038 = vsel %vm1021, %v944, 0
        %v1041 = vsel %vm1021, %v945, 0
        %v1044 = vsel %vm1021, %v946, 0
        %v1047 = vsel %vm1021, %v947, 0
        %1049 = vmatpush.msra.mxu0 0.0
        %1050 = vmatpush.msra.mxu0 0.0
        %1051 = vmatpush.msra.mxu0 %v1023
        %1052 = vmatpush.msra.mxu0 %v930
        %1053 = vmatpush.msra.mxu0 %v921
        %1054 = vmatpush.msra.mxu0 %v912
        %1055 = vmatpush.msra.mxu0 %v903
        %1056 = vmatpush.msra.mxu0 %v894
        %1057 = vmatpush.msra.mxu0 %v885
        %1058 = vmatpush.msra.mxu0 %v876
        %1059 = vmatpush.msra.mxu0 %v867
        %1060 = vmatpush.msra.mxu0 %v858
        %1061 = vmatpush.msra.mxu0 %v849
        %1062 = vmatpush.msra.mxu0 %v840
        %1063 = vmatpush.msra.mxu0 %v831
        %1064 = vmatpush.msra.mxu0 %v822
        %1065 = vmatmul.f32.gmra.mxu0 %v950
        %v1066 = vpop.f32.mrf.mxu0
        %v1067 = vadd.f32 0.0, %v1066
        %1068 = vmatmul.f32.gmra.mxu0 %v953
        %v1069 = vpop.f32.mrf.mxu0
        %v1070 = vadd.f32 0.0, %v1069
        %1071 = vmatmul.f32.gmra.mxu0 %v956
        %v1072 = vpop.f32.mrf.mxu0
        %v1073 = vadd.f32 0.0, %v1072
        %1074 = vmatmul.f32.gmra.mxu0 %v959
        %v1075 = vpop.f32.mrf.mxu0
        %v1076 = vadd.f32 0.0, %v1075
        %1077 = vmatmul.f32.gmra.mxu0 %v962
        %v1078 = vpop.f32.mrf.mxu0
        %v1079 = vadd.f32 0.0, %v1078
        %1080 = vmatmul.f32.gmra.mxu0 %v965
        %v1081 = vpop.f32.mrf.mxu0
        %v1082 = vadd.f32 0.0, %v1081
        %1083 = vmatmul.f32.gmra.mxu0 %v968
        %v1084 = vpop.f32.mrf.mxu0
        %v1085 = vadd.f32 0.0, %v1084
        %1086 = vmatmul.f32.gmra.mxu0 %v971
        %v1087 = vpop.f32.mrf.mxu0
        %v1088 = vadd.f32 0.0, %v1087
        %1089 = vmatmul.f32.gmra.mxu0 %v974
        %v1090 = vpop.f32.mrf.mxu0
        %v1091 = vadd.f32 0.0, %v1090
        %1092 = vmatmul.f32.gmra.mxu0 %v977
        %v1093 = vpop.f32.mrf.mxu0
        %v1094 = vadd.f32 0.0, %v1093
        %1095 = vmatmul.f32.gmra.mxu0 %v980
        %v1096 = vpop.f32.mrf.mxu0
        %v1097 = vadd.f32 0.0, %v1096
        %1098 = vmatmul.f32.gmra.mxu0 %v983
        %v1099 = vpop.f32.mrf.mxu0
        %v1100 = vadd.f32 0.0, %v1099
        %1101 = vmatmul.f32.gmra.mxu0 %v986
        %v1102 = vpop.f32.mrf.mxu0
        %v1103 = vadd.f32 0.0, %v1102
        %1104 = vmatmul.f32.gmra.mxu0 %v989
        %v1105 = vpop.f32.mrf.mxu0
        %v1106 = vadd.f32 0.0, %v1105
        %1107 = vmatmul.f32.gmra.mxu0 %v992
        %v1108 = vpop.f32.mrf.mxu0
        %v1109 = vadd.f32 0.0, %v1108
        %1110 = vmatmul.f32.gmra.mxu0 %v995
        %v1111 = vpop.f32.mrf.mxu0
        %v1112 = vadd.f32 0.0, %v1111
        %1113 = vmatmul.f32.gmra.mxu0 %v998
        %v1114 = vpop.f32.mrf.mxu0
        %v1115 = vadd.f32 0.0, %v1114
        %1116 = vmatmul.f32.gmra.mxu0 %v1001
        %v1117 = vpop.f32.mrf.mxu0
        %v1118 = vadd.f32 0.0, %v1117
        %1119 = vmatmul.f32.gmra.mxu0 %v1004
        %v1120 = vpop.f32.mrf.mxu0
        %v1121 = vadd.f32 0.0, %v1120
        %1122 = vmatmul.f32.gmra.mxu0 %v1007
        %v1123 = vpop.f32.mrf.mxu0
        %v1124 = vadd.f32 0.0, %v1123
        %1125 = vmatmul.f32.gmra.mxu0 %v1010
        %v1126 = vpop.f32.mrf.mxu0
        %v1127 = vadd.f32 0.0, %v1126
        %1128 = vmatmul.f32.gmra.mxu0 %v1013
        %v1129 = vpop.f32.mrf.mxu0
        %v1130 = vadd.f32 0.0, %v1129
        %1131 = vmatmul.f32.gmra.mxu0 %v1016
        %v1132 = vpop.f32.mrf.mxu0
        %v1133 = vadd.f32 0.0, %v1132
        %1134 = vmatmul.f32.gmra.mxu0 %v1019
        %v1135 = vpop.f32.mrf.mxu0
        %v1136 = vadd.f32 0.0, %v1135
        %1137 = vdwg.mxu0
        %1138 = vmatpush.msra.mxu0 0.0
        %1139 = vmatpush.msra.mxu0 0.0
        %1140 = vmatpush.msra.mxu0 %v1026
        %1141 = vmatpush.msra.mxu0 %v931
        %1142 = vmatpush.msra.mxu0 %v922
        %1143 = vmatpush.msra.mxu0 %v913
        %1144 = vmatpush.msra.mxu0 %v904
        %1145 = vmatpush.msra.mxu0 %v895
        %1146 = vmatpush.msra.mxu0 %v886
        %1147 = vmatpush.msra.mxu0 %v877
        %1148 = vmatpush.msra.mxu0 %v868
        %1149 = vmatpush.msra.mxu0 %v859
        %1150 = vmatpush.msra.mxu0 %v850
        %1151 = vmatpush.msra.mxu0 %v841
        %1152 = vmatpush.msra.mxu0 %v832
        %1153 = vmatpush.msra.mxu0 %v823
        %1154 = vmatmul.f32.gmra.mxu0 %v950
        %v1155 = vpop.f32.mrf.mxu0
        %v1156 = vadd.f32 0.0, %v1155
        %1157 = vmatmul.f32.gmra.mxu0 %v953
        %v1158 = vpop.f32.mrf.mxu0
        %v1159 = vadd.f32 0.0, %v1158
        %1160 = vmatmul.f32.gmra.mxu0 %v956
        %v1161 = vpop.f32.mrf.mxu0
        %v1162 = vadd.f32 0.0, %v1161
        %1163 = vmatmul.f32.gmra.mxu0 %v959
        %v1164 = vpop.f32.mrf.mxu0
        %v1165 = vadd.f32 0.0, %v1164
        %1166 = vmatmul.f32.gmra.mxu0 %v962
        %v1167 = vpop.f32.mrf.mxu0
        %v1168 = vadd.f32 0.0, %v1167
        %1169 = vmatmul.f32.gmra.mxu0 %v965
        %v1170 = vpop.f32.mrf.mxu0
        %v1171 = vadd.f32 0.0, %v1170
        %1172 = vmatmul.f32.gmra.mxu0 %v968
        %v1173 = vpop.f32.mrf.mxu0
        %v1174 = vadd.f32 0.0, %v1173
        %1175 = vmatmul.f32.gmra.mxu0 %v971
        %v1176 = vpop.f32.mrf.mxu0
        %v1177 = vadd.f32 0.0, %v1176
        %1178 = vmatmul.f32.gmra.mxu0 %v974
        %v1179 = vpop.f32.mrf.mxu0
        %v1180 = vadd.f32 0.0, %v1179
        %1181 = vmatmul.f32.gmra.mxu0 %v977
        %v1182 = vpop.f32.mrf.mxu0
        %v1183 = vadd.f32 0.0, %v1182
        %1184 = vmatmul.f32.gmra.mxu0 %v980
        %v1185 = vpop.f32.mrf.mxu0
        %v1186 = vadd.f32 0.0, %v1185
        %1187 = vmatmul.f32.gmra.mxu0 %v983
        %v1188 = vpop.f32.mrf.mxu0
        %v1189 = vadd.f32 0.0, %v1188
        %1190 = vmatmul.f32.gmra.mxu0 %v986
        %v1191 = vpop.f32.mrf.mxu0
        %v1192 = vadd.f32 0.0, %v1191
        %1193 = vmatmul.f32.gmra.mxu0 %v989
        %v1194 = vpop.f32.mrf.mxu0
        %v1195 = vadd.f32 0.0, %v1194
        %1196 = vmatmul.f32.gmra.mxu0 %v992
        %v1197 = vpop.f32.mrf.mxu0
        %v1198 = vadd.f32 0.0, %v1197
        %1199 = vmatmul.f32.gmra.mxu0 %v995
        %v1200 = vpop.f32.mrf.mxu0
        %v1201 = vadd.f32 0.0, %v1200
        %1202 = vmatmul.f32.gmra.mxu0 %v998
        %v1203 = vpop.f32.mrf.mxu0
        %v1204 = vadd.f32 0.0, %v1203
        %1205 = vmatmul.f32.gmra.mxu0 %v1001
        %v1206 = vpop.f32.mrf.mxu0
        %v1207 = vadd.f32 0.0, %v1206
        %1208 = vmatmul.f32.gmra.mxu0 %v1004
        %v1209 = vpop.f32.mrf.mxu0
        %v1210 = vadd.f32 0.0, %v1209
        %1211 = vmatmul.f32.gmra.mxu0 %v1007
        %v1212 = vpop.f32.mrf.mxu0
        %v1213 = vadd.f32 0.0, %v1212
        %1214 = vmatmul.f32.gmra.mxu0 %v1010
        %v1215 = vpop.f32.mrf.mxu0
        %v1216 = vadd.f32 0.0, %v1215
        %1217 = vmatmul.f32.gmra.mxu0 %v1013
        %v1218 = vpop.f32.mrf.mxu0
        %v1219 = vadd.f32 0.0, %v1218
        %1220 = vmatmul.f32.gmra.mxu0 %v1016
        %v1221 = vpop.f32.mrf.mxu0
        %v1222 = vadd.f32 0.0, %v1221
        %1223 = vmatmul.f32.gmra.mxu0 %v1019
        %v1224 = vpop.f32.mrf.mxu0
        %v1225 = vadd.f32 0.0, %v1224
        %1226 = vdwg.mxu0
        %1227 = vmatpush.msra.mxu0 0.0
        %1228 = vmatpush.msra.mxu0 0.0
        %1229 = vmatpush.msra.mxu0 %v1029
        %1230 = vmatpush.msra.mxu0 %v932
        %1231 = vmatpush.msra.mxu0 %v923
        %1232 = vmatpush.msra.mxu0 %v914
        %1233 = vmatpush.msra.mxu0 %v905
        %1234 = vmatpush.msra.mxu0 %v896
        %1235 = vmatpush.msra.mxu0 %v887
        %1236 = vmatpush.msra.mxu0 %v878
        %1237 = vmatpush.msra.mxu0 %v869
        %1238 = vmatpush.msra.mxu0 %v860
        %1239 = vmatpush.msra.mxu0 %v851
        %1240 = vmatpush.msra.mxu0 %v842
        %1241 = vmatpush.msra.mxu0 %v833
        %1242 = vmatpush.msra.mxu0 %v824
        %1243 = vmatmul.f32.gmra.mxu0 %v950
        %v1244 = vpop.f32.mrf.mxu0
        %v1245 = vadd.f32 0.0, %v1244
        %1246 = vmatmul.f32.gmra.mxu0 %v953
        %v1247 = vpop.f32.mrf.mxu0
        %v1248 = vadd.f32 0.0, %v1247
        %1249 = vmatmul.f32.gmra.mxu0 %v956
        %v1250 = vpop.f32.mrf.mxu0
        %v1251 = vadd.f32 0.0, %v1250
        %1252 = vmatmul.f32.gmra.mxu0 %v959
        %v1253 = vpop.f32.mrf.mxu0
        %v1254 = vadd.f32 0.0, %v1253
        %1255 = vmatmul.f32.gmra.mxu0 %v962
        %v1256 = vpop.f32.mrf.mxu0
        %v1257 = vadd.f32 0.0, %v1256
        %1258 = vmatmul.f32.gmra.mxu0 %v965
        %v1259 = vpop.f32.mrf.mxu0
        %v1260 = vadd.f32 0.0, %v1259
        %1261 = vmatmul.f32.gmra.mxu0 %v968
        %v1262 = vpop.f32.mrf.mxu0
        %v1263 = vadd.f32 0.0, %v1262
        %1264 = vmatmul.f32.gmra.mxu0 %v971
        %v1265 = vpop.f32.mrf.mxu0
        %v1266 = vadd.f32 0.0, %v1265
        %1267 = vmatmul.f32.gmra.mxu0 %v974
        %v1268 = vpop.f32.mrf.mxu0
        %v1269 = vadd.f32 0.0, %v1268
        %1270 = vmatmul.f32.gmra.mxu0 %v977
        %v1271 = vpop.f32.mrf.mxu0
        %v1272 = vadd.f32 0.0, %v1271
        %1273 = vmatmul.f32.gmra.mxu0 %v980
        %v1274 = vpop.f32.mrf.mxu0
        %v1275 = vadd.f32 0.0, %v1274
        %1276 = vmatmul.f32.gmra.mxu0 %v983
        %v1277 = vpop.f32.mrf.mxu0
        %v1278 = vadd.f32 0.0, %v1277
        %1279 = vmatmul.f32.gmra.mxu0 %v986
        %v1280 = vpop.f32.mrf.mxu0
        %v1281 = vadd.f32 0.0, %v1280
        %1282 = vmatmul.f32.gmra.mxu0 %v989
        %v1283 = vpop.f32.mrf.mxu0
        %v1284 = vadd.f32 0.0, %v1283
        %1285 = vmatmul.f32.gmra.mxu0 %v992
        %v1286 = vpop.f32.mrf.mxu0
        %v1287 = vadd.f32 0.0, %v1286
        %1288 = vmatmul.f32.gmra.mxu0 %v995
        %v1289 = vpop.f32.mrf.mxu0
        %v1290 = vadd.f32 0.0, %v1289
        %1291 = vmatmul.f32.gmra.mxu0 %v998
        %v1292 = vpop.f32.mrf.mxu0
        %v1293 = vadd.f32 0.0, %v1292
        %1294 = vmatmul.f32.gmra.mxu0 %v1001
        %v1295 = vpop.f32.mrf.mxu0
        %v1296 = vadd.f32 0.0, %v1295
        %1297 = vmatmul.f32.gmra.mxu0 %v1004
        %v1298 = vpop.f32.mrf.mxu0
        %v1299 = vadd.f32 0.0, %v1298
        %1300 = vmatmul.f32.gmra.mxu0 %v1007
        %v1301 = vpop.f32.mrf.mxu0
        %v1302 = vadd.f32 0.0, %v1301
        %1303 = vmatmul.f32.gmra.mxu0 %v1010
        %v1304 = vpop.f32.mrf.mxu0
        %v1305 = vadd.f32 0.0, %v1304
        %1306 = vmatmul.f32.gmra.mxu0 %v1013
        %v1307 = vpop.f32.mrf.mxu0
        %v1308 = vadd.f32 0.0, %v1307
        %1309 = vmatmul.f32.gmra.mxu0 %v1016
        %v1310 = vpop.f32.mrf.mxu0
        %v1311 = vadd.f32 0.0, %v1310
        %1312 = vmatmul.f32.gmra.mxu0 %v1019
        %v1313 = vpop.f32.mrf.mxu0
        %v1314 = vadd.f32 0.0, %v1313
        %1315 = vdwg.mxu0
        %1316 = vmatpush.msra.mxu0 0.0
        %1317 = vmatpush.msra.mxu0 0.0
        %1318 = vmatpush.msra.mxu0 %v1032
        %1319 = vmatpush.msra.mxu0 %v933
        %1320 = vmatpush.msra.mxu0 %v924
        %1321 = vmatpush.msra.mxu0 %v915
        %1322 = vmatpush.msra.mxu0 %v906
        %1323 = vmatpush.msra.mxu0 %v897
        %1324 = vmatpush.msra.mxu0 %v888
        %1325 = vmatpush.msra.mxu0 %v879
        %1326 = vmatpush.msra.mxu0 %v870
        %1327 = vmatpush.msra.mxu0 %v861
        %1328 = vmatpush.msra.mxu0 %v852
        %1329 = vmatpush.msra.mxu0 %v843
        %1330 = vmatpush.msra.mxu0 %v834
        %1331 = vmatpush.msra.mxu0 %v825
        %1332 = vmatmul.f32.gmra.mxu0 %v950
        %v1333 = vpop.f32.mrf.mxu0
        %v1334 = vadd.f32 0.0, %v1333
        %1335 = vmatmul.f32.gmra.mxu0 %v953
        %v1336 = vpop.f32.mrf.mxu0
        %v1337 = vadd.f32 0.0, %v1336
        %1338 = vmatmul.f32.gmra.mxu0 %v956
        %v1339 = vpop.f32.mrf.mxu0
        %v1340 = vadd.f32 0.0, %v1339
        %1341 = vmatmul.f32.gmra.mxu0 %v959
        %v1342 = vpop.f32.mrf.mxu0
        %v1343 = vadd.f32 0.0, %v1342
        %1344 = vmatmul.f32.gmra.mxu0 %v962
        %v1345 = vpop.f32.mrf.mxu0
        %v1346 = vadd.f32 0.0, %v1345
        %1347 = vmatmul.f32.gmra.mxu0 %v965
        %v1348 = vpop.f32.mrf.mxu0
        %v1349 = vadd.f32 0.0, %v1348
        %1350 = vmatmul.f32.gmra.mxu0 %v968
        %v1351 = vpop.f32.mrf.mxu0
        %v1352 = vadd.f32 0.0, %v1351
        %1353 = vmatmul.f32.gmra.mxu0 %v971
        %v1354 = vpop.f32.mrf.mxu0
        %v1355 = vadd.f32 0.0, %v1354
        %1356 = vmatmul.f32.gmra.mxu0 %v974
        %v1357 = vpop.f32.mrf.mxu0
        %v1358 = vadd.f32 0.0, %v1357
        %1359 = vmatmul.f32.gmra.mxu0 %v977
        %v1360 = vpop.f32.mrf.mxu0
        %v1361 = vadd.f32 0.0, %v1360
        %1362 = vmatmul.f32.gmra.mxu0 %v980
        %v1363 = vpop.f32.mrf.mxu0
        %v1364 = vadd.f32 0.0, %v1363
        %1365 = vmatmul.f32.gmra.mxu0 %v983
        %v1366 = vpop.f32.mrf.mxu0
        %v1367 = vadd.f32 0.0, %v1366
        %1368 = vmatmul.f32.gmra.mxu0 %v986
        %v1369 = vpop.f32.mrf.mxu0
        %v1370 = vadd.f32 0.0, %v1369
        %1371 = vmatmul.f32.gmra.mxu0 %v989
        %v1372 = vpop.f32.mrf.mxu0
        %v1373 = vadd.f32 0.0, %v1372
        %1374 = vmatmul.f32.gmra.mxu0 %v992
        %v1375 = vpop.f32.mrf.mxu0
        %v1376 = vadd.f32 0.0, %v1375
        %1377 = vmatmul.f32.gmra.mxu0 %v995
        %v1378 = vpop.f32.mrf.mxu0
        %v1379 = vadd.f32 0.0, %v1378
        %1380 = vmatmul.f32.gmra.mxu0 %v998
        %v1381 = vpop.f32.mrf.mxu0
        %v1382 = vadd.f32 0.0, %v1381
        %1383 = vmatmul.f32.gmra.mxu0 %v1001
        %v1384 = vpop.f32.mrf.mxu0
        %v1385 = vadd.f32 0.0, %v1384
        %1386 = vmatmul.f32.gmra.mxu0 %v1004
        %v1387 = vpop.f32.mrf.mxu0
        %v1388 = vadd.f32 0.0, %v1387
        %1389 = vmatmul.f32.gmra.mxu0 %v1007
        %v1390 = vpop.f32.mrf.mxu0
        %v1391 = vadd.f32 0.0, %v1390
        %1392 = vmatmul.f32.gmra.mxu0 %v1010
        %v1393 = vpop.f32.mrf.mxu0
        %v1394 = vadd.f32 0.0, %v1393
        %1395 = vmatmul.f32.gmra.mxu0 %v1013
        %v1396 = vpop.f32.mrf.mxu0
        %v1397 = vadd.f32 0.0, %v1396
        %1398 = vmatmul.f32.gmra.mxu0 %v1016
        %v1399 = vpop.f32.mrf.mxu0
        %v1400 = vadd.f32 0.0, %v1399
        %1401 = vmatmul.f32.gmra.mxu0 %v1019
        %v1402 = vpop.f32.mrf.mxu0
        %v1403 = vadd.f32 0.0, %v1402
        %1404 = vdwg.mxu0
        %1405 = vmatpush.msra.mxu0 0.0
        %1406 = vmatpush.msra.mxu0 0.0
        %1407 = vmatpush.msra.mxu0 %v1035
        %1408 = vmatpush.msra.mxu0 %v934
        %1409 = vmatpush.msra.mxu0 %v925
        %1410 = vmatpush.msra.mxu0 %v916
        %1411 = vmatpush.msra.mxu0 %v907
        %1412 = vmatpush.msra.mxu0 %v898
        %1413 = vmatpush.msra.mxu0 %v889
        %1414 = vmatpush.msra.mxu0 %v880
        %1415 = vmatpush.msra.mxu0 %v871
        %1416 = vmatpush.msra.mxu0 %v862
        %1417 = vmatpush.msra.mxu0 %v853
        %1418 = vmatpush.msra.mxu0 %v844
        %1419 = vmatpush.msra.mxu0 %v835
        %1420 = vmatpush.msra.mxu0 %v826
        %1421 = vmatmul.f32.gmra.mxu0 %v950
        %v1422 = vpop.f32.mrf.mxu0
        %v1423 = vadd.f32 0.0, %v1422
        %1424 = vmatmul.f32.gmra.mxu0 %v953
        %v1425 = vpop.f32.mrf.mxu0
        %v1426 = vadd.f32 0.0, %v1425
        %1427 = vmatmul.f32.gmra.mxu0 %v956
        %v1428 = vpop.f32.mrf.mxu0
        %v1429 = vadd.f32 0.0, %v1428
        %1430 = vmatmul.f32.gmra.mxu0 %v959
        %v1431 = vpop.f32.mrf.mxu0
        %v1432 = vadd.f32 0.0, %v1431
        %1433 = vmatmul.f32.gmra.mxu0 %v962
        %v1434 = vpop.f32.mrf.mxu0
        %v1435 = vadd.f32 0.0, %v1434
        %1436 = vmatmul.f32.gmra.mxu0 %v965
        %v1437 = vpop.f32.mrf.mxu0
        %v1438 = vadd.f32 0.0, %v1437
        %1439 = vmatmul.f32.gmra.mxu0 %v968
        %v1440 = vpop.f32.mrf.mxu0
        %v1441 = vadd.f32 0.0, %v1440
        %1442 = vmatmul.f32.gmra.mxu0 %v971
        %v1443 = vpop.f32.mrf.mxu0
        %v1444 = vadd.f32 0.0, %v1443
        %1445 = vmatmul.f32.gmra.mxu0 %v974
        %v1446 = vpop.f32.mrf.mxu0
        %v1447 = vadd.f32 0.0, %v1446
        %1448 = vmatmul.f32.gmra.mxu0 %v977
        %v1449 = vpop.f32.mrf.mxu0
        %v1450 = vadd.f32 0.0, %v1449
        %1451 = vmatmul.f32.gmra.mxu0 %v980
        %v1452 = vpop.f32.mrf.mxu0
        %v1453 = vadd.f32 0.0, %v1452
        %1454 = vmatmul.f32.gmra.mxu0 %v983
        %v1455 = vpop.f32.mrf.mxu0
        %v1456 = vadd.f32 0.0, %v1455
        %1457 = vmatmul.f32.gmra.mxu0 %v986
        %v1458 = vpop.f32.mrf.mxu0
        %v1459 = vadd.f32 0.0, %v1458
        %1460 = vmatmul.f32.gmra.mxu0 %v989
        %v1461 = vpop.f32.mrf.mxu0
        %v1462 = vadd.f32 0.0, %v1461
        %1463 = vmatmul.f32.gmra.mxu0 %v992
        %v1464 = vpop.f32.mrf.mxu0
        %v1465 = vadd.f32 0.0, %v1464
        %1466 = vmatmul.f32.gmra.mxu0 %v995
        %v1467 = vpop.f32.mrf.mxu0
        %v1468 = vadd.f32 0.0, %v1467
        %1469 = vmatmul.f32.gmra.mxu0 %v998
        %v1470 = vpop.f32.mrf.mxu0
        %v1471 = vadd.f32 0.0, %v1470
        %1472 = vmatmul.f32.gmra.mxu0 %v1001
        %v1473 = vpop.f32.mrf.mxu0
        %v1474 = vadd.f32 0.0, %v1473
        %1475 = vmatmul.f32.gmra.mxu0 %v1004
        %v1476 = vpop.f32.mrf.mxu0
        %v1477 = vadd.f32 0.0, %v1476
        %1478 = vmatmul.f32.gmra.mxu0 %v1007
        %v1479 = vpop.f32.mrf.mxu0
        %v1480 = vadd.f32 0.0, %v1479
        %1481 = vmatmul.f32.gmra.mxu0 %v1010
        %v1482 = vpop.f32.mrf.mxu0
        %v1483 = vadd.f32 0.0, %v1482
        %1484 = vmatmul.f32.gmra.mxu0 %v1013
        %v1485 = vpop.f32.mrf.mxu0
        %v1486 = vadd.f32 0.0, %v1485
        %1487 = vmatmul.f32.gmra.mxu0 %v1016
        %v1488 = vpop.f32.mrf.mxu0
        %v1489 = vadd.f32 0.0, %v1488
        %1490 = vmatmul.f32.gmra.mxu0 %v1019
        %v1491 = vpop.f32.mrf.mxu0
        %v1492 = vadd.f32 0.0, %v1491
        %1493 = vdwg.mxu0
        %1494 = vmatpush.msra.mxu0 0.0
        %1495 = vmatpush.msra.mxu0 0.0
        %1496 = vmatpush.msra.mxu0 %v1038
        %1497 = vmatpush.msra.mxu0 %v935
        %1498 = vmatpush.msra.mxu0 %v926
        %1499 = vmatpush.msra.mxu0 %v917
        %1500 = vmatpush.msra.mxu0 %v908
        %1501 = vmatpush.msra.mxu0 %v899
        %1502 = vmatpush.msra.mxu0 %v890
        %1503 = vmatpush.msra.mxu0 %v881
        %1504 = vmatpush.msra.mxu0 %v872
        %1505 = vmatpush.msra.mxu0 %v863
        %1506 = vmatpush.msra.mxu0 %v854
        %1507 = vmatpush.msra.mxu0 %v845
        %1508 = vmatpush.msra.mxu0 %v836
        %1509 = vmatpush.msra.mxu0 %v827
        %1510 = vmatmul.f32.gmra.mxu0 %v950
        %v1511 = vpop.f32.mrf.mxu0
        %v1512 = vadd.f32 0.0, %v1511
        %1513 = vmatmul.f32.gmra.mxu0 %v953
        %v1514 = vpop.f32.mrf.mxu0
        %v1515 = vadd.f32 0.0, %v1514
        %1516 = vmatmul.f32.gmra.mxu0 %v956
        %v1517 = vpop.f32.mrf.mxu0
        %v1518 = vadd.f32 0.0, %v1517
        %1519 = vmatmul.f32.gmra.mxu0 %v959
        %v1520 = vpop.f32.mrf.mxu0
        %v1521 = vadd.f32 0.0, %v1520
        %1522 = vmatmul.f32.gmra.mxu0 %v962
        %v1523 = vpop.f32.mrf.mxu0
        %v1524 = vadd.f32 0.0, %v1523
        %1525 = vmatmul.f32.gmra.mxu0 %v965
        %v1526 = vpop.f32.mrf.mxu0
        %v1527 = vadd.f32 0.0, %v1526
        %1528 = vmatmul.f32.gmra.mxu0 %v968
        %v1529 = vpop.f32.mrf.mxu0
        %v1530 = vadd.f32 0.0, %v1529
        %1531 = vmatmul.f32.gmra.mxu0 %v971
        %v1532 = vpop.f32.mrf.mxu0
        %v1533 = vadd.f32 0.0, %v1532
        %1534 = vmatmul.f32.gmra.mxu0 %v974
        %v1535 = vpop.f32.mrf.mxu0
        %v1536 = vadd.f32 0.0, %v1535
        %1537 = vmatmul.f32.gmra.mxu0 %v977
        %v1538 = vpop.f32.mrf.mxu0
        %v1539 = vadd.f32 0.0, %v1538
        %1540 = vmatmul.f32.gmra.mxu0 %v980
        %v1541 = vpop.f32.mrf.mxu0
        %v1542 = vadd.f32 0.0, %v1541
        %1543 = vmatmul.f32.gmra.mxu0 %v983
        %v1544 = vpop.f32.mrf.mxu0
        %v1545 = vadd.f32 0.0, %v1544
        %1546 = vmatmul.f32.gmra.mxu0 %v986
        %v1547 = vpop.f32.mrf.mxu0
        %v1548 = vadd.f32 0.0, %v1547
        %1549 = vmatmul.f32.gmra.mxu0 %v989
        %v1550 = vpop.f32.mrf.mxu0
        %v1551 = vadd.f32 0.0, %v1550
        %1552 = vmatmul.f32.gmra.mxu0 %v992
        %v1553 = vpop.f32.mrf.mxu0
        %v1554 = vadd.f32 0.0, %v1553
        %1555 = vmatmul.f32.gmra.mxu0 %v995
        %v1556 = vpop.f32.mrf.mxu0
        %v1557 = vadd.f32 0.0, %v1556
        %1558 = vmatmul.f32.gmra.mxu0 %v998
        %v1559 = vpop.f32.mrf.mxu0
        %v1560 = vadd.f32 0.0, %v1559
        %1561 = vmatmul.f32.gmra.mxu0 %v1001
        %v1562 = vpop.f32.mrf.mxu0
        %v1563 = vadd.f32 0.0, %v1562
        %1564 = vmatmul.f32.gmra.mxu0 %v1004
        %v1565 = vpop.f32.mrf.mxu0
        %v1566 = vadd.f32 0.0, %v1565
        %1567 = vmatmul.f32.gmra.mxu0 %v1007
        %v1568 = vpop.f32.mrf.mxu0
        %v1569 = vadd.f32 0.0, %v1568
        %1570 = vmatmul.f32.gmra.mxu0 %v1010
        %v1571 = vpop.f32.mrf.mxu0
        %v1572 = vadd.f32 0.0, %v1571
        %1573 = vmatmul.f32.gmra.mxu0 %v1013
        %v1574 = vpop.f32.mrf.mxu0
        %v1575 = vadd.f32 0.0, %v1574
        %1576 = vmatmul.f32.gmra.mxu0 %v1016
        %v1577 = vpop.f32.mrf.mxu0
        %v1578 = vadd.f32 0.0, %v1577
        %1579 = vmatmul.f32.gmra.mxu0 %v1019
        %v1580 = vpop.f32.mrf.mxu0
        %v1581 = vadd.f32 0.0, %v1580
        %1582 = vdwg.mxu0
        %1583 = vmatpush.msra.mxu0 0.0
        %1584 = vmatpush.msra.mxu0 0.0
        %1585 = vmatpush.msra.mxu0 %v1041
        %1586 = vmatpush.msra.mxu0 %v936
        %1587 = vmatpush.msra.mxu0 %v927
        %1588 = vmatpush.msra.mxu0 %v918
        %1589 = vmatpush.msra.mxu0 %v909
        %1590 = vmatpush.msra.mxu0 %v900
        %1591 = vmatpush.msra.mxu0 %v891
        %1592 = vmatpush.msra.mxu0 %v882
        %1593 = vmatpush.msra.mxu0 %v873
        %1594 = vmatpush.msra.mxu0 %v864
        %1595 = vmatpush.msra.mxu0 %v855
        %1596 = vmatpush.msra.mxu0 %v846
        %1597 = vmatpush.msra.mxu0 %v837
        %1598 = vmatpush.msra.mxu0 %v828
        %1599 = vmatmul.f32.gmra.mxu0 %v950
        %v1600 = vpop.f32.mrf.mxu0
        %v1601 = vadd.f32 0.0, %v1600
        %1602 = vmatmul.f32.gmra.mxu0 %v953
        %v1603 = vpop.f32.mrf.mxu0
        %v1604 = vadd.f32 0.0, %v1603
        %1605 = vmatmul.f32.gmra.mxu0 %v956
        %v1606 = vpop.f32.mrf.mxu0
        %v1607 = vadd.f32 0.0, %v1606
        %1608 = vmatmul.f32.gmra.mxu0 %v959
        %v1609 = vpop.f32.mrf.mxu0
        %v1610 = vadd.f32 0.0, %v1609
        %1611 = vmatmul.f32.gmra.mxu0 %v962
        %v1612 = vpop.f32.mrf.mxu0
        %v1613 = vadd.f32 0.0, %v1612
        %1614 = vmatmul.f32.gmra.mxu0 %v965
        %v1615 = vpop.f32.mrf.mxu0
        %v1616 = vadd.f32 0.0, %v1615
        %1617 = vmatmul.f32.gmra.mxu0 %v968
        %v1618 = vpop.f32.mrf.mxu0
        %v1619 = vadd.f32 0.0, %v1618
        %1620 = vmatmul.f32.gmra.mxu0 %v971
        %v1621 = vpop.f32.mrf.mxu0
        %v1622 = vadd.f32 0.0, %v1621
        %1623 = vmatmul.f32.gmra.mxu0 %v974
        %v1624 = vpop.f32.mrf.mxu0
        %v1625 = vadd.f32 0.0, %v1624
        %1626 = vmatmul.f32.gmra.mxu0 %v977
        %v1627 = vpop.f32.mrf.mxu0
        %v1628 = vadd.f32 0.0, %v1627
        %1629 = vmatmul.f32.gmra.mxu0 %v980
        %v1630 = vpop.f32.mrf.mxu0
        %v1631 = vadd.f32 0.0, %v1630
        %1632 = vmatmul.f32.gmra.mxu0 %v983
        %v1633 = vpop.f32.mrf.mxu0
        %v1634 = vadd.f32 0.0, %v1633
        %1635 = vmatmul.f32.gmra.mxu0 %v986
        %v1636 = vpop.f32.mrf.mxu0
        %v1637 = vadd.f32 0.0, %v1636
        %1638 = vmatmul.f32.gmra.mxu0 %v989
        %v1639 = vpop.f32.mrf.mxu0
        %v1640 = vadd.f32 0.0, %v1639
        %1641 = vmatmul.f32.gmra.mxu0 %v992
        %v1642 = vpop.f32.mrf.mxu0
        %v1643 = vadd.f32 0.0, %v1642
        %1644 = vmatmul.f32.gmra.mxu0 %v995
        %v1645 = vpop.f32.mrf.mxu0
        %v1646 = vadd.f32 0.0, %v1645
        %1647 = vmatmul.f32.gmra.mxu0 %v998
        %v1648 = vpop.f32.mrf.mxu0
        %v1649 = vadd.f32 0.0, %v1648
        %1650 = vmatmul.f32.gmra.mxu0 %v1001
        %v1651 = vpop.f32.mrf.mxu0
        %v1652 = vadd.f32 0.0, %v1651
        %1653 = vmatmul.f32.gmra.mxu0 %v1004
        %v1654 = vpop.f32.mrf.mxu0
        %v1655 = vadd.f32 0.0, %v1654
        %1656 = vmatmul.f32.gmra.mxu0 %v1007
        %v1657 = vpop.f32.mrf.mxu0
        %v1658 = vadd.f32 0.0, %v1657
        %1659 = vmatmul.f32.gmra.mxu0 %v1010
        %v1660 = vpop.f32.mrf.mxu0
        %v1661 = vadd.f32 0.0, %v1660
        %1662 = vmatmul.f32.gmra.mxu0 %v1013
        %v1663 = vpop.f32.mrf.mxu0
        %v1664 = vadd.f32 0.0, %v1663
        %1665 = vmatmul.f32.gmra.mxu0 %v1016
        %v1666 = vpop.f32.mrf.mxu0
        %v1667 = vadd.f32 0.0, %v1666
        %1668 = vmatmul.f32.gmra.mxu0 %v1019
        %v1669 = vpop.f32.mrf.mxu0
        %v1670 = vadd.f32 0.0, %v1669
        %1671 = vdwg.mxu0
        %1672 = vmatpush.msra.mxu0 0.0
        %1673 = vmatpush.msra.mxu0 0.0
        %1674 = vmatpush.msra.mxu0 %v1044
        %1675 = vmatpush.msra.mxu0 %v937
        %1676 = vmatpush.msra.mxu0 %v928
        %1677 = vmatpush.msra.mxu0 %v919
        %1678 = vmatpush.msra.mxu0 %v910
        %1679 = vmatpush.msra.mxu0 %v901
        %1680 = vmatpush.msra.mxu0 %v892
        %1681 = vmatpush.msra.mxu0 %v883
        %1682 = vmatpush.msra.mxu0 %v874
        %1683 = vmatpush.msra.mxu0 %v865
        %1684 = vmatpush.msra.mxu0 %v856
        %1685 = vmatpush.msra.mxu0 %v847
        %1686 = vmatpush.msra.mxu0 %v838
        %1687 = vmatpush.msra.mxu0 %v829
        %1688 = vmatmul.f32.gmra.mxu0 %v950
        %v1689 = vpop.f32.mrf.mxu0
        %v1690 = vadd.f32 0.0, %v1689
        %1691 = vmatmul.f32.gmra.mxu0 %v953
        %v1692 = vpop.f32.mrf.mxu0
        %v1693 = vadd.f32 0.0, %v1692
        %1694 = vmatmul.f32.gmra.mxu0 %v956
        %v1695 = vpop.f32.mrf.mxu0
        %v1696 = vadd.f32 0.0, %v1695
        %1697 = vmatmul.f32.gmra.mxu0 %v959
        %v1698 = vpop.f32.mrf.mxu0
        %v1699 = vadd.f32 0.0, %v1698
        %1700 = vmatmul.f32.gmra.mxu0 %v962
        %v1701 = vpop.f32.mrf.mxu0
        %v1702 = vadd.f32 0.0, %v1701
        %1703 = vmatmul.f32.gmra.mxu0 %v965
        %v1704 = vpop.f32.mrf.mxu0
        %v1705 = vadd.f32 0.0, %v1704
        %1706 = vmatmul.f32.gmra.mxu0 %v968
        %v1707 = vpop.f32.mrf.mxu0
        %v1708 = vadd.f32 0.0, %v1707
        %1709 = vmatmul.f32.gmra.mxu0 %v971
        %v1710 = vpop.f32.mrf.mxu0
        %v1711 = vadd.f32 0.0, %v1710
        %1712 = vmatmul.f32.gmra.mxu0 %v974
        %v1713 = vpop.f32.mrf.mxu0
        %v1714 = vadd.f32 0.0, %v1713
        %1715 = vmatmul.f32.gmra.mxu0 %v977
        %v1716 = vpop.f32.mrf.mxu0
        %v1717 = vadd.f32 0.0, %v1716
        %1718 = vmatmul.f32.gmra.mxu0 %v980
        %v1719 = vpop.f32.mrf.mxu0
        %v1720 = vadd.f32 0.0, %v1719
        %1721 = vmatmul.f32.gmra.mxu0 %v983
        %v1722 = vpop.f32.mrf.mxu0
        %v1723 = vadd.f32 0.0, %v1722
        %1724 = vmatmul.f32.gmra.mxu0 %v986
        %v1725 = vpop.f32.mrf.mxu0
        %v1726 = vadd.f32 0.0, %v1725
        %1727 = vmatmul.f32.gmra.mxu0 %v989
        %v1728 = vpop.f32.mrf.mxu0
        %v1729 = vadd.f32 0.0, %v1728
        %1730 = vmatmul.f32.gmra.mxu0 %v992
        %v1731 = vpop.f32.mrf.mxu0
        %v1732 = vadd.f32 0.0, %v1731
        %1733 = vmatmul.f32.gmra.mxu0 %v995
        %v1734 = vpop.f32.mrf.mxu0
        %v1735 = vadd.f32 0.0, %v1734
        %1736 = vmatmul.f32.gmra.mxu0 %v998
        %v1737 = vpop.f32.mrf.mxu0
        %v1738 = vadd.f32 0.0, %v1737
        %1739 = vmatmul.f32.gmra.mxu0 %v1001
        %v1740 = vpop.f32.mrf.mxu0
        %v1741 = vadd.f32 0.0, %v1740
        %1742 = vmatmul.f32.gmra.mxu0 %v1004
        %v1743 = vpop.f32.mrf.mxu0
        %v1744 = vadd.f32 0.0, %v1743
        %1745 = vmatmul.f32.gmra.mxu0 %v1007
        %v1746 = vpop.f32.mrf.mxu0
        %v1747 = vadd.f32 0.0, %v1746
        %1748 = vmatmul.f32.gmra.mxu0 %v1010
        %v1749 = vpop.f32.mrf.mxu0
        %v1750 = vadd.f32 0.0, %v1749
        %1751 = vmatmul.f32.gmra.mxu0 %v1013
        %v1752 = vpop.f32.mrf.mxu0
        %v1753 = vadd.f32 0.0, %v1752
        %1754 = vmatmul.f32.gmra.mxu0 %v1016
        %v1755 = vpop.f32.mrf.mxu0
        %v1756 = vadd.f32 0.0, %v1755
        %1757 = vmatmul.f32.gmra.mxu0 %v1019
        %v1758 = vpop.f32.mrf.mxu0
        %v1759 = vadd.f32 0.0, %v1758
        %1760 = vdwg.mxu0
        %1761 = vmatpush.msra.mxu0 0.0
        %1762 = vmatpush.msra.mxu0 0.0
        %1763 = vmatpush.msra.mxu0 %v1047
        %1764 = vmatpush.msra.mxu0 %v938
        %1765 = vmatpush.msra.mxu0 %v929
        %1766 = vmatpush.msra.mxu0 %v920
        %1767 = vmatpush.msra.mxu0 %v911
        %1768 = vmatpush.msra.mxu0 %v902
        %1769 = vmatpush.msra.mxu0 %v893
        %1770 = vmatpush.msra.mxu0 %v884
        %1771 = vmatpush.msra.mxu0 %v875
        %1772 = vmatpush.msra.mxu0 %v866
        %1773 = vmatpush.msra.mxu0 %v857
        %1774 = vmatpush.msra.mxu0 %v848
        %1775 = vmatpush.msra.mxu0 %v839
        %1776 = vmatpush.msra.mxu0 %v830
        %1777 = vmatmul.f32.gmra.mxu0 %v950
        %v1778 = vpop.f32.mrf.mxu0
        %v1779 = vadd.f32 0.0, %v1778
        %1780 = vmatmul.f32.gmra.mxu0 %v953
        %v1781 = vpop.f32.mrf.mxu0
        %v1782 = vadd.f32 0.0, %v1781
        %1783 = vmatmul.f32.gmra.mxu0 %v956
        %v1784 = vpop.f32.mrf.mxu0
        %v1785 = vadd.f32 0.0, %v1784
        %1786 = vmatmul.f32.gmra.mxu0 %v959
        %v1787 = vpop.f32.mrf.mxu0
        %v1788 = vadd.f32 0.0, %v1787
        %1789 = vmatmul.f32.gmra.mxu0 %v962
        %v1790 = vpop.f32.mrf.mxu0
        %v1791 = vadd.f32 0.0, %v1790
        %1792 = vmatmul.f32.gmra.mxu0 %v965
        %v1793 = vpop.f32.mrf.mxu0
        %v1794 = vadd.f32 0.0, %v1793
        %1795 = vmatmul.f32.gmra.mxu0 %v968
        %v1796 = vpop.f32.mrf.mxu0
        %v1797 = vadd.f32 0.0, %v1796
        %1798 = vmatmul.f32.gmra.mxu0 %v971
        %v1799 = vpop.f32.mrf.mxu0
        %v1800 = vadd.f32 0.0, %v1799
        %1801 = vmatmul.f32.gmra.mxu0 %v974
        %v1802 = vpop.f32.mrf.mxu0
        %v1803 = vadd.f32 0.0, %v1802
        %1804 = vmatmul.f32.gmra.mxu0 %v977
        %v1805 = vpop.f32.mrf.mxu0
        %v1806 = vadd.f32 0.0, %v1805
        %1807 = vmatmul.f32.gmra.mxu0 %v980
        %v1808 = vpop.f32.mrf.mxu0
        %v1809 = vadd.f32 0.0, %v1808
        %1810 = vmatmul.f32.gmra.mxu0 %v983
        %v1811 = vpop.f32.mrf.mxu0
        %v1812 = vadd.f32 0.0, %v1811
        %1813 = vmatmul.f32.gmra.mxu0 %v986
        %v1814 = vpop.f32.mrf.mxu0
        %v1815 = vadd.f32 0.0, %v1814
        %1816 = vmatmul.f32.gmra.mxu0 %v989
        %v1817 = vpop.f32.mrf.mxu0
        %v1818 = vadd.f32 0.0, %v1817
        %1819 = vmatmul.f32.gmra.mxu0 %v992
        %v1820 = vpop.f32.mrf.mxu0
        %v1821 = vadd.f32 0.0, %v1820
        %1822 = vmatmul.f32.gmra.mxu0 %v995
        %v1823 = vpop.f32.mrf.mxu0
        %v1824 = vadd.f32 0.0, %v1823
        %1825 = vmatmul.f32.gmra.mxu0 %v998
        %v1826 = vpop.f32.mrf.mxu0
        %v1827 = vadd.f32 0.0, %v1826
        %1828 = vmatmul.f32.gmra.mxu0 %v1001
        %v1829 = vpop.f32.mrf.mxu0
        %v1830 = vadd.f32 0.0, %v1829
        %1831 = vmatmul.f32.gmra.mxu0 %v1004
        %v1832 = vpop.f32.mrf.mxu0
        %v1833 = vadd.f32 0.0, %v1832
        %1834 = vmatmul.f32.gmra.mxu0 %v1007
        %v1835 = vpop.f32.mrf.mxu0
        %v1836 = vadd.f32 0.0, %v1835
        %1837 = vmatmul.f32.gmra.mxu0 %v1010
        %v1838 = vpop.f32.mrf.mxu0
        %v1839 = vadd.f32 0.0, %v1838
        %1840 = vmatmul.f32.gmra.mxu0 %v1013
        %v1841 = vpop.f32.mrf.mxu0
        %v1842 = vadd.f32 0.0, %v1841
        %1843 = vmatmul.f32.gmra.mxu0 %v1016
        %v1844 = vpop.f32.mrf.mxu0
        %v1845 = vadd.f32 0.0, %v1844
        %1846 = vmatmul.f32.gmra.mxu0 %v1019
        %v1847 = vpop.f32.mrf.mxu0
        %v1848 = vadd.f32 0.0, %v1847
        %1849 = vdwg.mxu0
        %v1850 = vxor.u32 %v1067, 2147483648
        %v1851 = vxor.u32 %v1156, 2147483648
        %v1852 = vxor.u32 %v1245, 2147483648
        %v1853 = vxor.u32 %v1070, 2147483648
        %v1854 = vxor.u32 %v1159, 2147483648
        %v1855 = vxor.u32 %v1248, 2147483648
        %v1856 = vxor.u32 %v1073, 2147483648
        %v1857 = vxor.u32 %v1162, 2147483648
        %v1858 = vxor.u32 %v1251, 2147483648
        %v1859 = vxor.u32 %v1076, 2147483648
        %v1860 = vxor.u32 %v1165, 2147483648
        %v1861 = vxor.u32 %v1254, 2147483648
        %v1862 = vxor.u32 %v1079, 2147483648
        %v1863 = vxor.u32 %v1168, 2147483648
        %v1864 = vxor.u32 %v1257, 2147483648
        %v1865 = vxor.u32 %v1082, 2147483648
        %v1866 = vxor.u32 %v1171, 2147483648
        %v1867 = vxor.u32 %v1260, 2147483648
        %v1868 = vxor.u32 %v1085, 2147483648
        %v1869 = vxor.u32 %v1174, 2147483648
        %v1870 = vxor.u32 %v1263, 2147483648
        %v1871 = vxor.u32 %v1088, 2147483648
        %v1872 = vxor.u32 %v1177, 2147483648
        %v1873 = vxor.u32 %v1266, 2147483648
        %v1874 = vxor.u32 %v1091, 2147483648
        %v1875 = vxor.u32 %v1180, 2147483648
        %v1876 = vxor.u32 %v1269, 2147483648
        %v1877 = vxor.u32 %v1094, 2147483648
        %v1878 = vxor.u32 %v1183, 2147483648
        %v1879 = vxor.u32 %v1272, 2147483648
        %v1880 = vxor.u32 %v1097, 2147483648
        %v1881 = vxor.u32 %v1186, 2147483648
        %v1882 = vxor.u32 %v1275, 2147483648
        %v1883 = vxor.u32 %v1100, 2147483648
        %v1884 = vxor.u32 %v1189, 2147483648
        %v1885 = vxor.u32 %v1278, 2147483648
        %v1886 = vxor.u32 %v1103, 2147483648
        %v1887 = vxor.u32 %v1192, 2147483648
        %v1888 = vxor.u32 %v1281, 2147483648
        %v1889 = vxor.u32 %v1106, 2147483648
        %v1890 = vxor.u32 %v1195, 2147483648
        %v1891 = vxor.u32 %v1284, 2147483648
        %v1892 = vxor.u32 %v1109, 2147483648
        %v1893 = vxor.u32 %v1198, 2147483648
        %v1894 = vxor.u32 %v1287, 2147483648
        %v1895 = vxor.u32 %v1112, 2147483648
        %v1896 = vxor.u32 %v1201, 2147483648
        %v1897 = vxor.u32 %v1290, 2147483648
        %v1898 = vxor.u32 %v1115, 2147483648
        %v1899 = vxor.u32 %v1204, 2147483648
        %v1900 = vxor.u32 %v1293, 2147483648
        %v1901 = vxor.u32 %v1118, 2147483648
        %v1902 = vxor.u32 %v1207, 2147483648
        %v1903 = vxor.u32 %v1296, 2147483648
        %v1904 = vxor.u32 %v1121, 2147483648
        %v1905 = vxor.u32 %v1210, 2147483648
        %v1906 = vxor.u32 %v1299, 2147483648
        %v1907 = vxor.u32 %v1124, 2147483648
        %v1908 = vxor.u32 %v1213, 2147483648
        %v1909 = vxor.u32 %v1302, 2147483648
        %v1910 = vxor.u32 %v1127, 2147483648
        %v1911 = vxor.u32 %v1216, 2147483648
        %v1912 = vxor.u32 %v1305, 2147483648
        %v1913 = vxor.u32 %v1130, 2147483648
        %v1914 = vxor.u32 %v1219, 2147483648
        %v1915 = vxor.u32 %v1308, 2147483648
        %v1916 = vxor.u32 %v1133, 2147483648
        %v1917 = vxor.u32 %v1222, 2147483648
        %v1918 = vxor.u32 %v1311, 2147483648
        %v1919 = vxor.u32 %v1136, 2147483648
        %v1920 = vxor.u32 %v1225, 2147483648
        %v1921 = vxor.u32 %v1314, 2147483648
        %v1922 = vmul.f32 %v1850, 1.442695
        %v1923 = vpow.pop %v1922
        %v1924 = vmul.f32 %v1851, 1.442695
        %v1925 = vpow.pop %v1924
        %v1926 = vmul.f32 %v1852, 1.442695
        %v1927 = vpow.pop %v1926
        %v1928 = vmul.f32 %v1853, 1.442695
        %v1929 = vpow.pop %v1928
        %v1930 = vmul.f32 %v1854, 1.442695
        %v1931 = vpow.pop %v1930
        %v1932 = vmul.f32 %v1855, 1.442695
        %v1933 = vpow.pop %v1932
        %v1934 = vmul.f32 %v1856, 1.442695
        %v1935 = vpow.pop %v1934
        %v1936 = vmul.f32 %v1857, 1.442695
        %v1937 = vpow.pop %v1936
        %v1938 = vmul.f32 %v1858, 1.442695
        %v1939 = vpow.pop %v1938
        %v1940 = vmul.f32 %v1859, 1.442695
        %v1941 = vpow.pop %v1940
        %v1942 = vmul.f32 %v1860, 1.442695
        %v1943 = vpow.pop %v1942
        %v1944 = vmul.f32 %v1861, 1.442695
        %v1945 = vpow.pop %v1944
        %v1946 = vmul.f32 %v1862, 1.442695
        %v1947 = vpow.pop %v1946
        %v1948 = vmul.f32 %v1863, 1.442695
        %v1949 = vpow.pop %v1948
        %v1950 = vmul.f32 %v1864, 1.442695
        %v1951 = vpow.pop %v1950
        %v1952 = vmul.f32 %v1865, 1.442695
        %v1953 = vpow.pop %v1952
        %v1954 = vmul.f32 %v1866, 1.442695
        %v1955 = vpow.pop %v1954
        %v1956 = vmul.f32 %v1867, 1.442695
        %v1957 = vpow.pop %v1956
        %v1958 = vmul.f32 %v1868, 1.442695
        %v1959 = vpow.pop %v1958
        %v1960 = vmul.f32 %v1869, 1.442695
        %v1961 = vpow.pop %v1960
        %v1962 = vmul.f32 %v1870, 1.442695
        %v1963 = vpow.pop %v1962
        %v1964 = vmul.f32 %v1871, 1.442695
        %v1965 = vpow.pop %v1964
        %v1966 = vmul.f32 %v1872, 1.442695
        %v1967 = vpow.pop %v1966
        %v1968 = vmul.f32 %v1873, 1.442695
        %v1969 = vpow.pop %v1968
        %v1970 = vmul.f32 %v1874, 1.442695
        %v1971 = vpow.pop %v1970
        %v1972 = vmul.f32 %v1875, 1.442695
        %v1973 = vpow.pop %v1972
        %v1974 = vmul.f32 %v1876, 1.442695
        %v1975 = vpow.pop %v1974
        %v1976 = vmul.f32 %v1877, 1.442695
        %v1977 = vpow.pop %v1976
        %v1978 = vmul.f32 %v1878, 1.442695
        %v1979 = vpow.pop %v1978
        %v1980 = vmul.f32 %v1879, 1.442695
        %v1981 = vpow.pop %v1980
        %v1982 = vmul.f32 %v1880, 1.442695
        %v1983 = vpow.pop %v1982
        %v1984 = vmul.f32 %v1881, 1.442695
        %v1985 = vpow.pop %v1984
        %v1986 = vmul.f32 %v1882, 1.442695
        %v1987 = vpow.pop %v1986
        %v1988 = vmul.f32 %v1883, 1.442695
        %v1989 = vpow.pop %v1988
        %v1990 = vmul.f32 %v1884, 1.442695
        %v1991 = vpow.pop %v1990
        %v1992 = vmul.f32 %v1885, 1.442695
        %v1993 = vpow.pop %v1992
        %v1994 = vmul.f32 %v1886, 1.442695
        %v1995 = vpow.pop %v1994
        %v1996 = vmul.f32 %v1887, 1.442695
        %v1997 = vpow.pop %v1996
        %v1998 = vmul.f32 %v1888, 1.442695
        %v1999 = vpow.pop %v1998
        %v2000 = vmul.f32 %v1889, 1.442695
        %v2001 = vpow.pop %v2000
        %v2002 = vmul.f32 %v1890, 1.442695
        %v2003 = vpow.pop %v2002
        %v2004 = vmul.f32 %v1891, 1.442695
        %v2005 = vpow.pop %v2004
        %v2006 = vmul.f32 %v1892, 1.442695
        %v2007 = vpow.pop %v2006
        %v2008 = vmul.f32 %v1893, 1.442695
        %v2009 = vpow.pop %v2008
        %v2010 = vmul.f32 %v1894, 1.442695
        %v2011 = vpow.pop %v2010
        %v2012 = vmul.f32 %v1895, 1.442695
        %v2013 = vpow.pop %v2012
        %v2014 = vmul.f32 %v1896, 1.442695
        %v2015 = vpow.pop %v2014
        %v2016 = vmul.f32 %v1897, 1.442695
        %v2017 = vpow.pop %v2016
        %v2018 = vmul.f32 %v1898, 1.442695
        %v2019 = vpow.pop %v2018
        %v2020 = vmul.f32 %v1899, 1.442695
        %v2021 = vpow.pop %v2020
        %v2022 = vmul.f32 %v1900, 1.442695
        %v2023 = vpow.pop %v2022
        %v2024 = vmul.f32 %v1901, 1.442695
        %v2025 = vpow.pop %v2024
        %v2026 = vmul.f32 %v1902, 1.442695
        %v2027 = vpow.pop %v2026
        %v2028 = vmul.f32 %v1903, 1.442695
        %v2029 = vpow.pop %v2028
        %v2030 = vmul.f32 %v1904, 1.442695
        %v2031 = vpow.pop %v2030
        %v2032 = vmul.f32 %v1905, 1.442695
        %v2033 = vpow.pop %v2032
        %v2034 = vmul.f32 %v1906, 1.442695
        %v2035 = vpow.pop %v2034
        %v2036 = vmul.f32 %v1907, 1.442695
        %v2037 = vpow.pop %v2036
        %v2038 = vmul.f32 %v1908, 1.442695
        %v2039 = vpow.pop %v2038
        %v2040 = vmul.f32 %v1909, 1.442695
        %v2041 = vpow.pop %v2040
        %v2042 = vmul.f32 %v1910, 1.442695
        %v2043 = vpow.pop %v2042
        %v2044 = vmul.f32 %v1911, 1.442695
        %v2045 = vpow.pop %v2044
        %v2046 = vmul.f32 %v1912, 1.442695
        %v2047 = vpow.pop %v2046
        %v2048 = vmul.f32 %v1913, 1.442695
        %v2049 = vpow.pop %v2048
        %v2050 = vmul.f32 %v1914, 1.442695
        %v2051 = vpow.pop %v2050
        %v2052 = vmul.f32 %v1915, 1.442695
        %v2053 = vpow.pop %v2052
        %v2054 = vmul.f32 %v1916, 1.442695
        %v2055 = vpow.pop %v2054
        %v2056 = vmul.f32 %v1917, 1.442695
        %v2057 = vpow.pop %v2056
        %v2058 = vmul.f32 %v1918, 1.442695
        %v2059 = vpow.pop %v2058
        %v2060 = vmul.f32 %v1919, 1.442695
        %v2061 = vpow.pop %v2060
        %v2062 = vmul.f32 %v1920, 1.442695
        %v2063 = vpow.pop %v2062
        %v2064 = vmul.f32 %v1921, 1.442695
        %v2065 = vpow.pop %v2064
        %v2066 = vadd.f32 %v1923, 1.0
        %v2067 = vadd.f32 %v1925, 1.0
        %v2068 = vadd.f32 %v1927, 1.0
        %v2069 = vadd.f32 %v1929, 1.0
        %v2070 = vadd.f32 %v1931, 1.0
        %v2071 = vadd.f32 %v1933, 1.0
        %v2072 = vadd.f32 %v1935, 1.0
        %v2073 = vadd.f32 %v1937, 1.0
        %v2074 = vadd.f32 %v1939, 1.0
        %v2075 = vadd.f32 %v1941, 1.0
        %v2076 = vadd.f32 %v1943, 1.0
        %v2077 = vadd.f32 %v1945, 1.0
        %v2078 = vadd.f32 %v1947, 1.0
        %v2079 = vadd.f32 %v1949, 1.0
        %v2080 = vadd.f32 %v1951, 1.0
        %v2081 = vadd.f32 %v1953, 1.0
        %v2082 = vadd.f32 %v1955, 1.0
        %v2083 = vadd.f32 %v1957, 1.0
        %v2084 = vadd.f32 %v1959, 1.0
        %v2085 = vadd.f32 %v1961, 1.0
        %v2086 = vadd.f32 %v1963, 1.0
        %v2087 = vadd.f32 %v1965, 1.0
        %v2088 = vadd.f32 %v1967, 1.0
        %v2089 = vadd.f32 %v1969, 1.0
        %v2090 = vadd.f32 %v1971, 1.0
        %v2091 = vadd.f32 %v1973, 1.0
        %v2092 = vadd.f32 %v1975, 1.0
        %v2093 = vadd.f32 %v1977, 1.0
        %v2094 = vadd.f32 %v1979, 1.0
        %v2095 = vadd.f32 %v1981, 1.0
        %v2096 = vadd.f32 %v1983, 1.0
        %v2097 = vadd.f32 %v1985, 1.0
        %v2098 = vadd.f32 %v1987, 1.0
        %v2099 = vadd.f32 %v1989, 1.0
        %v2100 = vadd.f32 %v1991, 1.0
        %v2101 = vadd.f32 %v1993, 1.0
        %v2102 = vadd.f32 %v1995, 1.0
        %v2103 = vadd.f32 %v1997, 1.0
        %v2104 = vadd.f32 %v1999, 1.0
        %v2105 = vadd.f32 %v2001, 1.0
        %v2106 = vadd.f32 %v2003, 1.0
        %v2107 = vadd.f32 %v2005, 1.0
        %v2108 = vadd.f32 %v2007, 1.0
        %v2109 = vadd.f32 %v2009, 1.0
        %v2110 = vadd.f32 %v2011, 1.0
        %v2111 = vadd.f32 %v2013, 1.0
        %v2112 = vadd.f32 %v2015, 1.0
        %v2113 = vadd.f32 %v2017, 1.0
        %v2114 = vadd.f32 %v2019, 1.0
        %v2115 = vadd.f32 %v2021, 1.0
        %v2116 = vadd.f32 %v2023, 1.0
        %v2117 = vadd.f32 %v2025, 1.0
        %v2118 = vadd.f32 %v2027, 1.0
        %v2119 = vadd.f32 %v2029, 1.0
        %v2120 = vadd.f32 %v2031, 1.0
        %v2121 = vadd.f32 %v2033, 1.0
        %v2122 = vadd.f32 %v2035, 1.0
        %v2123 = vadd.f32 %v2037, 1.0
        %v2124 = vadd.f32 %v2039, 1.0
        %v2125 = vadd.f32 %v2041, 1.0
        %v2126 = vadd.f32 %v2043, 1.0
        %v2127 = vadd.f32 %v2045, 1.0
        %v2128 = vadd.f32 %v2047, 1.0
        %v2129 = vadd.f32 %v2049, 1.0
        %v2130 = vadd.f32 %v2051, 1.0
        %v2131 = vadd.f32 %v2053, 1.0
        %v2132 = vadd.f32 %v2055, 1.0
        %v2133 = vadd.f32 %v2057, 1.0
        %v2134 = vadd.f32 %v2059, 1.0
        %v2135 = vadd.f32 %v2061, 1.0
        %v2136 = vadd.f32 %v2063, 1.0
        %v2137 = vadd.f32 %v2065, 1.0
        %v2138 = vrcp.pop %v2066
        %v2139 = vmul.f32 %v2066, %v2138
        %v2140 = vsub.f32 1.0, %v2139
        %v2141 = vmul.f32 %v2138, %v2140
        %v2142 = vadd.f32 %v2138, %v2141
        %vm2143 = vweird.f32 %v2066
        %vm2144 = vweird.f32 %v2138
        %vm2145 = vmor %vm2143, %vm2144
        %v2146 = vsel %vm2145, %v2138, %v2142
        %v2147 = vand.u32 2147483647, %v2066
        %vm2148 = vcmp.eq.f32.partialorder %v2147, 8.507059e+37
        %v2149 = vand.u32 %v2066, 2147483648
        %v2150 = vor.u32 1.1754944e-38, %v2149
        %v2151 = vsel %vm2148, %v2150, %v2146
        %v2152 = vmul.f32 1.0, %v2151
        %v2153 = vrcp.pop %v2067
        %v2154 = vmul.f32 %v2067, %v2153
        %v2155 = vsub.f32 1.0, %v2154
        %v2156 = vmul.f32 %v2153, %v2155
        %v2157 = vadd.f32 %v2153, %v2156
        %vm2158 = vweird.f32 %v2067
        %vm2159 = vweird.f32 %v2153
        %vm2160 = vmor %vm2158, %vm2159
        %v2161 = vsel %vm2160, %v2153, %v2157
        %v2162 = vand.u32 2147483647, %v2067
        %vm2163 = vcmp.eq.f32.partialorder %v2162, 8.507059e+37
        %v2164 = vand.u32 %v2067, 2147483648
        %v2165 = vor.u32 1.1754944e-38, %v2164
        %v2166 = vsel %vm2163, %v2165, %v2161
        %v2167 = vmul.f32 1.0, %v2166
        %v2168 = vrcp.pop %v2068
        %v2169 = vmul.f32 %v2068, %v2168
        %v2170 = vsub.f32 1.0, %v2169
        %v2171 = vmul.f32 %v2168, %v2170
        %v2172 = vadd.f32 %v2168, %v2171
        %vm2173 = vweird.f32 %v2068
        %vm2174 = vweird.f32 %v2168
        %vm2175 = vmor %vm2173, %vm2174
        %v2176 = vsel %vm2175, %v2168, %v2172
        %v2177 = vand.u32 2147483647, %v2068
        %vm2178 = vcmp.eq.f32.partialorder %v2177, 8.507059e+37
        %v2179 = vand.u32 %v2068, 2147483648
        %v2180 = vor.u32 1.1754944e-38, %v2179
        %v2181 = vsel %vm2178, %v2180, %v2176
        %v2182 = vmul.f32 1.0, %v2181
        %v2183 = vrcp.pop %v2069
        %v2184 = vmul.f32 %v2069, %v2183
        %v2185 = vsub.f32 1.0, %v2184
        %v2186 = vmul.f32 %v2183, %v2185
        %v2187 = vadd.f32 %v2183, %v2186
        %vm2188 = vweird.f32 %v2069
        %vm2189 = vweird.f32 %v2183
        %vm2190 = vmor %vm2188, %vm2189
        %v2191 = vsel %vm2190, %v2183, %v2187
        %v2192 = vand.u32 2147483647, %v2069
        %vm2193 = vcmp.eq.f32.partialorder %v2192, 8.507059e+37
        %v2194 = vand.u32 %v2069, 2147483648
        %v2195 = vor.u32 1.1754944e-38, %v2194
        %v2196 = vsel %vm2193, %v2195, %v2191
        %v2197 = vmul.f32 1.0, %v2196
        %v2198 = vrcp.pop %v2070
        %v2199 = vmul.f32 %v2070, %v2198
        %v2200 = vsub.f32 1.0, %v2199
        %v2201 = vmul.f32 %v2198, %v2200
        %v2202 = vadd.f32 %v2198, %v2201
        %vm2203 = vweird.f32 %v2070
        %vm2204 = vweird.f32 %v2198
        %vm2205 = vmor %vm2203, %vm2204
        %v2206 = vsel %vm2205, %v2198, %v2202
        %v2207 = vand.u32 2147483647, %v2070
        %vm2208 = vcmp.eq.f32.partialorder %v2207, 8.507059e+37
        %v2209 = vand.u32 %v2070, 2147483648
        %v2210 = vor.u32 1.1754944e-38, %v2209
        %v2211 = vsel %vm2208, %v2210, %v2206
        %v2212 = vmul.f32 1.0, %v2211
        %v2213 = vrcp.pop %v2071
        %v2214 = vmul.f32 %v2071, %v2213
        %v2215 = vsub.f32 1.0, %v2214
        %v2216 = vmul.f32 %v2213, %v2215
        %v2217 = vadd.f32 %v2213, %v2216
        %vm2218 = vweird.f32 %v2071
        %vm2219 = vweird.f32 %v2213
        %vm2220 = vmor %vm2218, %vm2219
        %v2221 = vsel %vm2220, %v2213, %v2217
        %v2222 = vand.u32 2147483647, %v2071
        %vm2223 = vcmp.eq.f32.partialorder %v2222, 8.507059e+37
        %v2224 = vand.u32 %v2071, 2147483648
        %v2225 = vor.u32 1.1754944e-38, %v2224
        %v2226 = vsel %vm2223, %v2225, %v2221
        %v2227 = vmul.f32 1.0, %v2226
        %v2228 = vrcp.pop %v2072
        %v2229 = vmul.f32 %v2072, %v2228
        %v2230 = vsub.f32 1.0, %v2229
        %v2231 = vmul.f32 %v2228, %v2230
        %v2232 = vadd.f32 %v2228, %v2231
        %vm2233 = vweird.f32 %v2072
        %vm2234 = vweird.f32 %v2228
        %vm2235 = vmor %vm2233, %vm2234
        %v2236 = vsel %vm2235, %v2228, %v2232
        %v2237 = vand.u32 2147483647, %v2072
        %vm2238 = vcmp.eq.f32.partialorder %v2237, 8.507059e+37
        %v2239 = vand.u32 %v2072, 2147483648
        %v2240 = vor.u32 1.1754944e-38, %v2239
        %v2241 = vsel %vm2238, %v2240, %v2236
        %v2242 = vmul.f32 1.0, %v2241
        %v2243 = vrcp.pop %v2073
        %v2244 = vmul.f32 %v2073, %v2243
        %v2245 = vsub.f32 1.0, %v2244
        %v2246 = vmul.f32 %v2243, %v2245
        %v2247 = vadd.f32 %v2243, %v2246
        %vm2248 = vweird.f32 %v2073
        %vm2249 = vweird.f32 %v2243
        %vm2250 = vmor %vm2248, %vm2249
        %v2251 = vsel %vm2250, %v2243, %v2247
        %v2252 = vand.u32 2147483647, %v2073
        %vm2253 = vcmp.eq.f32.partialorder %v2252, 8.507059e+37
        %v2254 = vand.u32 %v2073, 2147483648
        %v2255 = vor.u32 1.1754944e-38, %v2254
        %v2256 = vsel %vm2253, %v2255, %v2251
        %v2257 = vmul.f32 1.0, %v2256
        %v2258 = vrcp.pop %v2074
        %v2259 = vmul.f32 %v2074, %v2258
        %v2260 = vsub.f32 1.0, %v2259
        %v2261 = vmul.f32 %v2258, %v2260
        %v2262 = vadd.f32 %v2258, %v2261
        %vm2263 = vweird.f32 %v2074
        %vm2264 = vweird.f32 %v2258
        %vm2265 = vmor %vm2263, %vm2264
        %v2266 = vsel %vm2265, %v2258, %v2262
        %v2267 = vand.u32 2147483647, %v2074
        %vm2268 = vcmp.eq.f32.partialorder %v2267, 8.507059e+37
        %v2269 = vand.u32 %v2074, 2147483648
        %v2270 = vor.u32 1.1754944e-38, %v2269
        %v2271 = vsel %vm2268, %v2270, %v2266
        %v2272 = vmul.f32 1.0, %v2271
        %v2273 = vrcp.pop %v2075
        %v2274 = vmul.f32 %v2075, %v2273
        %v2275 = vsub.f32 1.0, %v2274
        %v2276 = vmul.f32 %v2273, %v2275
        %v2277 = vadd.f32 %v2273, %v2276
        %vm2278 = vweird.f32 %v2075
        %vm2279 = vweird.f32 %v2273
        %vm2280 = vmor %vm2278, %vm2279
        %v2281 = vsel %vm2280, %v2273, %v2277
        %v2282 = vand.u32 2147483647, %v2075
        %vm2283 = vcmp.eq.f32.partialorder %v2282, 8.507059e+37
        %v2284 = vand.u32 %v2075, 2147483648
        %v2285 = vor.u32 1.1754944e-38, %v2284
        %v2286 = vsel %vm2283, %v2285, %v2281
        %v2287 = vmul.f32 1.0, %v2286
        %v2288 = vrcp.pop %v2076
        %v2289 = vmul.f32 %v2076, %v2288
        %v2290 = vsub.f32 1.0, %v2289
        %v2291 = vmul.f32 %v2288, %v2290
        %v2292 = vadd.f32 %v2288, %v2291
        %vm2293 = vweird.f32 %v2076
        %vm2294 = vweird.f32 %v2288
        %vm2295 = vmor %vm2293, %vm2294
        %v2296 = vsel %vm2295, %v2288, %v2292
        %v2297 = vand.u32 2147483647, %v2076
        %vm2298 = vcmp.eq.f32.partialorder %v2297, 8.507059e+37
        %v2299 = vand.u32 %v2076, 2147483648
        %v2300 = vor.u32 1.1754944e-38, %v2299
        %v2301 = vsel %vm2298, %v2300, %v2296
        %v2302 = vmul.f32 1.0, %v2301
        %v2303 = vrcp.pop %v2077
        %v2304 = vmul.f32 %v2077, %v2303
        %v2305 = vsub.f32 1.0, %v2304
        %v2306 = vmul.f32 %v2303, %v2305
        %v2307 = vadd.f32 %v2303, %v2306
        %vm2308 = vweird.f32 %v2077
        %vm2309 = vweird.f32 %v2303
        %vm2310 = vmor %vm2308, %vm2309
        %v2311 = vsel %vm2310, %v2303, %v2307
        %v2312 = vand.u32 2147483647, %v2077
        %vm2313 = vcmp.eq.f32.partialorder %v2312, 8.507059e+37
        %v2314 = vand.u32 %v2077, 2147483648
        %v2315 = vor.u32 1.1754944e-38, %v2314
        %v2316 = vsel %vm2313, %v2315, %v2311
        %v2317 = vmul.f32 1.0, %v2316
        %v2318 = vrcp.pop %v2078
        %v2319 = vmul.f32 %v2078, %v2318
        %v2320 = vsub.f32 1.0, %v2319
        %v2321 = vmul.f32 %v2318, %v2320
        %v2322 = vadd.f32 %v2318, %v2321
        %vm2323 = vweird.f32 %v2078
        %vm2324 = vweird.f32 %v2318
        %vm2325 = vmor %vm2323, %vm2324
        %v2326 = vsel %vm2325, %v2318, %v2322
        %v2327 = vand.u32 2147483647, %v2078
        %vm2328 = vcmp.eq.f32.partialorder %v2327, 8.507059e+37
        %v2329 = vand.u32 %v2078, 2147483648
        %v2330 = vor.u32 1.1754944e-38, %v2329
        %v2331 = vsel %vm2328, %v2330, %v2326
        %v2332 = vmul.f32 1.0, %v2331
        %v2333 = vrcp.pop %v2079
        %v2334 = vmul.f32 %v2079, %v2333
        %v2335 = vsub.f32 1.0, %v2334
        %v2336 = vmul.f32 %v2333, %v2335
        %v2337 = vadd.f32 %v2333, %v2336
        %vm2338 = vweird.f32 %v2079
        %vm2339 = vweird.f32 %v2333
        %vm2340 = vmor %vm2338, %vm2339
        %v2341 = vsel %vm2340, %v2333, %v2337
        %v2342 = vand.u32 2147483647, %v2079
        %vm2343 = vcmp.eq.f32.partialorder %v2342, 8.507059e+37
        %v2344 = vand.u32 %v2079, 2147483648
        %v2345 = vor.u32 1.1754944e-38, %v2344
        %v2346 = vsel %vm2343, %v2345, %v2341
        %v2347 = vmul.f32 1.0, %v2346
        %v2348 = vrcp.pop %v2080
        %v2349 = vmul.f32 %v2080, %v2348
        %v2350 = vsub.f32 1.0, %v2349
        %v2351 = vmul.f32 %v2348, %v2350
        %v2352 = vadd.f32 %v2348, %v2351
        %vm2353 = vweird.f32 %v2080
        %vm2354 = vweird.f32 %v2348
        %vm2355 = vmor %vm2353, %vm2354
        %v2356 = vsel %vm2355, %v2348, %v2352
        %v2357 = vand.u32 2147483647, %v2080
        %vm2358 = vcmp.eq.f32.partialorder %v2357, 8.507059e+37
        %v2359 = vand.u32 %v2080, 2147483648
        %v2360 = vor.u32 1.1754944e-38, %v2359
        %v2361 = vsel %vm2358, %v2360, %v2356
        %v2362 = vmul.f32 1.0, %v2361
        %v2363 = vrcp.pop %v2081
        %v2364 = vmul.f32 %v2081, %v2363
        %v2365 = vsub.f32 1.0, %v2364
        %v2366 = vmul.f32 %v2363, %v2365
        %v2367 = vadd.f32 %v2363, %v2366
        %vm2368 = vweird.f32 %v2081
        %vm2369 = vweird.f32 %v2363
        %vm2370 = vmor %vm2368, %vm2369
        %v2371 = vsel %vm2370, %v2363, %v2367
        %v2372 = vand.u32 2147483647, %v2081
        %vm2373 = vcmp.eq.f32.partialorder %v2372, 8.507059e+37
        %v2374 = vand.u32 %v2081, 2147483648
        %v2375 = vor.u32 1.1754944e-38, %v2374
        %v2376 = vsel %vm2373, %v2375, %v2371
        %v2377 = vmul.f32 1.0, %v2376
        %v2378 = vrcp.pop %v2082
        %v2379 = vmul.f32 %v2082, %v2378
        %v2380 = vsub.f32 1.0, %v2379
        %v2381 = vmul.f32 %v2378, %v2380
        %v2382 = vadd.f32 %v2378, %v2381
        %vm2383 = vweird.f32 %v2082
        %vm2384 = vweird.f32 %v2378
        %vm2385 = vmor %vm2383, %vm2384
        %v2386 = vsel %vm2385, %v2378, %v2382
        %v2387 = vand.u32 2147483647, %v2082
        %vm2388 = vcmp.eq.f32.partialorder %v2387, 8.507059e+37
        %v2389 = vand.u32 %v2082, 2147483648
        %v2390 = vor.u32 1.1754944e-38, %v2389
        %v2391 = vsel %vm2388, %v2390, %v2386
        %v2392 = vmul.f32 1.0, %v2391
        %v2393 = vrcp.pop %v2083
        %v2394 = vmul.f32 %v2083, %v2393
        %v2395 = vsub.f32 1.0, %v2394
        %v2396 = vmul.f32 %v2393, %v2395
        %v2397 = vadd.f32 %v2393, %v2396
        %vm2398 = vweird.f32 %v2083
        %vm2399 = vweird.f32 %v2393
        %vm2400 = vmor %vm2398, %vm2399
        %v2401 = vsel %vm2400, %v2393, %v2397
        %v2402 = vand.u32 2147483647, %v2083
        %vm2403 = vcmp.eq.f32.partialorder %v2402, 8.507059e+37
        %v2404 = vand.u32 %v2083, 2147483648
        %v2405 = vor.u32 1.1754944e-38, %v2404
        %v2406 = vsel %vm2403, %v2405, %v2401
        %v2407 = vmul.f32 1.0, %v2406
        %v2408 = vrcp.pop %v2084
        %v2409 = vmul.f32 %v2084, %v2408
        %v2410 = vsub.f32 1.0, %v2409
        %v2411 = vmul.f32 %v2408, %v2410
        %v2412 = vadd.f32 %v2408, %v2411
        %vm2413 = vweird.f32 %v2084
        %vm2414 = vweird.f32 %v2408
        %vm2415 = vmor %vm2413, %vm2414
        %v2416 = vsel %vm2415, %v2408, %v2412
        %v2417 = vand.u32 2147483647, %v2084
        %vm2418 = vcmp.eq.f32.partialorder %v2417, 8.507059e+37
        %v2419 = vand.u32 %v2084, 2147483648
        %v2420 = vor.u32 1.1754944e-38, %v2419
        %v2421 = vsel %vm2418, %v2420, %v2416
        %v2422 = vmul.f32 1.0, %v2421
        %v2423 = vrcp.pop %v2085
        %v2424 = vmul.f32 %v2085, %v2423
        %v2425 = vsub.f32 1.0, %v2424
        %v2426 = vmul.f32 %v2423, %v2425
        %v2427 = vadd.f32 %v2423, %v2426
        %vm2428 = vweird.f32 %v2085
        %vm2429 = vweird.f32 %v2423
        %vm2430 = vmor %vm2428, %vm2429
        %v2431 = vsel %vm2430, %v2423, %v2427
        %v2432 = vand.u32 2147483647, %v2085
        %vm2433 = vcmp.eq.f32.partialorder %v2432, 8.507059e+37
        %v2434 = vand.u32 %v2085, 2147483648
        %v2435 = vor.u32 1.1754944e-38, %v2434
        %v2436 = vsel %vm2433, %v2435, %v2431
        %v2437 = vmul.f32 1.0, %v2436
        %v2438 = vrcp.pop %v2086
        %v2439 = vmul.f32 %v2086, %v2438
        %v2440 = vsub.f32 1.0, %v2439
        %v2441 = vmul.f32 %v2438, %v2440
        %v2442 = vadd.f32 %v2438, %v2441
        %vm2443 = vweird.f32 %v2086
        %vm2444 = vweird.f32 %v2438
        %vm2445 = vmor %vm2443, %vm2444
        %v2446 = vsel %vm2445, %v2438, %v2442
        %v2447 = vand.u32 2147483647, %v2086
        %vm2448 = vcmp.eq.f32.partialorder %v2447, 8.507059e+37
        %v2449 = vand.u32 %v2086, 2147483648
        %v2450 = vor.u32 1.1754944e-38, %v2449
        %v2451 = vsel %vm2448, %v2450, %v2446
        %v2452 = vmul.f32 1.0, %v2451
        %v2453 = vrcp.pop %v2087
        %v2454 = vmul.f32 %v2087, %v2453
        %v2455 = vsub.f32 1.0, %v2454
        %v2456 = vmul.f32 %v2453, %v2455
        %v2457 = vadd.f32 %v2453, %v2456
        %vm2458 = vweird.f32 %v2087
        %vm2459 = vweird.f32 %v2453
        %vm2460 = vmor %vm2458, %vm2459
        %v2461 = vsel %vm2460, %v2453, %v2457
        %v2462 = vand.u32 2147483647, %v2087
        %vm2463 = vcmp.eq.f32.partialorder %v2462, 8.507059e+37
        %v2464 = vand.u32 %v2087, 2147483648
        %v2465 = vor.u32 1.1754944e-38, %v2464
        %v2466 = vsel %vm2463, %v2465, %v2461
        %v2467 = vmul.f32 1.0, %v2466
        %v2468 = vrcp.pop %v2088
        %v2469 = vmul.f32 %v2088, %v2468
        %v2470 = vsub.f32 1.0, %v2469
        %v2471 = vmul.f32 %v2468, %v2470
        %v2472 = vadd.f32 %v2468, %v2471
        %vm2473 = vweird.f32 %v2088
        %vm2474 = vweird.f32 %v2468
        %vm2475 = vmor %vm2473, %vm2474
        %v2476 = vsel %vm2475, %v2468, %v2472
        %v2477 = vand.u32 2147483647, %v2088
        %vm2478 = vcmp.eq.f32.partialorder %v2477, 8.507059e+37
        %v2479 = vand.u32 %v2088, 2147483648
        %v2480 = vor.u32 1.1754944e-38, %v2479
        %v2481 = vsel %vm2478, %v2480, %v2476
        %v2482 = vmul.f32 1.0, %v2481
        %v2483 = vrcp.pop %v2089
        %v2484 = vmul.f32 %v2089, %v2483
        %v2485 = vsub.f32 1.0, %v2484
        %v2486 = vmul.f32 %v2483, %v2485
        %v2487 = vadd.f32 %v2483, %v2486
        %vm2488 = vweird.f32 %v2089
        %vm2489 = vweird.f32 %v2483
        %vm2490 = vmor %vm2488, %vm2489
        %v2491 = vsel %vm2490, %v2483, %v2487
        %v2492 = vand.u32 2147483647, %v2089
        %vm2493 = vcmp.eq.f32.partialorder %v2492, 8.507059e+37
        %v2494 = vand.u32 %v2089, 2147483648
        %v2495 = vor.u32 1.1754944e-38, %v2494
        %v2496 = vsel %vm2493, %v2495, %v2491
        %v2497 = vmul.f32 1.0, %v2496
        %v2498 = vrcp.pop %v2090
        %v2499 = vmul.f32 %v2090, %v2498
        %v2500 = vsub.f32 1.0, %v2499
        %v2501 = vmul.f32 %v2498, %v2500
        %v2502 = vadd.f32 %v2498, %v2501
        %vm2503 = vweird.f32 %v2090
        %vm2504 = vweird.f32 %v2498
        %vm2505 = vmor %vm2503, %vm2504
        %v2506 = vsel %vm2505, %v2498, %v2502
        %v2507 = vand.u32 2147483647, %v2090
        %vm2508 = vcmp.eq.f32.partialorder %v2507, 8.507059e+37
        %v2509 = vand.u32 %v2090, 2147483648
        %v2510 = vor.u32 1.1754944e-38, %v2509
        %v2511 = vsel %vm2508, %v2510, %v2506
        %v2512 = vmul.f32 1.0, %v2511
        %v2513 = vrcp.pop %v2091
        %v2514 = vmul.f32 %v2091, %v2513
        %v2515 = vsub.f32 1.0, %v2514
        %v2516 = vmul.f32 %v2513, %v2515
        %v2517 = vadd.f32 %v2513, %v2516
        %vm2518 = vweird.f32 %v2091
        %vm2519 = vweird.f32 %v2513
        %vm2520 = vmor %vm2518, %vm2519
        %v2521 = vsel %vm2520, %v2513, %v2517
        %v2522 = vand.u32 2147483647, %v2091
        %vm2523 = vcmp.eq.f32.partialorder %v2522, 8.507059e+37
        %v2524 = vand.u32 %v2091, 2147483648
        %v2525 = vor.u32 1.1754944e-38, %v2524
        %v2526 = vsel %vm2523, %v2525, %v2521
        %v2527 = vmul.f32 1.0, %v2526
        %v2528 = vrcp.pop %v2092
        %v2529 = vmul.f32 %v2092, %v2528
        %v2530 = vsub.f32 1.0, %v2529
        %v2531 = vmul.f32 %v2528, %v2530
        %v2532 = vadd.f32 %v2528, %v2531
        %vm2533 = vweird.f32 %v2092
        %vm2534 = vweird.f32 %v2528
        %vm2535 = vmor %vm2533, %vm2534
        %v2536 = vsel %vm2535, %v2528, %v2532
        %v2537 = vand.u32 2147483647, %v2092
        %vm2538 = vcmp.eq.f32.partialorder %v2537, 8.507059e+37
        %v2539 = vand.u32 %v2092, 2147483648
        %v2540 = vor.u32 1.1754944e-38, %v2539
        %v2541 = vsel %vm2538, %v2540, %v2536
        %v2542 = vmul.f32 1.0, %v2541
        %v2543 = vrcp.pop %v2093
        %v2544 = vmul.f32 %v2093, %v2543
        %v2545 = vsub.f32 1.0, %v2544
        %v2546 = vmul.f32 %v2543, %v2545
        %v2547 = vadd.f32 %v2543, %v2546
        %vm2548 = vweird.f32 %v2093
        %vm2549 = vweird.f32 %v2543
        %vm2550 = vmor %vm2548, %vm2549
        %v2551 = vsel %vm2550, %v2543, %v2547
        %v2552 = vand.u32 2147483647, %v2093
        %vm2553 = vcmp.eq.f32.partialorder %v2552, 8.507059e+37
        %v2554 = vand.u32 %v2093, 2147483648
        %v2555 = vor.u32 1.1754944e-38, %v2554
        %v2556 = vsel %vm2553, %v2555, %v2551
        %v2557 = vmul.f32 1.0, %v2556
        %v2558 = vrcp.pop %v2094
        %v2559 = vmul.f32 %v2094, %v2558
        %v2560 = vsub.f32 1.0, %v2559
        %v2561 = vmul.f32 %v2558, %v2560
        %v2562 = vadd.f32 %v2558, %v2561
        %vm2563 = vweird.f32 %v2094
        %vm2564 = vweird.f32 %v2558
        %vm2565 = vmor %vm2563, %vm2564
        %v2566 = vsel %vm2565, %v2558, %v2562
        %v2567 = vand.u32 2147483647, %v2094
        %vm2568 = vcmp.eq.f32.partialorder %v2567, 8.507059e+37
        %v2569 = vand.u32 %v2094, 2147483648
        %v2570 = vor.u32 1.1754944e-38, %v2569
        %v2571 = vsel %vm2568, %v2570, %v2566
        %v2572 = vmul.f32 1.0, %v2571
        %v2573 = vrcp.pop %v2095
        %v2574 = vmul.f32 %v2095, %v2573
        %v2575 = vsub.f32 1.0, %v2574
        %v2576 = vmul.f32 %v2573, %v2575
        %v2577 = vadd.f32 %v2573, %v2576
        %vm2578 = vweird.f32 %v2095
        %vm2579 = vweird.f32 %v2573
        %vm2580 = vmor %vm2578, %vm2579
        %v2581 = vsel %vm2580, %v2573, %v2577
        %v2582 = vand.u32 2147483647, %v2095
        %vm2583 = vcmp.eq.f32.partialorder %v2582, 8.507059e+37
        %v2584 = vand.u32 %v2095, 2147483648
        %v2585 = vor.u32 1.1754944e-38, %v2584
        %v2586 = vsel %vm2583, %v2585, %v2581
        %v2587 = vmul.f32 1.0, %v2586
        %v2588 = vrcp.pop %v2096
        %v2589 = vmul.f32 %v2096, %v2588
        %v2590 = vsub.f32 1.0, %v2589
        %v2591 = vmul.f32 %v2588, %v2590
        %v2592 = vadd.f32 %v2588, %v2591
        %vm2593 = vweird.f32 %v2096
        %vm2594 = vweird.f32 %v2588
        %vm2595 = vmor %vm2593, %vm2594
        %v2596 = vsel %vm2595, %v2588, %v2592
        %v2597 = vand.u32 2147483647, %v2096
        %vm2598 = vcmp.eq.f32.partialorder %v2597, 8.507059e+37
        %v2599 = vand.u32 %v2096, 2147483648
        %v2600 = vor.u32 1.1754944e-38, %v2599
        %v2601 = vsel %vm2598, %v2600, %v2596
        %v2602 = vmul.f32 1.0, %v2601
        %v2603 = vrcp.pop %v2097
        %v2604 = vmul.f32 %v2097, %v2603
        %v2605 = vsub.f32 1.0, %v2604
        %v2606 = vmul.f32 %v2603, %v2605
        %v2607 = vadd.f32 %v2603, %v2606
        %vm2608 = vweird.f32 %v2097
        %vm2609 = vweird.f32 %v2603
        %vm2610 = vmor %vm2608, %vm2609
        %v2611 = vsel %vm2610, %v2603, %v2607
        %v2612 = vand.u32 2147483647, %v2097
        %vm2613 = vcmp.eq.f32.partialorder %v2612, 8.507059e+37
        %v2614 = vand.u32 %v2097, 2147483648
        %v2615 = vor.u32 1.1754944e-38, %v2614
        %v2616 = vsel %vm2613, %v2615, %v2611
        %v2617 = vmul.f32 1.0, %v2616
        %v2618 = vrcp.pop %v2098
        %v2619 = vmul.f32 %v2098, %v2618
        %v2620 = vsub.f32 1.0, %v2619
        %v2621 = vmul.f32 %v2618, %v2620
        %v2622 = vadd.f32 %v2618, %v2621
        %vm2623 = vweird.f32 %v2098
        %vm2624 = vweird.f32 %v2618
        %vm2625 = vmor %vm2623, %vm2624
        %v2626 = vsel %vm2625, %v2618, %v2622
        %v2627 = vand.u32 2147483647, %v2098
        %vm2628 = vcmp.eq.f32.partialorder %v2627, 8.507059e+37
        %v2629 = vand.u32 %v2098, 2147483648
        %v2630 = vor.u32 1.1754944e-38, %v2629
        %v2631 = vsel %vm2628, %v2630, %v2626
        %v2632 = vmul.f32 1.0, %v2631
        %v2633 = vrcp.pop %v2099
        %v2634 = vmul.f32 %v2099, %v2633
        %v2635 = vsub.f32 1.0, %v2634
        %v2636 = vmul.f32 %v2633, %v2635
        %v2637 = vadd.f32 %v2633, %v2636
        %vm2638 = vweird.f32 %v2099
        %vm2639 = vweird.f32 %v2633
        %vm2640 = vmor %vm2638, %vm2639
        %v2641 = vsel %vm2640, %v2633, %v2637
        %v2642 = vand.u32 2147483647, %v2099
        %vm2643 = vcmp.eq.f32.partialorder %v2642, 8.507059e+37
        %v2644 = vand.u32 %v2099, 2147483648
        %v2645 = vor.u32 1.1754944e-38, %v2644
        %v2646 = vsel %vm2643, %v2645, %v2641
        %v2647 = vmul.f32 1.0, %v2646
        %v2648 = vrcp.pop %v2100
        %v2649 = vmul.f32 %v2100, %v2648
        %v2650 = vsub.f32 1.0, %v2649
        %v2651 = vmul.f32 %v2648, %v2650
        %v2652 = vadd.f32 %v2648, %v2651
        %vm2653 = vweird.f32 %v2100
        %vm2654 = vweird.f32 %v2648
        %vm2655 = vmor %vm2653, %vm2654
        %v2656 = vsel %vm2655, %v2648, %v2652
        %v2657 = vand.u32 2147483647, %v2100
        %vm2658 = vcmp.eq.f32.partialorder %v2657, 8.507059e+37
        %v2659 = vand.u32 %v2100, 2147483648
        %v2660 = vor.u32 1.1754944e-38, %v2659
        %v2661 = vsel %vm2658, %v2660, %v2656
        %v2662 = vmul.f32 1.0, %v2661
        %v2663 = vrcp.pop %v2101
        %v2664 = vmul.f32 %v2101, %v2663
        %v2665 = vsub.f32 1.0, %v2664
        %v2666 = vmul.f32 %v2663, %v2665
        %v2667 = vadd.f32 %v2663, %v2666
        %vm2668 = vweird.f32 %v2101
        %vm2669 = vweird.f32 %v2663
        %vm2670 = vmor %vm2668, %vm2669
        %v2671 = vsel %vm2670, %v2663, %v2667
        %v2672 = vand.u32 2147483647, %v2101
        %vm2673 = vcmp.eq.f32.partialorder %v2672, 8.507059e+37
        %v2674 = vand.u32 %v2101, 2147483648
        %v2675 = vor.u32 1.1754944e-38, %v2674
        %v2676 = vsel %vm2673, %v2675, %v2671
        %v2677 = vmul.f32 1.0, %v2676
        %v2678 = vrcp.pop %v2102
        %v2679 = vmul.f32 %v2102, %v2678
        %v2680 = vsub.f32 1.0, %v2679
        %v2681 = vmul.f32 %v2678, %v2680
        %v2682 = vadd.f32 %v2678, %v2681
        %vm2683 = vweird.f32 %v2102
        %vm2684 = vweird.f32 %v2678
        %vm2685 = vmor %vm2683, %vm2684
        %v2686 = vsel %vm2685, %v2678, %v2682
        %v2687 = vand.u32 2147483647, %v2102
        %vm2688 = vcmp.eq.f32.partialorder %v2687, 8.507059e+37
        %v2689 = vand.u32 %v2102, 2147483648
        %v2690 = vor.u32 1.1754944e-38, %v2689
        %v2691 = vsel %vm2688, %v2690, %v2686
        %v2692 = vmul.f32 1.0, %v2691
        %v2693 = vrcp.pop %v2103
        %v2694 = vmul.f32 %v2103, %v2693
        %v2695 = vsub.f32 1.0, %v2694
        %v2696 = vmul.f32 %v2693, %v2695
        %v2697 = vadd.f32 %v2693, %v2696
        %vm2698 = vweird.f32 %v2103
        %vm2699 = vweird.f32 %v2693
        %vm2700 = vmor %vm2698, %vm2699
        %v2701 = vsel %vm2700, %v2693, %v2697
        %v2702 = vand.u32 2147483647, %v2103
        %vm2703 = vcmp.eq.f32.partialorder %v2702, 8.507059e+37
        %v2704 = vand.u32 %v2103, 2147483648
        %v2705 = vor.u32 1.1754944e-38, %v2704
        %v2706 = vsel %vm2703, %v2705, %v2701
        %v2707 = vmul.f32 1.0, %v2706
        %v2708 = vrcp.pop %v2104
        %v2709 = vmul.f32 %v2104, %v2708
        %v2710 = vsub.f32 1.0, %v2709
        %v2711 = vmul.f32 %v2708, %v2710
        %v2712 = vadd.f32 %v2708, %v2711
        %vm2713 = vweird.f32 %v2104
        %vm2714 = vweird.f32 %v2708
        %vm2715 = vmor %vm2713, %vm2714
        %v2716 = vsel %vm2715, %v2708, %v2712
        %v2717 = vand.u32 2147483647, %v2104
        %vm2718 = vcmp.eq.f32.partialorder %v2717, 8.507059e+37
        %v2719 = vand.u32 %v2104, 2147483648
        %v2720 = vor.u32 1.1754944e-38, %v2719
        %v2721 = vsel %vm2718, %v2720, %v2716
        %v2722 = vmul.f32 1.0, %v2721
        %v2723 = vrcp.pop %v2105
        %v2724 = vmul.f32 %v2105, %v2723
        %v2725 = vsub.f32 1.0, %v2724
        %v2726 = vmul.f32 %v2723, %v2725
        %v2727 = vadd.f32 %v2723, %v2726
        %vm2728 = vweird.f32 %v2105
        %vm2729 = vweird.f32 %v2723
        %vm2730 = vmor %vm2728, %vm2729
        %v2731 = vsel %vm2730, %v2723, %v2727
        %v2732 = vand.u32 2147483647, %v2105
        %vm2733 = vcmp.eq.f32.partialorder %v2732, 8.507059e+37
        %v2734 = vand.u32 %v2105, 2147483648
        %v2735 = vor.u32 1.1754944e-38, %v2734
        %v2736 = vsel %vm2733, %v2735, %v2731
        %v2737 = vmul.f32 1.0, %v2736
        %v2738 = vrcp.pop %v2106
        %v2739 = vmul.f32 %v2106, %v2738
        %v2740 = vsub.f32 1.0, %v2739
        %v2741 = vmul.f32 %v2738, %v2740
        %v2742 = vadd.f32 %v2738, %v2741
        %vm2743 = vweird.f32 %v2106
        %vm2744 = vweird.f32 %v2738
        %vm2745 = vmor %vm2743, %vm2744
        %v2746 = vsel %vm2745, %v2738, %v2742
        %v2747 = vand.u32 2147483647, %v2106
        %vm2748 = vcmp.eq.f32.partialorder %v2747, 8.507059e+37
        %v2749 = vand.u32 %v2106, 2147483648
        %v2750 = vor.u32 1.1754944e-38, %v2749
        %v2751 = vsel %vm2748, %v2750, %v2746
        %v2752 = vmul.f32 1.0, %v2751
        %v2753 = vrcp.pop %v2107
        %v2754 = vmul.f32 %v2107, %v2753
        %v2755 = vsub.f32 1.0, %v2754
        %v2756 = vmul.f32 %v2753, %v2755
        %v2757 = vadd.f32 %v2753, %v2756
        %vm2758 = vweird.f32 %v2107
        %vm2759 = vweird.f32 %v2753
        %vm2760 = vmor %vm2758, %vm2759
        %v2761 = vsel %vm2760, %v2753, %v2757
        %v2762 = vand.u32 2147483647, %v2107
        %vm2763 = vcmp.eq.f32.partialorder %v2762, 8.507059e+37
        %v2764 = vand.u32 %v2107, 2147483648
        %v2765 = vor.u32 1.1754944e-38, %v2764
        %v2766 = vsel %vm2763, %v2765, %v2761
        %v2767 = vmul.f32 1.0, %v2766
        %v2768 = vrcp.pop %v2108
        %v2769 = vmul.f32 %v2108, %v2768
        %v2770 = vsub.f32 1.0, %v2769
        %v2771 = vmul.f32 %v2768, %v2770
        %v2772 = vadd.f32 %v2768, %v2771
        %vm2773 = vweird.f32 %v2108
        %vm2774 = vweird.f32 %v2768
        %vm2775 = vmor %vm2773, %vm2774
        %v2776 = vsel %vm2775, %v2768, %v2772
        %v2777 = vand.u32 2147483647, %v2108
        %vm2778 = vcmp.eq.f32.partialorder %v2777, 8.507059e+37
        %v2779 = vand.u32 %v2108, 2147483648
        %v2780 = vor.u32 1.1754944e-38, %v2779
        %v2781 = vsel %vm2778, %v2780, %v2776
        %v2782 = vmul.f32 1.0, %v2781
        %v2783 = vrcp.pop %v2109
        %v2784 = vmul.f32 %v2109, %v2783
        %v2785 = vsub.f32 1.0, %v2784
        %v2786 = vmul.f32 %v2783, %v2785
        %v2787 = vadd.f32 %v2783, %v2786
        %vm2788 = vweird.f32 %v2109
        %vm2789 = vweird.f32 %v2783
        %vm2790 = vmor %vm2788, %vm2789
        %v2791 = vsel %vm2790, %v2783, %v2787
        %v2792 = vand.u32 2147483647, %v2109
        %vm2793 = vcmp.eq.f32.partialorder %v2792, 8.507059e+37
        %v2794 = vand.u32 %v2109, 2147483648
        %v2795 = vor.u32 1.1754944e-38, %v2794
        %v2796 = vsel %vm2793, %v2795, %v2791
        %v2797 = vmul.f32 1.0, %v2796
        %v2798 = vrcp.pop %v2110
        %v2799 = vmul.f32 %v2110, %v2798
        %v2800 = vsub.f32 1.0, %v2799
        %v2801 = vmul.f32 %v2798, %v2800
        %v2802 = vadd.f32 %v2798, %v2801
        %vm2803 = vweird.f32 %v2110
        %vm2804 = vweird.f32 %v2798
        %vm2805 = vmor %vm2803, %vm2804
        %v2806 = vsel %vm2805, %v2798, %v2802
        %v2807 = vand.u32 2147483647, %v2110
        %vm2808 = vcmp.eq.f32.partialorder %v2807, 8.507059e+37
        %v2809 = vand.u32 %v2110, 2147483648
        %v2810 = vor.u32 1.1754944e-38, %v2809
        %v2811 = vsel %vm2808, %v2810, %v2806
        %v2812 = vmul.f32 1.0, %v2811
        %v2813 = vrcp.pop %v2111
        %v2814 = vmul.f32 %v2111, %v2813
        %v2815 = vsub.f32 1.0, %v2814
        %v2816 = vmul.f32 %v2813, %v2815
        %v2817 = vadd.f32 %v2813, %v2816
        %vm2818 = vweird.f32 %v2111
        %vm2819 = vweird.f32 %v2813
        %vm2820 = vmor %vm2818, %vm2819
        %v2821 = vsel %vm2820, %v2813, %v2817
        %v2822 = vand.u32 2147483647, %v2111
        %vm2823 = vcmp.eq.f32.partialorder %v2822, 8.507059e+37
        %v2824 = vand.u32 %v2111, 2147483648
        %v2825 = vor.u32 1.1754944e-38, %v2824
        %v2826 = vsel %vm2823, %v2825, %v2821
        %v2827 = vmul.f32 1.0, %v2826
        %v2828 = vrcp.pop %v2112
        %v2829 = vmul.f32 %v2112, %v2828
        %v2830 = vsub.f32 1.0, %v2829
        %v2831 = vmul.f32 %v2828, %v2830
        %v2832 = vadd.f32 %v2828, %v2831
        %vm2833 = vweird.f32 %v2112
        %vm2834 = vweird.f32 %v2828
        %vm2835 = vmor %vm2833, %vm2834
        %v2836 = vsel %vm2835, %v2828, %v2832
        %v2837 = vand.u32 2147483647, %v2112
        %vm2838 = vcmp.eq.f32.partialorder %v2837, 8.507059e+37
        %v2839 = vand.u32 %v2112, 2147483648
        %v2840 = vor.u32 1.1754944e-38, %v2839
        %v2841 = vsel %vm2838, %v2840, %v2836
        %v2842 = vmul.f32 1.0, %v2841
        %v2843 = vrcp.pop %v2113
        %v2844 = vmul.f32 %v2113, %v2843
        %v2845 = vsub.f32 1.0, %v2844
        %v2846 = vmul.f32 %v2843, %v2845
        %v2847 = vadd.f32 %v2843, %v2846
        %vm2848 = vweird.f32 %v2113
        %vm2849 = vweird.f32 %v2843
        %vm2850 = vmor %vm2848, %vm2849
        %v2851 = vsel %vm2850, %v2843, %v2847
        %v2852 = vand.u32 2147483647, %v2113
        %vm2853 = vcmp.eq.f32.partialorder %v2852, 8.507059e+37
        %v2854 = vand.u32 %v2113, 2147483648
        %v2855 = vor.u32 1.1754944e-38, %v2854
        %v2856 = vsel %vm2853, %v2855, %v2851
        %v2857 = vmul.f32 1.0, %v2856
        %v2858 = vrcp.pop %v2114
        %v2859 = vmul.f32 %v2114, %v2858
        %v2860 = vsub.f32 1.0, %v2859
        %v2861 = vmul.f32 %v2858, %v2860
        %v2862 = vadd.f32 %v2858, %v2861
        %vm2863 = vweird.f32 %v2114
        %vm2864 = vweird.f32 %v2858
        %vm2865 = vmor %vm2863, %vm2864
        %v2866 = vsel %vm2865, %v2858, %v2862
        %v2867 = vand.u32 2147483647, %v2114
        %vm2868 = vcmp.eq.f32.partialorder %v2867, 8.507059e+37
        %v2869 = vand.u32 %v2114, 2147483648
        %v2870 = vor.u32 1.1754944e-38, %v2869
        %v2871 = vsel %vm2868, %v2870, %v2866
        %v2872 = vmul.f32 1.0, %v2871
        %v2873 = vrcp.pop %v2115
        %v2874 = vmul.f32 %v2115, %v2873
        %v2875 = vsub.f32 1.0, %v2874
        %v2876 = vmul.f32 %v2873, %v2875
        %v2877 = vadd.f32 %v2873, %v2876
        %vm2878 = vweird.f32 %v2115
        %vm2879 = vweird.f32 %v2873
        %vm2880 = vmor %vm2878, %vm2879
        %v2881 = vsel %vm2880, %v2873, %v2877
        %v2882 = vand.u32 2147483647, %v2115
        %vm2883 = vcmp.eq.f32.partialorder %v2882, 8.507059e+37
        %v2884 = vand.u32 %v2115, 2147483648
        %v2885 = vor.u32 1.1754944e-38, %v2884
        %v2886 = vsel %vm2883, %v2885, %v2881
        %v2887 = vmul.f32 1.0, %v2886
        %v2888 = vrcp.pop %v2116
        %v2889 = vmul.f32 %v2116, %v2888
        %v2890 = vsub.f32 1.0, %v2889
        %v2891 = vmul.f32 %v2888, %v2890
        %v2892 = vadd.f32 %v2888, %v2891
        %vm2893 = vweird.f32 %v2116
        %vm2894 = vweird.f32 %v2888
        %vm2895 = vmor %vm2893, %vm2894
        %v2896 = vsel %vm2895, %v2888, %v2892
        %v2897 = vand.u32 2147483647, %v2116
        %vm2898 = vcmp.eq.f32.partialorder %v2897, 8.507059e+37
        %v2899 = vand.u32 %v2116, 2147483648
        %v2900 = vor.u32 1.1754944e-38, %v2899
        %v2901 = vsel %vm2898, %v2900, %v2896
        %v2902 = vmul.f32 1.0, %v2901
        %v2903 = vrcp.pop %v2117
        %v2904 = vmul.f32 %v2117, %v2903
        %v2905 = vsub.f32 1.0, %v2904
        %v2906 = vmul.f32 %v2903, %v2905
        %v2907 = vadd.f32 %v2903, %v2906
        %vm2908 = vweird.f32 %v2117
        %vm2909 = vweird.f32 %v2903
        %vm2910 = vmor %vm2908, %vm2909
        %v2911 = vsel %vm2910, %v2903, %v2907
        %v2912 = vand.u32 2147483647, %v2117
        %vm2913 = vcmp.eq.f32.partialorder %v2912, 8.507059e+37
        %v2914 = vand.u32 %v2117, 2147483648
        %v2915 = vor.u32 1.1754944e-38, %v2914
        %v2916 = vsel %vm2913, %v2915, %v2911
        %v2917 = vmul.f32 1.0, %v2916
        %v2918 = vrcp.pop %v2118
        %v2919 = vmul.f32 %v2118, %v2918
        %v2920 = vsub.f32 1.0, %v2919
        %v2921 = vmul.f32 %v2918, %v2920
        %v2922 = vadd.f32 %v2918, %v2921
        %vm2923 = vweird.f32 %v2118
        %vm2924 = vweird.f32 %v2918
        %vm2925 = vmor %vm2923, %vm2924
        %v2926 = vsel %vm2925, %v2918, %v2922
        %v2927 = vand.u32 2147483647, %v2118
        %vm2928 = vcmp.eq.f32.partialorder %v2927, 8.507059e+37
        %v2929 = vand.u32 %v2118, 2147483648
        %v2930 = vor.u32 1.1754944e-38, %v2929
        %v2931 = vsel %vm2928, %v2930, %v2926
        %v2932 = vmul.f32 1.0, %v2931
        %v2933 = vrcp.pop %v2119
        %v2934 = vmul.f32 %v2119, %v2933
        %v2935 = vsub.f32 1.0, %v2934
        %v2936 = vmul.f32 %v2933, %v2935
        %v2937 = vadd.f32 %v2933, %v2936
        %vm2938 = vweird.f32 %v2119
        %vm2939 = vweird.f32 %v2933
        %vm2940 = vmor %vm2938, %vm2939
        %v2941 = vsel %vm2940, %v2933, %v2937
        %v2942 = vand.u32 2147483647, %v2119
        %vm2943 = vcmp.eq.f32.partialorder %v2942, 8.507059e+37
        %v2944 = vand.u32 %v2119, 2147483648
        %v2945 = vor.u32 1.1754944e-38, %v2944
        %v2946 = vsel %vm2943, %v2945, %v2941
        %v2947 = vmul.f32 1.0, %v2946
        %v2948 = vrcp.pop %v2120
        %v2949 = vmul.f32 %v2120, %v2948
        %v2950 = vsub.f32 1.0, %v2949
        %v2951 = vmul.f32 %v2948, %v2950
        %v2952 = vadd.f32 %v2948, %v2951
        %vm2953 = vweird.f32 %v2120
        %vm2954 = vweird.f32 %v2948
        %vm2955 = vmor %vm2953, %vm2954
        %v2956 = vsel %vm2955, %v2948, %v2952
        %v2957 = vand.u32 2147483647, %v2120
        %vm2958 = vcmp.eq.f32.partialorder %v2957, 8.507059e+37
        %v2959 = vand.u32 %v2120, 2147483648
        %v2960 = vor.u32 1.1754944e-38, %v2959
        %v2961 = vsel %vm2958, %v2960, %v2956
        %v2962 = vmul.f32 1.0, %v2961
        %v2963 = vrcp.pop %v2121
        %v2964 = vmul.f32 %v2121, %v2963
        %v2965 = vsub.f32 1.0, %v2964
        %v2966 = vmul.f32 %v2963, %v2965
        %v2967 = vadd.f32 %v2963, %v2966
        %vm2968 = vweird.f32 %v2121
        %vm2969 = vweird.f32 %v2963
        %vm2970 = vmor %vm2968, %vm2969
        %v2971 = vsel %vm2970, %v2963, %v2967
        %v2972 = vand.u32 2147483647, %v2121
        %vm2973 = vcmp.eq.f32.partialorder %v2972, 8.507059e+37
        %v2974 = vand.u32 %v2121, 2147483648
        %v2975 = vor.u32 1.1754944e-38, %v2974
        %v2976 = vsel %vm2973, %v2975, %v2971
        %v2977 = vmul.f32 1.0, %v2976
        %v2978 = vrcp.pop %v2122
        %v2979 = vmul.f32 %v2122, %v2978
        %v2980 = vsub.f32 1.0, %v2979
        %v2981 = vmul.f32 %v2978, %v2980
        %v2982 = vadd.f32 %v2978, %v2981
        %vm2983 = vweird.f32 %v2122
        %vm2984 = vweird.f32 %v2978
        %vm2985 = vmor %vm2983, %vm2984
        %v2986 = vsel %vm2985, %v2978, %v2982
        %v2987 = vand.u32 2147483647, %v2122
        %vm2988 = vcmp.eq.f32.partialorder %v2987, 8.507059e+37
        %v2989 = vand.u32 %v2122, 2147483648
        %v2990 = vor.u32 1.1754944e-38, %v2989
        %v2991 = vsel %vm2988, %v2990, %v2986
        %v2992 = vmul.f32 1.0, %v2991
        %v2993 = vrcp.pop %v2123
        %v2994 = vmul.f32 %v2123, %v2993
        %v2995 = vsub.f32 1.0, %v2994
        %v2996 = vmul.f32 %v2993, %v2995
        %v2997 = vadd.f32 %v2993, %v2996
        %vm2998 = vweird.f32 %v2123
        %vm2999 = vweird.f32 %v2993
        %vm3000 = vmor %vm2998, %vm2999
        %v3001 = vsel %vm3000, %v2993, %v2997
        %v3002 = vand.u32 2147483647, %v2123
        %vm3003 = vcmp.eq.f32.partialorder %v3002, 8.507059e+37
        %v3004 = vand.u32 %v2123, 2147483648
        %v3005 = vor.u32 1.1754944e-38, %v3004
        %v3006 = vsel %vm3003, %v3005, %v3001
        %v3007 = vmul.f32 1.0, %v3006
        %v3008 = vrcp.pop %v2124
        %v3009 = vmul.f32 %v2124, %v3008
        %v3010 = vsub.f32 1.0, %v3009
        %v3011 = vmul.f32 %v3008, %v3010
        %v3012 = vadd.f32 %v3008, %v3011
        %vm3013 = vweird.f32 %v2124
        %vm3014 = vweird.f32 %v3008
        %vm3015 = vmor %vm3013, %vm3014
        %v3016 = vsel %vm3015, %v3008, %v3012
        %v3017 = vand.u32 2147483647, %v2124
        %vm3018 = vcmp.eq.f32.partialorder %v3017, 8.507059e+37
        %v3019 = vand.u32 %v2124, 2147483648
        %v3020 = vor.u32 1.1754944e-38, %v3019
        %v3021 = vsel %vm3018, %v3020, %v3016
        %v3022 = vmul.f32 1.0, %v3021
        %v3023 = vrcp.pop %v2125
        %v3024 = vmul.f32 %v2125, %v3023
        %v3025 = vsub.f32 1.0, %v3024
        %v3026 = vmul.f32 %v3023, %v3025
        %v3027 = vadd.f32 %v3023, %v3026
        %vm3028 = vweird.f32 %v2125
        %vm3029 = vweird.f32 %v3023
        %vm3030 = vmor %vm3028, %vm3029
        %v3031 = vsel %vm3030, %v3023, %v3027
        %v3032 = vand.u32 2147483647, %v2125
        %vm3033 = vcmp.eq.f32.partialorder %v3032, 8.507059e+37
        %v3034 = vand.u32 %v2125, 2147483648
        %v3035 = vor.u32 1.1754944e-38, %v3034
        %v3036 = vsel %vm3033, %v3035, %v3031
        %v3037 = vmul.f32 1.0, %v3036
        %v3038 = vrcp.pop %v2126
        %v3039 = vmul.f32 %v2126, %v3038
        %v3040 = vsub.f32 1.0, %v3039
        %v3041 = vmul.f32 %v3038, %v3040
        %v3042 = vadd.f32 %v3038, %v3041
        %vm3043 = vweird.f32 %v2126
        %vm3044 = vweird.f32 %v3038
        %vm3045 = vmor %vm3043, %vm3044
        %v3046 = vsel %vm3045, %v3038, %v3042
        %v3047 = vand.u32 2147483647, %v2126
        %vm3048 = vcmp.eq.f32.partialorder %v3047, 8.507059e+37
        %v3049 = vand.u32 %v2126, 2147483648
        %v3050 = vor.u32 1.1754944e-38, %v3049
        %v3051 = vsel %vm3048, %v3050, %v3046
        %v3052 = vmul.f32 1.0, %v3051
        %v3053 = vrcp.pop %v2127
        %v3054 = vmul.f32 %v2127, %v3053
        %v3055 = vsub.f32 1.0, %v3054
        %v3056 = vmul.f32 %v3053, %v3055
        %v3057 = vadd.f32 %v3053, %v3056
        %vm3058 = vweird.f32 %v2127
        %vm3059 = vweird.f32 %v3053
        %vm3060 = vmor %vm3058, %vm3059
        %v3061 = vsel %vm3060, %v3053, %v3057
        %v3062 = vand.u32 2147483647, %v2127
        %vm3063 = vcmp.eq.f32.partialorder %v3062, 8.507059e+37
        %v3064 = vand.u32 %v2127, 2147483648
        %v3065 = vor.u32 1.1754944e-38, %v3064
        %v3066 = vsel %vm3063, %v3065, %v3061
        %v3067 = vmul.f32 1.0, %v3066
        %v3068 = vrcp.pop %v2128
        %v3069 = vmul.f32 %v2128, %v3068
        %v3070 = vsub.f32 1.0, %v3069
        %v3071 = vmul.f32 %v3068, %v3070
        %v3072 = vadd.f32 %v3068, %v3071
        %vm3073 = vweird.f32 %v2128
        %vm3074 = vweird.f32 %v3068
        %vm3075 = vmor %vm3073, %vm3074
        %v3076 = vsel %vm3075, %v3068, %v3072
        %v3077 = vand.u32 2147483647, %v2128
        %vm3078 = vcmp.eq.f32.partialorder %v3077, 8.507059e+37
        %v3079 = vand.u32 %v2128, 2147483648
        %v3080 = vor.u32 1.1754944e-38, %v3079
        %v3081 = vsel %vm3078, %v3080, %v3076
        %v3082 = vmul.f32 1.0, %v3081
        %v3083 = vrcp.pop %v2129
        %v3084 = vmul.f32 %v2129, %v3083
        %v3085 = vsub.f32 1.0, %v3084
        %v3086 = vmul.f32 %v3083, %v3085
        %v3087 = vadd.f32 %v3083, %v3086
        %vm3088 = vweird.f32 %v2129
        %vm3089 = vweird.f32 %v3083
        %vm3090 = vmor %vm3088, %vm3089
        %v3091 = vsel %vm3090, %v3083, %v3087
        %v3092 = vand.u32 2147483647, %v2129
        %vm3093 = vcmp.eq.f32.partialorder %v3092, 8.507059e+37
        %v3094 = vand.u32 %v2129, 2147483648
        %v3095 = vor.u32 1.1754944e-38, %v3094
        %v3096 = vsel %vm3093, %v3095, %v3091
        %v3097 = vmul.f32 1.0, %v3096
        %v3098 = vrcp.pop %v2130
        %v3099 = vmul.f32 %v2130, %v3098
        %v3100 = vsub.f32 1.0, %v3099
        %v3101 = vmul.f32 %v3098, %v3100
        %v3102 = vadd.f32 %v3098, %v3101
        %vm3103 = vweird.f32 %v2130
        %vm3104 = vweird.f32 %v3098
        %vm3105 = vmor %vm3103, %vm3104
        %v3106 = vsel %vm3105, %v3098, %v3102
        %v3107 = vand.u32 2147483647, %v2130
        %vm3108 = vcmp.eq.f32.partialorder %v3107, 8.507059e+37
        %v3109 = vand.u32 %v2130, 2147483648
        %v3110 = vor.u32 1.1754944e-38, %v3109
        %v3111 = vsel %vm3108, %v3110, %v3106
        %v3112 = vmul.f32 1.0, %v3111
        %v3113 = vrcp.pop %v2131
        %v3114 = vmul.f32 %v2131, %v3113
        %v3115 = vsub.f32 1.0, %v3114
        %v3116 = vmul.f32 %v3113, %v3115
        %v3117 = vadd.f32 %v3113, %v3116
        %vm3118 = vweird.f32 %v2131
        %vm3119 = vweird.f32 %v3113
        %vm3120 = vmor %vm3118, %vm3119
        %v3121 = vsel %vm3120, %v3113, %v3117
        %v3122 = vand.u32 2147483647, %v2131
        %vm3123 = vcmp.eq.f32.partialorder %v3122, 8.507059e+37
        %v3124 = vand.u32 %v2131, 2147483648
        %v3125 = vor.u32 1.1754944e-38, %v3124
        %v3126 = vsel %vm3123, %v3125, %v3121
        %v3127 = vmul.f32 1.0, %v3126
        %v3128 = vrcp.pop %v2132
        %v3129 = vmul.f32 %v2132, %v3128
        %v3130 = vsub.f32 1.0, %v3129
        %v3131 = vmul.f32 %v3128, %v3130
        %v3132 = vadd.f32 %v3128, %v3131
        %vm3133 = vweird.f32 %v2132
        %vm3134 = vweird.f32 %v3128
        %vm3135 = vmor %vm3133, %vm3134
        %v3136 = vsel %vm3135, %v3128, %v3132
        %v3137 = vand.u32 2147483647, %v2132
        %vm3138 = vcmp.eq.f32.partialorder %v3137, 8.507059e+37
        %v3139 = vand.u32 %v2132, 2147483648
        %v3140 = vor.u32 1.1754944e-38, %v3139
        %v3141 = vsel %vm3138, %v3140, %v3136
        %v3142 = vmul.f32 1.0, %v3141
        %v3143 = vrcp.pop %v2133
        %v3144 = vmul.f32 %v2133, %v3143
        %v3145 = vsub.f32 1.0, %v3144
        %v3146 = vmul.f32 %v3143, %v3145
        %v3147 = vadd.f32 %v3143, %v3146
        %vm3148 = vweird.f32 %v2133
        %vm3149 = vweird.f32 %v3143
        %vm3150 = vmor %vm3148, %vm3149
        %v3151 = vsel %vm3150, %v3143, %v3147
        %v3152 = vand.u32 2147483647, %v2133
        %vm3153 = vcmp.eq.f32.partialorder %v3152, 8.507059e+37
        %v3154 = vand.u32 %v2133, 2147483648
        %v3155 = vor.u32 1.1754944e-38, %v3154
        %v3156 = vsel %vm3153, %v3155, %v3151
        %v3157 = vmul.f32 1.0, %v3156
        %v3158 = vrcp.pop %v2134
        %v3159 = vmul.f32 %v2134, %v3158
        %v3160 = vsub.f32 1.0, %v3159
        %v3161 = vmul.f32 %v3158, %v3160
        %v3162 = vadd.f32 %v3158, %v3161
        %vm3163 = vweird.f32 %v2134
        %vm3164 = vweird.f32 %v3158
        %vm3165 = vmor %vm3163, %vm3164
        %v3166 = vsel %vm3165, %v3158, %v3162
        %v3167 = vand.u32 2147483647, %v2134
        %vm3168 = vcmp.eq.f32.partialorder %v3167, 8.507059e+37
        %v3169 = vand.u32 %v2134, 2147483648
        %v3170 = vor.u32 1.1754944e-38, %v3169
        %v3171 = vsel %vm3168, %v3170, %v3166
        %v3172 = vmul.f32 1.0, %v3171
        %v3173 = vrcp.pop %v2135
        %v3174 = vmul.f32 %v2135, %v3173
        %v3175 = vsub.f32 1.0, %v3174
        %v3176 = vmul.f32 %v3173, %v3175
        %v3177 = vadd.f32 %v3173, %v3176
        %vm3178 = vweird.f32 %v2135
        %vm3179 = vweird.f32 %v3173
        %vm3180 = vmor %vm3178, %vm3179
        %v3181 = vsel %vm3180, %v3173, %v3177
        %v3182 = vand.u32 2147483647, %v2135
        %vm3183 = vcmp.eq.f32.partialorder %v3182, 8.507059e+37
        %v3184 = vand.u32 %v2135, 2147483648
        %v3185 = vor.u32 1.1754944e-38, %v3184
        %v3186 = vsel %vm3183, %v3185, %v3181
        %v3187 = vmul.f32 1.0, %v3186
        %v3188 = vrcp.pop %v2136
        %v3189 = vmul.f32 %v2136, %v3188
        %v3190 = vsub.f32 1.0, %v3189
        %v3191 = vmul.f32 %v3188, %v3190
        %v3192 = vadd.f32 %v3188, %v3191
        %vm3193 = vweird.f32 %v2136
        %vm3194 = vweird.f32 %v3188
        %vm3195 = vmor %vm3193, %vm3194
        %v3196 = vsel %vm3195, %v3188, %v3192
        %v3197 = vand.u32 2147483647, %v2136
        %vm3198 = vcmp.eq.f32.partialorder %v3197, 8.507059e+37
        %v3199 = vand.u32 %v2136, 2147483648
        %v3200 = vor.u32 1.1754944e-38, %v3199
        %v3201 = vsel %vm3198, %v3200, %v3196
        %v3202 = vmul.f32 1.0, %v3201
        %v3203 = vrcp.pop %v2137
        %v3204 = vmul.f32 %v2137, %v3203
        %v3205 = vsub.f32 1.0, %v3204
        %v3206 = vmul.f32 %v3203, %v3205
        %v3207 = vadd.f32 %v3203, %v3206
        %vm3208 = vweird.f32 %v2137
        %vm3209 = vweird.f32 %v3203
        %vm3210 = vmor %vm3208, %vm3209
        %v3211 = vsel %vm3210, %v3203, %v3207
        %v3212 = vand.u32 2147483647, %v2137
        %vm3213 = vcmp.eq.f32.partialorder %v3212, 8.507059e+37
        %v3214 = vand.u32 %v2137, 2147483648
        %v3215 = vor.u32 1.1754944e-38, %v3214
        %v3216 = vsel %vm3213, %v3215, %v3211
        %v3217 = vmul.f32 1.0, %v3216
        %v3218 = vtanh.pop %v1334
        %v3219 = vtanh.pop %v1423
        %v3220 = vtanh.pop %v1512
        %v3221 = vtanh.pop %v1337
        %v3222 = vtanh.pop %v1426
        %v3223 = vtanh.pop %v1515
        %v3224 = vtanh.pop %v1340
        %v3225 = vtanh.pop %v1429
        %v3226 = vtanh.pop %v1518
        %v3227 = vtanh.pop %v1343
        %v3228 = vtanh.pop %v1432
        %v3229 = vtanh.pop %v1521
        %v3230 = vtanh.pop %v1346
        %v3231 = vtanh.pop %v1435
        %v3232 = vtanh.pop %v1524
        %v3233 = vtanh.pop %v1349
        %v3234 = vtanh.pop %v1438
        %v3235 = vtanh.pop %v1527
        %v3236 = vtanh.pop %v1352
        %v3237 = vtanh.pop %v1441
        %v3238 = vtanh.pop %v1530
        %v3239 = vtanh.pop %v1355
        %v3240 = vtanh.pop %v1444
        %v3241 = vtanh.pop %v1533
        %v3242 = vtanh.pop %v1358
        %v3243 = vtanh.pop %v1447
        %v3244 = vtanh.pop %v1536
        %v3245 = vtanh.pop %v1361
        %v3246 = vtanh.pop %v1450
        %v3247 = vtanh.pop %v1539
        %v3248 = vtanh.pop %v1364
        %v3249 = vtanh.pop %v1453
        %v3250 = vtanh.pop %v1542
        %v3251 = vtanh.pop %v1367
        %v3252 = vtanh.pop %v1456
        %v3253 = vtanh.pop %v1545
        %v3254 = vtanh.pop %v1370
        %v3255 = vtanh.pop %v1459
        %v3256 = vtanh.pop %v1548
        %v3257 = vtanh.pop %v1373
        %v3258 = vtanh.pop %v1462
        %v3259 = vtanh.pop %v1551
        %v3260 = vtanh.pop %v1376
        %v3261 = vtanh.pop %v1465
        %v3262 = vtanh.pop %v1554
        %v3263 = vtanh.pop %v1379
        %v3264 = vtanh.pop %v1468
        %v3265 = vtanh.pop %v1557
        %v3266 = vtanh.pop %v1382
        %v3267 = vtanh.pop %v1471
        %v3268 = vtanh.pop %v1560
        %v3269 = vtanh.pop %v1385
        %v3270 = vtanh.pop %v1474
        %v3271 = vtanh.pop %v1563
        %v3272 = vtanh.pop %v1388
        %v3273 = vtanh.pop %v1477
        %v3274 = vtanh.pop %v1566
        %v3275 = vtanh.pop %v1391
        %v3276 = vtanh.pop %v1480
        %v3277 = vtanh.pop %v1569
        %v3278 = vtanh.pop %v1394
        %v3279 = vtanh.pop %v1483
        %v3280 = vtanh.pop %v1572
        %v3281 = vtanh.pop %v1397
        %v3282 = vtanh.pop %v1486
        %v3283 = vtanh.pop %v1575
        %v3284 = vtanh.pop %v1400
        %v3285 = vtanh.pop %v1489
        %v3286 = vtanh.pop %v1578
        %v3287 = vtanh.pop %v1403
        %v3288 = vtanh.pop %v1492
        %v3289 = vtanh.pop %v1581
        %v3290 = vxor.u32 %v1601, 2147483648
        %v3291 = vxor.u32 %v1690, 2147483648
        %v3292 = vxor.u32 %v1779, 2147483648
        %v3293 = vxor.u32 %v1604, 2147483648
        %v3294 = vxor.u32 %v1693, 2147483648
        %v3295 = vxor.u32 %v1782, 2147483648
        %v3296 = vxor.u32 %v1607, 2147483648
        %v3297 = vxor.u32 %v1696, 2147483648
        %v3298 = vxor.u32 %v1785, 2147483648
        %v3299 = vxor.u32 %v1610, 2147483648
        %v3300 = vxor.u32 %v1699, 2147483648
        %v3301 = vxor.u32 %v1788, 2147483648
        %v3302 = vxor.u32 %v1613, 2147483648
        %v3303 = vxor.u32 %v1702, 2147483648
        %v3304 = vxor.u32 %v1791, 2147483648
        %v3305 = vxor.u32 %v1616, 2147483648
        %v3306 = vxor.u32 %v1705, 2147483648
        %v3307 = vxor.u32 %v1794, 2147483648
        %v3308 = vxor.u32 %v1619, 2147483648
        %v3309 = vxor.u32 %v1708, 2147483648
        %v3310 = vxor.u32 %v1797, 2147483648
        %v3311 = vxor.u32 %v1622, 2147483648
        %v3312 = vxor.u32 %v1711, 2147483648
        %v3313 = vxor.u32 %v1800, 2147483648
        %v3314 = vxor.u32 %v1625, 2147483648
        %v3315 = vxor.u32 %v1714, 2147483648
        %v3316 = vxor.u32 %v1803, 2147483648
        %v3317 = vxor.u32 %v1628, 2147483648
        %v3318 = vxor.u32 %v1717, 2147483648
        %v3319 = vxor.u32 %v1806, 2147483648
        %v3320 = vxor.u32 %v1631, 2147483648
        %v3321 = vxor.u32 %v1720, 2147483648
        %v3322 = vxor.u32 %v1809, 2147483648
        %v3323 = vxor.u32 %v1634, 2147483648
        %v3324 = vxor.u32 %v1723, 2147483648
        %v3325 = vxor.u32 %v1812, 2147483648
        %v3326 = vxor.u32 %v1637, 2147483648
        %v3327 = vxor.u32 %v1726, 2147483648
        %v3328 = vxor.u32 %v1815, 2147483648
        %v3329 = vxor.u32 %v1640, 2147483648
        %v3330 = vxor.u32 %v1729, 2147483648
        %v3331 = vxor.u32 %v1818, 2147483648
        %v3332 = vxor.u32 %v1643, 2147483648
        %v3333 = vxor.u32 %v1732, 2147483648
        %v3334 = vxor.u32 %v1821, 2147483648
        %v3335 = vxor.u32 %v1646, 2147483648
        %v3336 = vxor.u32 %v1735, 2147483648
        %v3337 = vxor.u32 %v1824, 2147483648
        %v3338 = vxor.u32 %v1649, 2147483648
        %v3339 = vxor.u32 %v1738, 2147483648
        %v3340 = vxor.u32 %v1827, 2147483648
        %v3341 = vxor.u32 %v1652, 2147483648
        %v3342 = vxor.u32 %v1741, 2147483648
        %v3343 = vxor.u32 %v1830, 2147483648
        %v3344 = vxor.u32 %v1655, 2147483648
        %v3345 = vxor.u32 %v1744, 2147483648
        %v3346 = vxor.u32 %v1833, 2147483648
        %v3347 = vxor.u32 %v1658, 2147483648
        %v3348 = vxor.u32 %v1747, 2147483648
        %v3349 = vxor.u32 %v1836, 2147483648
        %v3350 = vxor.u32 %v1661, 2147483648
        %v3351 = vxor.u32 %v1750, 2147483648
        %v3352 = vxor.u32 %v1839, 2147483648
        %v3353 = vxor.u32 %v1664, 2147483648
        %v3354 = vxor.u32 %v1753, 2147483648
        %v3355 = vxor.u32 %v1842, 2147483648
        %v3356 = vxor.u32 %v1667, 2147483648
        %v3357 = vxor.u32 %v1756, 2147483648
        %v3358 = vxor.u32 %v1845, 2147483648
        %v3359 = vxor.u32 %v1670, 2147483648
        %v3360 = vxor.u32 %v1759, 2147483648
        %v3361 = vxor.u32 %v1848, 2147483648
        %v3362 = vmul.f32 %v3290, 1.442695
        %v3363 = vpow.pop %v3362
        %v3364 = vmul.f32 %v3291, 1.442695
        %v3365 = vpow.pop %v3364
        %v3366 = vmul.f32 %v3292, 1.442695
        %v3367 = vpow.pop %v3366
        %v3368 = vmul.f32 %v3293, 1.442695
        %v3369 = vpow.pop %v3368
        %v3370 = vmul.f32 %v3294, 1.442695
        %v3371 = vpow.pop %v3370
        %v3372 = vmul.f32 %v3295, 1.442695
        %v3373 = vpow.pop %v3372
        %v3374 = vmul.f32 %v3296, 1.442695
        %v3375 = vpow.pop %v3374
        %v3376 = vmul.f32 %v3297, 1.442695
        %v3377 = vpow.pop %v3376
        %v3378 = vmul.f32 %v3298, 1.442695
        %v3379 = vpow.pop %v3378
        %v3380 = vmul.f32 %v3299, 1.442695
        %v3381 = vpow.pop %v3380
        %v3382 = vmul.f32 %v3300, 1.442695
        %v3383 = vpow.pop %v3382
        %v3384 = vmul.f32 %v3301, 1.442695
        %v3385 = vpow.pop %v3384
        %v3386 = vmul.f32 %v3302, 1.442695
        %v3387 = vpow.pop %v3386
        %v3388 = vmul.f32 %v3303, 1.442695
        %v3389 = vpow.pop %v3388
        %v3390 = vmul.f32 %v3304, 1.442695
        %v3391 = vpow.pop %v3390
        %v3392 = vmul.f32 %v3305, 1.442695
        %v3393 = vpow.pop %v3392
        %v3394 = vmul.f32 %v3306, 1.442695
        %v3395 = vpow.pop %v3394
        %v3396 = vmul.f32 %v3307, 1.442695
        %v3397 = vpow.pop %v3396
        %v3398 = vmul.f32 %v3308, 1.442695
        %v3399 = vpow.pop %v3398
        %v3400 = vmul.f32 %v3309, 1.442695
        %v3401 = vpow.pop %v3400
        %v3402 = vmul.f32 %v3310, 1.442695
        %v3403 = vpow.pop %v3402
        %v3404 = vmul.f32 %v3311, 1.442695
        %v3405 = vpow.pop %v3404
        %v3406 = vmul.f32 %v3312, 1.442695
        %v3407 = vpow.pop %v3406
        %v3408 = vmul.f32 %v3313, 1.442695
        %v3409 = vpow.pop %v3408
        %v3410 = vmul.f32 %v3314, 1.442695
        %v3411 = vpow.pop %v3410
        %v3412 = vmul.f32 %v3315, 1.442695
        %v3413 = vpow.pop %v3412
        %v3414 = vmul.f32 %v3316, 1.442695
        %v3415 = vpow.pop %v3414
        %v3416 = vmul.f32 %v3317, 1.442695
        %v3417 = vpow.pop %v3416
        %v3418 = vmul.f32 %v3318, 1.442695
        %v3419 = vpow.pop %v3418
        %v3420 = vmul.f32 %v3319, 1.442695
        %v3421 = vpow.pop %v3420
        %v3422 = vmul.f32 %v3320, 1.442695
        %v3423 = vpow.pop %v3422
        %v3424 = vmul.f32 %v3321, 1.442695
        %v3425 = vpow.pop %v3424
        %v3426 = vmul.f32 %v3322, 1.442695
        %v3427 = vpow.pop %v3426
        %v3428 = vmul.f32 %v3323, 1.442695
        %v3429 = vpow.pop %v3428
        %v3430 = vmul.f32 %v3324, 1.442695
        %v3431 = vpow.pop %v3430
        %v3432 = vmul.f32 %v3325, 1.442695
        %v3433 = vpow.pop %v3432
        %v3434 = vmul.f32 %v3326, 1.442695
        %v3435 = vpow.pop %v3434
        %v3436 = vmul.f32 %v3327, 1.442695
        %v3437 = vpow.pop %v3436
        %v3438 = vmul.f32 %v3328, 1.442695
        %v3439 = vpow.pop %v3438
        %v3440 = vmul.f32 %v3329, 1.442695
        %v3441 = vpow.pop %v3440
        %v3442 = vmul.f32 %v3330, 1.442695
        %v3443 = vpow.pop %v3442
        %v3444 = vmul.f32 %v3331, 1.442695
        %v3445 = vpow.pop %v3444
        %v3446 = vmul.f32 %v3332, 1.442695
        %v3447 = vpow.pop %v3446
        %v3448 = vmul.f32 %v3333, 1.442695
        %v3449 = vpow.pop %v3448
        %v3450 = vmul.f32 %v3334, 1.442695
        %v3451 = vpow.pop %v3450
        %v3452 = vmul.f32 %v3335, 1.442695
        %v3453 = vpow.pop %v3452
        %v3454 = vmul.f32 %v3336, 1.442695
        %v3455 = vpow.pop %v3454
        %v3456 = vmul.f32 %v3337, 1.442695
        %v3457 = vpow.pop %v3456
        %v3458 = vmul.f32 %v3338, 1.442695
        %v3459 = vpow.pop %v3458
        %v3460 = vmul.f32 %v3339, 1.442695
        %v3461 = vpow.pop %v3460
        %v3462 = vmul.f32 %v3340, 1.442695
        %v3463 = vpow.pop %v3462
        %v3464 = vmul.f32 %v3341, 1.442695
        %v3465 = vpow.pop %v3464
        %v3466 = vmul.f32 %v3342, 1.442695
        %v3467 = vpow.pop %v3466
        %v3468 = vmul.f32 %v3343, 1.442695
        %v3469 = vpow.pop %v3468
        %v3470 = vmul.f32 %v3344, 1.442695
        %v3471 = vpow.pop %v3470
        %v3472 = vmul.f32 %v3345, 1.442695
        %v3473 = vpow.pop %v3472
        %v3474 = vmul.f32 %v3346, 1.442695
        %v3475 = vpow.pop %v3474
        %v3476 = vmul.f32 %v3347, 1.442695
        %v3477 = vpow.pop %v3476
        %v3478 = vmul.f32 %v3348, 1.442695
        %v3479 = vpow.pop %v3478
        %v3480 = vmul.f32 %v3349, 1.442695
        %v3481 = vpow.pop %v3480
        %v3482 = vmul.f32 %v3350, 1.442695
        %v3483 = vpow.pop %v3482
        %v3484 = vmul.f32 %v3351, 1.442695
        %v3485 = vpow.pop %v3484
        %v3486 = vmul.f32 %v3352, 1.442695
        %v3487 = vpow.pop %v3486
        %v3488 = vmul.f32 %v3353, 1.442695
        %v3489 = vpow.pop %v3488
        %v3490 = vmul.f32 %v3354, 1.442695
        %v3491 = vpow.pop %v3490
        %v3492 = vmul.f32 %v3355, 1.442695
        %v3493 = vpow.pop %v3492
        %v3494 = vmul.f32 %v3356, 1.442695
        %v3495 = vpow.pop %v3494
        %v3496 = vmul.f32 %v3357, 1.442695
        %v3497 = vpow.pop %v3496
        %v3498 = vmul.f32 %v3358, 1.442695
        %v3499 = vpow.pop %v3498
        %v3500 = vmul.f32 %v3359, 1.442695
        %v3501 = vpow.pop %v3500
        %v3502 = vmul.f32 %v3360, 1.442695
        %v3503 = vpow.pop %v3502
        %v3504 = vmul.f32 %v3361, 1.442695
        %v3505 = vpow.pop %v3504
        %v3506 = vadd.f32 %v3363, 1.0
        %v3507 = vadd.f32 %v3365, 1.0
        %v3508 = vadd.f32 %v3367, 1.0
        %v3509 = vadd.f32 %v3369, 1.0
        %v3510 = vadd.f32 %v3371, 1.0
        %v3511 = vadd.f32 %v3373, 1.0
        %v3512 = vadd.f32 %v3375, 1.0
        %v3513 = vadd.f32 %v3377, 1.0
        %v3514 = vadd.f32 %v3379, 1.0
        %v3515 = vadd.f32 %v3381, 1.0
        %v3516 = vadd.f32 %v3383, 1.0
        %v3517 = vadd.f32 %v3385, 1.0
        %v3518 = vadd.f32 %v3387, 1.0
        %v3519 = vadd.f32 %v3389, 1.0
        %v3520 = vadd.f32 %v3391, 1.0
        %v3521 = vadd.f32 %v3393, 1.0
        %v3522 = vadd.f32 %v3395, 1.0
        %v3523 = vadd.f32 %v3397, 1.0
        %v3524 = vadd.f32 %v3399, 1.0
        %v3525 = vadd.f32 %v3401, 1.0
        %v3526 = vadd.f32 %v3403, 1.0
        %v3527 = vadd.f32 %v3405, 1.0
        %v3528 = vadd.f32 %v3407, 1.0
        %v3529 = vadd.f32 %v3409, 1.0
        %v3530 = vadd.f32 %v3411, 1.0
        %v3531 = vadd.f32 %v3413, 1.0
        %v3532 = vadd.f32 %v3415, 1.0
        %v3533 = vadd.f32 %v3417, 1.0
        %v3534 = vadd.f32 %v3419, 1.0
        %v3535 = vadd.f32 %v3421, 1.0
        %v3536 = vadd.f32 %v3423, 1.0
        %v3537 = vadd.f32 %v3425, 1.0
        %v3538 = vadd.f32 %v3427, 1.0
        %v3539 = vadd.f32 %v3429, 1.0
        %v3540 = vadd.f32 %v3431, 1.0
        %v3541 = vadd.f32 %v3433, 1.0
        %v3542 = vadd.f32 %v3435, 1.0
        %v3543 = vadd.f32 %v3437, 1.0
        %v3544 = vadd.f32 %v3439, 1.0
        %v3545 = vadd.f32 %v3441, 1.0
        %v3546 = vadd.f32 %v3443, 1.0
        %v3547 = vadd.f32 %v3445, 1.0
        %v3548 = vadd.f32 %v3447, 1.0
        %v3549 = vadd.f32 %v3449, 1.0
        %v3550 = vadd.f32 %v3451, 1.0
        %v3551 = vadd.f32 %v3453, 1.0
        %v3552 = vadd.f32 %v3455, 1.0
        %v3553 = vadd.f32 %v3457, 1.0
        %v3554 = vadd.f32 %v3459, 1.0
        %v3555 = vadd.f32 %v3461, 1.0
        %v3556 = vadd.f32 %v3463, 1.0
        %v3557 = vadd.f32 %v3465, 1.0
        %v3558 = vadd.f32 %v3467, 1.0
        %v3559 = vadd.f32 %v3469, 1.0
        %v3560 = vadd.f32 %v3471, 1.0
        %v3561 = vadd.f32 %v3473, 1.0
        %v3562 = vadd.f32 %v3475, 1.0
        %v3563 = vadd.f32 %v3477, 1.0
        %v3564 = vadd.f32 %v3479, 1.0
        %v3565 = vadd.f32 %v3481, 1.0
        %v3566 = vadd.f32 %v3483, 1.0
        %v3567 = vadd.f32 %v3485, 1.0
        %v3568 = vadd.f32 %v3487, 1.0
        %v3569 = vadd.f32 %v3489, 1.0
        %v3570 = vadd.f32 %v3491, 1.0
        %v3571 = vadd.f32 %v3493, 1.0
        %v3572 = vadd.f32 %v3495, 1.0
        %v3573 = vadd.f32 %v3497, 1.0
        %v3574 = vadd.f32 %v3499, 1.0
        %v3575 = vadd.f32 %v3501, 1.0
        %v3576 = vadd.f32 %v3503, 1.0
        %v3577 = vadd.f32 %v3505, 1.0
        %v3578 = vrcp.pop %v3506
        %v3579 = vmul.f32 %v3506, %v3578
        %v3580 = vsub.f32 1.0, %v3579
        %v3581 = vmul.f32 %v3578, %v3580
        %v3582 = vadd.f32 %v3578, %v3581
        %vm3583 = vweird.f32 %v3506
        %vm3584 = vweird.f32 %v3578
        %vm3585 = vmor %vm3583, %vm3584
        %v3586 = vsel %vm3585, %v3578, %v3582
        %v3587 = vand.u32 2147483647, %v3506
        %vm3588 = vcmp.eq.f32.partialorder %v3587, 8.507059e+37
        %v3589 = vand.u32 %v3506, 2147483648
        %v3590 = vor.u32 1.1754944e-38, %v3589
        %v3591 = vsel %vm3588, %v3590, %v3586
        %v3592 = vmul.f32 1.0, %v3591
        %v3593 = vrcp.pop %v3507
        %v3594 = vmul.f32 %v3507, %v3593
        %v3595 = vsub.f32 1.0, %v3594
        %v3596 = vmul.f32 %v3593, %v3595
        %v3597 = vadd.f32 %v3593, %v3596
        %vm3598 = vweird.f32 %v3507
        %vm3599 = vweird.f32 %v3593
        %vm3600 = vmor %vm3598, %vm3599
        %v3601 = vsel %vm3600, %v3593, %v3597
        %v3602 = vand.u32 2147483647, %v3507
        %vm3603 = vcmp.eq.f32.partialorder %v3602, 8.507059e+37
        %v3604 = vand.u32 %v3507, 2147483648
        %v3605 = vor.u32 1.1754944e-38, %v3604
        %v3606 = vsel %vm3603, %v3605, %v3601
        %v3607 = vmul.f32 1.0, %v3606
        %v3608 = vrcp.pop %v3508
        %v3609 = vmul.f32 %v3508, %v3608
        %v3610 = vsub.f32 1.0, %v3609
        %v3611 = vmul.f32 %v3608, %v3610
        %v3612 = vadd.f32 %v3608, %v3611
        %vm3613 = vweird.f32 %v3508
        %vm3614 = vweird.f32 %v3608
        %vm3615 = vmor %vm3613, %vm3614
        %v3616 = vsel %vm3615, %v3608, %v3612
        %v3617 = vand.u32 2147483647, %v3508
        %vm3618 = vcmp.eq.f32.partialorder %v3617, 8.507059e+37
        %v3619 = vand.u32 %v3508, 2147483648
        %v3620 = vor.u32 1.1754944e-38, %v3619
        %v3621 = vsel %vm3618, %v3620, %v3616
        %v3622 = vmul.f32 1.0, %v3621
        %v3623 = vrcp.pop %v3509
        %v3624 = vmul.f32 %v3509, %v3623
        %v3625 = vsub.f32 1.0, %v3624
        %v3626 = vmul.f32 %v3623, %v3625
        %v3627 = vadd.f32 %v3623, %v3626
        %vm3628 = vweird.f32 %v3509
        %vm3629 = vweird.f32 %v3623
        %vm3630 = vmor %vm3628, %vm3629
        %v3631 = vsel %vm3630, %v3623, %v3627
        %v3632 = vand.u32 2147483647, %v3509
        %vm3633 = vcmp.eq.f32.partialorder %v3632, 8.507059e+37
        %v3634 = vand.u32 %v3509, 2147483648
        %v3635 = vor.u32 1.1754944e-38, %v3634
        %v3636 = vsel %vm3633, %v3635, %v3631
        %v3637 = vmul.f32 1.0, %v3636
        %v3638 = vrcp.pop %v3510
        %v3639 = vmul.f32 %v3510, %v3638
        %v3640 = vsub.f32 1.0, %v3639
        %v3641 = vmul.f32 %v3638, %v3640
        %v3642 = vadd.f32 %v3638, %v3641
        %vm3643 = vweird.f32 %v3510
        %vm3644 = vweird.f32 %v3638
        %vm3645 = vmor %vm3643, %vm3644
        %v3646 = vsel %vm3645, %v3638, %v3642
        %v3647 = vand.u32 2147483647, %v3510
        %vm3648 = vcmp.eq.f32.partialorder %v3647, 8.507059e+37
        %v3649 = vand.u32 %v3510, 2147483648
        %v3650 = vor.u32 1.1754944e-38, %v3649
        %v3651 = vsel %vm3648, %v3650, %v3646
        %v3652 = vmul.f32 1.0, %v3651
        %v3653 = vrcp.pop %v3511
        %v3654 = vmul.f32 %v3511, %v3653
        %v3655 = vsub.f32 1.0, %v3654
        %v3656 = vmul.f32 %v3653, %v3655
        %v3657 = vadd.f32 %v3653, %v3656
        %vm3658 = vweird.f32 %v3511
        %vm3659 = vweird.f32 %v3653
        %vm3660 = vmor %vm3658, %vm3659
        %v3661 = vsel %vm3660, %v3653, %v3657
        %v3662 = vand.u32 2147483647, %v3511
        %vm3663 = vcmp.eq.f32.partialorder %v3662, 8.507059e+37
        %v3664 = vand.u32 %v3511, 2147483648
        %v3665 = vor.u32 1.1754944e-38, %v3664
        %v3666 = vsel %vm3663, %v3665, %v3661
        %v3667 = vmul.f32 1.0, %v3666
        %v3668 = vrcp.pop %v3512
        %v3669 = vmul.f32 %v3512, %v3668
        %v3670 = vsub.f32 1.0, %v3669
        %v3671 = vmul.f32 %v3668, %v3670
        %v3672 = vadd.f32 %v3668, %v3671
        %vm3673 = vweird.f32 %v3512
        %vm3674 = vweird.f32 %v3668
        %vm3675 = vmor %vm3673, %vm3674
        %v3676 = vsel %vm3675, %v3668, %v3672
        %v3677 = vand.u32 2147483647, %v3512
        %vm3678 = vcmp.eq.f32.partialorder %v3677, 8.507059e+37
        %v3679 = vand.u32 %v3512, 2147483648
        %v3680 = vor.u32 1.1754944e-38, %v3679
        %v3681 = vsel %vm3678, %v3680, %v3676
        %v3682 = vmul.f32 1.0, %v3681
        %v3683 = vrcp.pop %v3513
        %v3684 = vmul.f32 %v3513, %v3683
        %v3685 = vsub.f32 1.0, %v3684
        %v3686 = vmul.f32 %v3683, %v3685
        %v3687 = vadd.f32 %v3683, %v3686
        %vm3688 = vweird.f32 %v3513
        %vm3689 = vweird.f32 %v3683
        %vm3690 = vmor %vm3688, %vm3689
        %v3691 = vsel %vm3690, %v3683, %v3687
        %v3692 = vand.u32 2147483647, %v3513
        %vm3693 = vcmp.eq.f32.partialorder %v3692, 8.507059e+37
        %v3694 = vand.u32 %v3513, 2147483648
        %v3695 = vor.u32 1.1754944e-38, %v3694
        %v3696 = vsel %vm3693, %v3695, %v3691
        %v3697 = vmul.f32 1.0, %v3696
        %v3698 = vrcp.pop %v3514
        %v3699 = vmul.f32 %v3514, %v3698
        %v3700 = vsub.f32 1.0, %v3699
        %v3701 = vmul.f32 %v3698, %v3700
        %v3702 = vadd.f32 %v3698, %v3701
        %vm3703 = vweird.f32 %v3514
        %vm3704 = vweird.f32 %v3698
        %vm3705 = vmor %vm3703, %vm3704
        %v3706 = vsel %vm3705, %v3698, %v3702
        %v3707 = vand.u32 2147483647, %v3514
        %vm3708 = vcmp.eq.f32.partialorder %v3707, 8.507059e+37
        %v3709 = vand.u32 %v3514, 2147483648
        %v3710 = vor.u32 1.1754944e-38, %v3709
        %v3711 = vsel %vm3708, %v3710, %v3706
        %v3712 = vmul.f32 1.0, %v3711
        %v3713 = vrcp.pop %v3515
        %v3714 = vmul.f32 %v3515, %v3713
        %v3715 = vsub.f32 1.0, %v3714
        %v3716 = vmul.f32 %v3713, %v3715
        %v3717 = vadd.f32 %v3713, %v3716
        %vm3718 = vweird.f32 %v3515
        %vm3719 = vweird.f32 %v3713
        %vm3720 = vmor %vm3718, %vm3719
        %v3721 = vsel %vm3720, %v3713, %v3717
        %v3722 = vand.u32 2147483647, %v3515
        %vm3723 = vcmp.eq.f32.partialorder %v3722, 8.507059e+37
        %v3724 = vand.u32 %v3515, 2147483648
        %v3725 = vor.u32 1.1754944e-38, %v3724
        %v3726 = vsel %vm3723, %v3725, %v3721
        %v3727 = vmul.f32 1.0, %v3726
        %v3728 = vrcp.pop %v3516
        %v3729 = vmul.f32 %v3516, %v3728
        %v3730 = vsub.f32 1.0, %v3729
        %v3731 = vmul.f32 %v3728, %v3730
        %v3732 = vadd.f32 %v3728, %v3731
        %vm3733 = vweird.f32 %v3516
        %vm3734 = vweird.f32 %v3728
        %vm3735 = vmor %vm3733, %vm3734
        %v3736 = vsel %vm3735, %v3728, %v3732
        %v3737 = vand.u32 2147483647, %v3516
        %vm3738 = vcmp.eq.f32.partialorder %v3737, 8.507059e+37
        %v3739 = vand.u32 %v3516, 2147483648
        %v3740 = vor.u32 1.1754944e-38, %v3739
        %v3741 = vsel %vm3738, %v3740, %v3736
        %v3742 = vmul.f32 1.0, %v3741
        %v3743 = vrcp.pop %v3517
        %v3744 = vmul.f32 %v3517, %v3743
        %v3745 = vsub.f32 1.0, %v3744
        %v3746 = vmul.f32 %v3743, %v3745
        %v3747 = vadd.f32 %v3743, %v3746
        %vm3748 = vweird.f32 %v3517
        %vm3749 = vweird.f32 %v3743
        %vm3750 = vmor %vm3748, %vm3749
        %v3751 = vsel %vm3750, %v3743, %v3747
        %v3752 = vand.u32 2147483647, %v3517
        %vm3753 = vcmp.eq.f32.partialorder %v3752, 8.507059e+37
        %v3754 = vand.u32 %v3517, 2147483648
        %v3755 = vor.u32 1.1754944e-38, %v3754
        %v3756 = vsel %vm3753, %v3755, %v3751
        %v3757 = vmul.f32 1.0, %v3756
        %v3758 = vrcp.pop %v3518
        %v3759 = vmul.f32 %v3518, %v3758
        %v3760 = vsub.f32 1.0, %v3759
        %v3761 = vmul.f32 %v3758, %v3760
        %v3762 = vadd.f32 %v3758, %v3761
        %vm3763 = vweird.f32 %v3518
        %vm3764 = vweird.f32 %v3758
        %vm3765 = vmor %vm3763, %vm3764
        %v3766 = vsel %vm3765, %v3758, %v3762
        %v3767 = vand.u32 2147483647, %v3518
        %vm3768 = vcmp.eq.f32.partialorder %v3767, 8.507059e+37
        %v3769 = vand.u32 %v3518, 2147483648
        %v3770 = vor.u32 1.1754944e-38, %v3769
        %v3771 = vsel %vm3768, %v3770, %v3766
        %v3772 = vmul.f32 1.0, %v3771
        %v3773 = vrcp.pop %v3519
        %v3774 = vmul.f32 %v3519, %v3773
        %v3775 = vsub.f32 1.0, %v3774
        %v3776 = vmul.f32 %v3773, %v3775
        %v3777 = vadd.f32 %v3773, %v3776
        %vm3778 = vweird.f32 %v3519
        %vm3779 = vweird.f32 %v3773
        %vm3780 = vmor %vm3778, %vm3779
        %v3781 = vsel %vm3780, %v3773, %v3777
        %v3782 = vand.u32 2147483647, %v3519
        %vm3783 = vcmp.eq.f32.partialorder %v3782, 8.507059e+37
        %v3784 = vand.u32 %v3519, 2147483648
        %v3785 = vor.u32 1.1754944e-38, %v3784
        %v3786 = vsel %vm3783, %v3785, %v3781
        %v3787 = vmul.f32 1.0, %v3786
        %v3788 = vrcp.pop %v3520
        %v3789 = vmul.f32 %v3520, %v3788
        %v3790 = vsub.f32 1.0, %v3789
        %v3791 = vmul.f32 %v3788, %v3790
        %v3792 = vadd.f32 %v3788, %v3791
        %vm3793 = vweird.f32 %v3520
        %vm3794 = vweird.f32 %v3788
        %vm3795 = vmor %vm3793, %vm3794
        %v3796 = vsel %vm3795, %v3788, %v3792
        %v3797 = vand.u32 2147483647, %v3520
        %vm3798 = vcmp.eq.f32.partialorder %v3797, 8.507059e+37
        %v3799 = vand.u32 %v3520, 2147483648
        %v3800 = vor.u32 1.1754944e-38, %v3799
        %v3801 = vsel %vm3798, %v3800, %v3796
        %v3802 = vmul.f32 1.0, %v3801
        %v3803 = vrcp.pop %v3521
        %v3804 = vmul.f32 %v3521, %v3803
        %v3805 = vsub.f32 1.0, %v3804
        %v3806 = vmul.f32 %v3803, %v3805
        %v3807 = vadd.f32 %v3803, %v3806
        %vm3808 = vweird.f32 %v3521
        %vm3809 = vweird.f32 %v3803
        %vm3810 = vmor %vm3808, %vm3809
        %v3811 = vsel %vm3810, %v3803, %v3807
        %v3812 = vand.u32 2147483647, %v3521
        %vm3813 = vcmp.eq.f32.partialorder %v3812, 8.507059e+37
        %v3814 = vand.u32 %v3521, 2147483648
        %v3815 = vor.u32 1.1754944e-38, %v3814
        %v3816 = vsel %vm3813, %v3815, %v3811
        %v3817 = vmul.f32 1.0, %v3816
        %v3818 = vrcp.pop %v3522
        %v3819 = vmul.f32 %v3522, %v3818
        %v3820 = vsub.f32 1.0, %v3819
        %v3821 = vmul.f32 %v3818, %v3820
        %v3822 = vadd.f32 %v3818, %v3821
        %vm3823 = vweird.f32 %v3522
        %vm3824 = vweird.f32 %v3818
        %vm3825 = vmor %vm3823, %vm3824
        %v3826 = vsel %vm3825, %v3818, %v3822
        %v3827 = vand.u32 2147483647, %v3522
        %vm3828 = vcmp.eq.f32.partialorder %v3827, 8.507059e+37
        %v3829 = vand.u32 %v3522, 2147483648
        %v3830 = vor.u32 1.1754944e-38, %v3829
        %v3831 = vsel %vm3828, %v3830, %v3826
        %v3832 = vmul.f32 1.0, %v3831
        %v3833 = vrcp.pop %v3523
        %v3834 = vmul.f32 %v3523, %v3833
        %v3835 = vsub.f32 1.0, %v3834
        %v3836 = vmul.f32 %v3833, %v3835
        %v3837 = vadd.f32 %v3833, %v3836
        %vm3838 = vweird.f32 %v3523
        %vm3839 = vweird.f32 %v3833
        %vm3840 = vmor %vm3838, %vm3839
        %v3841 = vsel %vm3840, %v3833, %v3837
        %v3842 = vand.u32 2147483647, %v3523
        %vm3843 = vcmp.eq.f32.partialorder %v3842, 8.507059e+37
        %v3844 = vand.u32 %v3523, 2147483648
        %v3845 = vor.u32 1.1754944e-38, %v3844
        %v3846 = vsel %vm3843, %v3845, %v3841
        %v3847 = vmul.f32 1.0, %v3846
        %v3848 = vrcp.pop %v3524
        %v3849 = vmul.f32 %v3524, %v3848
        %v3850 = vsub.f32 1.0, %v3849
        %v3851 = vmul.f32 %v3848, %v3850
        %v3852 = vadd.f32 %v3848, %v3851
        %vm3853 = vweird.f32 %v3524
        %vm3854 = vweird.f32 %v3848
        %vm3855 = vmor %vm3853, %vm3854
        %v3856 = vsel %vm3855, %v3848, %v3852
        %v3857 = vand.u32 2147483647, %v3524
        %vm3858 = vcmp.eq.f32.partialorder %v3857, 8.507059e+37
        %v3859 = vand.u32 %v3524, 2147483648
        %v3860 = vor.u32 1.1754944e-38, %v3859
        %v3861 = vsel %vm3858, %v3860, %v3856
        %v3862 = vmul.f32 1.0, %v3861
        %v3863 = vrcp.pop %v3525
        %v3864 = vmul.f32 %v3525, %v3863
        %v3865 = vsub.f32 1.0, %v3864
        %v3866 = vmul.f32 %v3863, %v3865
        %v3867 = vadd.f32 %v3863, %v3866
        %vm3868 = vweird.f32 %v3525
        %vm3869 = vweird.f32 %v3863
        %vm3870 = vmor %vm3868, %vm3869
        %v3871 = vsel %vm3870, %v3863, %v3867
        %v3872 = vand.u32 2147483647, %v3525
        %vm3873 = vcmp.eq.f32.partialorder %v3872, 8.507059e+37
        %v3874 = vand.u32 %v3525, 2147483648
        %v3875 = vor.u32 1.1754944e-38, %v3874
        %v3876 = vsel %vm3873, %v3875, %v3871
        %v3877 = vmul.f32 1.0, %v3876
        %v3878 = vrcp.pop %v3526
        %v3879 = vmul.f32 %v3526, %v3878
        %v3880 = vsub.f32 1.0, %v3879
        %v3881 = vmul.f32 %v3878, %v3880
        %v3882 = vadd.f32 %v3878, %v3881
        %vm3883 = vweird.f32 %v3526
        %vm3884 = vweird.f32 %v3878
        %vm3885 = vmor %vm3883, %vm3884
        %v3886 = vsel %vm3885, %v3878, %v3882
        %v3887 = vand.u32 2147483647, %v3526
        %vm3888 = vcmp.eq.f32.partialorder %v3887, 8.507059e+37
        %v3889 = vand.u32 %v3526, 2147483648
        %v3890 = vor.u32 1.1754944e-38, %v3889
        %v3891 = vsel %vm3888, %v3890, %v3886
        %v3892 = vmul.f32 1.0, %v3891
        %v3893 = vrcp.pop %v3527
        %v3894 = vmul.f32 %v3527, %v3893
        %v3895 = vsub.f32 1.0, %v3894
        %v3896 = vmul.f32 %v3893, %v3895
        %v3897 = vadd.f32 %v3893, %v3896
        %vm3898 = vweird.f32 %v3527
        %vm3899 = vweird.f32 %v3893
        %vm3900 = vmor %vm3898, %vm3899
        %v3901 = vsel %vm3900, %v3893, %v3897
        %v3902 = vand.u32 2147483647, %v3527
        %vm3903 = vcmp.eq.f32.partialorder %v3902, 8.507059e+37
        %v3904 = vand.u32 %v3527, 2147483648
        %v3905 = vor.u32 1.1754944e-38, %v3904
        %v3906 = vsel %vm3903, %v3905, %v3901
        %v3907 = vmul.f32 1.0, %v3906
        %v3908 = vrcp.pop %v3528
        %v3909 = vmul.f32 %v3528, %v3908
        %v3910 = vsub.f32 1.0, %v3909
        %v3911 = vmul.f32 %v3908, %v3910
        %v3912 = vadd.f32 %v3908, %v3911
        %vm3913 = vweird.f32 %v3528
        %vm3914 = vweird.f32 %v3908
        %vm3915 = vmor %vm3913, %vm3914
        %v3916 = vsel %vm3915, %v3908, %v3912
        %v3917 = vand.u32 2147483647, %v3528
        %vm3918 = vcmp.eq.f32.partialorder %v3917, 8.507059e+37
        %v3919 = vand.u32 %v3528, 2147483648
        %v3920 = vor.u32 1.1754944e-38, %v3919
        %v3921 = vsel %vm3918, %v3920, %v3916
        %v3922 = vmul.f32 1.0, %v3921
        %v3923 = vrcp.pop %v3529
        %v3924 = vmul.f32 %v3529, %v3923
        %v3925 = vsub.f32 1.0, %v3924
        %v3926 = vmul.f32 %v3923, %v3925
        %v3927 = vadd.f32 %v3923, %v3926
        %vm3928 = vweird.f32 %v3529
        %vm3929 = vweird.f32 %v3923
        %vm3930 = vmor %vm3928, %vm3929
        %v3931 = vsel %vm3930, %v3923, %v3927
        %v3932 = vand.u32 2147483647, %v3529
        %vm3933 = vcmp.eq.f32.partialorder %v3932, 8.507059e+37
        %v3934 = vand.u32 %v3529, 2147483648
        %v3935 = vor.u32 1.1754944e-38, %v3934
        %v3936 = vsel %vm3933, %v3935, %v3931
        %v3937 = vmul.f32 1.0, %v3936
        %v3938 = vrcp.pop %v3530
        %v3939 = vmul.f32 %v3530, %v3938
        %v3940 = vsub.f32 1.0, %v3939
        %v3941 = vmul.f32 %v3938, %v3940
        %v3942 = vadd.f32 %v3938, %v3941
        %vm3943 = vweird.f32 %v3530
        %vm3944 = vweird.f32 %v3938
        %vm3945 = vmor %vm3943, %vm3944
        %v3946 = vsel %vm3945, %v3938, %v3942
        %v3947 = vand.u32 2147483647, %v3530
        %vm3948 = vcmp.eq.f32.partialorder %v3947, 8.507059e+37
        %v3949 = vand.u32 %v3530, 2147483648
        %v3950 = vor.u32 1.1754944e-38, %v3949
        %v3951 = vsel %vm3948, %v3950, %v3946
        %v3952 = vmul.f32 1.0, %v3951
        %v3953 = vrcp.pop %v3531
        %v3954 = vmul.f32 %v3531, %v3953
        %v3955 = vsub.f32 1.0, %v3954
        %v3956 = vmul.f32 %v3953, %v3955
        %v3957 = vadd.f32 %v3953, %v3956
        %vm3958 = vweird.f32 %v3531
        %vm3959 = vweird.f32 %v3953
        %vm3960 = vmor %vm3958, %vm3959
        %v3961 = vsel %vm3960, %v3953, %v3957
        %v3962 = vand.u32 2147483647, %v3531
        %vm3963 = vcmp.eq.f32.partialorder %v3962, 8.507059e+37
        %v3964 = vand.u32 %v3531, 2147483648
        %v3965 = vor.u32 1.1754944e-38, %v3964
        %v3966 = vsel %vm3963, %v3965, %v3961
        %v3967 = vmul.f32 1.0, %v3966
        %v3968 = vrcp.pop %v3532
        %v3969 = vmul.f32 %v3532, %v3968
        %v3970 = vsub.f32 1.0, %v3969
        %v3971 = vmul.f32 %v3968, %v3970
        %v3972 = vadd.f32 %v3968, %v3971
        %vm3973 = vweird.f32 %v3532
        %vm3974 = vweird.f32 %v3968
        %vm3975 = vmor %vm3973, %vm3974
        %v3976 = vsel %vm3975, %v3968, %v3972
        %v3977 = vand.u32 2147483647, %v3532
        %vm3978 = vcmp.eq.f32.partialorder %v3977, 8.507059e+37
        %v3979 = vand.u32 %v3532, 2147483648
        %v3980 = vor.u32 1.1754944e-38, %v3979
        %v3981 = vsel %vm3978, %v3980, %v3976
        %v3982 = vmul.f32 1.0, %v3981
        %v3983 = vrcp.pop %v3533
        %v3984 = vmul.f32 %v3533, %v3983
        %v3985 = vsub.f32 1.0, %v3984
        %v3986 = vmul.f32 %v3983, %v3985
        %v3987 = vadd.f32 %v3983, %v3986
        %vm3988 = vweird.f32 %v3533
        %vm3989 = vweird.f32 %v3983
        %vm3990 = vmor %vm3988, %vm3989
        %v3991 = vsel %vm3990, %v3983, %v3987
        %v3992 = vand.u32 2147483647, %v3533
        %vm3993 = vcmp.eq.f32.partialorder %v3992, 8.507059e+37
        %v3994 = vand.u32 %v3533, 2147483648
        %v3995 = vor.u32 1.1754944e-38, %v3994
        %v3996 = vsel %vm3993, %v3995, %v3991
        %v3997 = vmul.f32 1.0, %v3996
        %v3998 = vrcp.pop %v3534
        %v3999 = vmul.f32 %v3534, %v3998
        %v4000 = vsub.f32 1.0, %v3999
        %v4001 = vmul.f32 %v3998, %v4000
        %v4002 = vadd.f32 %v3998, %v4001
        %vm4003 = vweird.f32 %v3534
        %vm4004 = vweird.f32 %v3998
        %vm4005 = vmor %vm4003, %vm4004
        %v4006 = vsel %vm4005, %v3998, %v4002
        %v4007 = vand.u32 2147483647, %v3534
        %vm4008 = vcmp.eq.f32.partialorder %v4007, 8.507059e+37
        %v4009 = vand.u32 %v3534, 2147483648
        %v4010 = vor.u32 1.1754944e-38, %v4009
        %v4011 = vsel %vm4008, %v4010, %v4006
        %v4012 = vmul.f32 1.0, %v4011
        %v4013 = vrcp.pop %v3535
        %v4014 = vmul.f32 %v3535, %v4013
        %v4015 = vsub.f32 1.0, %v4014
        %v4016 = vmul.f32 %v4013, %v4015
        %v4017 = vadd.f32 %v4013, %v4016
        %vm4018 = vweird.f32 %v3535
        %vm4019 = vweird.f32 %v4013
        %vm4020 = vmor %vm4018, %vm4019
        %v4021 = vsel %vm4020, %v4013, %v4017
        %v4022 = vand.u32 2147483647, %v3535
        %vm4023 = vcmp.eq.f32.partialorder %v4022, 8.507059e+37
        %v4024 = vand.u32 %v3535, 2147483648
        %v4025 = vor.u32 1.1754944e-38, %v4024
        %v4026 = vsel %vm4023, %v4025, %v4021
        %v4027 = vmul.f32 1.0, %v4026
        %v4028 = vrcp.pop %v3536
        %v4029 = vmul.f32 %v3536, %v4028
        %v4030 = vsub.f32 1.0, %v4029
        %v4031 = vmul.f32 %v4028, %v4030
        %v4032 = vadd.f32 %v4028, %v4031
        %vm4033 = vweird.f32 %v3536
        %vm4034 = vweird.f32 %v4028
        %vm4035 = vmor %vm4033, %vm4034
        %v4036 = vsel %vm4035, %v4028, %v4032
        %v4037 = vand.u32 2147483647, %v3536
        %vm4038 = vcmp.eq.f32.partialorder %v4037, 8.507059e+37
        %v4039 = vand.u32 %v3536, 2147483648
        %v4040 = vor.u32 1.1754944e-38, %v4039
        %v4041 = vsel %vm4038, %v4040, %v4036
        %v4042 = vmul.f32 1.0, %v4041
        %v4043 = vrcp.pop %v3537
        %v4044 = vmul.f32 %v3537, %v4043
        %v4045 = vsub.f32 1.0, %v4044
        %v4046 = vmul.f32 %v4043, %v4045
        %v4047 = vadd.f32 %v4043, %v4046
        %vm4048 = vweird.f32 %v3537
        %vm4049 = vweird.f32 %v4043
        %vm4050 = vmor %vm4048, %vm4049
        %v4051 = vsel %vm4050, %v4043, %v4047
        %v4052 = vand.u32 2147483647, %v3537
        %vm4053 = vcmp.eq.f32.partialorder %v4052, 8.507059e+37
        %v4054 = vand.u32 %v3537, 2147483648
        %v4055 = vor.u32 1.1754944e-38, %v4054
        %v4056 = vsel %vm4053, %v4055, %v4051
        %v4057 = vmul.f32 1.0, %v4056
        %v4058 = vrcp.pop %v3538
        %v4059 = vmul.f32 %v3538, %v4058
        %v4060 = vsub.f32 1.0, %v4059
        %v4061 = vmul.f32 %v4058, %v4060
        %v4062 = vadd.f32 %v4058, %v4061
        %vm4063 = vweird.f32 %v3538
        %vm4064 = vweird.f32 %v4058
        %vm4065 = vmor %vm4063, %vm4064
        %v4066 = vsel %vm4065, %v4058, %v4062
        %v4067 = vand.u32 2147483647, %v3538
        %vm4068 = vcmp.eq.f32.partialorder %v4067, 8.507059e+37
        %v4069 = vand.u32 %v3538, 2147483648
        %v4070 = vor.u32 1.1754944e-38, %v4069
        %v4071 = vsel %vm4068, %v4070, %v4066
        %v4072 = vmul.f32 1.0, %v4071
        %v4073 = vrcp.pop %v3539
        %v4074 = vmul.f32 %v3539, %v4073
        %v4075 = vsub.f32 1.0, %v4074
        %v4076 = vmul.f32 %v4073, %v4075
        %v4077 = vadd.f32 %v4073, %v4076
        %vm4078 = vweird.f32 %v3539
        %vm4079 = vweird.f32 %v4073
        %vm4080 = vmor %vm4078, %vm4079
        %v4081 = vsel %vm4080, %v4073, %v4077
        %v4082 = vand.u32 2147483647, %v3539
        %vm4083 = vcmp.eq.f32.partialorder %v4082, 8.507059e+37
        %v4084 = vand.u32 %v3539, 2147483648
        %v4085 = vor.u32 1.1754944e-38, %v4084
        %v4086 = vsel %vm4083, %v4085, %v4081
        %v4087 = vmul.f32 1.0, %v4086
        %v4088 = vrcp.pop %v3540
        %v4089 = vmul.f32 %v3540, %v4088
        %v4090 = vsub.f32 1.0, %v4089
        %v4091 = vmul.f32 %v4088, %v4090
        %v4092 = vadd.f32 %v4088, %v4091
        %vm4093 = vweird.f32 %v3540
        %vm4094 = vweird.f32 %v4088
        %vm4095 = vmor %vm4093, %vm4094
        %v4096 = vsel %vm4095, %v4088, %v4092
        %v4097 = vand.u32 2147483647, %v3540
        %vm4098 = vcmp.eq.f32.partialorder %v4097, 8.507059e+37
        %v4099 = vand.u32 %v3540, 2147483648
        %v4100 = vor.u32 1.1754944e-38, %v4099
        %v4101 = vsel %vm4098, %v4100, %v4096
        %v4102 = vmul.f32 1.0, %v4101
        %v4103 = vrcp.pop %v3541
        %v4104 = vmul.f32 %v3541, %v4103
        %v4105 = vsub.f32 1.0, %v4104
        %v4106 = vmul.f32 %v4103, %v4105
        %v4107 = vadd.f32 %v4103, %v4106
        %vm4108 = vweird.f32 %v3541
        %vm4109 = vweird.f32 %v4103
        %vm4110 = vmor %vm4108, %vm4109
        %v4111 = vsel %vm4110, %v4103, %v4107
        %v4112 = vand.u32 2147483647, %v3541
        %vm4113 = vcmp.eq.f32.partialorder %v4112, 8.507059e+37
        %v4114 = vand.u32 %v3541, 2147483648
        %v4115 = vor.u32 1.1754944e-38, %v4114
        %v4116 = vsel %vm4113, %v4115, %v4111
        %v4117 = vmul.f32 1.0, %v4116
        %v4118 = vrcp.pop %v3542
        %v4119 = vmul.f32 %v3542, %v4118
        %v4120 = vsub.f32 1.0, %v4119
        %v4121 = vmul.f32 %v4118, %v4120
        %v4122 = vadd.f32 %v4118, %v4121
        %vm4123 = vweird.f32 %v3542
        %vm4124 = vweird.f32 %v4118
        %vm4125 = vmor %vm4123, %vm4124
        %v4126 = vsel %vm4125, %v4118, %v4122
        %v4127 = vand.u32 2147483647, %v3542
        %vm4128 = vcmp.eq.f32.partialorder %v4127, 8.507059e+37
        %v4129 = vand.u32 %v3542, 2147483648
        %v4130 = vor.u32 1.1754944e-38, %v4129
        %v4131 = vsel %vm4128, %v4130, %v4126
        %v4132 = vmul.f32 1.0, %v4131
        %v4133 = vrcp.pop %v3543
        %v4134 = vmul.f32 %v3543, %v4133
        %v4135 = vsub.f32 1.0, %v4134
        %v4136 = vmul.f32 %v4133, %v4135
        %v4137 = vadd.f32 %v4133, %v4136
        %vm4138 = vweird.f32 %v3543
        %vm4139 = vweird.f32 %v4133
        %vm4140 = vmor %vm4138, %vm4139
        %v4141 = vsel %vm4140, %v4133, %v4137
        %v4142 = vand.u32 2147483647, %v3543
        %vm4143 = vcmp.eq.f32.partialorder %v4142, 8.507059e+37
        %v4144 = vand.u32 %v3543, 2147483648
        %v4145 = vor.u32 1.1754944e-38, %v4144
        %v4146 = vsel %vm4143, %v4145, %v4141
        %v4147 = vmul.f32 1.0, %v4146
        %v4148 = vrcp.pop %v3544
        %v4149 = vmul.f32 %v3544, %v4148
        %v4150 = vsub.f32 1.0, %v4149
        %v4151 = vmul.f32 %v4148, %v4150
        %v4152 = vadd.f32 %v4148, %v4151
        %vm4153 = vweird.f32 %v3544
        %vm4154 = vweird.f32 %v4148
        %vm4155 = vmor %vm4153, %vm4154
        %v4156 = vsel %vm4155, %v4148, %v4152
        %v4157 = vand.u32 2147483647, %v3544
        %vm4158 = vcmp.eq.f32.partialorder %v4157, 8.507059e+37
        %v4159 = vand.u32 %v3544, 2147483648
        %v4160 = vor.u32 1.1754944e-38, %v4159
        %v4161 = vsel %vm4158, %v4160, %v4156
        %v4162 = vmul.f32 1.0, %v4161
        %v4163 = vrcp.pop %v3545
        %v4164 = vmul.f32 %v3545, %v4163
        %v4165 = vsub.f32 1.0, %v4164
        %v4166 = vmul.f32 %v4163, %v4165
        %v4167 = vadd.f32 %v4163, %v4166
        %vm4168 = vweird.f32 %v3545
        %vm4169 = vweird.f32 %v4163
        %vm4170 = vmor %vm4168, %vm4169
        %v4171 = vsel %vm4170, %v4163, %v4167
        %v4172 = vand.u32 2147483647, %v3545
        %vm4173 = vcmp.eq.f32.partialorder %v4172, 8.507059e+37
        %v4174 = vand.u32 %v3545, 2147483648
        %v4175 = vor.u32 1.1754944e-38, %v4174
        %v4176 = vsel %vm4173, %v4175, %v4171
        %v4177 = vmul.f32 1.0, %v4176
        %v4178 = vrcp.pop %v3546
        %v4179 = vmul.f32 %v3546, %v4178
        %v4180 = vsub.f32 1.0, %v4179
        %v4181 = vmul.f32 %v4178, %v4180
        %v4182 = vadd.f32 %v4178, %v4181
        %vm4183 = vweird.f32 %v3546
        %vm4184 = vweird.f32 %v4178
        %vm4185 = vmor %vm4183, %vm4184
        %v4186 = vsel %vm4185, %v4178, %v4182
        %v4187 = vand.u32 2147483647, %v3546
        %vm4188 = vcmp.eq.f32.partialorder %v4187, 8.507059e+37
        %v4189 = vand.u32 %v3546, 2147483648
        %v4190 = vor.u32 1.1754944e-38, %v4189
        %v4191 = vsel %vm4188, %v4190, %v4186
        %v4192 = vmul.f32 1.0, %v4191
        %v4193 = vrcp.pop %v3547
        %v4194 = vmul.f32 %v3547, %v4193
        %v4195 = vsub.f32 1.0, %v4194
        %v4196 = vmul.f32 %v4193, %v4195
        %v4197 = vadd.f32 %v4193, %v4196
        %vm4198 = vweird.f32 %v3547
        %vm4199 = vweird.f32 %v4193
        %vm4200 = vmor %vm4198, %vm4199
        %v4201 = vsel %vm4200, %v4193, %v4197
        %v4202 = vand.u32 2147483647, %v3547
        %vm4203 = vcmp.eq.f32.partialorder %v4202, 8.507059e+37
        %v4204 = vand.u32 %v3547, 2147483648
        %v4205 = vor.u32 1.1754944e-38, %v4204
        %v4206 = vsel %vm4203, %v4205, %v4201
        %v4207 = vmul.f32 1.0, %v4206
        %v4208 = vrcp.pop %v3548
        %v4209 = vmul.f32 %v3548, %v4208
        %v4210 = vsub.f32 1.0, %v4209
        %v4211 = vmul.f32 %v4208, %v4210
        %v4212 = vadd.f32 %v4208, %v4211
        %vm4213 = vweird.f32 %v3548
        %vm4214 = vweird.f32 %v4208
        %vm4215 = vmor %vm4213, %vm4214
        %v4216 = vsel %vm4215, %v4208, %v4212
        %v4217 = vand.u32 2147483647, %v3548
        %vm4218 = vcmp.eq.f32.partialorder %v4217, 8.507059e+37
        %v4219 = vand.u32 %v3548, 2147483648
        %v4220 = vor.u32 1.1754944e-38, %v4219
        %v4221 = vsel %vm4218, %v4220, %v4216
        %v4222 = vmul.f32 1.0, %v4221
        %v4223 = vrcp.pop %v3549
        %v4224 = vmul.f32 %v3549, %v4223
        %v4225 = vsub.f32 1.0, %v4224
        %v4226 = vmul.f32 %v4223, %v4225
        %v4227 = vadd.f32 %v4223, %v4226
        %vm4228 = vweird.f32 %v3549
        %vm4229 = vweird.f32 %v4223
        %vm4230 = vmor %vm4228, %vm4229
        %v4231 = vsel %vm4230, %v4223, %v4227
        %v4232 = vand.u32 2147483647, %v3549
        %vm4233 = vcmp.eq.f32.partialorder %v4232, 8.507059e+37
        %v4234 = vand.u32 %v3549, 2147483648
        %v4235 = vor.u32 1.1754944e-38, %v4234
        %v4236 = vsel %vm4233, %v4235, %v4231
        %v4237 = vmul.f32 1.0, %v4236
        %v4238 = vrcp.pop %v3550
        %v4239 = vmul.f32 %v3550, %v4238
        %v4240 = vsub.f32 1.0, %v4239
        %v4241 = vmul.f32 %v4238, %v4240
        %v4242 = vadd.f32 %v4238, %v4241
        %vm4243 = vweird.f32 %v3550
        %vm4244 = vweird.f32 %v4238
        %vm4245 = vmor %vm4243, %vm4244
        %v4246 = vsel %vm4245, %v4238, %v4242
        %v4247 = vand.u32 2147483647, %v3550
        %vm4248 = vcmp.eq.f32.partialorder %v4247, 8.507059e+37
        %v4249 = vand.u32 %v3550, 2147483648
        %v4250 = vor.u32 1.1754944e-38, %v4249
        %v4251 = vsel %vm4248, %v4250, %v4246
        %v4252 = vmul.f32 1.0, %v4251
        %v4253 = vrcp.pop %v3551
        %v4254 = vmul.f32 %v3551, %v4253
        %v4255 = vsub.f32 1.0, %v4254
        %v4256 = vmul.f32 %v4253, %v4255
        %v4257 = vadd.f32 %v4253, %v4256
        %vm4258 = vweird.f32 %v3551
        %vm4259 = vweird.f32 %v4253
        %vm4260 = vmor %vm4258, %vm4259
        %v4261 = vsel %vm4260, %v4253, %v4257
        %v4262 = vand.u32 2147483647, %v3551
        %vm4263 = vcmp.eq.f32.partialorder %v4262, 8.507059e+37
        %v4264 = vand.u32 %v3551, 2147483648
        %v4265 = vor.u32 1.1754944e-38, %v4264
        %v4266 = vsel %vm4263, %v4265, %v4261
        %v4267 = vmul.f32 1.0, %v4266
        %v4268 = vrcp.pop %v3552
        %v4269 = vmul.f32 %v3552, %v4268
        %v4270 = vsub.f32 1.0, %v4269
        %v4271 = vmul.f32 %v4268, %v4270
        %v4272 = vadd.f32 %v4268, %v4271
        %vm4273 = vweird.f32 %v3552
        %vm4274 = vweird.f32 %v4268
        %vm4275 = vmor %vm4273, %vm4274
        %v4276 = vsel %vm4275, %v4268, %v4272
        %v4277 = vand.u32 2147483647, %v3552
        %vm4278 = vcmp.eq.f32.partialorder %v4277, 8.507059e+37
        %v4279 = vand.u32 %v3552, 2147483648
        %v4280 = vor.u32 1.1754944e-38, %v4279
        %v4281 = vsel %vm4278, %v4280, %v4276
        %v4282 = vmul.f32 1.0, %v4281
        %v4283 = vrcp.pop %v3553
        %v4284 = vmul.f32 %v3553, %v4283
        %v4285 = vsub.f32 1.0, %v4284
        %v4286 = vmul.f32 %v4283, %v4285
        %v4287 = vadd.f32 %v4283, %v4286
        %vm4288 = vweird.f32 %v3553
        %vm4289 = vweird.f32 %v4283
        %vm4290 = vmor %vm4288, %vm4289
        %v4291 = vsel %vm4290, %v4283, %v4287
        %v4292 = vand.u32 2147483647, %v3553
        %vm4293 = vcmp.eq.f32.partialorder %v4292, 8.507059e+37
        %v4294 = vand.u32 %v3553, 2147483648
        %v4295 = vor.u32 1.1754944e-38, %v4294
        %v4296 = vsel %vm4293, %v4295, %v4291
        %v4297 = vmul.f32 1.0, %v4296
        %v4298 = vrcp.pop %v3554
        %v4299 = vmul.f32 %v3554, %v4298
        %v4300 = vsub.f32 1.0, %v4299
        %v4301 = vmul.f32 %v4298, %v4300
        %v4302 = vadd.f32 %v4298, %v4301
        %vm4303 = vweird.f32 %v3554
        %vm4304 = vweird.f32 %v4298
        %vm4305 = vmor %vm4303, %vm4304
        %v4306 = vsel %vm4305, %v4298, %v4302
        %v4307 = vand.u32 2147483647, %v3554
        %vm4308 = vcmp.eq.f32.partialorder %v4307, 8.507059e+37
        %v4309 = vand.u32 %v3554, 2147483648
        %v4310 = vor.u32 1.1754944e-38, %v4309
        %v4311 = vsel %vm4308, %v4310, %v4306
        %v4312 = vmul.f32 1.0, %v4311
        %v4313 = vrcp.pop %v3555
        %v4314 = vmul.f32 %v3555, %v4313
        %v4315 = vsub.f32 1.0, %v4314
        %v4316 = vmul.f32 %v4313, %v4315
        %v4317 = vadd.f32 %v4313, %v4316
        %vm4318 = vweird.f32 %v3555
        %vm4319 = vweird.f32 %v4313
        %vm4320 = vmor %vm4318, %vm4319
        %v4321 = vsel %vm4320, %v4313, %v4317
        %v4322 = vand.u32 2147483647, %v3555
        %vm4323 = vcmp.eq.f32.partialorder %v4322, 8.507059e+37
        %v4324 = vand.u32 %v3555, 2147483648
        %v4325 = vor.u32 1.1754944e-38, %v4324
        %v4326 = vsel %vm4323, %v4325, %v4321
        %v4327 = vmul.f32 1.0, %v4326
        %v4328 = vrcp.pop %v3556
        %v4329 = vmul.f32 %v3556, %v4328
        %v4330 = vsub.f32 1.0, %v4329
        %v4331 = vmul.f32 %v4328, %v4330
        %v4332 = vadd.f32 %v4328, %v4331
        %vm4333 = vweird.f32 %v3556
        %vm4334 = vweird.f32 %v4328
        %vm4335 = vmor %vm4333, %vm4334
        %v4336 = vsel %vm4335, %v4328, %v4332
        %v4337 = vand.u32 2147483647, %v3556
        %vm4338 = vcmp.eq.f32.partialorder %v4337, 8.507059e+37
        %v4339 = vand.u32 %v3556, 2147483648
        %v4340 = vor.u32 1.1754944e-38, %v4339
        %v4341 = vsel %vm4338, %v4340, %v4336
        %v4342 = vmul.f32 1.0, %v4341
        %v4343 = vrcp.pop %v3557
        %v4344 = vmul.f32 %v3557, %v4343
        %v4345 = vsub.f32 1.0, %v4344
        %v4346 = vmul.f32 %v4343, %v4345
        %v4347 = vadd.f32 %v4343, %v4346
        %vm4348 = vweird.f32 %v3557
        %vm4349 = vweird.f32 %v4343
        %vm4350 = vmor %vm4348, %vm4349
        %v4351 = vsel %vm4350, %v4343, %v4347
        %v4352 = vand.u32 2147483647, %v3557
        %vm4353 = vcmp.eq.f32.partialorder %v4352, 8.507059e+37
        %v4354 = vand.u32 %v3557, 2147483648
        %v4355 = vor.u32 1.1754944e-38, %v4354
        %v4356 = vsel %vm4353, %v4355, %v4351
        %v4357 = vmul.f32 1.0, %v4356
        %v4358 = vrcp.pop %v3558
        %v4359 = vmul.f32 %v3558, %v4358
        %v4360 = vsub.f32 1.0, %v4359
        %v4361 = vmul.f32 %v4358, %v4360
        %v4362 = vadd.f32 %v4358, %v4361
        %vm4363 = vweird.f32 %v3558
        %vm4364 = vweird.f32 %v4358
        %vm4365 = vmor %vm4363, %vm4364
        %v4366 = vsel %vm4365, %v4358, %v4362
        %v4367 = vand.u32 2147483647, %v3558
        %vm4368 = vcmp.eq.f32.partialorder %v4367, 8.507059e+37
        %v4369 = vand.u32 %v3558, 2147483648
        %v4370 = vor.u32 1.1754944e-38, %v4369
        %v4371 = vsel %vm4368, %v4370, %v4366
        %v4372 = vmul.f32 1.0, %v4371
        %v4373 = vrcp.pop %v3559
        %v4374 = vmul.f32 %v3559, %v4373
        %v4375 = vsub.f32 1.0, %v4374
        %v4376 = vmul.f32 %v4373, %v4375
        %v4377 = vadd.f32 %v4373, %v4376
        %vm4378 = vweird.f32 %v3559
        %vm4379 = vweird.f32 %v4373
        %vm4380 = vmor %vm4378, %vm4379
        %v4381 = vsel %vm4380, %v4373, %v4377
        %v4382 = vand.u32 2147483647, %v3559
        %vm4383 = vcmp.eq.f32.partialorder %v4382, 8.507059e+37
        %v4384 = vand.u32 %v3559, 2147483648
        %v4385 = vor.u32 1.1754944e-38, %v4384
        %v4386 = vsel %vm4383, %v4385, %v4381
        %v4387 = vmul.f32 1.0, %v4386
        %v4388 = vrcp.pop %v3560
        %v4389 = vmul.f32 %v3560, %v4388
        %v4390 = vsub.f32 1.0, %v4389
        %v4391 = vmul.f32 %v4388, %v4390
        %v4392 = vadd.f32 %v4388, %v4391
        %vm4393 = vweird.f32 %v3560
        %vm4394 = vweird.f32 %v4388
        %vm4395 = vmor %vm4393, %vm4394
        %v4396 = vsel %vm4395, %v4388, %v4392
        %v4397 = vand.u32 2147483647, %v3560
        %vm4398 = vcmp.eq.f32.partialorder %v4397, 8.507059e+37
        %v4399 = vand.u32 %v3560, 2147483648
        %v4400 = vor.u32 1.1754944e-38, %v4399
        %v4401 = vsel %vm4398, %v4400, %v4396
        %v4402 = vmul.f32 1.0, %v4401
        %v4403 = vrcp.pop %v3561
        %v4404 = vmul.f32 %v3561, %v4403
        %v4405 = vsub.f32 1.0, %v4404
        %v4406 = vmul.f32 %v4403, %v4405
        %v4407 = vadd.f32 %v4403, %v4406
        %vm4408 = vweird.f32 %v3561
        %vm4409 = vweird.f32 %v4403
        %vm4410 = vmor %vm4408, %vm4409
        %v4411 = vsel %vm4410, %v4403, %v4407
        %v4412 = vand.u32 2147483647, %v3561
        %vm4413 = vcmp.eq.f32.partialorder %v4412, 8.507059e+37
        %v4414 = vand.u32 %v3561, 2147483648
        %v4415 = vor.u32 1.1754944e-38, %v4414
        %v4416 = vsel %vm4413, %v4415, %v4411
        %v4417 = vmul.f32 1.0, %v4416
        %v4418 = vrcp.pop %v3562
        %v4419 = vmul.f32 %v3562, %v4418
        %v4420 = vsub.f32 1.0, %v4419
        %v4421 = vmul.f32 %v4418, %v4420
        %v4422 = vadd.f32 %v4418, %v4421
        %vm4423 = vweird.f32 %v3562
        %vm4424 = vweird.f32 %v4418
        %vm4425 = vmor %vm4423, %vm4424
        %v4426 = vsel %vm4425, %v4418, %v4422
        %v4427 = vand.u32 2147483647, %v3562
        %vm4428 = vcmp.eq.f32.partialorder %v4427, 8.507059e+37
        %v4429 = vand.u32 %v3562, 2147483648
        %v4430 = vor.u32 1.1754944e-38, %v4429
        %v4431 = vsel %vm4428, %v4430, %v4426
        %v4432 = vmul.f32 1.0, %v4431
        %v4433 = vrcp.pop %v3563
        %v4434 = vmul.f32 %v3563, %v4433
        %v4435 = vsub.f32 1.0, %v4434
        %v4436 = vmul.f32 %v4433, %v4435
        %v4437 = vadd.f32 %v4433, %v4436
        %vm4438 = vweird.f32 %v3563
        %vm4439 = vweird.f32 %v4433
        %vm4440 = vmor %vm4438, %vm4439
        %v4441 = vsel %vm4440, %v4433, %v4437
        %v4442 = vand.u32 2147483647, %v3563
        %vm4443 = vcmp.eq.f32.partialorder %v4442, 8.507059e+37
        %v4444 = vand.u32 %v3563, 2147483648
        %v4445 = vor.u32 1.1754944e-38, %v4444
        %v4446 = vsel %vm4443, %v4445, %v4441
        %v4447 = vmul.f32 1.0, %v4446
        %v4448 = vrcp.pop %v3564
        %v4449 = vmul.f32 %v3564, %v4448
        %v4450 = vsub.f32 1.0, %v4449
        %v4451 = vmul.f32 %v4448, %v4450
        %v4452 = vadd.f32 %v4448, %v4451
        %vm4453 = vweird.f32 %v3564
        %vm4454 = vweird.f32 %v4448
        %vm4455 = vmor %vm4453, %vm4454
        %v4456 = vsel %vm4455, %v4448, %v4452
        %v4457 = vand.u32 2147483647, %v3564
        %vm4458 = vcmp.eq.f32.partialorder %v4457, 8.507059e+37
        %v4459 = vand.u32 %v3564, 2147483648
        %v4460 = vor.u32 1.1754944e-38, %v4459
        %v4461 = vsel %vm4458, %v4460, %v4456
        %v4462 = vmul.f32 1.0, %v4461
        %v4463 = vrcp.pop %v3565
        %v4464 = vmul.f32 %v3565, %v4463
        %v4465 = vsub.f32 1.0, %v4464
        %v4466 = vmul.f32 %v4463, %v4465
        %v4467 = vadd.f32 %v4463, %v4466
        %vm4468 = vweird.f32 %v3565
        %vm4469 = vweird.f32 %v4463
        %vm4470 = vmor %vm4468, %vm4469
        %v4471 = vsel %vm4470, %v4463, %v4467
        %v4472 = vand.u32 2147483647, %v3565
        %vm4473 = vcmp.eq.f32.partialorder %v4472, 8.507059e+37
        %v4474 = vand.u32 %v3565, 2147483648
        %v4475 = vor.u32 1.1754944e-38, %v4474
        %v4476 = vsel %vm4473, %v4475, %v4471
        %v4477 = vmul.f32 1.0, %v4476
        %v4478 = vrcp.pop %v3566
        %v4479 = vmul.f32 %v3566, %v4478
        %v4480 = vsub.f32 1.0, %v4479
        %v4481 = vmul.f32 %v4478, %v4480
        %v4482 = vadd.f32 %v4478, %v4481
        %vm4483 = vweird.f32 %v3566
        %vm4484 = vweird.f32 %v4478
        %vm4485 = vmor %vm4483, %vm4484
        %v4486 = vsel %vm4485, %v4478, %v4482
        %v4487 = vand.u32 2147483647, %v3566
        %vm4488 = vcmp.eq.f32.partialorder %v4487, 8.507059e+37
        %v4489 = vand.u32 %v3566, 2147483648
        %v4490 = vor.u32 1.1754944e-38, %v4489
        %v4491 = vsel %vm4488, %v4490, %v4486
        %v4492 = vmul.f32 1.0, %v4491
        %v4493 = vrcp.pop %v3567
        %v4494 = vmul.f32 %v3567, %v4493
        %v4495 = vsub.f32 1.0, %v4494
        %v4496 = vmul.f32 %v4493, %v4495
        %v4497 = vadd.f32 %v4493, %v4496
        %vm4498 = vweird.f32 %v3567
        %vm4499 = vweird.f32 %v4493
        %vm4500 = vmor %vm4498, %vm4499
        %v4501 = vsel %vm4500, %v4493, %v4497
        %v4502 = vand.u32 2147483647, %v3567
        %vm4503 = vcmp.eq.f32.partialorder %v4502, 8.507059e+37
        %v4504 = vand.u32 %v3567, 2147483648
        %v4505 = vor.u32 1.1754944e-38, %v4504
        %v4506 = vsel %vm4503, %v4505, %v4501
        %v4507 = vmul.f32 1.0, %v4506
        %v4508 = vrcp.pop %v3568
        %v4509 = vmul.f32 %v3568, %v4508
        %v4510 = vsub.f32 1.0, %v4509
        %v4511 = vmul.f32 %v4508, %v4510
        %v4512 = vadd.f32 %v4508, %v4511
        %vm4513 = vweird.f32 %v3568
        %vm4514 = vweird.f32 %v4508
        %vm4515 = vmor %vm4513, %vm4514
        %v4516 = vsel %vm4515, %v4508, %v4512
        %v4517 = vand.u32 2147483647, %v3568
        %vm4518 = vcmp.eq.f32.partialorder %v4517, 8.507059e+37
        %v4519 = vand.u32 %v3568, 2147483648
        %v4520 = vor.u32 1.1754944e-38, %v4519
        %v4521 = vsel %vm4518, %v4520, %v4516
        %v4522 = vmul.f32 1.0, %v4521
        %v4523 = vrcp.pop %v3569
        %v4524 = vmul.f32 %v3569, %v4523
        %v4525 = vsub.f32 1.0, %v4524
        %v4526 = vmul.f32 %v4523, %v4525
        %v4527 = vadd.f32 %v4523, %v4526
        %vm4528 = vweird.f32 %v3569
        %vm4529 = vweird.f32 %v4523
        %vm4530 = vmor %vm4528, %vm4529
        %v4531 = vsel %vm4530, %v4523, %v4527
        %v4532 = vand.u32 2147483647, %v3569
        %vm4533 = vcmp.eq.f32.partialorder %v4532, 8.507059e+37
        %v4534 = vand.u32 %v3569, 2147483648
        %v4535 = vor.u32 1.1754944e-38, %v4534
        %v4536 = vsel %vm4533, %v4535, %v4531
        %v4537 = vmul.f32 1.0, %v4536
        %v4538 = vrcp.pop %v3570
        %v4539 = vmul.f32 %v3570, %v4538
        %v4540 = vsub.f32 1.0, %v4539
        %v4541 = vmul.f32 %v4538, %v4540
        %v4542 = vadd.f32 %v4538, %v4541
        %vm4543 = vweird.f32 %v3570
        %vm4544 = vweird.f32 %v4538
        %vm4545 = vmor %vm4543, %vm4544
        %v4546 = vsel %vm4545, %v4538, %v4542
        %v4547 = vand.u32 2147483647, %v3570
        %vm4548 = vcmp.eq.f32.partialorder %v4547, 8.507059e+37
        %v4549 = vand.u32 %v3570, 2147483648
        %v4550 = vor.u32 1.1754944e-38, %v4549
        %v4551 = vsel %vm4548, %v4550, %v4546
        %v4552 = vmul.f32 1.0, %v4551
        %v4553 = vrcp.pop %v3571
        %v4554 = vmul.f32 %v3571, %v4553
        %v4555 = vsub.f32 1.0, %v4554
        %v4556 = vmul.f32 %v4553, %v4555
        %v4557 = vadd.f32 %v4553, %v4556
        %vm4558 = vweird.f32 %v3571
        %vm4559 = vweird.f32 %v4553
        %vm4560 = vmor %vm4558, %vm4559
        %v4561 = vsel %vm4560, %v4553, %v4557
        %v4562 = vand.u32 2147483647, %v3571
        %vm4563 = vcmp.eq.f32.partialorder %v4562, 8.507059e+37
        %v4564 = vand.u32 %v3571, 2147483648
        %v4565 = vor.u32 1.1754944e-38, %v4564
        %v4566 = vsel %vm4563, %v4565, %v4561
        %v4567 = vmul.f32 1.0, %v4566
        %v4568 = vrcp.pop %v3572
        %v4569 = vmul.f32 %v3572, %v4568
        %v4570 = vsub.f32 1.0, %v4569
        %v4571 = vmul.f32 %v4568, %v4570
        %v4572 = vadd.f32 %v4568, %v4571
        %vm4573 = vweird.f32 %v3572
        %vm4574 = vweird.f32 %v4568
        %vm4575 = vmor %vm4573, %vm4574
        %v4576 = vsel %vm4575, %v4568, %v4572
        %v4577 = vand.u32 2147483647, %v3572
        %vm4578 = vcmp.eq.f32.partialorder %v4577, 8.507059e+37
        %v4579 = vand.u32 %v3572, 2147483648
        %v4580 = vor.u32 1.1754944e-38, %v4579
        %v4581 = vsel %vm4578, %v4580, %v4576
        %v4582 = vmul.f32 1.0, %v4581
        %v4583 = vrcp.pop %v3573
        %v4584 = vmul.f32 %v3573, %v4583
        %v4585 = vsub.f32 1.0, %v4584
        %v4586 = vmul.f32 %v4583, %v4585
        %v4587 = vadd.f32 %v4583, %v4586
        %vm4588 = vweird.f32 %v3573
        %vm4589 = vweird.f32 %v4583
        %vm4590 = vmor %vm4588, %vm4589
        %v4591 = vsel %vm4590, %v4583, %v4587
        %v4592 = vand.u32 2147483647, %v3573
        %vm4593 = vcmp.eq.f32.partialorder %v4592, 8.507059e+37
        %v4594 = vand.u32 %v3573, 2147483648
        %v4595 = vor.u32 1.1754944e-38, %v4594
        %v4596 = vsel %vm4593, %v4595, %v4591
        %v4597 = vmul.f32 1.0, %v4596
        %v4598 = vrcp.pop %v3574
        %v4599 = vmul.f32 %v3574, %v4598
        %v4600 = vsub.f32 1.0, %v4599
        %v4601 = vmul.f32 %v4598, %v4600
        %v4602 = vadd.f32 %v4598, %v4601
        %vm4603 = vweird.f32 %v3574
        %vm4604 = vweird.f32 %v4598
        %vm4605 = vmor %vm4603, %vm4604
        %v4606 = vsel %vm4605, %v4598, %v4602
        %v4607 = vand.u32 2147483647, %v3574
        %vm4608 = vcmp.eq.f32.partialorder %v4607, 8.507059e+37
        %v4609 = vand.u32 %v3574, 2147483648
        %v4610 = vor.u32 1.1754944e-38, %v4609
        %v4611 = vsel %vm4608, %v4610, %v4606
        %v4612 = vmul.f32 1.0, %v4611
        %v4613 = vrcp.pop %v3575
        %v4614 = vmul.f32 %v3575, %v4613
        %v4615 = vsub.f32 1.0, %v4614
        %v4616 = vmul.f32 %v4613, %v4615
        %v4617 = vadd.f32 %v4613, %v4616
        %vm4618 = vweird.f32 %v3575
        %vm4619 = vweird.f32 %v4613
        %vm4620 = vmor %vm4618, %vm4619
        %v4621 = vsel %vm4620, %v4613, %v4617
        %v4622 = vand.u32 2147483647, %v3575
        %vm4623 = vcmp.eq.f32.partialorder %v4622, 8.507059e+37
        %v4624 = vand.u32 %v3575, 2147483648
        %v4625 = vor.u32 1.1754944e-38, %v4624
        %v4626 = vsel %vm4623, %v4625, %v4621
        %v4627 = vmul.f32 1.0, %v4626
        %v4628 = vrcp.pop %v3576
        %v4629 = vmul.f32 %v3576, %v4628
        %v4630 = vsub.f32 1.0, %v4629
        %v4631 = vmul.f32 %v4628, %v4630
        %v4632 = vadd.f32 %v4628, %v4631
        %vm4633 = vweird.f32 %v3576
        %vm4634 = vweird.f32 %v4628
        %vm4635 = vmor %vm4633, %vm4634
        %v4636 = vsel %vm4635, %v4628, %v4632
        %v4637 = vand.u32 2147483647, %v3576
        %vm4638 = vcmp.eq.f32.partialorder %v4637, 8.507059e+37
        %v4639 = vand.u32 %v3576, 2147483648
        %v4640 = vor.u32 1.1754944e-38, %v4639
        %v4641 = vsel %vm4638, %v4640, %v4636
        %v4642 = vmul.f32 1.0, %v4641
        %v4643 = vrcp.pop %v3577
        %v4644 = vmul.f32 %v3577, %v4643
        %v4645 = vsub.f32 1.0, %v4644
        %v4646 = vmul.f32 %v4643, %v4645
        %v4647 = vadd.f32 %v4643, %v4646
        %vm4648 = vweird.f32 %v3577
        %vm4649 = vweird.f32 %v4643
        %vm4650 = vmor %vm4648, %vm4649
        %v4651 = vsel %vm4650, %v4643, %v4647
        %v4652 = vand.u32 2147483647, %v3577
        %vm4653 = vcmp.eq.f32.partialorder %v4652, 8.507059e+37
        %v4654 = vand.u32 %v3577, 2147483648
        %v4655 = vor.u32 1.1754944e-38, %v4654
        %v4656 = vsel %vm4653, %v4655, %v4651
        %v4657 = vmul.f32 1.0, %v4656
        %v4658 = vmul.f32 %v2152, %v3218
        %v4659 = vmul.f32 %v2167, %v3219
        %v4660 = vmul.f32 %v2182, %v3220
        %v4661 = vmul.f32 %v2197, %v3221
        %v4662 = vmul.f32 %v2212, %v3222
        %v4663 = vmul.f32 %v2227, %v3223
        %v4664 = vmul.f32 %v2242, %v3224
        %v4665 = vmul.f32 %v2257, %v3225
        %v4666 = vmul.f32 %v2272, %v3226
        %v4667 = vmul.f32 %v2287, %v3227
        %v4668 = vmul.f32 %v2302, %v3228
        %v4669 = vmul.f32 %v2317, %v3229
        %v4670 = vmul.f32 %v2332, %v3230
        %v4671 = vmul.f32 %v2347, %v3231
        %v4672 = vmul.f32 %v2362, %v3232
        %v4673 = vmul.f32 %v2377, %v3233
        %v4674 = vmul.f32 %v2392, %v3234
        %v4675 = vmul.f32 %v2407, %v3235
        %v4676 = vmul.f32 %v2422, %v3236
        %v4677 = vmul.f32 %v2437, %v3237
        %v4678 = vmul.f32 %v2452, %v3238
        %v4679 = vmul.f32 %v2467, %v3239
        %v4680 = vmul.f32 %v2482, %v3240
        %v4681 = vmul.f32 %v2497, %v3241
        %v4682 = vmul.f32 %v2512, %v3242
        %v4683 = vmul.f32 %v2527, %v3243
        %v4684 = vmul.f32 %v2542, %v3244
        %v4685 = vmul.f32 %v2557, %v3245
        %v4686 = vmul.f32 %v2572, %v3246
        %v4687 = vmul.f32 %v2587, %v3247
        %v4688 = vmul.f32 %v2602, %v3248
        %v4689 = vmul.f32 %v2617, %v3249
        %v4690 = vmul.f32 %v2632, %v3250
        %v4691 = vmul.f32 %v2647, %v3251
        %v4692 = vmul.f32 %v2662, %v3252
        %v4693 = vmul.f32 %v2677, %v3253
        %v4694 = vmul.f32 %v2692, %v3254
        %v4695 = vmul.f32 %v2707, %v3255
        %v4696 = vmul.f32 %v2722, %v3256
        %v4697 = vmul.f32 %v2737, %v3257
        %v4698 = vmul.f32 %v2752, %v3258
        %v4699 = vmul.f32 %v2767, %v3259
        %v4700 = vmul.f32 %v2782, %v3260
        %v4701 = vmul.f32 %v2797, %v3261
        %v4702 = vmul.f32 %v2812, %v3262
        %v4703 = vmul.f32 %v2827, %v3263
        %v4704 = vmul.f32 %v2842, %v3264
        %v4705 = vmul.f32 %v2857, %v3265
        %v4706 = vmul.f32 %v2872, %v3266
        %v4707 = vmul.f32 %v2887, %v3267
        %v4708 = vmul.f32 %v2902, %v3268
        %v4709 = vmul.f32 %v2917, %v3269
        %v4710 = vmul.f32 %v2932, %v3270
        %v4711 = vmul.f32 %v2947, %v3271
        %v4712 = vmul.f32 %v2962, %v3272
        %v4713 = vmul.f32 %v2977, %v3273
        %v4714 = vmul.f32 %v2992, %v3274
        %v4715 = vmul.f32 %v3007, %v3275
        %v4716 = vmul.f32 %v3022, %v3276
        %v4717 = vmul.f32 %v3037, %v3277
        %v4718 = vmul.f32 %v3052, %v3278
        %v4719 = vmul.f32 %v3067, %v3279
        %v4720 = vmul.f32 %v3082, %v3280
        %v4721 = vmul.f32 %v3097, %v3281
        %v4722 = vmul.f32 %v3112, %v3282
        %v4723 = vmul.f32 %v3127, %v3283
        %v4724 = vmul.f32 %v3142, %v3284
        %v4725 = vmul.f32 %v3157, %v3285
        %v4726 = vmul.f32 %v3172, %v3286
        %v4727 = vmul.f32 %v3187, %v3287
        %v4728 = vmul.f32 %v3202, %v3288
        %v4729 = vmul.f32 %v3217, %v3289
        %v4730 = vtanh.pop %v4658
        %v4731 = vtanh.pop %v4659
        %v4732 = vtanh.pop %v4660
        %v4733 = vtanh.pop %v4661
        %v4734 = vtanh.pop %v4662
        %v4735 = vtanh.pop %v4663
        %v4736 = vtanh.pop %v4664
        %v4737 = vtanh.pop %v4665
        %v4738 = vtanh.pop %v4666
        %v4739 = vtanh.pop %v4667
        %v4740 = vtanh.pop %v4668
        %v4741 = vtanh.pop %v4669
        %v4742 = vtanh.pop %v4670
        %v4743 = vtanh.pop %v4671
        %v4744 = vtanh.pop %v4672
        %v4745 = vtanh.pop %v4673
        %v4746 = vtanh.pop %v4674
        %v4747 = vtanh.pop %v4675
        %v4748 = vtanh.pop %v4676
        %v4749 = vtanh.pop %v4677
        %v4750 = vtanh.pop %v4678
        %v4751 = vtanh.pop %v4679
        %v4752 = vtanh.pop %v4680
        %v4753 = vtanh.pop %v4681
        %v4754 = vtanh.pop %v4682
        %v4755 = vtanh.pop %v4683
        %v4756 = vtanh.pop %v4684
        %v4757 = vtanh.pop %v4685
        %v4758 = vtanh.pop %v4686
        %v4759 = vtanh.pop %v4687
        %v4760 = vtanh.pop %v4688
        %v4761 = vtanh.pop %v4689
        %v4762 = vtanh.pop %v4690
        %v4763 = vtanh.pop %v4691
        %v4764 = vtanh.pop %v4692
        %v4765 = vtanh.pop %v4693
        %v4766 = vtanh.pop %v4694
        %v4767 = vtanh.pop %v4695
        %v4768 = vtanh.pop %v4696
        %v4769 = vtanh.pop %v4697
        %v4770 = vtanh.pop %v4698
        %v4771 = vtanh.pop %v4699
        %v4772 = vtanh.pop %v4700
        %v4773 = vtanh.pop %v4701
        %v4774 = vtanh.pop %v4702
        %v4775 = vtanh.pop %v4703
        %v4776 = vtanh.pop %v4704
        %v4777 = vtanh.pop %v4705
        %v4778 = vtanh.pop %v4706
        %v4779 = vtanh.pop %v4707
        %v4780 = vtanh.pop %v4708
        %v4781 = vtanh.pop %v4709
        %v4782 = vtanh.pop %v4710
        %v4783 = vtanh.pop %v4711
        %v4784 = vtanh.pop %v4712
        %v4785 = vtanh.pop %v4713
        %v4786 = vtanh.pop %v4714
        %v4787 = vtanh.pop %v4715
        %v4788 = vtanh.pop %v4716
        %v4789 = vtanh.pop %v4717
        %v4790 = vtanh.pop %v4718
        %v4791 = vtanh.pop %v4719
        %v4792 = vtanh.pop %v4720
        %v4793 = vtanh.pop %v4721
        %v4794 = vtanh.pop %v4722
        %v4795 = vtanh.pop %v4723
        %v4796 = vtanh.pop %v4724
        %v4797 = vtanh.pop %v4725
        %v4798 = vtanh.pop %v4726
        %v4799 = vtanh.pop %v4727
        %v4800 = vtanh.pop %v4728
        %v4801 = vtanh.pop %v4729
        %v4802 = vmul.f32 %v3592, %v4730
        %v4803 = vmul.f32 %v3607, %v4731
        %v4804 = vmul.f32 %v3622, %v4732
        %v4805 = vmul.f32 %v3637, %v4733
        %v4806 = vmul.f32 %v3652, %v4734
        %v4807 = vmul.f32 %v3667, %v4735
        %v4808 = vmul.f32 %v3682, %v4736
        %v4809 = vmul.f32 %v3697, %v4737
        %v4810 = vmul.f32 %v3712, %v4738
        %v4811 = vmul.f32 %v3727, %v4739
        %v4812 = vmul.f32 %v3742, %v4740
        %v4813 = vmul.f32 %v3757, %v4741
        %v4814 = vmul.f32 %v3772, %v4742
        %v4815 = vmul.f32 %v3787, %v4743
        %v4816 = vmul.f32 %v3802, %v4744
        %v4817 = vmul.f32 %v3817, %v4745
        %v4818 = vmul.f32 %v3832, %v4746
        %v4819 = vmul.f32 %v3847, %v4747
        %v4820 = vmul.f32 %v3862, %v4748
        %v4821 = vmul.f32 %v3877, %v4749
        %v4822 = vmul.f32 %v3892, %v4750
        %v4823 = vmul.f32 %v3907, %v4751
        %v4824 = vmul.f32 %v3922, %v4752
        %v4825 = vmul.f32 %v3937, %v4753
        %v4826 = vmul.f32 %v3952, %v4754
        %v4827 = vmul.f32 %v3967, %v4755
        %v4828 = vmul.f32 %v3982, %v4756
        %v4829 = vmul.f32 %v3997, %v4757
        %v4830 = vmul.f32 %v4012, %v4758
        %v4831 = vmul.f32 %v4027, %v4759
        %v4832 = vmul.f32 %v4042, %v4760
        %v4833 = vmul.f32 %v4057, %v4761
        %v4834 = vmul.f32 %v4072, %v4762
        %v4835 = vmul.f32 %v4087, %v4763
        %v4836 = vmul.f32 %v4102, %v4764
        %v4837 = vmul.f32 %v4117, %v4765
        %v4838 = vmul.f32 %v4132, %v4766
        %v4839 = vmul.f32 %v4147, %v4767
        %v4840 = vmul.f32 %v4162, %v4768
        %v4841 = vmul.f32 %v4177, %v4769
        %v4842 = vmul.f32 %v4192, %v4770
        %v4843 = vmul.f32 %v4207, %v4771
        %v4844 = vmul.f32 %v4222, %v4772
        %v4845 = vmul.f32 %v4237, %v4773
        %v4846 = vmul.f32 %v4252, %v4774
        %v4847 = vmul.f32 %v4267, %v4775
        %v4848 = vmul.f32 %v4282, %v4776
        %v4849 = vmul.f32 %v4297, %v4777
        %v4850 = vmul.f32 %v4312, %v4778
        %v4851 = vmul.f32 %v4327, %v4779
        %v4852 = vmul.f32 %v4342, %v4780
        %v4853 = vmul.f32 %v4357, %v4781
        %v4854 = vmul.f32 %v4372, %v4782
        %v4855 = vmul.f32 %v4387, %v4783
        %v4856 = vmul.f32 %v4402, %v4784
        %v4857 = vmul.f32 %v4417, %v4785
        %v4858 = vmul.f32 %v4432, %v4786
        %v4859 = vmul.f32 %v4447, %v4787
        %v4860 = vmul.f32 %v4462, %v4788
        %v4861 = vmul.f32 %v4477, %v4789
        %v4862 = vmul.f32 %v4492, %v4790
        %v4863 = vmul.f32 %v4507, %v4791
        %v4864 = vmul.f32 %v4522, %v4792
        %v4865 = vmul.f32 %v4537, %v4793
        %v4866 = vmul.f32 %v4552, %v4794
        %v4867 = vmul.f32 %v4567, %v4795
        %v4868 = vmul.f32 %v4582, %v4796
        %v4869 = vmul.f32 %v4597, %v4797
        %v4870 = vmul.f32 %v4612, %v4798
        %v4871 = vmul.f32 %v4627, %v4799
        %v4872 = vmul.f32 %v4642, %v4800
        %v4873 = vmul.f32 %v4657, %v4801
        %v4874 = vld [vmem:[%s789] sm:$0xff]
        %v4875 = vld [vmem:[%s789 + $0x8] sm:$0xff]
        %v4876 = vld [vmem:[%s5] sm:$0x3f]
        %v4877 = vld [vmem:[%s5 + $0x8] sm:$0x3f]
        %v4878 = vld [vmem:[%s5 + $0x10] sm:$0x3f]
        %v4879 = vld [vmem:[%s5 + $0x18] sm:$0x3f]
        %v4880 = vld [vmem:[%s5 + $0x20] sm:$0x3f]
        %v4881 = vld [vmem:[%s5 + $0x28] sm:$0x3f]
        %v4882 = vld [vmem:[%s5 + $0x30] sm:$0x3f]
        %v4883 = vld [vmem:[%s5 + $0x38] sm:$0x3f]
        %v4884 = vld [vmem:[%s5 + $0x40] sm:$0x3f]
        %vm4885 = vcmask 48128
        %v4887 = vsel %vm4885, %v4874, 0
        %v4890 = vsel %vm4885, %v4875, 0
        %vm4892 = vcmask 1045504
        %v4894 = vsel %vm4892, %v4876, 0
        %v4897 = vsel %vm4892, %v4877, 0
        %v4900 = vsel %vm4892, %v4878, 0
        %v4903 = vsel %vm4892, %v4879, 0
        %v4906 = vsel %vm4892, %v4880, 0
        %v4909 = vsel %vm4892, %v4881, 0
        %v4912 = vsel %vm4892, %v4882, 0
        %v4915 = vsel %vm4892, %v4883, 0
        %v4918 = vsel %vm4892, %v4884, 0
        %4920 = vmatpush.msra.mxu0 0.0
        %4921 = vmatpush.msra.mxu0 0.0
        %4922 = vmatpush.msra.mxu0 0.0
        %4923 = vmatpush.msra.mxu0 0.0
        %4924 = vmatpush.msra.mxu0 0.0
        %4925 = vmatpush.msra.mxu0 0.0
        %4926 = vmatpush.msra.mxu0 0.0
        %4927 = vmatpush.msra.mxu0 0.0
        %4928 = vmatpush.msra.mxu0 0.0
        %4929 = vmatpush.msra.mxu0 0.0
        %4930 = vmatpush.msra.mxu0 0.0
        %4931 = vmatpush.msra.mxu0 0.0
        %4932 = vmatpush.msra.mxu0 0.0
        %4933 = vmatpush.msra.mxu0 0.0
        %4934 = vmatpush.msra.mxu0 0.0
        %4935 = vmatpush.msra.mxu0 %v4894
        %4936 = vmatmul.f32.gmra.mxu0 %v4887
        %v4937 = vpop.f32.mrf.mxu0
        %v4938 = vadd.f32 0.0, %v4937
        %4939 = vmatmul.f32.gmra.mxu0 %v4890
        %v4940 = vpop.f32.mrf.mxu0
        %v4941 = vadd.f32 0.0, %v4940
        %4942 = vdwg.mxu0
        %4943 = vmatpush.msra.mxu0 0.0
        %4944 = vmatpush.msra.mxu0 0.0
        %4945 = vmatpush.msra.mxu0 0.0
        %4946 = vmatpush.msra.mxu0 0.0
        %4947 = vmatpush.msra.mxu0 0.0
        %4948 = vmatpush.msra.mxu0 0.0
        %4949 = vmatpush.msra.mxu0 0.0
        %4950 = vmatpush.msra.mxu0 0.0
        %4951 = vmatpush.msra.mxu0 0.0
        %4952 = vmatpush.msra.mxu0 0.0
        %4953 = vmatpush.msra.mxu0 0.0
        %4954 = vmatpush.msra.mxu0 0.0
        %4955 = vmatpush.msra.mxu0 0.0
        %4956 = vmatpush.msra.mxu0 0.0
        %4957 = vmatpush.msra.mxu0 0.0
        %4958 = vmatpush.msra.mxu0 %v4897
        %4959 = vmatmul.f32.gmra.mxu0 %v4887
        %v4960 = vpop.f32.mrf.mxu0
        %v4961 = vadd.f32 0.0, %v4960
        %4962 = vmatmul.f32.gmra.mxu0 %v4890
        %v4963 = vpop.f32.mrf.mxu0
        %v4964 = vadd.f32 0.0, %v4963
        %4965 = vdwg.mxu0
        %4966 = vmatpush.msra.mxu0 0.0
        %4967 = vmatpush.msra.mxu0 0.0
        %4968 = vmatpush.msra.mxu0 0.0
        %4969 = vmatpush.msra.mxu0 0.0
        %4970 = vmatpush.msra.mxu0 0.0
        %4971 = vmatpush.msra.mxu0 0.0
        %4972 = vmatpush.msra.mxu0 0.0
        %4973 = vmatpush.msra.mxu0 0.0
        %4974 = vmatpush.msra.mxu0 0.0
        %4975 = vmatpush.msra.mxu0 0.0
        %4976 = vmatpush.msra.mxu0 0.0
        %4977 = vmatpush.msra.mxu0 0.0
        %4978 = vmatpush.msra.mxu0 0.0
        %4979 = vmatpush.msra.mxu0 0.0
        %4980 = vmatpush.msra.mxu0 0.0
        %4981 = vmatpush.msra.mxu0 %v4900
        %4982 = vmatmul.f32.gmra.mxu0 %v4887
        %v4983 = vpop.f32.mrf.mxu0
        %v4984 = vadd.f32 0.0, %v4983
        %4985 = vmatmul.f32.gmra.mxu0 %v4890
        %v4986 = vpop.f32.mrf.mxu0
        %v4987 = vadd.f32 0.0, %v4986
        %4988 = vdwg.mxu0
        %4989 = vmatpush.msra.mxu0 0.0
        %4990 = vmatpush.msra.mxu0 0.0
        %4991 = vmatpush.msra.mxu0 0.0
        %4992 = vmatpush.msra.mxu0 0.0
        %4993 = vmatpush.msra.mxu0 0.0
        %4994 = vmatpush.msra.mxu0 0.0
        %4995 = vmatpush.msra.mxu0 0.0
        %4996 = vmatpush.msra.mxu0 0.0
        %4997 = vmatpush.msra.mxu0 0.0
        %4998 = vmatpush.msra.mxu0 0.0
        %4999 = vmatpush.msra.mxu0 0.0
        %5000 = vmatpush.msra.mxu0 0.0
        %5001 = vmatpush.msra.mxu0 0.0
        %5002 = vmatpush.msra.mxu0 0.0
        %5003 = vmatpush.msra.mxu0 0.0
        %5004 = vmatpush.msra.mxu0 %v4903
        %5005 = vmatmul.f32.gmra.mxu0 %v4887
        %v5006 = vpop.f32.mrf.mxu0
        %v5007 = vadd.f32 0.0, %v5006
        %5008 = vmatmul.f32.gmra.mxu0 %v4890
        %v5009 = vpop.f32.mrf.mxu0
        %v5010 = vadd.f32 0.0, %v5009
        %5011 = vdwg.mxu0
        %5012 = vmatpush.msra.mxu0 0.0
        %5013 = vmatpush.msra.mxu0 0.0
        %5014 = vmatpush.msra.mxu0 0.0
        %5015 = vmatpush.msra.mxu0 0.0
        %5016 = vmatpush.msra.mxu0 0.0
        %5017 = vmatpush.msra.mxu0 0.0
        %5018 = vmatpush.msra.mxu0 0.0
        %5019 = vmatpush.msra.mxu0 0.0
        %5020 = vmatpush.msra.mxu0 0.0
        %5021 = vmatpush.msra.mxu0 0.0
        %5022 = vmatpush.msra.mxu0 0.0
        %5023 = vmatpush.msra.mxu0 0.0
        %5024 = vmatpush.msra.mxu0 0.0
        %5025 = vmatpush.msra.mxu0 0.0
        %5026 = vmatpush.msra.mxu0 0.0
        %5027 = vmatpush.msra.mxu0 %v4906
        %5028 = vmatmul.f32.gmra.mxu0 %v4887
        %v5029 = vpop.f32.mrf.mxu0
        %v5030 = vadd.f32 0.0, %v5029
        %5031 = vmatmul.f32.gmra.mxu0 %v4890
        %v5032 = vpop.f32.mrf.mxu0
        %v5033 = vadd.f32 0.0, %v5032
        %5034 = vdwg.mxu0
        %5035 = vmatpush.msra.mxu0 0.0
        %5036 = vmatpush.msra.mxu0 0.0
        %5037 = vmatpush.msra.mxu0 0.0
        %5038 = vmatpush.msra.mxu0 0.0
        %5039 = vmatpush.msra.mxu0 0.0
        %5040 = vmatpush.msra.mxu0 0.0
        %5041 = vmatpush.msra.mxu0 0.0
        %5042 = vmatpush.msra.mxu0 0.0
        %5043 = vmatpush.msra.mxu0 0.0
        %5044 = vmatpush.msra.mxu0 0.0
        %5045 = vmatpush.msra.mxu0 0.0
        %5046 = vmatpush.msra.mxu0 0.0
        %5047 = vmatpush.msra.mxu0 0.0
        %5048 = vmatpush.msra.mxu0 0.0
        %5049 = vmatpush.msra.mxu0 0.0
        %5050 = vmatpush.msra.mxu0 %v4909
        %5051 = vmatmul.f32.gmra.mxu0 %v4887
        %v5052 = vpop.f32.mrf.mxu0
        %v5053 = vadd.f32 0.0, %v5052
        %5054 = vmatmul.f32.gmra.mxu0 %v4890
        %v5055 = vpop.f32.mrf.mxu0
        %v5056 = vadd.f32 0.0, %v5055
        %5057 = vdwg.mxu0
        %5058 = vmatpush.msra.mxu0 0.0
        %5059 = vmatpush.msra.mxu0 0.0
        %5060 = vmatpush.msra.mxu0 0.0
        %5061 = vmatpush.msra.mxu0 0.0
        %5062 = vmatpush.msra.mxu0 0.0
        %5063 = vmatpush.msra.mxu0 0.0
        %5064 = vmatpush.msra.mxu0 0.0
        %5065 = vmatpush.msra.mxu0 0.0
        %5066 = vmatpush.msra.mxu0 0.0
        %5067 = vmatpush.msra.mxu0 0.0
        %5068 = vmatpush.msra.mxu0 0.0
        %5069 = vmatpush.msra.mxu0 0.0
        %5070 = vmatpush.msra.mxu0 0.0
        %5071 = vmatpush.msra.mxu0 0.0
        %5072 = vmatpush.msra.mxu0 0.0
        %5073 = vmatpush.msra.mxu0 %v4912
        %5074 = vmatmul.f32.gmra.mxu0 %v4887
        %v5075 = vpop.f32.mrf.mxu0
        %v5076 = vadd.f32 0.0, %v5075
        %5077 = vmatmul.f32.gmra.mxu0 %v4890
        %v5078 = vpop.f32.mrf.mxu0
        %v5079 = vadd.f32 0.0, %v5078
        %5080 = vdwg.mxu0
        %5081 = vmatpush.msra.mxu0 0.0
        %5082 = vmatpush.msra.mxu0 0.0
        %5083 = vmatpush.msra.mxu0 0.0
        %5084 = vmatpush.msra.mxu0 0.0
        %5085 = vmatpush.msra.mxu0 0.0
        %5086 = vmatpush.msra.mxu0 0.0
        %5087 = vmatpush.msra.mxu0 0.0
        %5088 = vmatpush.msra.mxu0 0.0
        %5089 = vmatpush.msra.mxu0 0.0
        %5090 = vmatpush.msra.mxu0 0.0
        %5091 = vmatpush.msra.mxu0 0.0
        %5092 = vmatpush.msra.mxu0 0.0
        %5093 = vmatpush.msra.mxu0 0.0
        %5094 = vmatpush.msra.mxu0 0.0
        %5095 = vmatpush.msra.mxu0 0.0
        %5096 = vmatpush.msra.mxu0 %v4915
        %5097 = vmatmul.f32.gmra.mxu0 %v4887
        %v5098 = vpop.f32.mrf.mxu0
        %v5099 = vadd.f32 0.0, %v5098
        %5100 = vmatmul.f32.gmra.mxu0 %v4890
        %v5101 = vpop.f32.mrf.mxu0
        %v5102 = vadd.f32 0.0, %v5101
        %5103 = vdwg.mxu0
        %5104 = vmatpush.msra.mxu0 0.0
        %5105 = vmatpush.msra.mxu0 0.0
        %5106 = vmatpush.msra.mxu0 0.0
        %5107 = vmatpush.msra.mxu0 0.0
        %5108 = vmatpush.msra.mxu0 0.0
        %5109 = vmatpush.msra.mxu0 0.0
        %5110 = vmatpush.msra.mxu0 0.0
        %5111 = vmatpush.msra.mxu0 0.0
        %5112 = vmatpush.msra.mxu0 0.0
        %5113 = vmatpush.msra.mxu0 0.0
        %5114 = vmatpush.msra.mxu0 0.0
        %5115 = vmatpush.msra.mxu0 0.0
        %5116 = vmatpush.msra.mxu0 0.0
        %5117 = vmatpush.msra.mxu0 0.0
        %5118 = vmatpush.msra.mxu0 0.0
        %5119 = vmatpush.msra.mxu0 %v4918
        %5120 = vmatmul.f32.gmra.mxu0 %v4887
        %v5121 = vpop.f32.mrf.mxu0
        %v5122 = vadd.f32 0.0, %v5121
        %5123 = vmatmul.f32.gmra.mxu0 %v4890
        %v5124 = vpop.f32.mrf.mxu0
        %v5125 = vadd.f32 0.0, %v5124
        %5126 = vdwg.mxu0
        %v5127 = vxor.u32 %v4938, 2147483648
        %v5128 = vxor.u32 %v4961, 2147483648
        %v5129 = vxor.u32 %v4984, 2147483648
        %v5130 = vxor.u32 %v4941, 2147483648
        %v5131 = vxor.u32 %v4964, 2147483648
        %v5132 = vxor.u32 %v4987, 2147483648
        %v5133 = vmul.f32 %v5127, 1.442695
        %v5134 = vpow.pop %v5133
        %v5135 = vmul.f32 %v5128, 1.442695
        %v5136 = vpow.pop %v5135
        %v5137 = vmul.f32 %v5129, 1.442695
        %v5138 = vpow.pop %v5137
        %v5139 = vmul.f32 %v5130, 1.442695
        %v5140 = vpow.pop %v5139
        %v5141 = vmul.f32 %v5131, 1.442695
        %v5142 = vpow.pop %v5141
        %v5143 = vmul.f32 %v5132, 1.442695
        %v5144 = vpow.pop %v5143
        %v5145 = vadd.f32 %v5134, 1.0
        %v5146 = vadd.f32 %v5136, 1.0
        %v5147 = vadd.f32 %v5138, 1.0
        %v5148 = vadd.f32 %v5140, 1.0
        %v5149 = vadd.f32 %v5142, 1.0
        %v5150 = vadd.f32 %v5144, 1.0
        %v5151 = vrcp.pop %v5145
        %v5152 = vmul.f32 %v5145, %v5151
        %v5153 = vsub.f32 1.0, %v5152
        %v5154 = vmul.f32 %v5151, %v5153
        %v5155 = vadd.f32 %v5151, %v5154
        %vm5156 = vweird.f32 %v5145
        %vm5157 = vweird.f32 %v5151
        %vm5158 = vmor %vm5156, %vm5157
        %v5159 = vsel %vm5158, %v5151, %v5155
        %v5160 = vand.u32 2147483647, %v5145
        %vm5161 = vcmp.eq.f32.partialorder %v5160, 8.507059e+37
        %v5162 = vand.u32 %v5145, 2147483648
        %v5163 = vor.u32 1.1754944e-38, %v5162
        %v5164 = vsel %vm5161, %v5163, %v5159
        %v5165 = vmul.f32 1.0, %v5164
        %v5166 = vrcp.pop %v5146
        %v5167 = vmul.f32 %v5146, %v5166
        %v5168 = vsub.f32 1.0, %v5167
        %v5169 = vmul.f32 %v5166, %v5168
        %v5170 = vadd.f32 %v5166, %v5169
        %vm5171 = vweird.f32 %v5146
        %vm5172 = vweird.f32 %v5166
        %vm5173 = vmor %vm5171, %vm5172
        %v5174 = vsel %vm5173, %v5166, %v5170
        %v5175 = vand.u32 2147483647, %v5146
        %vm5176 = vcmp.eq.f32.partialorder %v5175, 8.507059e+37
        %v5177 = vand.u32 %v5146, 2147483648
        %v5178 = vor.u32 1.1754944e-38, %v5177
        %v5179 = vsel %vm5176, %v5178, %v5174
        %v5180 = vmul.f32 1.0, %v5179
        %v5181 = vrcp.pop %v5147
        %v5182 = vmul.f32 %v5147, %v5181
        %v5183 = vsub.f32 1.0, %v5182
        %v5184 = vmul.f32 %v5181, %v5183
        %v5185 = vadd.f32 %v5181, %v5184
        %vm5186 = vweird.f32 %v5147
        %vm5187 = vweird.f32 %v5181
        %vm5188 = vmor %vm5186, %vm5187
        %v5189 = vsel %vm5188, %v5181, %v5185
        %v5190 = vand.u32 2147483647, %v5147
        %vm5191 = vcmp.eq.f32.partialorder %v5190, 8.507059e+37
        %v5192 = vand.u32 %v5147, 2147483648
        %v5193 = vor.u32 1.1754944e-38, %v5192
        %v5194 = vsel %vm5191, %v5193, %v5189
        %v5195 = vmul.f32 1.0, %v5194
        %v5196 = vrcp.pop %v5148
        %v5197 = vmul.f32 %v5148, %v5196
        %v5198 = vsub.f32 1.0, %v5197
        %v5199 = vmul.f32 %v5196, %v5198
        %v5200 = vadd.f32 %v5196, %v5199
        %vm5201 = vweird.f32 %v5148
        %vm5202 = vweird.f32 %v5196
        %vm5203 = vmor %vm5201, %vm5202
        %v5204 = vsel %vm5203, %v5196, %v5200
        %v5205 = vand.u32 2147483647, %v5148
        %vm5206 = vcmp.eq.f32.partialorder %v5205, 8.507059e+37
        %v5207 = vand.u32 %v5148, 2147483648
        %v5208 = vor.u32 1.1754944e-38, %v5207
        %v5209 = vsel %vm5206, %v5208, %v5204
        %v5210 = vmul.f32 1.0, %v5209
        %v5211 = vrcp.pop %v5149
        %v5212 = vmul.f32 %v5149, %v5211
        %v5213 = vsub.f32 1.0, %v5212
        %v5214 = vmul.f32 %v5211, %v5213
        %v5215 = vadd.f32 %v5211, %v5214
        %vm5216 = vweird.f32 %v5149
        %vm5217 = vweird.f32 %v5211
        %vm5218 = vmor %vm5216, %vm5217
        %v5219 = vsel %vm5218, %v5211, %v5215
        %v5220 = vand.u32 2147483647, %v5149
        %vm5221 = vcmp.eq.f32.partialorder %v5220, 8.507059e+37
        %v5222 = vand.u32 %v5149, 2147483648
        %v5223 = vor.u32 1.1754944e-38, %v5222
        %v5224 = vsel %vm5221, %v5223, %v5219
        %v5225 = vmul.f32 1.0, %v5224
        %v5226 = vrcp.pop %v5150
        %v5227 = vmul.f32 %v5150, %v5226
        %v5228 = vsub.f32 1.0, %v5227
        %v5229 = vmul.f32 %v5226, %v5228
        %v5230 = vadd.f32 %v5226, %v5229
        %vm5231 = vweird.f32 %v5150
        %vm5232 = vweird.f32 %v5226
        %vm5233 = vmor %vm5231, %vm5232
        %v5234 = vsel %vm5233, %v5226, %v5230
        %v5235 = vand.u32 2147483647, %v5150
        %vm5236 = vcmp.eq.f32.partialorder %v5235, 8.507059e+37
        %v5237 = vand.u32 %v5150, 2147483648
        %v5238 = vor.u32 1.1754944e-38, %v5237
        %v5239 = vsel %vm5236, %v5238, %v5234
        %v5240 = vmul.f32 1.0, %v5239
        %v5241 = vtanh.pop %v5007
        %v5242 = vtanh.pop %v5030
        %v5243 = vtanh.pop %v5053
        %v5244 = vtanh.pop %v5010
        %v5245 = vtanh.pop %v5033
        %v5246 = vtanh.pop %v5056
        %v5247 = vxor.u32 %v5076, 2147483648
        %v5248 = vxor.u32 %v5099, 2147483648
        %v5249 = vxor.u32 %v5122, 2147483648
        %v5250 = vxor.u32 %v5079, 2147483648
        %v5251 = vxor.u32 %v5102, 2147483648
        %v5252 = vxor.u32 %v5125, 2147483648
        %v5253 = vmul.f32 %v5247, 1.442695
        %v5254 = vpow.pop %v5253
        %v5255 = vmul.f32 %v5248, 1.442695
        %v5256 = vpow.pop %v5255
        %v5257 = vmul.f32 %v5249, 1.442695
        %v5258 = vpow.pop %v5257
        %v5259 = vmul.f32 %v5250, 1.442695
        %v5260 = vpow.pop %v5259
        %v5261 = vmul.f32 %v5251, 1.442695
        %v5262 = vpow.pop %v5261
        %v5263 = vmul.f32 %v5252, 1.442695
        %v5264 = vpow.pop %v5263
        %v5265 = vadd.f32 %v5254, 1.0
        %v5266 = vadd.f32 %v5256, 1.0
        %v5267 = vadd.f32 %v5258, 1.0
        %v5268 = vadd.f32 %v5260, 1.0
        %v5269 = vadd.f32 %v5262, 1.0
        %v5270 = vadd.f32 %v5264, 1.0
        %v5271 = vrcp.pop %v5265
        %v5272 = vmul.f32 %v5265, %v5271
        %v5273 = vsub.f32 1.0, %v5272
        %v5274 = vmul.f32 %v5271, %v5273
        %v5275 = vadd.f32 %v5271, %v5274
        %vm5276 = vweird.f32 %v5265
        %vm5277 = vweird.f32 %v5271
        %vm5278 = vmor %vm5276, %vm5277
        %v5279 = vsel %vm5278, %v5271, %v5275
        %v5280 = vand.u32 2147483647, %v5265
        %vm5281 = vcmp.eq.f32.partialorder %v5280, 8.507059e+37
        %v5282 = vand.u32 %v5265, 2147483648
        %v5283 = vor.u32 1.1754944e-38, %v5282
        %v5284 = vsel %vm5281, %v5283, %v5279
        %v5285 = vmul.f32 1.0, %v5284
        %v5286 = vrcp.pop %v5266
        %v5287 = vmul.f32 %v5266, %v5286
        %v5288 = vsub.f32 1.0, %v5287
        %v5289 = vmul.f32 %v5286, %v5288
        %v5290 = vadd.f32 %v5286, %v5289
        %vm5291 = vweird.f32 %v5266
        %vm5292 = vweird.f32 %v5286
        %vm5293 = vmor %vm5291, %vm5292
        %v5294 = vsel %vm5293, %v5286, %v5290
        %v5295 = vand.u32 2147483647, %v5266
        %vm5296 = vcmp.eq.f32.partialorder %v5295, 8.507059e+37
        %v5297 = vand.u32 %v5266, 2147483648
        %v5298 = vor.u32 1.1754944e-38, %v5297
        %v5299 = vsel %vm5296, %v5298, %v5294
        %v5300 = vmul.f32 1.0, %v5299
        %v5301 = vrcp.pop %v5267
        %v5302 = vmul.f32 %v5267, %v5301
        %v5303 = vsub.f32 1.0, %v5302
        %v5304 = vmul.f32 %v5301, %v5303
        %v5305 = vadd.f32 %v5301, %v5304
        %vm5306 = vweird.f32 %v5267
        %vm5307 = vweird.f32 %v5301
        %vm5308 = vmor %vm5306, %vm5307
        %v5309 = vsel %vm5308, %v5301, %v5305
        %v5310 = vand.u32 2147483647, %v5267
        %vm5311 = vcmp.eq.f32.partialorder %v5310, 8.507059e+37
        %v5312 = vand.u32 %v5267, 2147483648
        %v5313 = vor.u32 1.1754944e-38, %v5312
        %v5314 = vsel %vm5311, %v5313, %v5309
        %v5315 = vmul.f32 1.0, %v5314
        %v5316 = vrcp.pop %v5268
        %v5317 = vmul.f32 %v5268, %v5316
        %v5318 = vsub.f32 1.0, %v5317
        %v5319 = vmul.f32 %v5316, %v5318
        %v5320 = vadd.f32 %v5316, %v5319
        %vm5321 = vweird.f32 %v5268
        %vm5322 = vweird.f32 %v5316
        %vm5323 = vmor %vm5321, %vm5322
        %v5324 = vsel %vm5323, %v5316, %v5320
        %v5325 = vand.u32 2147483647, %v5268
        %vm5326 = vcmp.eq.f32.partialorder %v5325, 8.507059e+37
        %v5327 = vand.u32 %v5268, 2147483648
        %v5328 = vor.u32 1.1754944e-38, %v5327
        %v5329 = vsel %vm5326, %v5328, %v5324
        %v5330 = vmul.f32 1.0, %v5329
        %v5331 = vrcp.pop %v5269
        %v5332 = vmul.f32 %v5269, %v5331
        %v5333 = vsub.f32 1.0, %v5332
        %v5334 = vmul.f32 %v5331, %v5333
        %v5335 = vadd.f32 %v5331, %v5334
        %vm5336 = vweird.f32 %v5269
        %vm5337 = vweird.f32 %v5331
        %vm5338 = vmor %vm5336, %vm5337
        %v5339 = vsel %vm5338, %v5331, %v5335
        %v5340 = vand.u32 2147483647, %v5269
        %vm5341 = vcmp.eq.f32.partialorder %v5340, 8.507059e+37
        %v5342 = vand.u32 %v5269, 2147483648
        %v5343 = vor.u32 1.1754944e-38, %v5342
        %v5344 = vsel %vm5341, %v5343, %v5339
        %v5345 = vmul.f32 1.0, %v5344
        %v5346 = vrcp.pop %v5270
        %v5347 = vmul.f32 %v5270, %v5346
        %v5348 = vsub.f32 1.0, %v5347
        %v5349 = vmul.f32 %v5346, %v5348
        %v5350 = vadd.f32 %v5346, %v5349
        %vm5351 = vweird.f32 %v5270
        %vm5352 = vweird.f32 %v5346
        %vm5353 = vmor %vm5351, %vm5352
        %v5354 = vsel %vm5353, %v5346, %v5350
        %v5355 = vand.u32 2147483647, %v5270
        %vm5356 = vcmp.eq.f32.partialorder %v5355, 8.507059e+37
        %v5357 = vand.u32 %v5270, 2147483648
        %v5358 = vor.u32 1.1754944e-38, %v5357
        %v5359 = vsel %vm5356, %v5358, %v5354
        %v5360 = vmul.f32 1.0, %v5359
        %v5361 = vmul.f32 %v5165, %v5241
        %v5362 = vmul.f32 %v5180, %v5242
        %v5363 = vmul.f32 %v5195, %v5243
        %v5364 = vmul.f32 %v5210, %v5244
        %v5365 = vmul.f32 %v5225, %v5245
        %v5366 = vmul.f32 %v5240, %v5246
        %v5367 = vtanh.pop %v5361
        %v5368 = vtanh.pop %v5362
        %v5369 = vtanh.pop %v5363
        %v5370 = vtanh.pop %v5364
        %v5371 = vtanh.pop %v5365
        %v5372 = vtanh.pop %v5366
        %v5373 = vmul.f32 %v5285, %v5367
        %v5374 = vmul.f32 %v5300, %v5368
        %v5375 = vmul.f32 %v5315, %v5369
        %v5376 = vmul.f32 %v5330, %v5370
        %v5377 = vmul.f32 %v5345, %v5371
        %v5378 = vmul.f32 %v5360, %v5372
        %v5379 = vld [vmem:[%s6] sm:$0xff]
        %v5380 = vld [vmem:[%s6 + $0x8] sm:$0xff]
        %v5381 = vld [vmem:[%s6 + $0x10] sm:$0xff]
        %v5382 = vld [vmem:[%s6 + $0x18] sm:$0xff]
        %v5383 = vld [vmem:[%s6 + $0x20] sm:$0xff]
        %v5384 = vld [vmem:[%s6 + $0x28] sm:$0xff]
        %v5385 = vld [vmem:[%s6 + $0x30] sm:$0xff]
        %v5386 = vld [vmem:[%s6 + $0x38] sm:$0xff]
        %v5387 = vld [vmem:[%s6 + $0x40] sm:$0xff]
        %v5388 = vld [vmem:[%s6 + $0x48] sm:$0xff]
        %v5389 = vld [vmem:[%s6 + $0x50] sm:$0xff]
        %v5390 = vld [vmem:[%s6 + $0x58] sm:$0xff]
        %v5391 = vld [vmem:[%s6 + $0x60] sm:$0xff]
        %v5392 = vld [vmem:[%s6 + $0x68] sm:$0xff]
        %v5393 = vld [vmem:[%s6 + $0x70] sm:$0xff]
        %v5394 = vld [vmem:[%s6 + $0x78] sm:$0xff]
        %v5395 = vld [vmem:[%s6 + $0x80] sm:$0xff]
        %v5396 = vld [vmem:[%s6 + $0x88] sm:$0xff]
        %v5397 = vld [vmem:[%s6 + $0x90] sm:$0xff]
        %v5398 = vld [vmem:[%s6 + $0x98] sm:$0xff]
        %v5399 = vld [vmem:[%s6 + $0xa0] sm:$0xff]
        %v5400 = vld [vmem:[%s6 + $0xa8] sm:$0xff]
        %v5401 = vld [vmem:[%s6 + $0xb0] sm:$0xff]
        %v5402 = vld [vmem:[%s6 + $0xb8] sm:$0xff]
        %v5403 = vld [vmem:[%s6 + $0xc0] sm:$0xff]
        %v5404 = vld [vmem:[%s6 + $0xc8] sm:$0xff]
        %v5405 = vld [vmem:[%s6 + $0xd0] sm:$0xff]
        %v5406 = vld [vmem:[%s6 + $0xd8] sm:$0xff]
        %v5407 = vld [vmem:[%s6 + $0xe0] sm:$0xff]
        %v5408 = vld [vmem:[%s6 + $0xe8] sm:$0xff]
        %v5409 = vld [vmem:[%s6 + $0xf0] sm:$0xff]
        %v5410 = vld [vmem:[%s6 + $0xf8] sm:$0xff]
        %v5411 = vld [vmem:[%s6 + $0x100] sm:$0xff]
        %v5412 = vld [vmem:[%s6 + $0x108] sm:$0xff]
        %v5413 = vld [vmem:[%s6 + $0x110] sm:$0xff]
        %v5414 = vld [vmem:[%s6 + $0x118] sm:$0xff]
        %v5415 = vld [vmem:[%s6 + $0x120] sm:$0xff]
        %v5416 = vld [vmem:[%s6 + $0x128] sm:$0xff]
        %v5417 = vld [vmem:[%s6 + $0x130] sm:$0xff]
        %v5418 = vld [vmem:[%s6 + $0x138] sm:$0xff]
        %v5419 = vld [vmem:[%s6 + $0x140] sm:$0xff]
        %v5420 = vld [vmem:[%s6 + $0x148] sm:$0xff]
        %v5421 = vld [vmem:[%s6 + $0x150] sm:$0xff]
        %v5422 = vld [vmem:[%s6 + $0x158] sm:$0xff]
        %v5423 = vld [vmem:[%s6 + $0x160] sm:$0xff]
        %v5424 = vld [vmem:[%s6 + $0x168] sm:$0xff]
        %v5425 = vld [vmem:[%s6 + $0x170] sm:$0xff]
        %v5426 = vld [vmem:[%s6 + $0x178] sm:$0xff]
        %v5427 = vld [vmem:[%s6 + $0x180] sm:$0xff]
        %v5428 = vld [vmem:[%s6 + $0x188] sm:$0xff]
        %v5429 = vld [vmem:[%s6 + $0x190] sm:$0xff]
        %v5430 = vld [vmem:[%s6 + $0x198] sm:$0xff]
        %v5431 = vld [vmem:[%s6 + $0x1a0] sm:$0xff]
        %v5432 = vld [vmem:[%s6 + $0x1a8] sm:$0xff]
        %v5433 = vld [vmem:[%s6 + $0x1b0] sm:$0xff]
        %v5434 = vld [vmem:[%s6 + $0x1b8] sm:$0xff]
        %v5435 = vld [vmem:[%s6 + $0x1c0] sm:$0xff]
        %v5436 = vld [vmem:[%s6 + $0x1c8] sm:$0xff]
        %v5437 = vld [vmem:[%s6 + $0x1d0] sm:$0xff]
        %v5438 = vld [vmem:[%s6 + $0x1d8] sm:$0xff]
        %v5439 = vld [vmem:[%s6 + $0x1e0] sm:$0xff]
        %v5440 = vld [vmem:[%s6 + $0x1e8] sm:$0xff]
        %v5441 = vld [vmem:[%s6 + $0x1f0] sm:$0xff]
        %v5442 = vld [vmem:[%s6 + $0x1f8] sm:$0xff]
        %v5443 = vld [vmem:[%s6 + $0x200] sm:$0xff]
        %v5444 = vld [vmem:[%s6 + $0x208] sm:$0xff]
        %v5445 = vld [vmem:[%s6 + $0x210] sm:$0xff]
        %v5446 = vld [vmem:[%s6 + $0x218] sm:$0xff]
        %v5447 = vld [vmem:[%s6 + $0x220] sm:$0xff]
        %v5448 = vld [vmem:[%s6 + $0x228] sm:$0xff]
        %v5449 = vld [vmem:[%s6 + $0x230] sm:$0xff]
        %v5450 = vld [vmem:[%s6 + $0x238] sm:$0xff]
        %v5451 = vld [vmem:[%s6 + $0x240] sm:$0xff]
        %v5452 = vld [vmem:[%s6 + $0x248] sm:$0xff]
        %v5453 = vld [vmem:[%s6 + $0x250] sm:$0xff]
        %v5454 = vld [vmem:[%s6 + $0x258] sm:$0xff]
        %v5455 = vld [vmem:[%s6 + $0x260] sm:$0xff]
        %v5456 = vld [vmem:[%s6 + $0x268] sm:$0xff]
        %v5457 = vld [vmem:[%s6 + $0x270] sm:$0xff]
        %v5458 = vld [vmem:[%s6 + $0x278] sm:$0xff]
        %v5459 = vld [vmem:[%s6 + $0x280] sm:$0xff]
        %v5460 = vld [vmem:[%s6 + $0x288] sm:$0xff]
        %v5461 = vld [vmem:[%s6 + $0x290] sm:$0xff]
        %v5462 = vld [vmem:[%s6 + $0x298] sm:$0xff]
        %v5463 = vld [vmem:[%s6 + $0x2a0] sm:$0xff]
        %v5464 = vld [vmem:[%s6 + $0x2a8] sm:$0xff]
        %v5465 = vld [vmem:[%s6 + $0x2b0] sm:$0xff]
        %v5466 = vld [vmem:[%s6 + $0x2b8] sm:$0xff]
        %v5467 = vld [vmem:[%s6 + $0x2c0] sm:$0xff]
        %v5468 = vld [vmem:[%s6 + $0x2c8] sm:$0xff]
        %v5469 = vld [vmem:[%s6 + $0x2d0] sm:$0xff]
        %v5470 = vld [vmem:[%s6 + $0x2d8] sm:$0xff]
        %v5471 = vld [vmem:[%s6 + $0x2e0] sm:$0xff]
        %v5472 = vld [vmem:[%s6 + $0x2e8] sm:$0xff]
        %v5473 = vld [vmem:[%s6 + $0x2f0] sm:$0xff]
        %v5474 = vld [vmem:[%s6 + $0x2f8] sm:$0xff]
        %v5475 = vld [vmem:[%s8] sm:$0x3]
        %v5477 = vperm.slane %v5475, 0
        %v5478 = vperm.slane %v5475, 1
        %5481 = vmatpush.msra.mxu0 %v5409
        %5482 = vmatpush.msra.mxu0 %v5407
        %5483 = vmatpush.msra.mxu0 %v5405
        %5484 = vmatpush.msra.mxu0 %v5403
        %5485 = vmatpush.msra.mxu0 %v5401
        %5486 = vmatpush.msra.mxu0 %v5399
        %5487 = vmatpush.msra.mxu0 %v5397
        %5488 = vmatpush.msra.mxu0 %v5395
        %5489 = vmatpush.msra.mxu0 %v5393
        %5490 = vmatpush.msra.mxu0 %v5391
        %5491 = vmatpush.msra.mxu0 %v5389
        %5492 = vmatpush.msra.mxu0 %v5387
        %5493 = vmatpush.msra.mxu0 %v5385
        %5494 = vmatpush.msra.mxu0 %v5383
        %5495 = vmatpush.msra.mxu0 %v5381
        %5496 = vmatpush.msra.mxu0 %v5379
        %5497 = vmatmul.f32.gmra.mxu0 %v5373
        %v5498 = vpop.f32.mrf.mxu0
        %v5499 = vadd.f32 %v5477, %v5498
        %5500 = vmatmul.f32.gmra.mxu0 %v5376
        %v5501 = vpop.f32.mrf.mxu0
        %v5502 = vadd.f32 %v5477, %v5501
        %5503 = vdwg.mxu0
        %5504 = vmatpush.msra.mxu0 %v5441
        %5505 = vmatpush.msra.mxu0 %v5439
        %5506 = vmatpush.msra.mxu0 %v5437
        %5507 = vmatpush.msra.mxu0 %v5435
        %5508 = vmatpush.msra.mxu0 %v5433
        %5509 = vmatpush.msra.mxu0 %v5431
        %5510 = vmatpush.msra.mxu0 %v5429
        %5511 = vmatpush.msra.mxu0 %v5427
        %5512 = vmatpush.msra.mxu0 %v5425
        %5513 = vmatpush.msra.mxu0 %v5423
        %5514 = vmatpush.msra.mxu0 %v5421
        %5515 = vmatpush.msra.mxu0 %v5419
        %5516 = vmatpush.msra.mxu0 %v5417
        %5517 = vmatpush.msra.mxu0 %v5415
        %5518 = vmatpush.msra.mxu0 %v5413
        %5519 = vmatpush.msra.mxu0 %v5411
        %5520 = vmatmul.f32.gmra.mxu0 %v5374
        %v5521 = vpop.f32.mrf.mxu0
        %v5522 = vadd.f32 %v5499, %v5521
        %5523 = vmatmul.f32.gmra.mxu0 %v5377
        %v5524 = vpop.f32.mrf.mxu0
        %v5525 = vadd.f32 %v5502, %v5524
        %5526 = vdwg.mxu0
        %5527 = vmatpush.msra.mxu0 %v5473
        %5528 = vmatpush.msra.mxu0 %v5471
        %5529 = vmatpush.msra.mxu0 %v5469
        %5530 = vmatpush.msra.mxu0 %v5467
        %5531 = vmatpush.msra.mxu0 %v5465
        %5532 = vmatpush.msra.mxu0 %v5463
        %5533 = vmatpush.msra.mxu0 %v5461
        %5534 = vmatpush.msra.mxu0 %v5459
        %5535 = vmatpush.msra.mxu0 %v5457
        %5536 = vmatpush.msra.mxu0 %v5455
        %5537 = vmatpush.msra.mxu0 %v5453
        %5538 = vmatpush.msra.mxu0 %v5451
        %5539 = vmatpush.msra.mxu0 %v5449
        %5540 = vmatpush.msra.mxu0 %v5447
        %5541 = vmatpush.msra.mxu0 %v5445
        %5542 = vmatpush.msra.mxu0 %v5443
        %5543 = vmatmul.f32.gmra.mxu0 %v5375
        %v5544 = vpop.f32.mrf.mxu0
        %v5545 = vadd.f32 %v5522, %v5544
        %5546 = vmatmul.f32.gmra.mxu0 %v5378
        %v5547 = vpop.f32.mrf.mxu0
        %v5548 = vadd.f32 %v5525, %v5547
        %5549 = vdwg.mxu0
        %5550 = vmatpush.msra.mxu0 %v5410
        %5551 = vmatpush.msra.mxu0 %v5408
        %5552 = vmatpush.msra.mxu0 %v5406
        %5553 = vmatpush.msra.mxu0 %v5404
        %5554 = vmatpush.msra.mxu0 %v5402
        %5555 = vmatpush.msra.mxu0 %v5400
        %5556 = vmatpush.msra.mxu0 %v5398
        %5557 = vmatpush.msra.mxu0 %v5396
        %5558 = vmatpush.msra.mxu0 %v5394
        %5559 = vmatpush.msra.mxu0 %v5392
        %5560 = vmatpush.msra.mxu0 %v5390
        %5561 = vmatpush.msra.mxu0 %v5388
        %5562 = vmatpush.msra.mxu0 %v5386
        %5563 = vmatpush.msra.mxu0 %v5384
        %5564 = vmatpush.msra.mxu0 %v5382
        %5565 = vmatpush.msra.mxu0 %v5380
        %5566 = vmatmul.f32.gmra.mxu0 %v5373
        %v5567 = vpop.f32.mrf.mxu0
        %v5568 = vadd.f32 %v5478, %v5567
        %5569 = vmatmul.f32.gmra.mxu0 %v5376
        %v5570 = vpop.f32.mrf.mxu0
        %v5571 = vadd.f32 %v5478, %v5570
        %5572 = vdwg.mxu0
        %5573 = vmatpush.msra.mxu0 %v5442
        %5574 = vmatpush.msra.mxu0 %v5440
        %5575 = vmatpush.msra.mxu0 %v5438
        %5576 = vmatpush.msra.mxu0 %v5436
        %5577 = vmatpush.msra.mxu0 %v5434
        %5578 = vmatpush.msra.mxu0 %v5432
        %5579 = vmatpush.msra.mxu0 %v5430
        %5580 = vmatpush.msra.mxu0 %v5428
        %5581 = vmatpush.msra.mxu0 %v5426
        %5582 = vmatpush.msra.mxu0 %v5424
        %5583 = vmatpush.msra.mxu0 %v5422
        %5584 = vmatpush.msra.mxu0 %v5420
        %5585 = vmatpush.msra.mxu0 %v5418
        %5586 = vmatpush.msra.mxu0 %v5416
        %5587 = vmatpush.msra.mxu0 %v5414
        %5588 = vmatpush.msra.mxu0 %v5412
        %5589 = vmatmul.f32.gmra.mxu0 %v5374
        %v5590 = vpop.f32.mrf.mxu0
        %v5591 = vadd.f32 %v5568, %v5590
        %5592 = vmatmul.f32.gmra.mxu0 %v5377
        %v5593 = vpop.f32.mrf.mxu0
        %v5594 = vadd.f32 %v5571, %v5593
        %5595 = vdwg.mxu0
        %5596 = vmatpush.msra.mxu0 %v5474
        %5597 = vmatpush.msra.mxu0 %v5472
        %5598 = vmatpush.msra.mxu0 %v5470
        %5599 = vmatpush.msra.mxu0 %v5468
        %5600 = vmatpush.msra.mxu0 %v5466
        %5601 = vmatpush.msra.mxu0 %v5464
        %5602 = vmatpush.msra.mxu0 %v5462
        %5603 = vmatpush.msra.mxu0 %v5460
        %5604 = vmatpush.msra.mxu0 %v5458
        %5605 = vmatpush.msra.mxu0 %v5456
        %5606 = vmatpush.msra.mxu0 %v5454
        %5607 = vmatpush.msra.mxu0 %v5452
        %5608 = vmatpush.msra.mxu0 %v5450
        %5609 = vmatpush.msra.mxu0 %v5448
        %5610 = vmatpush.msra.mxu0 %v5446
        %5611 = vmatpush.msra.mxu0 %v5444
        %5612 = vmatmul.f32.gmra.mxu0 %v5375
        %v5613 = vpop.f32.mrf.mxu0
        %v5614 = vadd.f32 %v5591, %v5613
        %5615 = vmatmul.f32.gmra.mxu0 %v5378
        %v5616 = vpop.f32.mrf.mxu0
        %v5617 = vadd.f32 %v5594, %v5616
        %5618 = vdwg.mxu0
        %v5619 = vld [vmem:[%s7] sm:$0xff]
        %v5620 = vld [vmem:[%s7 + $0x8] sm:$0xff]
        %v5621 = vld [vmem:[%s7 + $0x10] sm:$0xff]
        %v5622 = vld [vmem:[%s7 + $0x18] sm:$0xff]
        %v5623 = vld [vmem:[%s7 + $0x20] sm:$0xff]
        %v5624 = vld [vmem:[%s7 + $0x28] sm:$0xff]
        %v5625 = vld [vmem:[%s7 + $0x30] sm:$0xff]
        %v5626 = vld [vmem:[%s7 + $0x38] sm:$0xff]
        %v5627 = vld [vmem:[%s7 + $0x40] sm:$0xff]
        %v5628 = vld [vmem:[%s7 + $0x48] sm:$0xff]
        %v5629 = vld [vmem:[%s7 + $0x50] sm:$0xff]
        %v5630 = vld [vmem:[%s7 + $0x58] sm:$0xff]
        %v5631 = vld [vmem:[%s7 + $0x60] sm:$0xff]
        %v5632 = vld [vmem:[%s7 + $0x68] sm:$0xff]
        %v5633 = vld [vmem:[%s7 + $0x70] sm:$0xff]
        %v5634 = vld [vmem:[%s7 + $0x78] sm:$0xff]
        %v5635 = vld [vmem:[%s7 + $0x80] sm:$0xff]
        %v5636 = vld [vmem:[%s7 + $0x88] sm:$0xff]
        %v5637 = vld [vmem:[%s7 + $0x90] sm:$0xff]
        %v5638 = vld [vmem:[%s7 + $0x98] sm:$0xff]
        %v5639 = vld [vmem:[%s7 + $0xa0] sm:$0xff]
        %v5640 = vld [vmem:[%s7 + $0xa8] sm:$0xff]
        %v5641 = vld [vmem:[%s7 + $0xb0] sm:$0xff]
        %v5642 = vld [vmem:[%s7 + $0xb8] sm:$0xff]
        %v5643 = vld [vmem:[%s7 + $0xc0] sm:$0xff]
        %v5644 = vld [vmem:[%s7 + $0xc8] sm:$0xff]
        %v5645 = vld [vmem:[%s7 + $0xd0] sm:$0xff]
        %v5646 = vld [vmem:[%s7 + $0xd8] sm:$0xff]
        %v5647 = vld [vmem:[%s7 + $0xe0] sm:$0xff]
        %v5648 = vld [vmem:[%s7 + $0xe8] sm:$0xff]
        %v5649 = vld [vmem:[%s7 + $0xf0] sm:$0xff]
        %v5650 = vld [vmem:[%s7 + $0xf8] sm:$0xff]
        %v5651 = vld [vmem:[%s7 + $0x100] sm:$0xff]
        %v5652 = vld [vmem:[%s7 + $0x108] sm:$0xff]
        %v5653 = vld [vmem:[%s7 + $0x110] sm:$0xff]
        %v5654 = vld [vmem:[%s7 + $0x118] sm:$0xff]
        %v5655 = vld [vmem:[%s7 + $0x120] sm:$0xff]
        %v5656 = vld [vmem:[%s7 + $0x128] sm:$0xff]
        %v5657 = vld [vmem:[%s7 + $0x130] sm:$0xff]
        %v5658 = vld [vmem:[%s7 + $0x138] sm:$0xff]
        %v5659 = vld [vmem:[%s7 + $0x140] sm:$0xff]
        %v5660 = vld [vmem:[%s7 + $0x148] sm:$0xff]
        %v5661 = vld [vmem:[%s7 + $0x150] sm:$0xff]
        %v5662 = vld [vmem:[%s7 + $0x158] sm:$0xff]
        %v5663 = vld [vmem:[%s7 + $0x160] sm:$0xff]
        %v5664 = vld [vmem:[%s7 + $0x168] sm:$0xff]
        %v5665 = vld [vmem:[%s7 + $0x170] sm:$0xff]
        %v5666 = vld [vmem:[%s7 + $0x178] sm:$0xff]
        %v5667 = vld [vmem:[%s7 + $0x180] sm:$0xff]
        %v5668 = vld [vmem:[%s7 + $0x188] sm:$0xff]
        %v5669 = vld [vmem:[%s7 + $0x190] sm:$0xff]
        %v5670 = vld [vmem:[%s7 + $0x198] sm:$0xff]
        %v5671 = vld [vmem:[%s7 + $0x1a0] sm:$0xff]
        %v5672 = vld [vmem:[%s7 + $0x1a8] sm:$0xff]
        %v5673 = vld [vmem:[%s7 + $0x1b0] sm:$0xff]
        %v5674 = vld [vmem:[%s7 + $0x1b8] sm:$0xff]
        %v5675 = vld [vmem:[%s7 + $0x1c0] sm:$0xff]
        %v5676 = vld [vmem:[%s7 + $0x1c8] sm:$0xff]
        %v5677 = vld [vmem:[%s7 + $0x1d0] sm:$0xff]
        %v5678 = vld [vmem:[%s7 + $0x1d8] sm:$0xff]
        %v5679 = vld [vmem:[%s7 + $0x1e0] sm:$0xff]
        %v5680 = vld [vmem:[%s7 + $0x1e8] sm:$0xff]
        %v5681 = vld [vmem:[%s7 + $0x1f0] sm:$0xff]
        %v5682 = vld [vmem:[%s7 + $0x1f8] sm:$0xff]
        %v5683 = vld [vmem:[%s7 + $0x200] sm:$0xff]
        %v5684 = vld [vmem:[%s7 + $0x208] sm:$0xff]
        %v5685 = vld [vmem:[%s7 + $0x210] sm:$0xff]
        %v5686 = vld [vmem:[%s7 + $0x218] sm:$0xff]
        %v5687 = vld [vmem:[%s7 + $0x220] sm:$0xff]
        %v5688 = vld [vmem:[%s7 + $0x228] sm:$0xff]
        %v5689 = vld [vmem:[%s7 + $0x230] sm:$0xff]
        %v5690 = vld [vmem:[%s7 + $0x238] sm:$0xff]
        %v5691 = vld [vmem:[%s7 + $0x240] sm:$0xff]
        %v5692 = vld [vmem:[%s7 + $0x248] sm:$0xff]
        %v5693 = vld [vmem:[%s7 + $0x250] sm:$0xff]
        %v5694 = vld [vmem:[%s7 + $0x258] sm:$0xff]
        %v5695 = vld [vmem:[%s7 + $0x260] sm:$0xff]
        %v5696 = vld [vmem:[%s7 + $0x268] sm:$0xff]
        %v5697 = vld [vmem:[%s7 + $0x270] sm:$0xff]
        %v5698 = vld [vmem:[%s7 + $0x278] sm:$0xff]
        %v5699 = vld [vmem:[%s7 + $0x280] sm:$0xff]
        %v5700 = vld [vmem:[%s7 + $0x288] sm:$0xff]
        %v5701 = vld [vmem:[%s7 + $0x290] sm:$0xff]
        %v5702 = vld [vmem:[%s7 + $0x298] sm:$0xff]
        %v5703 = vld [vmem:[%s7 + $0x2a0] sm:$0xff]
        %v5704 = vld [vmem:[%s7 + $0x2a8] sm:$0xff]
        %v5705 = vld [vmem:[%s7 + $0x2b0] sm:$0xff]
        %v5706 = vld [vmem:[%s7 + $0x2b8] sm:$0xff]
        %v5707 = vld [vmem:[%s7 + $0x2c0] sm:$0xff]
        %v5708 = vld [vmem:[%s7 + $0x2c8] sm:$0xff]
        %v5709 = vld [vmem:[%s7 + $0x2d0] sm:$0xff]
        %v5710 = vld [vmem:[%s7 + $0x2d8] sm:$0xff]
        %v5711 = vld [vmem:[%s7 + $0x2e0] sm:$0xff]
        %v5712 = vld [vmem:[%s7 + $0x2e8] sm:$0xff]
        %v5713 = vld [vmem:[%s7 + $0x2f0] sm:$0xff]
        %v5714 = vld [vmem:[%s7 + $0x2f8] sm:$0xff]
        %5715 = vmatpush.msra.mxu0 %v5649
        %5716 = vmatpush.msra.mxu0 %v5647
        %5717 = vmatpush.msra.mxu0 %v5645
        %5718 = vmatpush.msra.mxu0 %v5643
        %5719 = vmatpush.msra.mxu0 %v5641
        %5720 = vmatpush.msra.mxu0 %v5639
        %5721 = vmatpush.msra.mxu0 %v5637
        %5722 = vmatpush.msra.mxu0 %v5635
        %5723 = vmatpush.msra.mxu0 %v5633
        %5724 = vmatpush.msra.mxu0 %v5631
        %5725 = vmatpush.msra.mxu0 %v5629
        %5726 = vmatpush.msra.mxu0 %v5627
        %5727 = vmatpush.msra.mxu0 %v5625
        %5728 = vmatpush.msra.mxu0 %v5623
        %5729 = vmatpush.msra.mxu0 %v5621
        %5730 = vmatpush.msra.mxu0 %v5619
        %5731 = vmatmul.f32.gmra.mxu0 %v4802
        %v5732 = vpop.f32.mrf.mxu0
        %v5733 = vadd.f32 0.0, %v5732
        %5734 = vmatmul.f32.gmra.mxu0 %v4805
        %v5735 = vpop.f32.mrf.mxu0
        %v5736 = vadd.f32 0.0, %v5735
        %5737 = vmatmul.f32.gmra.mxu0 %v4808
        %v5738 = vpop.f32.mrf.mxu0
        %v5739 = vadd.f32 0.0, %v5738
        %5740 = vmatmul.f32.gmra.mxu0 %v4811
        %v5741 = vpop.f32.mrf.mxu0
        %v5742 = vadd.f32 0.0, %v5741
        %5743 = vmatmul.f32.gmra.mxu0 %v4814
        %v5744 = vpop.f32.mrf.mxu0
        %v5745 = vadd.f32 0.0, %v5744
        %5746 = vmatmul.f32.gmra.mxu0 %v4817
        %v5747 = vpop.f32.mrf.mxu0
        %v5748 = vadd.f32 0.0, %v5747
        %5749 = vmatmul.f32.gmra.mxu0 %v4820
        %v5750 = vpop.f32.mrf.mxu0
        %v5751 = vadd.f32 0.0, %v5750
        %5752 = vmatmul.f32.gmra.mxu0 %v4823
        %v5753 = vpop.f32.mrf.mxu0
        %v5754 = vadd.f32 0.0, %v5753
        %5755 = vmatmul.f32.gmra.mxu0 %v4826
        %v5756 = vpop.f32.mrf.mxu0
        %v5757 = vadd.f32 0.0, %v5756
        %5758 = vmatmul.f32.gmra.mxu0 %v4829
        %v5759 = vpop.f32.mrf.mxu0
        %v5760 = vadd.f32 0.0, %v5759
        %5761 = vmatmul.f32.gmra.mxu0 %v4832
        %v5762 = vpop.f32.mrf.mxu0
        %v5763 = vadd.f32 0.0, %v5762
        %5764 = vmatmul.f32.gmra.mxu0 %v4835
        %v5765 = vpop.f32.mrf.mxu0
        %v5766 = vadd.f32 0.0, %v5765
        %5767 = vmatmul.f32.gmra.mxu0 %v4838
        %v5768 = vpop.f32.mrf.mxu0
        %v5769 = vadd.f32 0.0, %v5768
        %5770 = vmatmul.f32.gmra.mxu0 %v4841
        %v5771 = vpop.f32.mrf.mxu0
        %v5772 = vadd.f32 0.0, %v5771
        %5773 = vmatmul.f32.gmra.mxu0 %v4844
        %v5774 = vpop.f32.mrf.mxu0
        %v5775 = vadd.f32 0.0, %v5774
        %5776 = vmatmul.f32.gmra.mxu0 %v4847
        %v5777 = vpop.f32.mrf.mxu0
        %v5778 = vadd.f32 0.0, %v5777
        %5779 = vmatmul.f32.gmra.mxu0 %v4850
        %v5780 = vpop.f32.mrf.mxu0
        %v5781 = vadd.f32 0.0, %v5780
        %5782 = vmatmul.f32.gmra.mxu0 %v4853
        %v5783 = vpop.f32.mrf.mxu0
        %v5784 = vadd.f32 0.0, %v5783
        %5785 = vmatmul.f32.gmra.mxu0 %v4856
        %v5786 = vpop.f32.mrf.mxu0
        %v5787 = vadd.f32 0.0, %v5786
        %5788 = vmatmul.f32.gmra.mxu0 %v4859
        %v5789 = vpop.f32.mrf.mxu0
        %v5790 = vadd.f32 0.0, %v5789
        %5791 = vmatmul.f32.gmra.mxu0 %v4862
        %v5792 = vpop.f32.mrf.mxu0
        %v5793 = vadd.f32 0.0, %v5792
        %5794 = vmatmul.f32.gmra.mxu0 %v4865
        %v5795 = vpop.f32.mrf.mxu0
        %v5796 = vadd.f32 0.0, %v5795
        %5797 = vmatmul.f32.gmra.mxu0 %v4868
        %v5798 = vpop.f32.mrf.mxu0
        %v5799 = vadd.f32 0.0, %v5798
        %5800 = vmatmul.f32.gmra.mxu0 %v4871
        %v5801 = vpop.f32.mrf.mxu0
        %v5802 = vadd.f32 0.0, %v5801
        %5803 = vdwg.mxu0
        %5804 = vmatpush.msra.mxu0 %v5681
        %5805 = vmatpush.msra.mxu0 %v5679
        %5806 = vmatpush.msra.mxu0 %v5677
        %5807 = vmatpush.msra.mxu0 %v5675
        %5808 = vmatpush.msra.mxu0 %v5673
        %5809 = vmatpush.msra.mxu0 %v5671
        %5810 = vmatpush.msra.mxu0 %v5669
        %5811 = vmatpush.msra.mxu0 %v5667
        %5812 = vmatpush.msra.mxu0 %v5665
        %5813 = vmatpush.msra.mxu0 %v5663
        %5814 = vmatpush.msra.mxu0 %v5661
        %5815 = vmatpush.msra.mxu0 %v5659
        %5816 = vmatpush.msra.mxu0 %v5657
        %5817 = vmatpush.msra.mxu0 %v5655
        %5818 = vmatpush.msra.mxu0 %v5653
        %5819 = vmatpush.msra.mxu0 %v5651
        %5820 = vmatmul.f32.gmra.mxu0 %v4803
        %v5821 = vpop.f32.mrf.mxu0
        %v5822 = vadd.f32 %v5733, %v5821
        %5823 = vmatmul.f32.gmra.mxu0 %v4806
        %v5824 = vpop.f32.mrf.mxu0
        %v5825 = vadd.f32 %v5736, %v5824
        %5826 = vmatmul.f32.gmra.mxu0 %v4809
        %v5827 = vpop.f32.mrf.mxu0
        %v5828 = vadd.f32 %v5739, %v5827
        %5829 = vmatmul.f32.gmra.mxu0 %v4812
        %v5830 = vpop.f32.mrf.mxu0
        %v5831 = vadd.f32 %v5742, %v5830
        %5832 = vmatmul.f32.gmra.mxu0 %v4815
        %v5833 = vpop.f32.mrf.mxu0
        %v5834 = vadd.f32 %v5745, %v5833
        %5835 = vmatmul.f32.gmra.mxu0 %v4818
        %v5836 = vpop.f32.mrf.mxu0
        %v5837 = vadd.f32 %v5748, %v5836
        %5838 = vmatmul.f32.gmra.mxu0 %v4821
        %v5839 = vpop.f32.mrf.mxu0
        %v5840 = vadd.f32 %v5751, %v5839
        %5841 = vmatmul.f32.gmra.mxu0 %v4824
        %v5842 = vpop.f32.mrf.mxu0
        %v5843 = vadd.f32 %v5754, %v5842
        %5844 = vmatmul.f32.gmra.mxu0 %v4827
        %v5845 = vpop.f32.mrf.mxu0
        %v5846 = vadd.f32 %v5757, %v5845
        %5847 = vmatmul.f32.gmra.mxu0 %v4830
        %v5848 = vpop.f32.mrf.mxu0
        %v5849 = vadd.f32 %v5760, %v5848
        %5850 = vmatmul.f32.gmra.mxu0 %v4833
        %v5851 = vpop.f32.mrf.mxu0
        %v5852 = vadd.f32 %v5763, %v5851
        %5853 = vmatmul.f32.gmra.mxu0 %v4836
        %v5854 = vpop.f32.mrf.mxu0
        %v5855 = vadd.f32 %v5766, %v5854
        %5856 = vmatmul.f32.gmra.mxu0 %v4839
        %v5857 = vpop.f32.mrf.mxu0
        %v5858 = vadd.f32 %v5769, %v5857
        %5859 = vmatmul.f32.gmra.mxu0 %v4842
        %v5860 = vpop.f32.mrf.mxu0
        %v5861 = vadd.f32 %v5772, %v5860
        %5862 = vmatmul.f32.gmra.mxu0 %v4845
        %v5863 = vpop.f32.mrf.mxu0
        %v5864 = vadd.f32 %v5775, %v5863
        %5865 = vmatmul.f32.gmra.mxu0 %v4848
        %v5866 = vpop.f32.mrf.mxu0
        %v5867 = vadd.f32 %v5778, %v5866
        %5868 = vmatmul.f32.gmra.mxu0 %v4851
        %v5869 = vpop.f32.mrf.mxu0
        %v5870 = vadd.f32 %v5781, %v5869
        %5871 = vmatmul.f32.gmra.mxu0 %v4854
        %v5872 = vpop.f32.mrf.mxu0
        %v5873 = vadd.f32 %v5784, %v5872
        %5874 = vmatmul.f32.gmra.mxu0 %v4857
        %v5875 = vpop.f32.mrf.mxu0
        %v5876 = vadd.f32 %v5787, %v5875
        %5877 = vmatmul.f32.gmra.mxu0 %v4860
        %v5878 = vpop.f32.mrf.mxu0
        %v5879 = vadd.f32 %v5790, %v5878
        %5880 = vmatmul.f32.gmra.mxu0 %v4863
        %v5881 = vpop.f32.mrf.mxu0
        %v5882 = vadd.f32 %v5793, %v5881
        %5883 = vmatmul.f32.gmra.mxu0 %v4866
        %v5884 = vpop.f32.mrf.mxu0
        %v5885 = vadd.f32 %v5796, %v5884
        %5886 = vmatmul.f32.gmra.mxu0 %v4869
        %v5887 = vpop.f32.mrf.mxu0
        %v5888 = vadd.f32 %v5799, %v5887
        %5889 = vmatmul.f32.gmra.mxu0 %v4872
        %v5890 = vpop.f32.mrf.mxu0
        %v5891 = vadd.f32 %v5802, %v5890
        %5892 = vdwg.mxu0
        %5893 = vmatpush.msra.mxu0 %v5713
        %5894 = vmatpush.msra.mxu0 %v5711
        %5895 = vmatpush.msra.mxu0 %v5709
        %5896 = vmatpush.msra.mxu0 %v5707
        %5897 = vmatpush.msra.mxu0 %v5705
        %5898 = vmatpush.msra.mxu0 %v5703
        %5899 = vmatpush.msra.mxu0 %v5701
        %5900 = vmatpush.msra.mxu0 %v5699
        %5901 = vmatpush.msra.mxu0 %v5697
        %5902 = vmatpush.msra.mxu0 %v5695
        %5903 = vmatpush.msra.mxu0 %v5693
        %5904 = vmatpush.msra.mxu0 %v5691
        %5905 = vmatpush.msra.mxu0 %v5689
        %5906 = vmatpush.msra.mxu0 %v5687
        %5907 = vmatpush.msra.mxu0 %v5685
        %5908 = vmatpush.msra.mxu0 %v5683
        %5909 = vmatmul.f32.gmra.mxu0 %v4804
        %v5910 = vpop.f32.mrf.mxu0
        %v5911 = vadd.f32 %v5822, %v5910
        %5912 = vmatmul.f32.gmra.mxu0 %v4807
        %v5913 = vpop.f32.mrf.mxu0
        %v5914 = vadd.f32 %v5825, %v5913
        %5915 = vmatmul.f32.gmra.mxu0 %v4810
        %v5916 = vpop.f32.mrf.mxu0
        %v5917 = vadd.f32 %v5828, %v5916
        %5918 = vmatmul.f32.gmra.mxu0 %v4813
        %v5919 = vpop.f32.mrf.mxu0
        %v5920 = vadd.f32 %v5831, %v5919
        %5921 = vmatmul.f32.gmra.mxu0 %v4816
        %v5922 = vpop.f32.mrf.mxu0
        %v5923 = vadd.f32 %v5834, %v5922
        %5924 = vmatmul.f32.gmra.mxu0 %v4819
        %v5925 = vpop.f32.mrf.mxu0
        %v5926 = vadd.f32 %v5837, %v5925
        %5927 = vmatmul.f32.gmra.mxu0 %v4822
        %v5928 = vpop.f32.mrf.mxu0
        %v5929 = vadd.f32 %v5840, %v5928
        %5930 = vmatmul.f32.gmra.mxu0 %v4825
        %v5931 = vpop.f32.mrf.mxu0
        %v5932 = vadd.f32 %v5843, %v5931
        %5933 = vmatmul.f32.gmra.mxu0 %v4828
        %v5934 = vpop.f32.mrf.mxu0
        %v5935 = vadd.f32 %v5846, %v5934
        %5936 = vmatmul.f32.gmra.mxu0 %v4831
        %v5937 = vpop.f32.mrf.mxu0
        %v5938 = vadd.f32 %v5849, %v5937
        %5939 = vmatmul.f32.gmra.mxu0 %v4834
        %v5940 = vpop.f32.mrf.mxu0
        %v5941 = vadd.f32 %v5852, %v5940
        %5942 = vmatmul.f32.gmra.mxu0 %v4837
        %v5943 = vpop.f32.mrf.mxu0
        %v5944 = vadd.f32 %v5855, %v5943
        %5945 = vmatmul.f32.gmra.mxu0 %v4840
        %v5946 = vpop.f32.mrf.mxu0
        %v5947 = vadd.f32 %v5858, %v5946
        %5948 = vmatmul.f32.gmra.mxu0 %v4843
        %v5949 = vpop.f32.mrf.mxu0
        %v5950 = vadd.f32 %v5861, %v5949
        %5951 = vmatmul.f32.gmra.mxu0 %v4846
        %v5952 = vpop.f32.mrf.mxu0
        %v5953 = vadd.f32 %v5864, %v5952
        %5954 = vmatmul.f32.gmra.mxu0 %v4849
        %v5955 = vpop.f32.mrf.mxu0
        %v5956 = vadd.f32 %v5867, %v5955
        %5957 = vmatmul.f32.gmra.mxu0 %v4852
        %v5958 = vpop.f32.mrf.mxu0
        %v5959 = vadd.f32 %v5870, %v5958
        %5960 = vmatmul.f32.gmra.mxu0 %v4855
        %v5961 = vpop.f32.mrf.mxu0
        %v5962 = vadd.f32 %v5873, %v5961
        %5963 = vmatmul.f32.gmra.mxu0 %v4858
        %v5964 = vpop.f32.mrf.mxu0
        %v5965 = vadd.f32 %v5876, %v5964
        %5966 = vmatmul.f32.gmra.mxu0 %v4861
        %v5967 = vpop.f32.mrf.mxu0
        %v5968 = vadd.f32 %v5879, %v5967
        %5969 = vmatmul.f32.gmra.mxu0 %v4864
        %v5970 = vpop.f32.mrf.mxu0
        %v5971 = vadd.f32 %v5882, %v5970
        %5972 = vmatmul.f32.gmra.mxu0 %v4867
        %v5973 = vpop.f32.mrf.mxu0
        %v5974 = vadd.f32 %v5885, %v5973
        %5975 = vmatmul.f32.gmra.mxu0 %v4870
        %v5976 = vpop.f32.mrf.mxu0
        %v5977 = vadd.f32 %v5888, %v5976
        %5978 = vmatmul.f32.gmra.mxu0 %v4873
        %v5979 = vpop.f32.mrf.mxu0
        %v5980 = vadd.f32 %v5891, %v5979
        %5981 = vdwg.mxu0
        %5982 = vmatpush.msra.mxu0 %v5650
        %5983 = vmatpush.msra.mxu0 %v5648
        %5984 = vmatpush.msra.mxu0 %v5646
        %5985 = vmatpush.msra.mxu0 %v5644
        %5986 = vmatpush.msra.mxu0 %v5642
        %5987 = vmatpush.msra.mxu0 %v5640
        %5988 = vmatpush.msra.mxu0 %v5638
        %5989 = vmatpush.msra.mxu0 %v5636
        %5990 = vmatpush.msra.mxu0 %v5634
        %5991 = vmatpush.msra.mxu0 %v5632
        %5992 = vmatpush.msra.mxu0 %v5630
        %5993 = vmatpush.msra.mxu0 %v5628
        %5994 = vmatpush.msra.mxu0 %v5626
        %5995 = vmatpush.msra.mxu0 %v5624
        %5996 = vmatpush.msra.mxu0 %v5622
        %5997 = vmatpush.msra.mxu0 %v5620
        %5998 = vmatmul.f32.gmra.mxu0 %v4802
        %v5999 = vpop.f32.mrf.mxu0
        %v6000 = vadd.f32 0.0, %v5999
        %6001 = vmatmul.f32.gmra.mxu0 %v4805
        %v6002 = vpop.f32.mrf.mxu0
        %v6003 = vadd.f32 0.0, %v6002
        %6004 = vmatmul.f32.gmra.mxu0 %v4808
        %v6005 = vpop.f32.mrf.mxu0
        %v6006 = vadd.f32 0.0, %v6005
        %6007 = vmatmul.f32.gmra.mxu0 %v4811
        %v6008 = vpop.f32.mrf.mxu0
        %v6009 = vadd.f32 0.0, %v6008
        %6010 = vmatmul.f32.gmra.mxu0 %v4814
        %v6011 = vpop.f32.mrf.mxu0
        %v6012 = vadd.f32 0.0, %v6011
        %6013 = vmatmul.f32.gmra.mxu0 %v4817
        %v6014 = vpop.f32.mrf.mxu0
        %v6015 = vadd.f32 0.0, %v6014
        %6016 = vmatmul.f32.gmra.mxu0 %v4820
        %v6017 = vpop.f32.mrf.mxu0
        %v6018 = vadd.f32 0.0, %v6017
        %6019 = vmatmul.f32.gmra.mxu0 %v4823
        %v6020 = vpop.f32.mrf.mxu0
        %v6021 = vadd.f32 0.0, %v6020
        %6022 = vmatmul.f32.gmra.mxu0 %v4826
        %v6023 = vpop.f32.mrf.mxu0
        %v6024 = vadd.f32 0.0, %v6023
        %6025 = vmatmul.f32.gmra.mxu0 %v4829
        %v6026 = vpop.f32.mrf.mxu0
        %v6027 = vadd.f32 0.0, %v6026
        %6028 = vmatmul.f32.gmra.mxu0 %v4832
        %v6029 = vpop.f32.mrf.mxu0
        %v6030 = vadd.f32 0.0, %v6029
        %6031 = vmatmul.f32.gmra.mxu0 %v4835
        %v6032 = vpop.f32.mrf.mxu0
        %v6033 = vadd.f32 0.0, %v6032
        %6034 = vmatmul.f32.gmra.mxu0 %v4838
        %v6035 = vpop.f32.mrf.mxu0
        %v6036 = vadd.f32 0.0, %v6035
        %6037 = vmatmul.f32.gmra.mxu0 %v4841
        %v6038 = vpop.f32.mrf.mxu0
        %v6039 = vadd.f32 0.0, %v6038
        %6040 = vmatmul.f32.gmra.mxu0 %v4844
        %v6041 = vpop.f32.mrf.mxu0
        %v6042 = vadd.f32 0.0, %v6041
        %6043 = vmatmul.f32.gmra.mxu0 %v4847
        %v6044 = vpop.f32.mrf.mxu0
        %v6045 = vadd.f32 0.0, %v6044
        %6046 = vmatmul.f32.gmra.mxu0 %v4850
        %v6047 = vpop.f32.mrf.mxu0
        %v6048 = vadd.f32 0.0, %v6047
        %6049 = vmatmul.f32.gmra.mxu0 %v4853
        %v6050 = vpop.f32.mrf.mxu0
        %v6051 = vadd.f32 0.0, %v6050
        %6052 = vmatmul.f32.gmra.mxu0 %v4856
        %v6053 = vpop.f32.mrf.mxu0
        %v6054 = vadd.f32 0.0, %v6053
        %6055 = vmatmul.f32.gmra.mxu0 %v4859
        %v6056 = vpop.f32.mrf.mxu0
        %v6057 = vadd.f32 0.0, %v6056
        %6058 = vmatmul.f32.gmra.mxu0 %v4862
        %v6059 = vpop.f32.mrf.mxu0
        %v6060 = vadd.f32 0.0, %v6059
        %6061 = vmatmul.f32.gmra.mxu0 %v4865
        %v6062 = vpop.f32.mrf.mxu0
        %v6063 = vadd.f32 0.0, %v6062
        %6064 = vmatmul.f32.gmra.mxu0 %v4868
        %v6065 = vpop.f32.mrf.mxu0
        %v6066 = vadd.f32 0.0, %v6065
        %6067 = vmatmul.f32.gmra.mxu0 %v4871
        %v6068 = vpop.f32.mrf.mxu0
        %v6069 = vadd.f32 0.0, %v6068
        %6070 = vdwg.mxu0
        %6071 = vmatpush.msra.mxu0 %v5682
        %6072 = vmatpush.msra.mxu0 %v5680
        %6073 = vmatpush.msra.mxu0 %v5678
        %6074 = vmatpush.msra.mxu0 %v5676
        %6075 = vmatpush.msra.mxu0 %v5674
        %6076 = vmatpush.msra.mxu0 %v5672
        %6077 = vmatpush.msra.mxu0 %v5670
        %6078 = vmatpush.msra.mxu0 %v5668
        %6079 = vmatpush.msra.mxu0 %v5666
        %6080 = vmatpush.msra.mxu0 %v5664
        %6081 = vmatpush.msra.mxu0 %v5662
        %6082 = vmatpush.msra.mxu0 %v5660
        %6083 = vmatpush.msra.mxu0 %v5658
        %6084 = vmatpush.msra.mxu0 %v5656
        %6085 = vmatpush.msra.mxu0 %v5654
        %6086 = vmatpush.msra.mxu0 %v5652
        %6087 = vmatmul.f32.gmra.mxu0 %v4803
        %v6088 = vpop.f32.mrf.mxu0
        %v6089 = vadd.f32 %v6000, %v6088
        %6090 = vmatmul.f32.gmra.mxu0 %v4806
        %v6091 = vpop.f32.mrf.mxu0
        %v6092 = vadd.f32 %v6003, %v6091
        %6093 = vmatmul.f32.gmra.mxu0 %v4809
        %v6094 = vpop.f32.mrf.mxu0
        %v6095 = vadd.f32 %v6006, %v6094
        %6096 = vmatmul.f32.gmra.mxu0 %v4812
        %v6097 = vpop.f32.mrf.mxu0
        %v6098 = vadd.f32 %v6009, %v6097
        %6099 = vmatmul.f32.gmra.mxu0 %v4815
        %v6100 = vpop.f32.mrf.mxu0
        %v6101 = vadd.f32 %v6012, %v6100
        %6102 = vmatmul.f32.gmra.mxu0 %v4818
        %v6103 = vpop.f32.mrf.mxu0
        %v6104 = vadd.f32 %v6015, %v6103
        %6105 = vmatmul.f32.gmra.mxu0 %v4821
        %v6106 = vpop.f32.mrf.mxu0
        %v6107 = vadd.f32 %v6018, %v6106
        %6108 = vmatmul.f32.gmra.mxu0 %v4824
        %v6109 = vpop.f32.mrf.mxu0
        %v6110 = vadd.f32 %v6021, %v6109
        %6111 = vmatmul.f32.gmra.mxu0 %v4827
        %v6112 = vpop.f32.mrf.mxu0
        %v6113 = vadd.f32 %v6024, %v6112
        %6114 = vmatmul.f32.gmra.mxu0 %v4830
        %v6115 = vpop.f32.mrf.mxu0
        %v6116 = vadd.f32 %v6027, %v6115
        %6117 = vmatmul.f32.gmra.mxu0 %v4833
        %v6118 = vpop.f32.mrf.mxu0
        %v6119 = vadd.f32 %v6030, %v6118
        %6120 = vmatmul.f32.gmra.mxu0 %v4836
        %v6121 = vpop.f32.mrf.mxu0
        %v6122 = vadd.f32 %v6033, %v6121
        %6123 = vmatmul.f32.gmra.mxu0 %v4839
        %v6124 = vpop.f32.mrf.mxu0
        %v6125 = vadd.f32 %v6036, %v6124
        %6126 = vmatmul.f32.gmra.mxu0 %v4842
        %v6127 = vpop.f32.mrf.mxu0
        %v6128 = vadd.f32 %v6039, %v6127
        %6129 = vmatmul.f32.gmra.mxu0 %v4845
        %v6130 = vpop.f32.mrf.mxu0
        %v6131 = vadd.f32 %v6042, %v6130
        %6132 = vmatmul.f32.gmra.mxu0 %v4848
        %v6133 = vpop.f32.mrf.mxu0
        %v6134 = vadd.f32 %v6045, %v6133
        %6135 = vmatmul.f32.gmra.mxu0 %v4851
        %v6136 = vpop.f32.mrf.mxu0
        %v6137 = vadd.f32 %v6048, %v6136
        %6138 = vmatmul.f32.gmra.mxu0 %v4854
        %v6139 = vpop.f32.mrf.mxu0
        %v6140 = vadd.f32 %v6051, %v6139
        %6141 = vmatmul.f32.gmra.mxu0 %v4857
        %v6142 = vpop.f32.mrf.mxu0
        %v6143 = vadd.f32 %v6054, %v6142
        %6144 = vmatmul.f32.gmra.mxu0 %v4860
        %v6145 = vpop.f32.mrf.mxu0
        %v6146 = vadd.f32 %v6057, %v6145
        %6147 = vmatmul.f32.gmra.mxu0 %v4863
        %v6148 = vpop.f32.mrf.mxu0
        %v6149 = vadd.f32 %v6060, %v6148
        %6150 = vmatmul.f32.gmra.mxu0 %v4866
        %v6151 = vpop.f32.mrf.mxu0
        %v6152 = vadd.f32 %v6063, %v6151
        %6153 = vmatmul.f32.gmra.mxu0 %v4869
        %v6154 = vpop.f32.mrf.mxu0
        %v6155 = vadd.f32 %v6066, %v6154
        %6156 = vmatmul.f32.gmra.mxu0 %v4872
        %v6157 = vpop.f32.mrf.mxu0
        %v6158 = vadd.f32 %v6069, %v6157
        %6159 = vdwg.mxu0
        %6160 = vmatpush.msra.mxu0 %v5714
        %6161 = vmatpush.msra.mxu0 %v5712
        %6162 = vmatpush.msra.mxu0 %v5710
        %6163 = vmatpush.msra.mxu0 %v5708
        %6164 = vmatpush.msra.mxu0 %v5706
        %6165 = vmatpush.msra.mxu0 %v5704
        %6166 = vmatpush.msra.mxu0 %v5702
        %6167 = vmatpush.msra.mxu0 %v5700
        %6168 = vmatpush.msra.mxu0 %v5698
        %6169 = vmatpush.msra.mxu0 %v5696
        %6170 = vmatpush.msra.mxu0 %v5694
        %6171 = vmatpush.msra.mxu0 %v5692
        %6172 = vmatpush.msra.mxu0 %v5690
        %6173 = vmatpush.msra.mxu0 %v5688
        %6174 = vmatpush.msra.mxu0 %v5686
        %6175 = vmatpush.msra.mxu0 %v5684
        %6176 = vmatmul.f32.gmra.mxu0 %v4804
        %v6177 = vpop.f32.mrf.mxu0
        %v6178 = vadd.f32 %v6089, %v6177
        %6179 = vmatmul.f32.gmra.mxu0 %v4807
        %v6180 = vpop.f32.mrf.mxu0
        %v6181 = vadd.f32 %v6092, %v6180
        %6182 = vmatmul.f32.gmra.mxu0 %v4810
        %v6183 = vpop.f32.mrf.mxu0
        %v6184 = vadd.f32 %v6095, %v6183
        %6185 = vmatmul.f32.gmra.mxu0 %v4813
        %v6186 = vpop.f32.mrf.mxu0
        %v6187 = vadd.f32 %v6098, %v6186
        %6188 = vmatmul.f32.gmra.mxu0 %v4816
        %v6189 = vpop.f32.mrf.mxu0
        %v6190 = vadd.f32 %v6101, %v6189
        %6191 = vmatmul.f32.gmra.mxu0 %v4819
        %v6192 = vpop.f32.mrf.mxu0
        %v6193 = vadd.f32 %v6104, %v6192
        %6194 = vmatmul.f32.gmra.mxu0 %v4822
        %v6195 = vpop.f32.mrf.mxu0
        %v6196 = vadd.f32 %v6107, %v6195
        %6197 = vmatmul.f32.gmra.mxu0 %v4825
        %v6198 = vpop.f32.mrf.mxu0
        %v6199 = vadd.f32 %v6110, %v6198
        %6200 = vmatmul.f32.gmra.mxu0 %v4828
        %v6201 = vpop.f32.mrf.mxu0
        %v6202 = vadd.f32 %v6113, %v6201
        %6203 = vmatmul.f32.gmra.mxu0 %v4831
        %v6204 = vpop.f32.mrf.mxu0
        %v6205 = vadd.f32 %v6116, %v6204
        %6206 = vmatmul.f32.gmra.mxu0 %v4834
        %v6207 = vpop.f32.mrf.mxu0
        %v6208 = vadd.f32 %v6119, %v6207
        %6209 = vmatmul.f32.gmra.mxu0 %v4837
        %v6210 = vpop.f32.mrf.mxu0
        %v6211 = vadd.f32 %v6122, %v6210
        %6212 = vmatmul.f32.gmra.mxu0 %v4840
        %v6213 = vpop.f32.mrf.mxu0
        %v6214 = vadd.f32 %v6125, %v6213
        %6215 = vmatmul.f32.gmra.mxu0 %v4843
        %v6216 = vpop.f32.mrf.mxu0
        %v6217 = vadd.f32 %v6128, %v6216
        %6218 = vmatmul.f32.gmra.mxu0 %v4846
        %v6219 = vpop.f32.mrf.mxu0
        %v6220 = vadd.f32 %v6131, %v6219
        %6221 = vmatmul.f32.gmra.mxu0 %v4849
        %v6222 = vpop.f32.mrf.mxu0
        %v6223 = vadd.f32 %v6134, %v6222
        %6224 = vmatmul.f32.gmra.mxu0 %v4852
        %v6225 = vpop.f32.mrf.mxu0
        %v6226 = vadd.f32 %v6137, %v6225
        %6227 = vmatmul.f32.gmra.mxu0 %v4855
        %v6228 = vpop.f32.mrf.mxu0
        %v6229 = vadd.f32 %v6140, %v6228
        %6230 = vmatmul.f32.gmra.mxu0 %v4858
        %v6231 = vpop.f32.mrf.mxu0
        %v6232 = vadd.f32 %v6143, %v6231
        %6233 = vmatmul.f32.gmra.mxu0 %v4861
        %v6234 = vpop.f32.mrf.mxu0
        %v6235 = vadd.f32 %v6146, %v6234
        %6236 = vmatmul.f32.gmra.mxu0 %v4864
        %v6237 = vpop.f32.mrf.mxu0
        %v6238 = vadd.f32 %v6149, %v6237
        %6239 = vmatmul.f32.gmra.mxu0 %v4867
        %v6240 = vpop.f32.mrf.mxu0
        %v6241 = vadd.f32 %v6152, %v6240
        %6242 = vmatmul.f32.gmra.mxu0 %v4870
        %v6243 = vpop.f32.mrf.mxu0
        %v6244 = vadd.f32 %v6155, %v6243
        %6245 = vmatmul.f32.gmra.mxu0 %v4873
        %v6246 = vpop.f32.mrf.mxu0
        %v6247 = vadd.f32 %v6158, %v6246
        %6248 = vdwg.mxu0
        %v6249 = vadd.f32 %v5911, %v5545
        %v6250 = vadd.f32 %v6178, %v5614
        %v6251 = vadd.f32 %v5914, %v5548
        %v6252 = vadd.f32 %v6181, %v5617
        %v6253 = vadd.f32 %v5917, %v5545
        %v6254 = vadd.f32 %v6184, %v5614
        %v6255 = vadd.f32 %v5920, %v5548
        %v6256 = vadd.f32 %v6187, %v5617
        %v6257 = vadd.f32 %v5923, %v5545
        %v6258 = vadd.f32 %v6190, %v5614
        %v6259 = vadd.f32 %v5926, %v5548
        %v6260 = vadd.f32 %v6193, %v5617
        %v6261 = vadd.f32 %v5929, %v5545
        %v6262 = vadd.f32 %v6196, %v5614
        %v6263 = vadd.f32 %v5932, %v5548
        %v6264 = vadd.f32 %v6199, %v5617
        %v6265 = vadd.f32 %v5935, %v5545
        %v6266 = vadd.f32 %v6202, %v5614
        %v6267 = vadd.f32 %v5938, %v5548
        %v6268 = vadd.f32 %v6205, %v5617
        %v6269 = vadd.f32 %v5941, %v5545
        %v6270 = vadd.f32 %v6208, %v5614
        %v6271 = vadd.f32 %v5944, %v5548
        %v6272 = vadd.f32 %v6211, %v5617
        %v6273 = vadd.f32 %v5947, %v5545
        %v6274 = vadd.f32 %v6214, %v5614
        %v6275 = vadd.f32 %v5950, %v5548
        %v6276 = vadd.f32 %v6217, %v5617
        %v6277 = vadd.f32 %v5953, %v5545
        %v6278 = vadd.f32 %v6220, %v5614
        %v6279 = vadd.f32 %v5956, %v5548
        %v6280 = vadd.f32 %v6223, %v5617
        %v6281 = vadd.f32 %v5959, %v5545
        %v6282 = vadd.f32 %v6226, %v5614
        %v6283 = vadd.f32 %v5962, %v5548
        %v6284 = vadd.f32 %v6229, %v5617
        %v6285 = vadd.f32 %v5965, %v5545
        %v6286 = vadd.f32 %v6232, %v5614
        %v6287 = vadd.f32 %v5968, %v5548
        %v6288 = vadd.f32 %v6235, %v5617
        %v6289 = vadd.f32 %v5971, %v5545
        %v6290 = vadd.f32 %v6238, %v5614
        %v6291 = vadd.f32 %v5974, %v5548
        %v6292 = vadd.f32 %v6241, %v5617
        %v6293 = vadd.f32 %v5977, %v5545
        %v6294 = vadd.f32 %v6244, %v5614
        %v6295 = vadd.f32 %v5980, %v5548
        %v6296 = vadd.f32 %v6247, %v5617
        %v6297 = vmax.f32 %v6249, 0.0
        %v6298 = vmax.f32 %v6250, 0.0
        %v6299 = vmax.f32 %v6251, 0.0
        %v6300 = vmax.f32 %v6252, 0.0
        %v6301 = vmax.f32 %v6253, 0.0
        %v6302 = vmax.f32 %v6254, 0.0
        %v6303 = vmax.f32 %v6255, 0.0
        %v6304 = vmax.f32 %v6256, 0.0
        %v6305 = vmax.f32 %v6257, 0.0
        %v6306 = vmax.f32 %v6258, 0.0
        %v6307 = vmax.f32 %v6259, 0.0
        %v6308 = vmax.f32 %v6260, 0.0
        %v6309 = vmax.f32 %v6261, 0.0
        %v6310 = vmax.f32 %v6262, 0.0
        %v6311 = vmax.f32 %v6263, 0.0
        %v6312 = vmax.f32 %v6264, 0.0
        %v6313 = vmax.f32 %v6265, 0.0
        %v6314 = vmax.f32 %v6266, 0.0
        %v6315 = vmax.f32 %v6267, 0.0
        %v6316 = vmax.f32 %v6268, 0.0
        %v6317 = vmax.f32 %v6269, 0.0
        %v6318 = vmax.f32 %v6270, 0.0
        %v6319 = vmax.f32 %v6271, 0.0
        %v6320 = vmax.f32 %v6272, 0.0
        %v6321 = vmax.f32 %v6273, 0.0
        %v6322 = vmax.f32 %v6274, 0.0
        %v6323 = vmax.f32 %v6275, 0.0
        %v6324 = vmax.f32 %v6276, 0.0
        %v6325 = vmax.f32 %v6277, 0.0
        %v6326 = vmax.f32 %v6278, 0.0
        %v6327 = vmax.f32 %v6279, 0.0
        %v6328 = vmax.f32 %v6280, 0.0
        %v6329 = vmax.f32 %v6281, 0.0
        %v6330 = vmax.f32 %v6282, 0.0
        %v6331 = vmax.f32 %v6283, 0.0
        %v6332 = vmax.f32 %v6284, 0.0
        %v6333 = vmax.f32 %v6285, 0.0
        %v6334 = vmax.f32 %v6286, 0.0
        %v6335 = vmax.f32 %v6287, 0.0
        %v6336 = vmax.f32 %v6288, 0.0
        %v6337 = vmax.f32 %v6289, 0.0
        %v6338 = vmax.f32 %v6290, 0.0
        %v6339 = vmax.f32 %v6291, 0.0
        %v6340 = vmax.f32 %v6292, 0.0
        %v6341 = vmax.f32 %v6293, 0.0
        %v6342 = vmax.f32 %v6294, 0.0
        %v6343 = vmax.f32 %v6295, 0.0
        %v6344 = vmax.f32 %v6296, 0.0
        %v6345 = vld [vmem:[%s9] sm:$0xff]
        %v6346 = vld [vmem:[%s9 + $0x8] sm:$0xff]
        %v6347 = vld [vmem:[%s9 + $0x10] sm:$0xff]
        %v6348 = vld [vmem:[%s9 + $0x18] sm:$0xff]
        %v6349 = vld [vmem:[%s9 + $0x20] sm:$0xff]
        %v6350 = vld [vmem:[%s9 + $0x28] sm:$0xff]
        %v6351 = vld [vmem:[%s9 + $0x30] sm:$0xff]
        %v6352 = vld [vmem:[%s9 + $0x38] sm:$0xff]
        %v6353 = vld [vmem:[%s9 + $0x40] sm:$0xff]
        %v6354 = vld [vmem:[%s9 + $0x48] sm:$0xff]
        %v6355 = vld [vmem:[%s9 + $0x50] sm:$0xff]
        %v6356 = vld [vmem:[%s9 + $0x58] sm:$0xff]
        %v6357 = vld [vmem:[%s9 + $0x60] sm:$0xff]
        %v6358 = vld [vmem:[%s9 + $0x68] sm:$0xff]
        %v6359 = vld [vmem:[%s9 + $0x70] sm:$0xff]
        %v6360 = vld [vmem:[%s9 + $0x78] sm:$0xff]
        %v6361 = vld [vmem:[%s9 + $0x80] sm:$0xff]
        %v6362 = vld [vmem:[%s9 + $0x88] sm:$0xff]
        %v6363 = vld [vmem:[%s9 + $0x90] sm:$0xff]
        %v6364 = vld [vmem:[%s9 + $0x98] sm:$0xff]
        %v6365 = vld [vmem:[%s9 + $0xa0] sm:$0xff]
        %v6366 = vld [vmem:[%s9 + $0xa8] sm:$0xff]
        %v6367 = vld [vmem:[%s9 + $0xb0] sm:$0xff]
        %v6368 = vld [vmem:[%s9 + $0xb8] sm:$0xff]
        %v6369 = vld [vmem:[%s9 + $0xc0] sm:$0xff]
        %v6370 = vld [vmem:[%s9 + $0xc8] sm:$0xff]
        %v6371 = vld [vmem:[%s9 + $0xd0] sm:$0xff]
        %v6372 = vld [vmem:[%s9 + $0xd8] sm:$0xff]
        %v6373 = vld [vmem:[%s9 + $0xe0] sm:$0xff]
        %v6374 = vld [vmem:[%s9 + $0xe8] sm:$0xff]
        %v6375 = vld [vmem:[%s9 + $0xf0] sm:$0xff]
        %v6376 = vld [vmem:[%s9 + $0xf8] sm:$0xff]
        %v6377 = vld [vmem:[%s730] sm:$0xff]
        %v6378 = vld [vmem:[%s730 + $0x8] sm:$0xff]
        %v6379 = vld [vmem:[%s730 + $0x10] sm:$0xff]
        %v6380 = vld [vmem:[%s730 + $0x18] sm:$0xff]
        %v6381 = vld [vmem:[%s730 + $0x20] sm:$0xff]
        %v6382 = vld [vmem:[%s730 + $0x28] sm:$0xff]
        %v6383 = vld [vmem:[%s730 + $0x30] sm:$0xff]
        %v6384 = vld [vmem:[%s730 + $0x38] sm:$0xff]
        %v6385 = vld [vmem:[%s730 + $0x40] sm:$0xff]
        %v6386 = vld [vmem:[%s730 + $0x48] sm:$0xff]
        %v6387 = vld [vmem:[%s730 + $0x50] sm:$0xff]
        %v6388 = vld [vmem:[%s730 + $0x58] sm:$0xff]
        %v6389 = vld [vmem:[%s730 + $0x60] sm:$0xff]
        %v6390 = vld [vmem:[%s730 + $0x68] sm:$0xff]
        %v6391 = vld [vmem:[%s730 + $0x70] sm:$0xff]
        %v6392 = vld [vmem:[%s730 + $0x78] sm:$0xff]
        %v6393 = vld [vmem:[%s730 + $0x80] sm:$0xff]
        %v6394 = vld [vmem:[%s730 + $0x88] sm:$0xff]
        %v6395 = vld [vmem:[%s730 + $0x90] sm:$0xff]
        %v6396 = vld [vmem:[%s730 + $0x98] sm:$0xff]
        %v6397 = vld [vmem:[%s730 + $0xa0] sm:$0xff]
        %v6398 = vld [vmem:[%s730 + $0xa8] sm:$0xff]
        %v6399 = vld [vmem:[%s730 + $0xb0] sm:$0xff]
        %v6400 = vld [vmem:[%s730 + $0xb8] sm:$0xff]
        %6401 = vmatpush.msra.mxu0 %v6360
        %6402 = vmatpush.msra.mxu0 %v6359
        %6403 = vmatpush.msra.mxu0 %v6358
        %6404 = vmatpush.msra.mxu0 %v6357
        %6405 = vmatpush.msra.mxu0 %v6356
        %6406 = vmatpush.msra.mxu0 %v6355
        %6407 = vmatpush.msra.mxu0 %v6354
        %6408 = vmatpush.msra.mxu0 %v6353
        %6409 = vmatpush.msra.mxu0 %v6352
        %6410 = vmatpush.msra.mxu0 %v6351
        %6411 = vmatpush.msra.mxu0 %v6350
        %6412 = vmatpush.msra.mxu0 %v6349
        %6413 = vmatpush.msra.mxu0 %v6348
        %6414 = vmatpush.msra.mxu0 %v6347
        %6415 = vmatpush.msra.mxu0 %v6346
        %6416 = vmatpush.msra.mxu0 %v6345
        %6417 = vmatmul.f32.gmra.mxu0 %v6297
        %v6418 = vpop.f32.mrf.mxu0
        %v6419 = vadd.f32 %v6377, %v6418
        %6420 = vmatmul.f32.gmra.mxu0 %v6299
        %v6421 = vpop.f32.mrf.mxu0
        %v6422 = vadd.f32 %v6378, %v6421
        %6423 = vmatmul.f32.gmra.mxu0 %v6301
        %v6424 = vpop.f32.mrf.mxu0
        %v6425 = vadd.f32 %v6379, %v6424
        %6426 = vmatmul.f32.gmra.mxu0 %v6303
        %v6427 = vpop.f32.mrf.mxu0
        %v6428 = vadd.f32 %v6380, %v6427
        %6429 = vmatmul.f32.gmra.mxu0 %v6305
        %v6430 = vpop.f32.mrf.mxu0
        %v6431 = vadd.f32 %v6381, %v6430
        %6432 = vmatmul.f32.gmra.mxu0 %v6307
        %v6433 = vpop.f32.mrf.mxu0
        %v6434 = vadd.f32 %v6382, %v6433
        %6435 = vmatmul.f32.gmra.mxu0 %v6309
        %v6436 = vpop.f32.mrf.mxu0
        %v6437 = vadd.f32 %v6383, %v6436
        %6438 = vmatmul.f32.gmra.mxu0 %v6311
        %v6439 = vpop.f32.mrf.mxu0
        %v6440 = vadd.f32 %v6384, %v6439
        %6441 = vmatmul.f32.gmra.mxu0 %v6313
        %v6442 = vpop.f32.mrf.mxu0
        %v6443 = vadd.f32 %v6385, %v6442
        %6444 = vmatmul.f32.gmra.mxu0 %v6315
        %v6445 = vpop.f32.mrf.mxu0
        %v6446 = vadd.f32 %v6386, %v6445
        %6447 = vmatmul.f32.gmra.mxu0 %v6317
        %v6448 = vpop.f32.mrf.mxu0
        %v6449 = vadd.f32 %v6387, %v6448
        %6450 = vmatmul.f32.gmra.mxu0 %v6319
        %v6451 = vpop.f32.mrf.mxu0
        %v6452 = vadd.f32 %v6388, %v6451
        %6453 = vmatmul.f32.gmra.mxu0 %v6321
        %v6454 = vpop.f32.mrf.mxu0
        %v6455 = vadd.f32 %v6389, %v6454
        %6456 = vmatmul.f32.gmra.mxu0 %v6323
        %v6457 = vpop.f32.mrf.mxu0
        %v6458 = vadd.f32 %v6390, %v6457
        %6459 = vmatmul.f32.gmra.mxu0 %v6325
        %v6460 = vpop.f32.mrf.mxu0
        %v6461 = vadd.f32 %v6391, %v6460
        %6462 = vmatmul.f32.gmra.mxu0 %v6327
        %v6463 = vpop.f32.mrf.mxu0
        %v6464 = vadd.f32 %v6392, %v6463
        %6465 = vmatmul.f32.gmra.mxu0 %v6329
        %v6466 = vpop.f32.mrf.mxu0
        %v6467 = vadd.f32 %v6393, %v6466
        %6468 = vmatmul.f32.gmra.mxu0 %v6331
        %v6469 = vpop.f32.mrf.mxu0
        %v6470 = vadd.f32 %v6394, %v6469
        %6471 = vmatmul.f32.gmra.mxu0 %v6333
        %v6472 = vpop.f32.mrf.mxu0
        %v6473 = vadd.f32 %v6395, %v6472
        %6474 = vmatmul.f32.gmra.mxu0 %v6335
        %v6475 = vpop.f32.mrf.mxu0
        %v6476 = vadd.f32 %v6396, %v6475
        %6477 = vmatmul.f32.gmra.mxu0 %v6337
        %v6478 = vpop.f32.mrf.mxu0
        %v6479 = vadd.f32 %v6397, %v6478
        %6480 = vmatmul.f32.gmra.mxu0 %v6339
        %v6481 = vpop.f32.mrf.mxu0
        %v6482 = vadd.f32 %v6398, %v6481
        %6483 = vmatmul.f32.gmra.mxu0 %v6341
        %v6484 = vpop.f32.mrf.mxu0
        %v6485 = vadd.f32 %v6399, %v6484
        %6486 = vmatmul.f32.gmra.mxu0 %v6343
        %v6487 = vpop.f32.mrf.mxu0
        %v6488 = vadd.f32 %v6400, %v6487
        %6489 = vdwg.mxu0
        %6490 = vmatpush.msra.mxu0 %v6376
        %6491 = vmatpush.msra.mxu0 %v6375
        %6492 = vmatpush.msra.mxu0 %v6374
        %6493 = vmatpush.msra.mxu0 %v6373
        %6494 = vmatpush.msra.mxu0 %v6372
        %6495 = vmatpush.msra.mxu0 %v6371
        %6496 = vmatpush.msra.mxu0 %v6370
        %6497 = vmatpush.msra.mxu0 %v6369
        %6498 = vmatpush.msra.mxu0 %v6368
        %6499 = vmatpush.msra.mxu0 %v6367
        %6500 = vmatpush.msra.mxu0 %v6366
        %6501 = vmatpush.msra.mxu0 %v6365
        %6502 = vmatpush.msra.mxu0 %v6364
        %6503 = vmatpush.msra.mxu0 %v6363
        %6504 = vmatpush.msra.mxu0 %v6362
        %6505 = vmatpush.msra.mxu0 %v6361
        %6506 = vmatmul.f32.gmra.mxu0 %v6298
        %v6507 = vpop.f32.mrf.mxu0
        %v6508 = vadd.f32 %v6419, %v6507
        %6509 = vmatmul.f32.gmra.mxu0 %v6300
        %v6510 = vpop.f32.mrf.mxu0
        %v6511 = vadd.f32 %v6422, %v6510
        %6512 = vmatmul.f32.gmra.mxu0 %v6302
        %v6513 = vpop.f32.mrf.mxu0
        %v6514 = vadd.f32 %v6425, %v6513
        %6515 = vmatmul.f32.gmra.mxu0 %v6304
        %v6516 = vpop.f32.mrf.mxu0
        %v6517 = vadd.f32 %v6428, %v6516
        %6518 = vmatmul.f32.gmra.mxu0 %v6306
        %v6519 = vpop.f32.mrf.mxu0
        %v6520 = vadd.f32 %v6431, %v6519
        %6521 = vmatmul.f32.gmra.mxu0 %v6308
        %v6522 = vpop.f32.mrf.mxu0
        %v6523 = vadd.f32 %v6434, %v6522
        %6524 = vmatmul.f32.gmra.mxu0 %v6310
        %v6525 = vpop.f32.mrf.mxu0
        %v6526 = vadd.f32 %v6437, %v6525
        %6527 = vmatmul.f32.gmra.mxu0 %v6312
        %v6528 = vpop.f32.mrf.mxu0
        %v6529 = vadd.f32 %v6440, %v6528
        %6530 = vmatmul.f32.gmra.mxu0 %v6314
        %v6531 = vpop.f32.mrf.mxu0
        %v6532 = vadd.f32 %v6443, %v6531
        %6533 = vmatmul.f32.gmra.mxu0 %v6316
        %v6534 = vpop.f32.mrf.mxu0
        %v6535 = vadd.f32 %v6446, %v6534
        %6536 = vmatmul.f32.gmra.mxu0 %v6318
        %v6537 = vpop.f32.mrf.mxu0
        %v6538 = vadd.f32 %v6449, %v6537
        %6539 = vmatmul.f32.gmra.mxu0 %v6320
        %v6540 = vpop.f32.mrf.mxu0
        %v6541 = vadd.f32 %v6452, %v6540
        %6542 = vmatmul.f32.gmra.mxu0 %v6322
        %v6543 = vpop.f32.mrf.mxu0
        %v6544 = vadd.f32 %v6455, %v6543
        %6545 = vmatmul.f32.gmra.mxu0 %v6324
        %v6546 = vpop.f32.mrf.mxu0
        %v6547 = vadd.f32 %v6458, %v6546
        %6548 = vmatmul.f32.gmra.mxu0 %v6326
        %v6549 = vpop.f32.mrf.mxu0
        %v6550 = vadd.f32 %v6461, %v6549
        %6551 = vmatmul.f32.gmra.mxu0 %v6328
        %v6552 = vpop.f32.mrf.mxu0
        %v6553 = vadd.f32 %v6464, %v6552
        %6554 = vmatmul.f32.gmra.mxu0 %v6330
        %v6555 = vpop.f32.mrf.mxu0
        %v6556 = vadd.f32 %v6467, %v6555
        %6557 = vmatmul.f32.gmra.mxu0 %v6332
        %v6558 = vpop.f32.mrf.mxu0
        %v6559 = vadd.f32 %v6470, %v6558
        %6560 = vmatmul.f32.gmra.mxu0 %v6334
        %v6561 = vpop.f32.mrf.mxu0
        %v6562 = vadd.f32 %v6473, %v6561
        %6563 = vmatmul.f32.gmra.mxu0 %v6336
        %v6564 = vpop.f32.mrf.mxu0
        %v6565 = vadd.f32 %v6476, %v6564
        %6566 = vmatmul.f32.gmra.mxu0 %v6338
        %v6567 = vpop.f32.mrf.mxu0
        %v6568 = vadd.f32 %v6479, %v6567
        %6569 = vmatmul.f32.gmra.mxu0 %v6340
        %v6570 = vpop.f32.mrf.mxu0
        %v6571 = vadd.f32 %v6482, %v6570
        %6572 = vmatmul.f32.gmra.mxu0 %v6342
        %v6573 = vpop.f32.mrf.mxu0
        %v6574 = vadd.f32 %v6485, %v6573
        %6575 = vmatmul.f32.gmra.mxu0 %v6344
        %v6576 = vpop.f32.mrf.mxu0
        %v6577 = vadd.f32 %v6488, %v6576
        %6578 = vdwg.mxu0
        %v6579 = vmax.f32 %v6508, 0.0
        %v6580 = vmax.f32 %v6511, 0.0
        %v6581 = vmax.f32 %v6514, 0.0
        %v6582 = vmax.f32 %v6517, 0.0
        %v6583 = vmax.f32 %v6520, 0.0
        %v6584 = vmax.f32 %v6523, 0.0
        %v6585 = vmax.f32 %v6526, 0.0
        %v6586 = vmax.f32 %v6529, 0.0
        %v6587 = vmax.f32 %v6532, 0.0
        %v6588 = vmax.f32 %v6535, 0.0
        %v6589 = vmax.f32 %v6538, 0.0
        %v6590 = vmax.f32 %v6541, 0.0
        %v6591 = vmax.f32 %v6544, 0.0
        %v6592 = vmax.f32 %v6547, 0.0
        %v6593 = vmax.f32 %v6550, 0.0
        %v6594 = vmax.f32 %v6553, 0.0
        %v6595 = vmax.f32 %v6556, 0.0
        %v6596 = vmax.f32 %v6559, 0.0
        %v6597 = vmax.f32 %v6562, 0.0
        %v6598 = vmax.f32 %v6565, 0.0
        %v6599 = vmax.f32 %v6568, 0.0
        %v6600 = vmax.f32 %v6571, 0.0
        %v6601 = vmax.f32 %v6574, 0.0
        %v6602 = vmax.f32 %v6577, 0.0
        %vm6603 = vcmask 7168
        %v6604 = vsel %vm6603, %v6579, -inf
        %v6605 = vsel %vm6603, %v6581, -inf
        %v6606 = vsel %vm6603, %v6583, -inf
        %v6607 = vmax.f32 %v6604, %v6606
        %v6608 = vsel %vm6603, %v6585, -inf
        %v6609 = vmax.f32 %v6605, %v6608
        %v6610 = vsel %vm6603, %v6587, -inf
        %v6611 = vmax.f32 %v6607, %v6610
        %v6612 = vsel %vm6603, %v6589, -inf
        %v6613 = vmax.f32 %v6609, %v6612
        %v6614 = vsel %vm6603, %v6591, -inf
        %v6615 = vmax.f32 %v6611, %v6614
        %v6616 = vsel %vm6603, %v6593, -inf
        %v6617 = vmax.f32 %v6613, %v6616
        %v6618 = vsel %vm6603, %v6595, -inf
        %v6619 = vmax.f32 %v6615, %v6618
        %v6620 = vsel %vm6603, %v6597, -inf
        %v6621 = vmax.f32 %v6617, %v6620
        %v6622 = vsel %vm6603, %v6599, -inf
        %v6623 = vmax.f32 %v6619, %v6622
        %v6624 = vsel %vm6603, %v6601, -inf
        %v6625 = vmax.f32 %v6621, %v6624
        %v6626 = vmax.f32 %v6623, %v6625
        %v6627 = vsel %vm6603, %v6580, -inf
        %v6628 = vsel %vm6603, %v6582, -inf
        %v6629 = vsel %vm6603, %v6584, -inf
        %v6630 = vmax.f32 %v6627, %v6629
        %v6631 = vsel %vm6603, %v6586, -inf
        %v6632 = vmax.f32 %v6628, %v6631
        %v6633 = vsel %vm6603, %v6588, -inf
        %v6634 = vmax.f32 %v6630, %v6633
        %v6635 = vsel %vm6603, %v6590, -inf
        %v6636 = vmax.f32 %v6632, %v6635
        %v6637 = vsel %vm6603, %v6592, -inf
        %v6638 = vmax.f32 %v6634, %v6637
        %v6639 = vsel %vm6603, %v6594, -inf
        %v6640 = vmax.f32 %v6636, %v6639
        %v6641 = vsel %vm6603, %v6596, -inf
        %v6642 = vmax.f32 %v6638, %v6641
        %v6643 = vsel %vm6603, %v6598, -inf
        %v6644 = vmax.f32 %v6640, %v6643
        %v6645 = vsel %vm6603, %v6600, -inf
        %v6646 = vmax.f32 %v6642, %v6645
        %v6647 = vsel %vm6603, %v6602, -inf
        %v6648 = vmax.f32 %v6644, %v6647
        %v6649 = vmax.f32 %v6646, %v6648
        %v6650 = vsub.f32 %v6579, %v6626
        %v6651 = vsub.f32 %v6580, %v6649
        %v6652 = vsub.f32 %v6581, %v6626
        %v6653 = vsub.f32 %v6582, %v6649
        %v6654 = vsub.f32 %v6583, %v6626
        %v6655 = vsub.f32 %v6584, %v6649
        %v6656 = vsub.f32 %v6585, %v6626
        %v6657 = vsub.f32 %v6586, %v6649
        %v6658 = vsub.f32 %v6587, %v6626
        %v6659 = vsub.f32 %v6588, %v6649
        %v6660 = vsub.f32 %v6589, %v6626
        %v6661 = vsub.f32 %v6590, %v6649
        %v6662 = vsub.f32 %v6591, %v6626
        %v6663 = vsub.f32 %v6592, %v6649
        %v6664 = vsub.f32 %v6593, %v6626
        %v6665 = vsub.f32 %v6594, %v6649
        %v6666 = vsub.f32 %v6595, %v6626
        %v6667 = vsub.f32 %v6596, %v6649
        %v6668 = vsub.f32 %v6597, %v6626
        %v6669 = vsub.f32 %v6598, %v6649
        %v6670 = vsub.f32 %v6599, %v6626
        %v6671 = vsub.f32 %v6600, %v6649
        %v6672 = vsub.f32 %v6601, %v6626
        %v6673 = vsub.f32 %v6602, %v6649
        %v6674 = vmul.f32 %v6650, 1.442695
        %v6675 = vpow.pop %v6674
        %v6676 = vmul.f32 %v6651, 1.442695
        %v6677 = vpow.pop %v6676
        %v6678 = vmul.f32 %v6652, 1.442695
        %v6679 = vpow.pop %v6678
        %v6680 = vmul.f32 %v6653, 1.442695
        %v6681 = vpow.pop %v6680
        %v6682 = vmul.f32 %v6654, 1.442695
        %v6683 = vpow.pop %v6682
        %v6684 = vmul.f32 %v6655, 1.442695
        %v6685 = vpow.pop %v6684
        %v6686 = vmul.f32 %v6656, 1.442695
        %v6687 = vpow.pop %v6686
        %v6688 = vmul.f32 %v6657, 1.442695
        %v6689 = vpow.pop %v6688
        %v6690 = vmul.f32 %v6658, 1.442695
        %v6691 = vpow.pop %v6690
        %v6692 = vmul.f32 %v6659, 1.442695
        %v6693 = vpow.pop %v6692
        %v6694 = vmul.f32 %v6660, 1.442695
        %v6695 = vpow.pop %v6694
        %v6696 = vmul.f32 %v6661, 1.442695
        %v6697 = vpow.pop %v6696
        %v6698 = vmul.f32 %v6662, 1.442695
        %v6699 = vpow.pop %v6698
        %v6700 = vmul.f32 %v6663, 1.442695
        %v6701 = vpow.pop %v6700
        %v6702 = vmul.f32 %v6664, 1.442695
        %v6703 = vpow.pop %v6702
        %v6704 = vmul.f32 %v6665, 1.442695
        %v6705 = vpow.pop %v6704
        %v6706 = vmul.f32 %v6666, 1.442695
        %v6707 = vpow.pop %v6706
        %v6708 = vmul.f32 %v6667, 1.442695
        %v6709 = vpow.pop %v6708
        %v6710 = vmul.f32 %v6668, 1.442695
        %v6711 = vpow.pop %v6710
        %v6712 = vmul.f32 %v6669, 1.442695
        %v6713 = vpow.pop %v6712
        %v6714 = vmul.f32 %v6670, 1.442695
        %v6715 = vpow.pop %v6714
        %v6716 = vmul.f32 %v6671, 1.442695
        %v6717 = vpow.pop %v6716
        %v6718 = vmul.f32 %v6672, 1.442695
        %v6719 = vpow.pop %v6718
        %v6720 = vmul.f32 %v6673, 1.442695
        %v6721 = vpow.pop %v6720
        %v6722 = vsel %vm6603, %v6675, 0.0
        %v6723 = vsel %vm6603, %v6679, 0.0
        %v6724 = vadd.f32 %v6722, %v6723
        %v6725 = vsel %vm6603, %v6683, 0.0
        %v6726 = vadd.f32 %v6724, %v6725
        %v6727 = vsel %vm6603, %v6687, 0.0
        %v6728 = vadd.f32 %v6726, %v6727
        %v6729 = vsel %vm6603, %v6691, 0.0
        %v6730 = vadd.f32 %v6728, %v6729
        %v6731 = vsel %vm6603, %v6695, 0.0
        %v6732 = vadd.f32 %v6730, %v6731
        %v6733 = vsel %vm6603, %v6699, 0.0
        %v6734 = vadd.f32 %v6732, %v6733
        %v6735 = vsel %vm6603, %v6703, 0.0
        %v6736 = vadd.f32 %v6734, %v6735
        %v6737 = vsel %vm6603, %v6707, 0.0
        %v6738 = vadd.f32 %v6736, %v6737
        %v6739 = vsel %vm6603, %v6711, 0.0
        %v6740 = vadd.f32 %v6738, %v6739
        %v6741 = vsel %vm6603, %v6715, 0.0
        %v6742 = vadd.f32 %v6740, %v6741
        %v6743 = vsel %vm6603, %v6719, 0.0
        %v6744 = vadd.f32 %v6742, %v6743
        %v6745 = vsel %vm6603, %v6677, 0.0
        %v6746 = vsel %vm6603, %v6681, 0.0
        %v6747 = vadd.f32 %v6745, %v6746
        %v6748 = vsel %vm6603, %v6685, 0.0
        %v6749 = vadd.f32 %v6747, %v6748
        %v6750 = vsel %vm6603, %v6689, 0.0
        %v6751 = vadd.f32 %v6749, %v6750
        %v6752 = vsel %vm6603, %v6693, 0.0
        %v6753 = vadd.f32 %v6751, %v6752
        %v6754 = vsel %vm6603, %v6697, 0.0
        %v6755 = vadd.f32 %v6753, %v6754
        %v6756 = vsel %vm6603, %v6701, 0.0
        %v6757 = vadd.f32 %v6755, %v6756
        %v6758 = vsel %vm6603, %v6705, 0.0
        %v6759 = vadd.f32 %v6757, %v6758
        %v6760 = vsel %vm6603, %v6709, 0.0
        %v6761 = vadd.f32 %v6759, %v6760
        %v6762 = vsel %vm6603, %v6713, 0.0
        %v6763 = vadd.f32 %v6761, %v6762
        %v6764 = vsel %vm6603, %v6717, 0.0
        %v6765 = vadd.f32 %v6763, %v6764
        %v6766 = vsel %vm6603, %v6721, 0.0
        %v6767 = vadd.f32 %v6765, %v6766
        %v6768 = vrcp.pop %v6744
        %v6769 = vmul.f32 %v6744, %v6768
        %v6770 = vsub.f32 1.0, %v6769
        %v6771 = vmul.f32 %v6768, %v6770
        %v6772 = vadd.f32 %v6768, %v6771
        %vm6773 = vweird.f32 %v6744
        %vm6774 = vweird.f32 %v6768
        %vm6775 = vmor %vm6773, %vm6774
        %v6776 = vsel %vm6775, %v6768, %v6772
        %v6777 = vand.u32 2147483647, %v6744
        %vm6778 = vcmp.eq.f32.partialorder %v6777, 8.507059e+37
        %v6779 = vand.u32 %v6744, 2147483648
        %v6780 = vor.u32 1.1754944e-38, %v6779
        %v6781 = vsel %vm6778, %v6780, %v6776
        %v6782 = vmul.f32 %v6675, %v6781
        %v6783 = vrcp.pop %v6767
        %v6784 = vmul.f32 %v6767, %v6783
        %v6785 = vsub.f32 1.0, %v6784
        %v6786 = vmul.f32 %v6783, %v6785
        %v6787 = vadd.f32 %v6783, %v6786
        %vm6788 = vweird.f32 %v6767
        %vm6789 = vweird.f32 %v6783
        %vm6790 = vmor %vm6788, %vm6789
        %v6791 = vsel %vm6790, %v6783, %v6787
        %v6792 = vand.u32 2147483647, %v6767
        %vm6793 = vcmp.eq.f32.partialorder %v6792, 8.507059e+37
        %v6794 = vand.u32 %v6767, 2147483648
        %v6795 = vor.u32 1.1754944e-38, %v6794
        %v6796 = vsel %vm6793, %v6795, %v6791
        %v6797 = vmul.f32 %v6677, %v6796
        %v6798 = vmul.f32 %v6679, %v6781
        %v6799 = vmul.f32 %v6681, %v6796
        %v6800 = vmul.f32 %v6683, %v6781
        %v6801 = vmul.f32 %v6685, %v6796
        %v6802 = vmul.f32 %v6687, %v6781
        %v6803 = vmul.f32 %v6689, %v6796
        %v6804 = vmul.f32 %v6691, %v6781
        %v6805 = vmul.f32 %v6693, %v6796
        %v6806 = vmul.f32 %v6695, %v6781
        %v6807 = vmul.f32 %v6697, %v6796
        %v6808 = vmul.f32 %v6699, %v6781
        %v6809 = vmul.f32 %v6701, %v6796
        %v6810 = vmul.f32 %v6703, %v6781
        %v6811 = vmul.f32 %v6705, %v6796
        %v6812 = vmul.f32 %v6707, %v6781
        %v6813 = vmul.f32 %v6709, %v6796
        %v6814 = vmul.f32 %v6711, %v6781
        %v6815 = vmul.f32 %v6713, %v6796
        %v6816 = vmul.f32 %v6715, %v6781
        %v6817 = vmul.f32 %v6717, %v6796
        %v6818 = vmul.f32 %v6719, %v6781
        %v6819 = vmul.f32 %v6721, %v6796
        %v6820 = vld [vmem:[%s3] sm:$0xff]
        %v6821 = vld [vmem:[%s3 + $0x8] sm:$0xff]
        %v6822 = vld [vmem:[%s3 + $0x10] sm:$0xff]
        %v6823 = vld [vmem:[%s3 + $0x18] sm:$0xff]
        %v6824 = vld [vmem:[%s3 + $0x20] sm:$0xff]
        %v6825 = vld [vmem:[%s3 + $0x28] sm:$0xff]
        %v6826 = vld [vmem:[%s3 + $0x30] sm:$0xff]
        %v6827 = vld [vmem:[%s3 + $0x38] sm:$0xff]
        %v6828 = vld [vmem:[%s3 + $0x40] sm:$0xff]
        %v6829 = vld [vmem:[%s3 + $0x48] sm:$0xff]
        %v6830 = vld [vmem:[%s3 + $0x50] sm:$0xff]
        %v6831 = vld [vmem:[%s3 + $0x58] sm:$0xff]
        %v6832 = vld [vmem:[%s3 + $0x60] sm:$0xff]
        %v6833 = vld [vmem:[%s3 + $0x68] sm:$0xff]
        %v6834 = vld [vmem:[%s3 + $0x70] sm:$0xff]
        %v6835 = vld [vmem:[%s3 + $0x78] sm:$0xff]
        %v6836 = vld [vmem:[%s3 + $0x80] sm:$0xff]
        %v6837 = vld [vmem:[%s3 + $0x88] sm:$0xff]
        %v6838 = vld [vmem:[%s3 + $0x90] sm:$0xff]
        %v6839 = vld [vmem:[%s3 + $0x98] sm:$0xff]
        %v6840 = vld [vmem:[%s3 + $0xa0] sm:$0xff]
        %v6841 = vld [vmem:[%s3 + $0xa8] sm:$0xff]
        %v6842 = vld [vmem:[%s3 + $0xb0] sm:$0xff]
        %v6843 = vld [vmem:[%s3 + $0xb8] sm:$0xff]
        %v6844 = vld [vmem:[%s3 + $0xc0] sm:$0xff]
        %v6845 = vld [vmem:[%s3 + $0xc8] sm:$0xff]
        %v6846 = vld [vmem:[%s3 + $0xd0] sm:$0xff]
        %v6847 = vld [vmem:[%s3 + $0xd8] sm:$0xff]
        %v6848 = vld [vmem:[%s3 + $0xe0] sm:$0xff]
        %v6849 = vld [vmem:[%s3 + $0xe8] sm:$0xff]
        %v6850 = vld [vmem:[%s3 + $0xf0] sm:$0xff]
        %v6851 = vld [vmem:[%s3 + $0xf8] sm:$0xff]
        %v6852 = vld [vmem:[%s3 + $0x100] sm:$0xff]
        %v6853 = vld [vmem:[%s3 + $0x108] sm:$0xff]
        %v6854 = vld [vmem:[%s3 + $0x110] sm:$0xff]
        %v6855 = vld [vmem:[%s3 + $0x118] sm:$0xff]
        %v6856 = vld [vmem:[%s3 + $0x120] sm:$0xff]
        %v6857 = vld [vmem:[%s3 + $0x128] sm:$0xff]
        %v6858 = vld [vmem:[%s3 + $0x130] sm:$0xff]
        %v6859 = vld [vmem:[%s3 + $0x138] sm:$0xff]
        %v6860 = vld [vmem:[%s3 + $0x140] sm:$0xff]
        %v6861 = vld [vmem:[%s3 + $0x148] sm:$0xff]
        %v6862 = vld [vmem:[%s3 + $0x150] sm:$0xff]
        %v6863 = vld [vmem:[%s3 + $0x158] sm:$0xff]
        %v6864 = vld [vmem:[%s3 + $0x160] sm:$0xff]
        %v6865 = vld [vmem:[%s3 + $0x168] sm:$0xff]
        %v6866 = vld [vmem:[%s3 + $0x170] sm:$0xff]
        %v6867 = vld [vmem:[%s3 + $0x178] sm:$0xff]
        %vm6868 = vcmask 523264
        %v6870 = vsel %vm6868, %v6821, 0
        %v6873 = vsel %vm6868, %v6823, 0
        %v6876 = vsel %vm6868, %v6825, 0
        %v6879 = vsel %vm6868, %v6827, 0
        %v6882 = vsel %vm6868, %v6829, 0
        %v6885 = vsel %vm6868, %v6831, 0
        %v6888 = vsel %vm6868, %v6833, 0
        %v6891 = vsel %vm6868, %v6835, 0
        %v6894 = vsel %vm6868, %v6837, 0
        %v6897 = vsel %vm6868, %v6839, 0
        %v6900 = vsel %vm6868, %v6841, 0
        %v6903 = vsel %vm6868, %v6843, 0
        %v6906 = vsel %vm6868, %v6845, 0
        %v6909 = vsel %vm6868, %v6847, 0
        %v6912 = vsel %vm6868, %v6849, 0
        %v6915 = vsel %vm6868, %v6851, 0
        %v6918 = vsel %vm6868, %v6853, 0
        %v6921 = vsel %vm6868, %v6855, 0
        %v6924 = vsel %vm6868, %v6857, 0
        %v6927 = vsel %vm6868, %v6859, 0
        %v6930 = vsel %vm6868, %v6861, 0
        %v6933 = vsel %vm6868, %v6863, 0
        %v6936 = vsel %vm6868, %v6865, 0
        %v6939 = vsel %vm6868, %v6867, 0
        %6941 = vmatpush.msra.mxu0 %v6811
        %6942 = vmatpush.msra.mxu0 %v6810
        %6943 = vmatpush.msra.mxu0 %v6809
        %6944 = vmatpush.msra.mxu0 %v6808
        %6945 = vmatpush.msra.mxu0 %v6807
        %6946 = vmatpush.msra.mxu0 %v6806
        %6947 = vmatpush.msra.mxu0 %v6805
        %6948 = vmatpush.msra.mxu0 %v6804
        %6949 = vmatpush.msra.mxu0 %v6803
        %6950 = vmatpush.msra.mxu0 %v6802
        %6951 = vmatpush.msra.mxu0 %v6801
        %6952 = vmatpush.msra.mxu0 %v6800
        %6953 = vmatpush.msra.mxu0 %v6799
        %6954 = vmatpush.msra.mxu0 %v6798
        %6955 = vmatpush.msra.mxu0 %v6797
        %6956 = vmatpush.msra.mxu0 %v6782
        %6957 = vmatmul.f32.gmra.mxu0 %v6820
        %v6958 = vpop.f32.mrf.mxu0
        %v6959 = vadd.f32 0.0, %v6958
        %6960 = vmatmul.f32.gmra.mxu0 %v6822
        %v6961 = vpop.f32.mrf.mxu0
        %v6962 = vadd.f32 0.0, %v6961
        %6963 = vmatmul.f32.gmra.mxu0 %v6824
        %v6964 = vpop.f32.mrf.mxu0
        %v6965 = vadd.f32 0.0, %v6964
        %6966 = vmatmul.f32.gmra.mxu0 %v6826
        %v6967 = vpop.f32.mrf.mxu0
        %v6968 = vadd.f32 0.0, %v6967
        %6969 = vmatmul.f32.gmra.mxu0 %v6828
        %v6970 = vpop.f32.mrf.mxu0
        %v6971 = vadd.f32 0.0, %v6970
        %6972 = vmatmul.f32.gmra.mxu0 %v6830
        %v6973 = vpop.f32.mrf.mxu0
        %v6974 = vadd.f32 0.0, %v6973
        %6975 = vmatmul.f32.gmra.mxu0 %v6832
        %v6976 = vpop.f32.mrf.mxu0
        %v6977 = vadd.f32 0.0, %v6976
        %6978 = vmatmul.f32.gmra.mxu0 %v6834
        %v6979 = vpop.f32.mrf.mxu0
        %v6980 = vadd.f32 0.0, %v6979
        %6981 = vmatmul.f32.gmra.mxu0 %v6836
        %v6982 = vpop.f32.mrf.mxu0
        %v6983 = vadd.f32 0.0, %v6982
        %6984 = vmatmul.f32.gmra.mxu0 %v6838
        %v6985 = vpop.f32.mrf.mxu0
        %v6986 = vadd.f32 0.0, %v6985
        %6987 = vmatmul.f32.gmra.mxu0 %v6840
        %v6988 = vpop.f32.mrf.mxu0
        %v6989 = vadd.f32 0.0, %v6988
        %6990 = vmatmul.f32.gmra.mxu0 %v6842
        %v6991 = vpop.f32.mrf.mxu0
        %v6992 = vadd.f32 0.0, %v6991
        %6993 = vmatmul.f32.gmra.mxu0 %v6844
        %v6994 = vpop.f32.mrf.mxu0
        %v6995 = vadd.f32 0.0, %v6994
        %6996 = vmatmul.f32.gmra.mxu0 %v6846
        %v6997 = vpop.f32.mrf.mxu0
        %v6998 = vadd.f32 0.0, %v6997
        %6999 = vmatmul.f32.gmra.mxu0 %v6848
        %v7000 = vpop.f32.mrf.mxu0
        %v7001 = vadd.f32 0.0, %v7000
        %7002 = vmatmul.f32.gmra.mxu0 %v6850
        %v7003 = vpop.f32.mrf.mxu0
        %v7004 = vadd.f32 0.0, %v7003
        %7005 = vmatmul.f32.gmra.mxu0 %v6852
        %v7006 = vpop.f32.mrf.mxu0
        %v7007 = vadd.f32 0.0, %v7006
        %7008 = vmatmul.f32.gmra.mxu0 %v6854
        %v7009 = vpop.f32.mrf.mxu0
        %v7010 = vadd.f32 0.0, %v7009
        %7011 = vmatmul.f32.gmra.mxu0 %v6856
        %v7012 = vpop.f32.mrf.mxu0
        %v7013 = vadd.f32 0.0, %v7012
        %7014 = vmatmul.f32.gmra.mxu0 %v6858
        %v7015 = vpop.f32.mrf.mxu0
        %v7016 = vadd.f32 0.0, %v7015
        %7017 = vmatmul.f32.gmra.mxu0 %v6860
        %v7018 = vpop.f32.mrf.mxu0
        %v7019 = vadd.f32 0.0, %v7018
        %7020 = vmatmul.f32.gmra.mxu0 %v6862
        %v7021 = vpop.f32.mrf.mxu0
        %v7022 = vadd.f32 0.0, %v7021
        %7023 = vmatmul.f32.gmra.mxu0 %v6864
        %v7024 = vpop.f32.mrf.mxu0
        %v7025 = vadd.f32 0.0, %v7024
        %7026 = vmatmul.f32.gmra.mxu0 %v6866
        %v7027 = vpop.f32.mrf.mxu0
        %v7028 = vadd.f32 0.0, %v7027
        %7029 = vdwg.mxu0
        %7030 = vmatpush.msra.mxu0 0.0
        %7031 = vmatpush.msra.mxu0 0.0
        %7032 = vmatpush.msra.mxu0 0.0
        %7033 = vmatpush.msra.mxu0 0.0
        %7034 = vmatpush.msra.mxu0 0.0
        %7035 = vmatpush.msra.mxu0 0.0
        %7036 = vmatpush.msra.mxu0 0.0
        %7037 = vmatpush.msra.mxu0 0.0
        %7038 = vmatpush.msra.mxu0 %v6819
        %7039 = vmatpush.msra.mxu0 %v6818
        %7040 = vmatpush.msra.mxu0 %v6817
        %7041 = vmatpush.msra.mxu0 %v6816
        %7042 = vmatpush.msra.mxu0 %v6815
        %7043 = vmatpush.msra.mxu0 %v6814
        %7044 = vmatpush.msra.mxu0 %v6813
        %7045 = vmatpush.msra.mxu0 %v6812
        %7046 = vmatmul.f32.gmra.mxu0 %v6870
        %v7047 = vpop.f32.mrf.mxu0
        %v7048 = vadd.f32 %v6959, %v7047
        %7049 = vmatmul.f32.gmra.mxu0 %v6873
        %v7050 = vpop.f32.mrf.mxu0
        %v7051 = vadd.f32 %v6962, %v7050
        %7052 = vmatmul.f32.gmra.mxu0 %v6876
        %v7053 = vpop.f32.mrf.mxu0
        %v7054 = vadd.f32 %v6965, %v7053
        %7055 = vmatmul.f32.gmra.mxu0 %v6879
        %v7056 = vpop.f32.mrf.mxu0
        %v7057 = vadd.f32 %v6968, %v7056
        %7058 = vmatmul.f32.gmra.mxu0 %v6882
        %v7059 = vpop.f32.mrf.mxu0
        %v7060 = vadd.f32 %v6971, %v7059
        %7061 = vmatmul.f32.gmra.mxu0 %v6885
        %v7062 = vpop.f32.mrf.mxu0
        %v7063 = vadd.f32 %v6974, %v7062
        %7064 = vmatmul.f32.gmra.mxu0 %v6888
        %v7065 = vpop.f32.mrf.mxu0
        %v7066 = vadd.f32 %v6977, %v7065
        %7067 = vmatmul.f32.gmra.mxu0 %v6891
        %v7068 = vpop.f32.mrf.mxu0
        %v7069 = vadd.f32 %v6980, %v7068
        %7070 = vmatmul.f32.gmra.mxu0 %v6894
        %v7071 = vpop.f32.mrf.mxu0
        %v7072 = vadd.f32 %v6983, %v7071
        %7073 = vmatmul.f32.gmra.mxu0 %v6897
        %v7074 = vpop.f32.mrf.mxu0
        %v7075 = vadd.f32 %v6986, %v7074
        %7076 = vmatmul.f32.gmra.mxu0 %v6900
        %v7077 = vpop.f32.mrf.mxu0
        %v7078 = vadd.f32 %v6989, %v7077
        %7079 = vmatmul.f32.gmra.mxu0 %v6903
        %v7080 = vpop.f32.mrf.mxu0
        %v7081 = vadd.f32 %v6992, %v7080
        %7082 = vmatmul.f32.gmra.mxu0 %v6906
        %v7083 = vpop.f32.mrf.mxu0
        %v7084 = vadd.f32 %v6995, %v7083
        %7085 = vmatmul.f32.gmra.mxu0 %v6909
        %v7086 = vpop.f32.mrf.mxu0
        %v7087 = vadd.f32 %v6998, %v7086
        %7088 = vmatmul.f32.gmra.mxu0 %v6912
        %v7089 = vpop.f32.mrf.mxu0
        %v7090 = vadd.f32 %v7001, %v7089
        %7091 = vmatmul.f32.gmra.mxu0 %v6915
        %v7092 = vpop.f32.mrf.mxu0
        %v7093 = vadd.f32 %v7004, %v7092
        %7094 = vmatmul.f32.gmra.mxu0 %v6918
        %v7095 = vpop.f32.mrf.mxu0
        %v7096 = vadd.f32 %v7007, %v7095
        %7097 = vmatmul.f32.gmra.mxu0 %v6921
        %v7098 = vpop.f32.mrf.mxu0
        %v7099 = vadd.f32 %v7010, %v7098
        %7100 = vmatmul.f32.gmra.mxu0 %v6924
        %v7101 = vpop.f32.mrf.mxu0
        %v7102 = vadd.f32 %v7013, %v7101
        %7103 = vmatmul.f32.gmra.mxu0 %v6927
        %v7104 = vpop.f32.mrf.mxu0
        %v7105 = vadd.f32 %v7016, %v7104
        %7106 = vmatmul.f32.gmra.mxu0 %v6930
        %v7107 = vpop.f32.mrf.mxu0
        %v7108 = vadd.f32 %v7019, %v7107
        %7109 = vmatmul.f32.gmra.mxu0 %v6933
        %v7110 = vpop.f32.mrf.mxu0
        %v7111 = vadd.f32 %v7022, %v7110
        %7112 = vmatmul.f32.gmra.mxu0 %v6936
        %v7113 = vpop.f32.mrf.mxu0
        %v7114 = vadd.f32 %v7025, %v7113
        %7115 = vmatmul.f32.gmra.mxu0 %v6939
        %v7116 = vpop.f32.mrf.mxu0
        %v7117 = vadd.f32 %v7028, %v7116
        %7118 = vdwg.mxu0
        %7120 = vset.pattern.permute.xlu0 0
        %7121 = vperm.xlu0 %7120, %v7048
        %v7122 = vpop.permute.xlu0 %7121
        %7125 = vset.pattern.permute.xlu0 0
        %7126 = vperm.xlu0 %7125, %v7051
        %v7127 = vpop.permute.xlu0 %7126
        %7130 = vset.pattern.permute.xlu0 0
        %7131 = vperm.xlu0 %7130, %v7054
        %v7132 = vpop.permute.xlu0 %7131
        %7135 = vset.pattern.permute.xlu0 0
        %7136 = vperm.xlu0 %7135, %v7057
        %v7137 = vpop.permute.xlu0 %7136
        %7140 = vset.pattern.permute.xlu0 0
        %7141 = vperm.xlu0 %7140, %v7060
        %v7142 = vpop.permute.xlu0 %7141
        %7145 = vset.pattern.permute.xlu0 0
        %7146 = vperm.xlu0 %7145, %v7063
        %v7147 = vpop.permute.xlu0 %7146
        %7150 = vset.pattern.permute.xlu0 0
        %7151 = vperm.xlu0 %7150, %v7066
        %v7152 = vpop.permute.xlu0 %7151
        %7155 = vset.pattern.permute.xlu0 0
        %7156 = vperm.xlu0 %7155, %v7069
        %v7157 = vpop.permute.xlu0 %7156
        %7160 = vset.pattern.permute.xlu0 0
        %7161 = vperm.xlu0 %7160, %v7072
        %v7162 = vpop.permute.xlu0 %7161
        %7165 = vset.pattern.permute.xlu0 0
        %7166 = vperm.xlu0 %7165, %v7075
        %v7167 = vpop.permute.xlu0 %7166
        %7170 = vset.pattern.permute.xlu0 0
        %7171 = vperm.xlu0 %7170, %v7078
        %v7172 = vpop.permute.xlu0 %7171
        %7175 = vset.pattern.permute.xlu0 0
        %7176 = vperm.xlu0 %7175, %v7081
        %v7177 = vpop.permute.xlu0 %7176
        %7180 = vset.pattern.permute.xlu0 0
        %7181 = vperm.xlu0 %7180, %v7084
        %v7182 = vpop.permute.xlu0 %7181
        %7185 = vset.pattern.permute.xlu0 0
        %7186 = vperm.xlu0 %7185, %v7087
        %v7187 = vpop.permute.xlu0 %7186
        %7190 = vset.pattern.permute.xlu0 0
        %7191 = vperm.xlu0 %7190, %v7090
        %v7192 = vpop.permute.xlu0 %7191
        %7195 = vset.pattern.permute.xlu0 0
        %7196 = vperm.xlu0 %7195, %v7093
        %v7197 = vpop.permute.xlu0 %7196
        %7200 = vset.pattern.permute.xlu0 0
        %7201 = vperm.xlu0 %7200, %v7096
        %v7202 = vpop.permute.xlu0 %7201
        %7205 = vset.pattern.permute.xlu0 0
        %7206 = vperm.xlu0 %7205, %v7099
        %v7207 = vpop.permute.xlu0 %7206
        %7210 = vset.pattern.permute.xlu0 0
        %7211 = vperm.xlu0 %7210, %v7102
        %v7212 = vpop.permute.xlu0 %7211
        %7215 = vset.pattern.permute.xlu0 0
        %7216 = vperm.xlu0 %7215, %v7105
        %v7217 = vpop.permute.xlu0 %7216
        %7220 = vset.pattern.permute.xlu0 0
        %7221 = vperm.xlu0 %7220, %v7108
        %v7222 = vpop.permute.xlu0 %7221
        %7225 = vset.pattern.permute.xlu0 0
        %7226 = vperm.xlu0 %7225, %v7111
        %v7227 = vpop.permute.xlu0 %7226
        %7230 = vset.pattern.permute.xlu0 0
        %7231 = vperm.xlu0 %7230, %v7114
        %v7232 = vpop.permute.xlu0 %7231
        %7235 = vset.pattern.permute.xlu0 0
        %7236 = vperm.xlu0 %7235, %v7117
        %v7237 = vpop.permute.xlu0 %7236
        %v7239 = vmul.f32 %v4802, %v7122
        %v7240 = vmul.f32 %v4803, %v7122
        %v7241 = vmul.f32 %v4804, %v7122
        %v7242 = vmul.f32 %v4805, %v7127
        %v7243 = vmul.f32 %v4806, %v7127
        %v7244 = vmul.f32 %v4807, %v7127
        %v7245 = vmul.f32 %v4808, %v7132
        %v7246 = vmul.f32 %v4809, %v7132
        %v7247 = vmul.f32 %v4810, %v7132
        %v7248 = vmul.f32 %v4811, %v7137
        %v7249 = vmul.f32 %v4812, %v7137
        %v7250 = vmul.f32 %v4813, %v7137
        %v7251 = vmul.f32 %v4814, %v7142
        %v7252 = vmul.f32 %v4815, %v7142
        %v7253 = vmul.f32 %v4816, %v7142
        %v7254 = vmul.f32 %v4817, %v7147
        %v7255 = vmul.f32 %v4818, %v7147
        %v7256 = vmul.f32 %v4819, %v7147
        %v7257 = vmul.f32 %v4820, %v7152
        %v7258 = vmul.f32 %v4821, %v7152
        %v7259 = vmul.f32 %v4822, %v7152
        %v7260 = vmul.f32 %v4823, %v7157
        %v7261 = vmul.f32 %v4824, %v7157
        %v7262 = vmul.f32 %v4825, %v7157
        %v7263 = vmul.f32 %v4826, %v7162
        %v7264 = vmul.f32 %v4827, %v7162
        %v7265 = vmul.f32 %v4828, %v7162
        %v7266 = vmul.f32 %v4829, %v7167
        %v7267 = vmul.f32 %v4830, %v7167
        %v7268 = vmul.f32 %v4831, %v7167
        %v7269 = vmul.f32 %v4832, %v7172
        %v7270 = vmul.f32 %v4833, %v7172
        %v7271 = vmul.f32 %v4834, %v7172
        %v7272 = vmul.f32 %v4835, %v7177
        %v7273 = vmul.f32 %v4836, %v7177
        %v7274 = vmul.f32 %v4837, %v7177
        %v7275 = vmul.f32 %v4838, %v7182
        %v7276 = vmul.f32 %v4839, %v7182
        %v7277 = vmul.f32 %v4840, %v7182
        %v7278 = vmul.f32 %v4841, %v7187
        %v7279 = vmul.f32 %v4842, %v7187
        %v7280 = vmul.f32 %v4843, %v7187
        %v7281 = vmul.f32 %v4844, %v7192
        %v7282 = vmul.f32 %v4845, %v7192
        %v7283 = vmul.f32 %v4846, %v7192
        %v7284 = vmul.f32 %v4847, %v7197
        %v7285 = vmul.f32 %v4848, %v7197
        %v7286 = vmul.f32 %v4849, %v7197
        %v7287 = vmul.f32 %v4850, %v7202
        %v7288 = vmul.f32 %v4851, %v7202
        %v7289 = vmul.f32 %v4852, %v7202
        %v7290 = vmul.f32 %v4853, %v7207
        %v7291 = vmul.f32 %v4854, %v7207
        %v7292 = vmul.f32 %v4855, %v7207
        %v7293 = vmul.f32 %v4856, %v7212
        %v7294 = vmul.f32 %v4857, %v7212
        %v7295 = vmul.f32 %v4858, %v7212
        %v7296 = vmul.f32 %v4859, %v7217
        %v7297 = vmul.f32 %v4860, %v7217
        %v7298 = vmul.f32 %v4861, %v7217
        %v7299 = vmul.f32 %v4862, %v7222
        %v7300 = vmul.f32 %v4863, %v7222
        %v7301 = vmul.f32 %v4864, %v7222
        %v7302 = vmul.f32 %v4865, %v7227
        %v7303 = vmul.f32 %v4866, %v7227
        %v7304 = vmul.f32 %v4867, %v7227
        %v7305 = vmul.f32 %v4868, %v7232
        %v7306 = vmul.f32 %v4869, %v7232
        %v7307 = vmul.f32 %v4870, %v7232
        %v7308 = vmul.f32 %v4871, %v7237
        %v7309 = vmul.f32 %v4872, %v7237
        %v7310 = vmul.f32 %v4873, %v7237
        %v7311 = vadd.f32 %v7239, %v7245
        %v7312 = vadd.f32 %v7311, %v7251
        %v7313 = vadd.f32 %v7312, %v7257
        %v7314 = vadd.f32 %v7313, %v7263
        %v7315 = vadd.f32 %v7314, %v7269
        %v7316 = vadd.f32 %v7315, %v7275
        %v7317 = vadd.f32 %v7316, %v7281
        %v7318 = vadd.f32 %v7317, %v7287
        %v7319 = vadd.f32 %v7318, %v7293
        %v7320 = vadd.f32 %v7319, %v7299
        %v7321 = vadd.f32 %v7320, %v7305
        %v7322 = vadd.f32 %v7240, %v7246
        %v7323 = vadd.f32 %v7322, %v7252
        %v7324 = vadd.f32 %v7323, %v7258
        %v7325 = vadd.f32 %v7324, %v7264
        %v7326 = vadd.f32 %v7325, %v7270
        %v7327 = vadd.f32 %v7326, %v7276
        %v7328 = vadd.f32 %v7327, %v7282
        %v7329 = vadd.f32 %v7328, %v7288
        %v7330 = vadd.f32 %v7329, %v7294
        %v7331 = vadd.f32 %v7330, %v7300
        %v7332 = vadd.f32 %v7331, %v7306
        %v7333 = vadd.f32 %v7241, %v7247
        %v7334 = vadd.f32 %v7333, %v7253
        %v7335 = vadd.f32 %v7334, %v7259
        %v7336 = vadd.f32 %v7335, %v7265
        %v7337 = vadd.f32 %v7336, %v7271
        %v7338 = vadd.f32 %v7337, %v7277
        %v7339 = vadd.f32 %v7338, %v7283
        %v7340 = vadd.f32 %v7339, %v7289
        %v7341 = vadd.f32 %v7340, %v7295
        %v7342 = vadd.f32 %v7341, %v7301
        %v7343 = vadd.f32 %v7342, %v7307
        %v7344 = vadd.f32 %v7242, %v7248
        %v7345 = vadd.f32 %v7344, %v7254
        %v7346 = vadd.f32 %v7345, %v7260
        %v7347 = vadd.f32 %v7346, %v7266
        %v7348 = vadd.f32 %v7347, %v7272
        %v7349 = vadd.f32 %v7348, %v7278
        %v7350 = vadd.f32 %v7349, %v7284
        %v7351 = vadd.f32 %v7350, %v7290
        %v7352 = vadd.f32 %v7351, %v7296
        %v7353 = vadd.f32 %v7352, %v7302
        %v7354 = vadd.f32 %v7353, %v7308
        %v7355 = vadd.f32 %v7243, %v7249
        %v7356 = vadd.f32 %v7355, %v7255
        %v7357 = vadd.f32 %v7356, %v7261
        %v7358 = vadd.f32 %v7357, %v7267
        %v7359 = vadd.f32 %v7358, %v7273
        %v7360 = vadd.f32 %v7359, %v7279
        %v7361 = vadd.f32 %v7360, %v7285
        %v7362 = vadd.f32 %v7361, %v7291
        %v7363 = vadd.f32 %v7362, %v7297
        %v7364 = vadd.f32 %v7363, %v7303
        %v7365 = vadd.f32 %v7364, %v7309
        %v7366 = vadd.f32 %v7244, %v7250
        %v7367 = vadd.f32 %v7366, %v7256
        %v7368 = vadd.f32 %v7367, %v7262
        %v7369 = vadd.f32 %v7368, %v7268
        %v7370 = vadd.f32 %v7369, %v7274
        %v7371 = vadd.f32 %v7370, %v7280
        %v7372 = vadd.f32 %v7371, %v7286
        %v7373 = vadd.f32 %v7372, %v7292
        %v7374 = vadd.f32 %v7373, %v7298
        %v7375 = vadd.f32 %v7374, %v7304
        %v7376 = vadd.f32 %v7375, %v7310
        %v7377 = vld [vmem:[%s10] sm:$0xff]
        %v7378 = vld [vmem:[%s10 + $0x8] sm:$0xff]
        %v7379 = vld [vmem:[%s10 + $0x10] sm:$0xff]
        %v7380 = vld [vmem:[%s10 + $0x18] sm:$0xff]
        %v7381 = vld [vmem:[%s10 + $0x20] sm:$0xff]
        %v7382 = vld [vmem:[%s10 + $0x28] sm:$0xff]
        %v7383 = vld [vmem:[%s10 + $0x30] sm:$0xff]
        %v7384 = vld [vmem:[%s10 + $0x38] sm:$0xff]
        %v7385 = vld [vmem:[%s10 + $0x40] sm:$0xff]
        %v7386 = vld [vmem:[%s10 + $0x48] sm:$0xff]
        %v7387 = vld [vmem:[%s10 + $0x50] sm:$0xff]
        %v7388 = vld [vmem:[%s10 + $0x58] sm:$0xff]
        %v7389 = vld [vmem:[%s10 + $0x60] sm:$0xff]
        %v7390 = vld [vmem:[%s10 + $0x68] sm:$0xff]
        %v7391 = vld [vmem:[%s10 + $0x70] sm:$0xff]
        %v7392 = vld [vmem:[%s10 + $0x78] sm:$0xff]
        %v7393 = vld [vmem:[%s10 + $0x80] sm:$0xff]
        %v7394 = vld [vmem:[%s10 + $0x88] sm:$0xff]
        %v7395 = vld [vmem:[%s10 + $0x90] sm:$0xff]
        %v7396 = vld [vmem:[%s10 + $0x98] sm:$0xff]
        %v7397 = vld [vmem:[%s10 + $0xa0] sm:$0xff]
        %v7398 = vld [vmem:[%s10 + $0xa8] sm:$0xff]
        %v7399 = vld [vmem:[%s10 + $0xb0] sm:$0xff]
        %v7400 = vld [vmem:[%s10 + $0xb8] sm:$0xff]
        %v7401 = vld [vmem:[%s10 + $0xc0] sm:$0xff]
        %v7402 = vld [vmem:[%s10 + $0xc8] sm:$0xff]
        %v7403 = vld [vmem:[%s10 + $0xd0] sm:$0xff]
        %v7404 = vld [vmem:[%s10 + $0xd8] sm:$0xff]
        %v7405 = vld [vmem:[%s10 + $0xe0] sm:$0xff]
        %v7406 = vld [vmem:[%s10 + $0xe8] sm:$0xff]
        %v7407 = vld [vmem:[%s10 + $0xf0] sm:$0xff]
        %v7408 = vld [vmem:[%s10 + $0xf8] sm:$0xff]
        %v7409 = vld [vmem:[%s10 + $0x100] sm:$0xff]
        %v7410 = vld [vmem:[%s10 + $0x108] sm:$0xff]
        %v7411 = vld [vmem:[%s10 + $0x110] sm:$0xff]
        %v7412 = vld [vmem:[%s10 + $0x118] sm:$0xff]
        %v7413 = vld [vmem:[%s10 + $0x120] sm:$0xff]
        %v7414 = vld [vmem:[%s10 + $0x128] sm:$0xff]
        %v7415 = vld [vmem:[%s10 + $0x130] sm:$0xff]
        %v7416 = vld [vmem:[%s10 + $0x138] sm:$0xff]
        %v7417 = vld [vmem:[%s10 + $0x140] sm:$0xff]
        %v7418 = vld [vmem:[%s10 + $0x148] sm:$0xff]
        %v7419 = vld [vmem:[%s10 + $0x150] sm:$0xff]
        %v7420 = vld [vmem:[%s10 + $0x158] sm:$0xff]
        %v7421 = vld [vmem:[%s10 + $0x160] sm:$0xff]
        %v7422 = vld [vmem:[%s10 + $0x168] sm:$0xff]
        %v7423 = vld [vmem:[%s10 + $0x170] sm:$0xff]
        %v7424 = vld [vmem:[%s10 + $0x178] sm:$0xff]
        %v7425 = vld [vmem:[%s10 + $0x180] sm:$0xff]
        %v7426 = vld [vmem:[%s10 + $0x188] sm:$0xff]
        %v7427 = vld [vmem:[%s10 + $0x190] sm:$0xff]
        %v7428 = vld [vmem:[%s10 + $0x198] sm:$0xff]
        %v7429 = vld [vmem:[%s10 + $0x1a0] sm:$0xff]
        %v7430 = vld [vmem:[%s10 + $0x1a8] sm:$0xff]
        %v7431 = vld [vmem:[%s10 + $0x1b0] sm:$0xff]
        %v7432 = vld [vmem:[%s10 + $0x1b8] sm:$0xff]
        %v7433 = vld [vmem:[%s10 + $0x1c0] sm:$0xff]
        %v7434 = vld [vmem:[%s10 + $0x1c8] sm:$0xff]
        %v7435 = vld [vmem:[%s10 + $0x1d0] sm:$0xff]
        %v7436 = vld [vmem:[%s10 + $0x1d8] sm:$0xff]
        %v7437 = vld [vmem:[%s10 + $0x1e0] sm:$0xff]
        %v7438 = vld [vmem:[%s10 + $0x1e8] sm:$0xff]
        %v7439 = vld [vmem:[%s10 + $0x1f0] sm:$0xff]
        %v7440 = vld [vmem:[%s10 + $0x1f8] sm:$0xff]
        %v7441 = vld [vmem:[%s10 + $0x200] sm:$0xff]
        %v7442 = vld [vmem:[%s10 + $0x208] sm:$0xff]
        %v7443 = vld [vmem:[%s10 + $0x210] sm:$0xff]
        %v7444 = vld [vmem:[%s10 + $0x218] sm:$0xff]
        %v7445 = vld [vmem:[%s10 + $0x220] sm:$0xff]
        %v7446 = vld [vmem:[%s10 + $0x228] sm:$0xff]
        %v7447 = vld [vmem:[%s10 + $0x230] sm:$0xff]
        %v7448 = vld [vmem:[%s10 + $0x238] sm:$0xff]
        %v7449 = vld [vmem:[%s10 + $0x240] sm:$0xff]
        %v7450 = vld [vmem:[%s10 + $0x248] sm:$0xff]
        %v7451 = vld [vmem:[%s10 + $0x250] sm:$0xff]
        %v7452 = vld [vmem:[%s10 + $0x258] sm:$0xff]
        %v7453 = vld [vmem:[%s10 + $0x260] sm:$0xff]
        %v7454 = vld [vmem:[%s10 + $0x268] sm:$0xff]
        %v7455 = vld [vmem:[%s10 + $0x270] sm:$0xff]
        %v7456 = vld [vmem:[%s10 + $0x278] sm:$0xff]
        %v7457 = vld [vmem:[%s10 + $0x280] sm:$0xff]
        %v7458 = vld [vmem:[%s10 + $0x288] sm:$0xff]
        %v7459 = vld [vmem:[%s10 + $0x290] sm:$0xff]
        %v7460 = vld [vmem:[%s10 + $0x298] sm:$0xff]
        %v7461 = vld [vmem:[%s10 + $0x2a0] sm:$0xff]
        %v7462 = vld [vmem:[%s10 + $0x2a8] sm:$0xff]
        %v7463 = vld [vmem:[%s10 + $0x2b0] sm:$0xff]
        %v7464 = vld [vmem:[%s10 + $0x2b8] sm:$0xff]
        %v7465 = vld [vmem:[%s10 + $0x2c0] sm:$0xff]
        %v7466 = vld [vmem:[%s10 + $0x2c8] sm:$0xff]
        %v7467 = vld [vmem:[%s10 + $0x2d0] sm:$0xff]
        %v7468 = vld [vmem:[%s10 + $0x2d8] sm:$0xff]
        %v7469 = vld [vmem:[%s10 + $0x2e0] sm:$0xff]
        %v7470 = vld [vmem:[%s10 + $0x2e8] sm:$0xff]
        %v7471 = vld [vmem:[%s10 + $0x2f0] sm:$0xff]
        %v7472 = vld [vmem:[%s10 + $0x2f8] sm:$0xff]
        %v7473 = vld [vmem:[%s11] sm:$0xff]
        %v7474 = vld [vmem:[%s11 + $0x8] sm:$0xff]
        %v7475 = vld [vmem:[%s11 + $0x10] sm:$0xff]
        %v7476 = vld [vmem:[%s11 + $0x18] sm:$0xff]
        %v7477 = vld [vmem:[%s11 + $0x20] sm:$0xff]
        %v7478 = vld [vmem:[%s11 + $0x28] sm:$0xff]
        %v7479 = vld [vmem:[%s11 + $0x30] sm:$0xff]
        %v7480 = vld [vmem:[%s11 + $0x38] sm:$0xff]
        %v7481 = vld [vmem:[%s11 + $0x40] sm:$0xff]
        %v7482 = vld [vmem:[%s11 + $0x48] sm:$0xff]
        %v7483 = vld [vmem:[%s11 + $0x50] sm:$0xff]
        %v7484 = vld [vmem:[%s11 + $0x58] sm:$0xff]
        %v7485 = vld [vmem:[%s11 + $0x60] sm:$0xff]
        %v7486 = vld [vmem:[%s11 + $0x68] sm:$0xff]
        %v7487 = vld [vmem:[%s11 + $0x70] sm:$0xff]
        %v7488 = vld [vmem:[%s11 + $0x78] sm:$0xff]
        %v7489 = vld [vmem:[%s11 + $0x80] sm:$0xff]
        %v7490 = vld [vmem:[%s11 + $0x88] sm:$0xff]
        %v7491 = vld [vmem:[%s11 + $0x90] sm:$0xff]
        %v7492 = vld [vmem:[%s11 + $0x98] sm:$0xff]
        %v7493 = vld [vmem:[%s11 + $0xa0] sm:$0xff]
        %v7494 = vld [vmem:[%s11 + $0xa8] sm:$0xff]
        %v7495 = vld [vmem:[%s11 + $0xb0] sm:$0xff]
        %v7496 = vld [vmem:[%s11 + $0xb8] sm:$0xff]
        %v7497 = vld [vmem:[%s11 + $0xc0] sm:$0xff]
        %v7498 = vld [vmem:[%s11 + $0xc8] sm:$0xff]
        %v7499 = vld [vmem:[%s11 + $0xd0] sm:$0xff]
        %v7500 = vld [vmem:[%s11 + $0xd8] sm:$0xff]
        %v7501 = vld [vmem:[%s11 + $0xe0] sm:$0xff]
        %v7502 = vld [vmem:[%s11 + $0xe8] sm:$0xff]
        %v7503 = vld [vmem:[%s11 + $0xf0] sm:$0xff]
        %v7504 = vld [vmem:[%s11 + $0xf8] sm:$0xff]
        %v7505 = vld [vmem:[%s11 + $0x100] sm:$0xff]
        %v7506 = vld [vmem:[%s11 + $0x108] sm:$0xff]
        %v7507 = vld [vmem:[%s11 + $0x110] sm:$0xff]
        %v7508 = vld [vmem:[%s11 + $0x118] sm:$0xff]
        %v7509 = vld [vmem:[%s11 + $0x120] sm:$0xff]
        %v7510 = vld [vmem:[%s11 + $0x128] sm:$0xff]
        %v7511 = vld [vmem:[%s11 + $0x130] sm:$0xff]
        %v7512 = vld [vmem:[%s11 + $0x138] sm:$0xff]
        %v7513 = vld [vmem:[%s11 + $0x140] sm:$0xff]
        %v7514 = vld [vmem:[%s11 + $0x148] sm:$0xff]
        %v7515 = vld [vmem:[%s11 + $0x150] sm:$0xff]
        %v7516 = vld [vmem:[%s11 + $0x158] sm:$0xff]
        %v7517 = vld [vmem:[%s11 + $0x160] sm:$0xff]
        %v7518 = vld [vmem:[%s11 + $0x168] sm:$0xff]
        %v7519 = vld [vmem:[%s11 + $0x170] sm:$0xff]
        %v7520 = vld [vmem:[%s11 + $0x178] sm:$0xff]
        %v7521 = vld [vmem:[%s11 + $0x180] sm:$0xff]
        %v7522 = vld [vmem:[%s11 + $0x188] sm:$0xff]
        %v7523 = vld [vmem:[%s11 + $0x190] sm:$0xff]
        %v7524 = vld [vmem:[%s11 + $0x198] sm:$0xff]
        %v7525 = vld [vmem:[%s11 + $0x1a0] sm:$0xff]
        %v7526 = vld [vmem:[%s11 + $0x1a8] sm:$0xff]
        %v7527 = vld [vmem:[%s11 + $0x1b0] sm:$0xff]
        %v7528 = vld [vmem:[%s11 + $0x1b8] sm:$0xff]
        %v7529 = vld [vmem:[%s11 + $0x1c0] sm:$0xff]
        %v7530 = vld [vmem:[%s11 + $0x1c8] sm:$0xff]
        %v7531 = vld [vmem:[%s11 + $0x1d0] sm:$0xff]
        %v7532 = vld [vmem:[%s11 + $0x1d8] sm:$0xff]
        %v7533 = vld [vmem:[%s11 + $0x1e0] sm:$0xff]
        %v7534 = vld [vmem:[%s11 + $0x1e8] sm:$0xff]
        %v7535 = vld [vmem:[%s11 + $0x1f0] sm:$0xff]
        %v7536 = vld [vmem:[%s11 + $0x1f8] sm:$0xff]
        %v7537 = vld [vmem:[%s11 + $0x200] sm:$0xff]
        %v7538 = vld [vmem:[%s11 + $0x208] sm:$0xff]
        %v7539 = vld [vmem:[%s11 + $0x210] sm:$0xff]
        %v7540 = vld [vmem:[%s11 + $0x218] sm:$0xff]
        %v7541 = vld [vmem:[%s11 + $0x220] sm:$0xff]
        %v7542 = vld [vmem:[%s11 + $0x228] sm:$0xff]
        %v7543 = vld [vmem:[%s11 + $0x230] sm:$0xff]
        %v7544 = vld [vmem:[%s11 + $0x238] sm:$0xff]
        %v7545 = vld [vmem:[%s11 + $0x240] sm:$0xff]
        %v7546 = vld [vmem:[%s11 + $0x248] sm:$0xff]
        %v7547 = vld [vmem:[%s11 + $0x250] sm:$0xff]
        %v7548 = vld [vmem:[%s11 + $0x258] sm:$0xff]
        %v7549 = vld [vmem:[%s11 + $0x260] sm:$0xff]
        %v7550 = vld [vmem:[%s11 + $0x268] sm:$0xff]
        %v7551 = vld [vmem:[%s11 + $0x270] sm:$0xff]
        %v7552 = vld [vmem:[%s11 + $0x278] sm:$0xff]
        %v7553 = vld [vmem:[%s11 + $0x280] sm:$0xff]
        %v7554 = vld [vmem:[%s11 + $0x288] sm:$0xff]
        %v7555 = vld [vmem:[%s11 + $0x290] sm:$0xff]
        %v7556 = vld [vmem:[%s11 + $0x298] sm:$0xff]
        %v7557 = vld [vmem:[%s11 + $0x2a0] sm:$0xff]
        %v7558 = vld [vmem:[%s11 + $0x2a8] sm:$0xff]
        %v7559 = vld [vmem:[%s11 + $0x2b0] sm:$0xff]
        %v7560 = vld [vmem:[%s11 + $0x2b8] sm:$0xff]
        %v7561 = vld [vmem:[%s11 + $0x2c0] sm:$0xff]
        %v7562 = vld [vmem:[%s11 + $0x2c8] sm:$0xff]
        %v7563 = vld [vmem:[%s11 + $0x2d0] sm:$0xff]
        %v7564 = vld [vmem:[%s11 + $0x2d8] sm:$0xff]
        %v7565 = vld [vmem:[%s11 + $0x2e0] sm:$0xff]
        %v7566 = vld [vmem:[%s11 + $0x2e8] sm:$0xff]
        %v7567 = vld [vmem:[%s11 + $0x2f0] sm:$0xff]
        %v7568 = vld [vmem:[%s11 + $0x2f8] sm:$0xff]
        %7569 = vmatpush.msra.mxu0 %v7503
        %7570 = vmatpush.msra.mxu0 %v7501
        %7571 = vmatpush.msra.mxu0 %v7499
        %7572 = vmatpush.msra.mxu0 %v7497
        %7573 = vmatpush.msra.mxu0 %v7495
        %7574 = vmatpush.msra.mxu0 %v7493
        %7575 = vmatpush.msra.mxu0 %v7491
        %7576 = vmatpush.msra.mxu0 %v7489
        %7577 = vmatpush.msra.mxu0 %v7487
        %7578 = vmatpush.msra.mxu0 %v7485
        %7579 = vmatpush.msra.mxu0 %v7483
        %7580 = vmatpush.msra.mxu0 %v7481
        %7581 = vmatpush.msra.mxu0 %v7479
        %7582 = vmatpush.msra.mxu0 %v7477
        %7583 = vmatpush.msra.mxu0 %v7475
        %7584 = vmatpush.msra.mxu0 %v7473
        %7585 = vmatmul.f32.gmra.mxu0 %v5373
        %v7586 = vpop.f32.mrf.mxu0
        %v7587 = vadd.f32 0.0, %v7586
        %7588 = vmatmul.f32.gmra.mxu0 %v5376
        %v7589 = vpop.f32.mrf.mxu0
        %v7590 = vadd.f32 0.0, %v7589
        %7591 = vdwg.mxu0
        %7592 = vmatpush.msra.mxu0 %v7535
        %7593 = vmatpush.msra.mxu0 %v7533
        %7594 = vmatpush.msra.mxu0 %v7531
        %7595 = vmatpush.msra.mxu0 %v7529
        %7596 = vmatpush.msra.mxu0 %v7527
        %7597 = vmatpush.msra.mxu0 %v7525
        %7598 = vmatpush.msra.mxu0 %v7523
        %7599 = vmatpush.msra.mxu0 %v7521
        %7600 = vmatpush.msra.mxu0 %v7519
        %7601 = vmatpush.msra.mxu0 %v7517
        %7602 = vmatpush.msra.mxu0 %v7515
        %7603 = vmatpush.msra.mxu0 %v7513
        %7604 = vmatpush.msra.mxu0 %v7511
        %7605 = vmatpush.msra.mxu0 %v7509
        %7606 = vmatpush.msra.mxu0 %v7507
        %7607 = vmatpush.msra.mxu0 %v7505
        %7608 = vmatmul.f32.gmra.mxu0 %v5374
        %v7609 = vpop.f32.mrf.mxu0
        %v7610 = vadd.f32 %v7587, %v7609
        %7611 = vmatmul.f32.gmra.mxu0 %v5377
        %v7612 = vpop.f32.mrf.mxu0
        %v7613 = vadd.f32 %v7590, %v7612
        %7614 = vdwg.mxu0
        %7615 = vmatpush.msra.mxu0 %v7567
        %7616 = vmatpush.msra.mxu0 %v7565
        %7617 = vmatpush.msra.mxu0 %v7563
        %7618 = vmatpush.msra.mxu0 %v7561
        %7619 = vmatpush.msra.mxu0 %v7559
        %7620 = vmatpush.msra.mxu0 %v7557
        %7621 = vmatpush.msra.mxu0 %v7555
        %7622 = vmatpush.msra.mxu0 %v7553
        %7623 = vmatpush.msra.mxu0 %v7551
        %7624 = vmatpush.msra.mxu0 %v7549
        %7625 = vmatpush.msra.mxu0 %v7547
        %7626 = vmatpush.msra.mxu0 %v7545
        %7627 = vmatpush.msra.mxu0 %v7543
        %7628 = vmatpush.msra.mxu0 %v7541
        %7629 = vmatpush.msra.mxu0 %v7539
        %7630 = vmatpush.msra.mxu0 %v7537
        %7631 = vmatmul.f32.gmra.mxu0 %v5375
        %v7632 = vpop.f32.mrf.mxu0
        %v7633 = vadd.f32 %v7610, %v7632
        %7634 = vmatmul.f32.gmra.mxu0 %v5378
        %v7635 = vpop.f32.mrf.mxu0
        %v7636 = vadd.f32 %v7613, %v7635
        %7637 = vdwg.mxu0
        %7638 = vmatpush.msra.mxu0 %v7504
        %7639 = vmatpush.msra.mxu0 %v7502
        %7640 = vmatpush.msra.mxu0 %v7500
        %7641 = vmatpush.msra.mxu0 %v7498
        %7642 = vmatpush.msra.mxu0 %v7496
        %7643 = vmatpush.msra.mxu0 %v7494
        %7644 = vmatpush.msra.mxu0 %v7492
        %7645 = vmatpush.msra.mxu0 %v7490
        %7646 = vmatpush.msra.mxu0 %v7488
        %7647 = vmatpush.msra.mxu0 %v7486
        %7648 = vmatpush.msra.mxu0 %v7484
        %7649 = vmatpush.msra.mxu0 %v7482
        %7650 = vmatpush.msra.mxu0 %v7480
        %7651 = vmatpush.msra.mxu0 %v7478
        %7652 = vmatpush.msra.mxu0 %v7476
        %7653 = vmatpush.msra.mxu0 %v7474
        %7654 = vmatmul.f32.gmra.mxu0 %v5373
        %v7655 = vpop.f32.mrf.mxu0
        %v7656 = vadd.f32 0.0, %v7655
        %7657 = vmatmul.f32.gmra.mxu0 %v5376
        %v7658 = vpop.f32.mrf.mxu0
        %v7659 = vadd.f32 0.0, %v7658
        %7660 = vdwg.mxu0
        %7661 = vmatpush.msra.mxu0 %v7536
        %7662 = vmatpush.msra.mxu0 %v7534
        %7663 = vmatpush.msra.mxu0 %v7532
        %7664 = vmatpush.msra.mxu0 %v7530
        %7665 = vmatpush.msra.mxu0 %v7528
        %7666 = vmatpush.msra.mxu0 %v7526
        %7667 = vmatpush.msra.mxu0 %v7524
        %7668 = vmatpush.msra.mxu0 %v7522
        %7669 = vmatpush.msra.mxu0 %v7520
        %7670 = vmatpush.msra.mxu0 %v7518
        %7671 = vmatpush.msra.mxu0 %v7516
        %7672 = vmatpush.msra.mxu0 %v7514
        %7673 = vmatpush.msra.mxu0 %v7512
        %7674 = vmatpush.msra.mxu0 %v7510
        %7675 = vmatpush.msra.mxu0 %v7508
        %7676 = vmatpush.msra.mxu0 %v7506
        %7677 = vmatmul.f32.gmra.mxu0 %v5374
        %v7678 = vpop.f32.mrf.mxu0
        %v7679 = vadd.f32 %v7656, %v7678
        %7680 = vmatmul.f32.gmra.mxu0 %v5377
        %v7681 = vpop.f32.mrf.mxu0
        %v7682 = vadd.f32 %v7659, %v7681
        %7683 = vdwg.mxu0
        %7684 = vmatpush.msra.mxu0 %v7568
        %7685 = vmatpush.msra.mxu0 %v7566
        %7686 = vmatpush.msra.mxu0 %v7564
        %7687 = vmatpush.msra.mxu0 %v7562
        %7688 = vmatpush.msra.mxu0 %v7560
        %7689 = vmatpush.msra.mxu0 %v7558
        %7690 = vmatpush.msra.mxu0 %v7556
        %7691 = vmatpush.msra.mxu0 %v7554
        %7692 = vmatpush.msra.mxu0 %v7552
        %7693 = vmatpush.msra.mxu0 %v7550
        %7694 = vmatpush.msra.mxu0 %v7548
        %7695 = vmatpush.msra.mxu0 %v7546
        %7696 = vmatpush.msra.mxu0 %v7544
        %7697 = vmatpush.msra.mxu0 %v7542
        %7698 = vmatpush.msra.mxu0 %v7540
        %7699 = vmatpush.msra.mxu0 %v7538
        %7700 = vmatmul.f32.gmra.mxu0 %v5375
        %v7701 = vpop.f32.mrf.mxu0
        %v7702 = vadd.f32 %v7679, %v7701
        %7703 = vmatmul.f32.gmra.mxu0 %v5378
        %v7704 = vpop.f32.mrf.mxu0
        %v7705 = vadd.f32 %v7682, %v7704
        %7706 = vdwg.mxu0
        %7707 = vmatpush.msra.mxu0 %v7407
        %7708 = vmatpush.msra.mxu0 %v7405
        %7709 = vmatpush.msra.mxu0 %v7403
        %7710 = vmatpush.msra.mxu0 %v7401
        %7711 = vmatpush.msra.mxu0 %v7399
        %7712 = vmatpush.msra.mxu0 %v7397
        %7713 = vmatpush.msra.mxu0 %v7395
        %7714 = vmatpush.msra.mxu0 %v7393
        %7715 = vmatpush.msra.mxu0 %v7391
        %7716 = vmatpush.msra.mxu0 %v7389
        %7717 = vmatpush.msra.mxu0 %v7387
        %7718 = vmatpush.msra.mxu0 %v7385
        %7719 = vmatpush.msra.mxu0 %v7383
        %7720 = vmatpush.msra.mxu0 %v7381
        %7721 = vmatpush.msra.mxu0 %v7379
        %7722 = vmatpush.msra.mxu0 %v7377
        %7723 = vmatmul.f32.gmra.mxu0 %v7321
        %v7724 = vpop.f32.mrf.mxu0
        %v7725 = vadd.f32 %v7633, %v7724
        %7726 = vmatmul.f32.gmra.mxu0 %v7354
        %v7727 = vpop.f32.mrf.mxu0
        %v7728 = vadd.f32 %v7636, %v7727
        %7729 = vdwg.mxu0
        %7730 = vmatpush.msra.mxu0 %v7439
        %7731 = vmatpush.msra.mxu0 %v7437
        %7732 = vmatpush.msra.mxu0 %v7435
        %7733 = vmatpush.msra.mxu0 %v7433
        %7734 = vmatpush.msra.mxu0 %v7431
        %7735 = vmatpush.msra.mxu0 %v7429
        %7736 = vmatpush.msra.mxu0 %v7427
        %7737 = vmatpush.msra.mxu0 %v7425
        %7738 = vmatpush.msra.mxu0 %v7423
        %7739 = vmatpush.msra.mxu0 %v7421
        %7740 = vmatpush.msra.mxu0 %v7419
        %7741 = vmatpush.msra.mxu0 %v7417
        %7742 = vmatpush.msra.mxu0 %v7415
        %7743 = vmatpush.msra.mxu0 %v7413
        %7744 = vmatpush.msra.mxu0 %v7411
        %7745 = vmatpush.msra.mxu0 %v7409
        %7746 = vmatmul.f32.gmra.mxu0 %v7332
        %v7747 = vpop.f32.mrf.mxu0
        %v7748 = vadd.f32 %v7725, %v7747
        %7749 = vmatmul.f32.gmra.mxu0 %v7365
        %v7750 = vpop.f32.mrf.mxu0
        %v7751 = vadd.f32 %v7728, %v7750
        %7752 = vdwg.mxu0
        %7753 = vmatpush.msra.mxu0 %v7471
        %7754 = vmatpush.msra.mxu0 %v7469
        %7755 = vmatpush.msra.mxu0 %v7467
        %7756 = vmatpush.msra.mxu0 %v7465
        %7757 = vmatpush.msra.mxu0 %v7463
        %7758 = vmatpush.msra.mxu0 %v7461
        %7759 = vmatpush.msra.mxu0 %v7459
        %7760 = vmatpush.msra.mxu0 %v7457
        %7761 = vmatpush.msra.mxu0 %v7455
        %7762 = vmatpush.msra.mxu0 %v7453
        %7763 = vmatpush.msra.mxu0 %v7451
        %7764 = vmatpush.msra.mxu0 %v7449
        %7765 = vmatpush.msra.mxu0 %v7447
        %7766 = vmatpush.msra.mxu0 %v7445
        %7767 = vmatpush.msra.mxu0 %v7443
        %7768 = vmatpush.msra.mxu0 %v7441
        %7769 = vmatmul.f32.gmra.mxu0 %v7343
        %v7770 = vpop.f32.mrf.mxu0
        %v7771 = vadd.f32 %v7748, %v7770
        %7772 = vmatmul.f32.gmra.mxu0 %v7376
        %v7773 = vpop.f32.mrf.mxu0
        %v7774 = vadd.f32 %v7751, %v7773
        %7775 = vdwg.mxu0
        %7776 = vmatpush.msra.mxu0 %v7408
        %7777 = vmatpush.msra.mxu0 %v7406
        %7778 = vmatpush.msra.mxu0 %v7404
        %7779 = vmatpush.msra.mxu0 %v7402
        %7780 = vmatpush.msra.mxu0 %v7400
        %7781 = vmatpush.msra.mxu0 %v7398
        %7782 = vmatpush.msra.mxu0 %v7396
        %7783 = vmatpush.msra.mxu0 %v7394
        %7784 = vmatpush.msra.mxu0 %v7392
        %7785 = vmatpush.msra.mxu0 %v7390
        %7786 = vmatpush.msra.mxu0 %v7388
        %7787 = vmatpush.msra.mxu0 %v7386
        %7788 = vmatpush.msra.mxu0 %v7384
        %7789 = vmatpush.msra.mxu0 %v7382
        %7790 = vmatpush.msra.mxu0 %v7380
        %7791 = vmatpush.msra.mxu0 %v7378
        %7792 = vmatmul.f32.gmra.mxu0 %v7321
        %v7793 = vpop.f32.mrf.mxu0
        %v7794 = vadd.f32 %v7702, %v7793
        %7795 = vmatmul.f32.gmra.mxu0 %v7354
        %v7796 = vpop.f32.mrf.mxu0
        %v7797 = vadd.f32 %v7705, %v7796
        %7798 = vdwg.mxu0
        %7799 = vmatpush.msra.mxu0 %v7440
        %7800 = vmatpush.msra.mxu0 %v7438
        %7801 = vmatpush.msra.mxu0 %v7436
        %7802 = vmatpush.msra.mxu0 %v7434
        %7803 = vmatpush.msra.mxu0 %v7432
        %7804 = vmatpush.msra.mxu0 %v7430
        %7805 = vmatpush.msra.mxu0 %v7428
        %7806 = vmatpush.msra.mxu0 %v7426
        %7807 = vmatpush.msra.mxu0 %v7424
        %7808 = vmatpush.msra.mxu0 %v7422
        %7809 = vmatpush.msra.mxu0 %v7420
        %7810 = vmatpush.msra.mxu0 %v7418
        %7811 = vmatpush.msra.mxu0 %v7416
        %7812 = vmatpush.msra.mxu0 %v7414
        %7813 = vmatpush.msra.mxu0 %v7412
        %7814 = vmatpush.msra.mxu0 %v7410
        %7815 = vmatmul.f32.gmra.mxu0 %v7332
        %v7816 = vpop.f32.mrf.mxu0
        %v7817 = vadd.f32 %v7794, %v7816
        %7818 = vmatmul.f32.gmra.mxu0 %v7365
        %v7819 = vpop.f32.mrf.mxu0
        %v7820 = vadd.f32 %v7797, %v7819
        %7821 = vdwg.mxu0
        %7822 = vmatpush.msra.mxu0 %v7472
        %7823 = vmatpush.msra.mxu0 %v7470
        %7824 = vmatpush.msra.mxu0 %v7468
        %7825 = vmatpush.msra.mxu0 %v7466
        %7826 = vmatpush.msra.mxu0 %v7464
        %7827 = vmatpush.msra.mxu0 %v7462
        %7828 = vmatpush.msra.mxu0 %v7460
        %7829 = vmatpush.msra.mxu0 %v7458
        %7830 = vmatpush.msra.mxu0 %v7456
        %7831 = vmatpush.msra.mxu0 %v7454
        %7832 = vmatpush.msra.mxu0 %v7452
        %7833 = vmatpush.msra.mxu0 %v7450
        %7834 = vmatpush.msra.mxu0 %v7448
        %7835 = vmatpush.msra.mxu0 %v7446
        %7836 = vmatpush.msra.mxu0 %v7444
        %7837 = vmatpush.msra.mxu0 %v7442
        %7838 = vmatmul.f32.gmra.mxu0 %v7343
        %v7839 = vpop.f32.mrf.mxu0
        %v7840 = vadd.f32 %v7817, %v7839
        %7841 = vmatmul.f32.gmra.mxu0 %v7376
        %v7842 = vpop.f32.mrf.mxu0
        %v7843 = vadd.f32 %v7820, %v7842
        %7844 = vdwg.mxu0
        %v7845 = vld [vmem:[%s12] sm:$0x3]
        %v7847 = vperm.slane %v7845, 0
        %v7848 = vperm.slane %v7845, 1
        %v7851 = vadd.f32 %v7771, %v7847
        %v7852 = vadd.f32 %v7840, %v7848
        %v7853 = vadd.f32 %v7774, %v7847
        %v7854 = vadd.f32 %v7843, %v7848
        %v7855 = vld [vmem:[%s13] sm:$0xff]
        %v7856 = vld [vmem:[%s13 + $0x8] sm:$0xff]
        %v7857 = vld [vmem:[%s13 + $0x10] sm:$0xff]
        %v7858 = vld [vmem:[%s13 + $0x18] sm:$0xff]
        %v7859 = vld [vmem:[%s13 + $0x20] sm:$0xff]
        %v7860 = vld [vmem:[%s13 + $0x28] sm:$0xff]
        %v7861 = vld [vmem:[%s13 + $0x30] sm:$0xff]
        %v7862 = vld [vmem:[%s13 + $0x38] sm:$0xff]
        %v7863 = vld [vmem:[%s13 + $0x40] sm:$0xff]
        %v7864 = vld [vmem:[%s13 + $0x48] sm:$0xff]
        %v7865 = vld [vmem:[%s13 + $0x50] sm:$0xff]
        %v7866 = vld [vmem:[%s13 + $0x58] sm:$0xff]
        %v7867 = vld [vmem:[%s13 + $0x60] sm:$0xff]
        %v7868 = vld [vmem:[%s13 + $0x68] sm:$0xff]
        %v7869 = vld [vmem:[%s13 + $0x70] sm:$0xff]
        %v7870 = vld [vmem:[%s13 + $0x78] sm:$0xff]
        %v7871 = vld [vmem:[%s13 + $0x80] sm:$0xff]
        %v7872 = vld [vmem:[%s13 + $0x88] sm:$0xff]
        %v7873 = vld [vmem:[%s13 + $0x90] sm:$0xff]
        %v7874 = vld [vmem:[%s13 + $0x98] sm:$0xff]
        %v7875 = vld [vmem:[%s13 + $0xa0] sm:$0xff]
        %v7876 = vld [vmem:[%s13 + $0xa8] sm:$0xff]
        %v7877 = vld [vmem:[%s13 + $0xb0] sm:$0xff]
        %v7878 = vld [vmem:[%s13 + $0xb8] sm:$0xff]
        %v7879 = vld [vmem:[%s13 + $0xc0] sm:$0xff]
        %v7880 = vld [vmem:[%s13 + $0xc8] sm:$0xff]
        %v7881 = vld [vmem:[%s13 + $0xd0] sm:$0xff]
        %v7882 = vld [vmem:[%s13 + $0xd8] sm:$0xff]
        %v7883 = vld [vmem:[%s13 + $0xe0] sm:$0xff]
        %v7884 = vld [vmem:[%s13 + $0xe8] sm:$0xff]
        %v7885 = vld [vmem:[%s13 + $0xf0] sm:$0xff]
        %v7886 = vld [vmem:[%s13 + $0xf8] sm:$0xff]
        %v7887 = vld [vmem:[#allocation2] sm:$0x1]
        %v7889 = vperm.slane %v7887, 0
        %7891 = vmatpush.msra.mxu0 %v7870
        %7892 = vmatpush.msra.mxu0 %v7869
        %7893 = vmatpush.msra.mxu0 %v7868
        %7894 = vmatpush.msra.mxu0 %v7867
        %7895 = vmatpush.msra.mxu0 %v7866
        %7896 = vmatpush.msra.mxu0 %v7865
        %7897 = vmatpush.msra.mxu0 %v7864
        %7898 = vmatpush.msra.mxu0 %v7863
        %7899 = vmatpush.msra.mxu0 %v7862
        %7900 = vmatpush.msra.mxu0 %v7861
        %7901 = vmatpush.msra.mxu0 %v7860
        %7902 = vmatpush.msra.mxu0 %v7859
        %7903 = vmatpush.msra.mxu0 %v7858
        %7904 = vmatpush.msra.mxu0 %v7857
        %7905 = vmatpush.msra.mxu0 %v7856
        %7906 = vmatpush.msra.mxu0 %v7855
        %7907 = vmatmul.f32.gmra.mxu0 %v7851
        %v7908 = vpop.f32.mrf.mxu0
        %v7909 = vadd.f32 %v7889, %v7908
        %7910 = vmatmul.f32.gmra.mxu0 %v7853
        %v7911 = vpop.f32.mrf.mxu0
        %v7912 = vadd.f32 %v7889, %v7911
        %7913 = vdwg.mxu0
        %7914 = vmatpush.msra.mxu0 %v7886
        %7915 = vmatpush.msra.mxu0 %v7885
        %7916 = vmatpush.msra.mxu0 %v7884
        %7917 = vmatpush.msra.mxu0 %v7883
        %7918 = vmatpush.msra.mxu0 %v7882
        %7919 = vmatpush.msra.mxu0 %v7881
        %7920 = vmatpush.msra.mxu0 %v7880
        %7921 = vmatpush.msra.mxu0 %v7879
        %7922 = vmatpush.msra.mxu0 %v7878
        %7923 = vmatpush.msra.mxu0 %v7877
        %7924 = vmatpush.msra.mxu0 %v7876
        %7925 = vmatpush.msra.mxu0 %v7875
        %7926 = vmatpush.msra.mxu0 %v7874
        %7927 = vmatpush.msra.mxu0 %v7873
        %7928 = vmatpush.msra.mxu0 %v7872
        %7929 = vmatpush.msra.mxu0 %v7871
        %7930 = vmatmul.f32.gmra.mxu0 %v7852
        %v7931 = vpop.f32.mrf.mxu0
        %v7932 = vadd.f32 %v7909, %v7931
        %7933 = vmatmul.f32.gmra.mxu0 %v7854
        %v7934 = vpop.f32.mrf.mxu0
        %v7935 = vadd.f32 %v7912, %v7934
        %7936 = vdwg.mxu0
        %7937 = vst.msk [vmem:[%s796] sm:$0xff] %vm6603, %v7932
        %7938 = vst.msk [vmem:[%s796 + $0x8] sm:$0xff] %vm6603, %v7935
        %s7939 = smul.u32 2, %s28
        %p7940 = scmp.lt.s32.totalorder %s7939, 3
        %s7941 = scalar_select %p7940, %s7939, 3
        %s7942 = smul.addr %s7941, 8
        %s7943 = scalar_lea.vmem %s15, %s7942
        // Predicated region
        $region157: #{gclstm_forward.1} parent=147 // pred_check
          %p7944 = pneg %p376
        $region158: #{gclstm_forward.1} parent=147 // pred_check_branch
          %7946 = sbr.rel (%p7944) target = $region160
        $region159: #{gclstm_forward.1} parent=147 // pred_region
          %s7947 = smul.u32 2, %s28
        $region160: #{gclstm_forward.1} parent=147 // pred_fallthru
          _
      $region148: #{gclstm_forward.1} parent=5 // pred_fallthru
        _
      %p7948 = scmp.le.s32.totalorder 2, %s23
      // Predicated region
      $region161: #{gclstm_forward.1} parent=5 // pred_check
        %p7949 = pneg %p7948
      $region162: #{gclstm_forward.1} parent=5 // pred_check_branch
        %7951 = sbr.rel (%p7949) target = $region164
      $region163: #{gclstm_forward.1} parent=5 // pred_region
        %s7952 = ssub.s32 %s23, 2
        // Predicated region
        $region165: #{gclstm_forward.1} parent=163 // pred_check
          %p7953 = pneg %p382
        $region166: #{gclstm_forward.1} parent=163 // pred_check_branch
          %7955 = sbr.rel (%p7953) target = $region168
        $region167: #{gclstm_forward.1} parent=163 // pred_region
          %s7956 = smul.u32 2, %s29
          %p7957 = scmp.lt.s32.totalorder %s7956, 3
          %s7958 = scalar_select %p7957, %s7956, 3
          %s7959 = smul.addr %s7958, 8
          %s7960 = scalar_lea.vmem %s15, %s7959
        $region168: #{gclstm_forward.1} parent=163 // pred_fallthru
          _
      $region164: #{gclstm_forward.1} parent=5 // pred_fallthru
        _
    $region6: #{gclstm_forward.1} parent=1 // loop_footer
      %s27 = sadd.s32 1, %s23
    $region7: #{gclstm_forward.1} parent=1 // loop_footer_branch
      %22 = sbr.rel target = $region3
    $region8: #{gclstm_forward.1} parent=1 // loop_exit
      _

</llo_original>
